<compile_context>
chip_gen: v7x
topology: tpu7x:2x2x1
jax: 0.10.0
libtpu: 0.0.40
codegen_flags: <defaults>
</compile_context>

<pallas_src>
import jax
import jax.numpy as jnp
from jax import lax
from jax.experimental import pallas as pl
from jax.experimental.pallas import tpu as pltpu

# ----------------------------- model config -----------------------------
EMBED_SIZE = 64
HIDDEN_SIZE = 128
NUM_LAYERS = 2          # kernel hard-codes the 2-layer stack
OUTPUT_SIZE = 1
VOCAB_SIZE = 1000

B_BLOCK = 32            # batch rows per grid step (multiple of 8; MXU M dim)
O_PAD = 128             # lane-dense fc output width (sliced back to OUTPUT_SIZE)


# ----------------------------- pallas kernel -----------------------------
def sentiment_lstm_kernel(
    xp_ref,       # (T, Bb, 4H)  hoisted layer-0 proj x @ W_ih0^T + b0 (compute dtype)
    w_hh0_ref,    # (H, 4H)      layer-0 W_hh^T                        (compute dtype)
    w_ih1_ref,    # (H, 4H)      layer-1 W_ih^T                        (compute dtype)
    w_hh1_ref,    # (H, 4H)      layer-1 W_hh^T                        (compute dtype)
    b1_ref,       # (1, 4H)  f32 layer-1 b_ih + b_hh
    w_fc_ref,     # (H, O_PAD)   fc weight^T, zero-padded              (compute dtype)
    b_fc_ref,     # (1, O_PAD) f32  fc bias, zero-padded
    out_ref,      # (Bb, O_PAD) f32 sigmoid(fc(h1_final)); cols >= OUTPUT_SIZE unused
):
    T, Bb, G = xp_ref.shape
    H = w_hh0_ref.shape[0]
    cdt = w_hh0_ref.dtype      # MXU operand dtype (f32 or bf16); accumulation is f32

    w_hh0 = w_hh0_ref[...]
    w_ih1 = w_ih1_ref[...]
    w_hh1 = w_hh1_ref[...]
    # Hoist the bias broadcast out of the time loop (JAX does not CSE broadcast_in_dim).
    b1 = jnp.broadcast_to(b1_ref[...], (Bb, G)).astype(jnp.float32)

    def gate_math(gates, c):
        # gates: (Bb, 4H) f32, PyTorch gate order i, f, g, o.
        # Gate math stays f32 (safe on v5e: no bf16 VPU/EUP); c stays f32;
        # h is returned in the MXU operand dtype so the recurrent matmuls
        # need no per-step casts.
        i = jax.nn.sigmoid(gates[:, 0 * H:1 * H])
        f = jax.nn.sigmoid(gates[:, 1 * H:2 * H])
        g = jnp.tanh(gates[:, 2 * H:3 * H])
        o = jax.nn.sigmoid(gates[:, 3 * H:4 * H])
        c_new = f * c + i * g
        h_new = (o * jnp.tanh(c_new)).astype(cdt)
        return h_new, c_new

    def step(t, carry):
        h0, c0, h1, c1 = carry
        # Both recurrent matmuls depend only on t-1 state -> off each other's
        # critical path; the LLO scheduler can issue them back-to-back on the MXU.
        r0 = jnp.dot(h0, w_hh0, preferred_element_type=jnp.float32)
        r1 = jnp.dot(h1, w_hh1, preferred_element_type=jnp.float32)
        # Layer 0: input projection + bias already hoisted.
        g0 = xp_ref[t].astype(jnp.float32) + r0
        h0, c0 = gate_math(g0, c0)
        # Layer 1: only the h0_t-dependent half remains on the serial chain.
        g1 = jnp.dot(h0, w_ih1, preferred_element_type=jnp.float32) + r1 + b1
        h1, c1 = gate_math(g1, c1)
        return h0, c0, h1, c1

    init = (jnp.zeros((Bb, H), cdt), jnp.zeros((Bb, H), jnp.float32),
            jnp.zeros((Bb, H), cdt), jnp.zeros((Bb, H), jnp.float32))
    # T is short and static: fully unroll so adjacent steps interleave on MXU/EUP/VPU.
    _, _, h1_final, _ = lax.fori_loop(0, T, step, init, unroll=True)

    # Lane-dense epilogue (O_PAD = 128 lanes; extra columns are zero-weight junk).
    logits = jnp.dot(h1_final, w_fc_ref[...],
                     preferred_element_type=jnp.float32) + b_fc_ref[...]
    out_ref[...] = jax.nn.sigmoid(logits)


# ----------------------------- weight prep (once per model) -----------------------------
def prepare_weights(params, compute_dtype=jnp.bfloat16):
    """Pre-cast / pre-pad kernel operands once (not per forward call)."""
    H, O = HIDDEN_SIZE, OUTPUT_SIZE
    w_fc_pad = jnp.zeros((H, O_PAD), jnp.float32).at[:, :O].set(params["w_fc_t"])
    b_fc_pad = jnp.zeros((1, O_PAD), jnp.float32).at[:, :O].set(params["b_fc"])
    return {
        "compute_dtype": compute_dtype,
        "w_hh0": params["w_hh0_t"].astype(compute_dtype),
        "w_ih1": params["w_ih1_t"].astype(compute_dtype),
        "w_hh1": params["w_hh1_t"].astype(compute_dtype),
        "b1": params["b1"].astype(jnp.float32),
        "w_fc": w_fc_pad.astype(compute_dtype),
        "b_fc": b_fc_pad,
    }


# ----------------------------- wrapper -----------------------------
def sentiment_lstm_forward(tokens, params, prepared=None, compute_dtype=jnp.bfloat16):
    """tokens: (B, T) int32. Returns (B, OUTPUT_SIZE) float32."""
    if prepared is None:
        prepared = prepare_weights(params, compute_dtype)
    compute_dtype = prepared["compute_dtype"]

    B, T = tokens.shape
    H, E = HIDDEN_SIZE, EMBED_SIZE

    # ---- glue in plain XLA: embedding gather + hoisted layer-0 projection ----
    x_emb = jnp.take(params["embedding"], tokens, axis=0).astype(jnp.float32)  # (B,T,E)

    B_pad = pl.cdiv(B, B_BLOCK) * B_BLOCK
    if B_pad != B:
        x_emb = jnp.pad(x_emb, ((0, B_pad - B), (0, 0), (0, 0)))

    x_emb = jnp.transpose(x_emb, (1, 0, 2))                       # (T, B_pad, E)
    # One large, well-shaped (T*B_pad, E) x (E, 4H) matmul; bias b0 folded in.
    # Computed in f32 for accuracy, then cast to the MXU operand dtype so the
    # dominant HBM->VMEM stream into the kernel is half-width when bf16.
    x_proj = (x_emb.reshape(T * B_pad, E) @ params["w_ih0_t"]
              + params["b0"]).reshape(T, B_pad, 4 * H).astype(compute_dtype)

    grid = (B_pad // B_BLOCK,)
    out = pl.pallas_call(
        sentiment_lstm_kernel,
        out_shape=jax.ShapeDtypeStruct((B_pad, O_PAD), jnp.float32),
        grid=grid,
        in_specs=[
            pl.BlockSpec((T, B_BLOCK, 4 * H), lambda b: (0, b, 0)),
            pl.BlockSpec((H, 4 * H), lambda b: (0, 0)),
            pl.BlockSpec((H, 4 * H), lambda b: (0, 0)),
            pl.BlockSpec((H, 4 * H), lambda b: (0, 0)),
            pl.BlockSpec((1, 4 * H), lambda b: (0, 0)),
            pl.BlockSpec((H, O_PAD), lambda b: (0, 0)),
            pl.BlockSpec((1, O_PAD), lambda b: (0, 0)),
        ],
        out_specs=pl.BlockSpec((B_BLOCK, O_PAD), lambda b: (b, 0)),
        compiler_params=pltpu.CompilerParams(
            dimension_semantics=("parallel",),   # batch blocks shard across TCs (v7x)
        ),
    )(x_proj, prepared["w_hh0"], prepared["w_ih1"], prepared["w_hh1"],
      prepared["b1"], prepared["w_fc"], prepared["b_fc"])

    return out[:B, :OUTPUT_SIZE]


# ----------------------------- parameter init -----------------------------
def init_params(key):
    E, H, O, V = EMBED_SIZE, HIDDEN_SIZE, OUTPUT_SIZE, VOCAB_SIZE
    ks = jax.random.split(key, 12)
    scale = 1.0 / jnp.sqrt(H)

    def uni(k, shape):
        return jax.random.uniform(k, shape, jnp.float32, -scale, scale)

    embedding = jax.random.normal(ks[0], (V + 1, E), jnp.float32) * 0.1
    embedding = embedding.at[0].set(0.0)    # padding_idx=0

    params = {
        "embedding": embedding,
        # layer 0: input size E
        "w_ih0_t": uni(ks[1], (E, 4 * H)),
        "w_hh0_t": uni(ks[2], (H, 4 * H)),
        "b0": uni(ks[3], (1, 4 * H)) + uni(ks[4], (1, 4 * H)),  # b_ih + b_hh
        # layer 1: input size H
        "w_ih1_t": uni(ks[5], (H, 4 * H)),
        "w_hh1_t": uni(ks[6], (H, 4 * H)),
        "b1": uni(ks[7], (1, 4 * H)) + uni(ks[8], (1, 4 * H)),
        # fc
        "w_fc_t": uni(ks[9], (H, O)),
        "b_fc": uni(ks[10], (1, O)),
    }
    return params


# ----------------------------- reference (plain JAX) -----------------------------
def reference_forward(tokens, params):
    H = HIDDEN_SIZE
    x = jnp.take(params["embedding"], tokens, axis=0)   # (B, T, E)
    B, T, _ = x.shape

    def cell(x_t, h, c, w_ih_t, w_hh_t, b):
        gates = x_t @ w_ih_t + h @ w_hh_t + b
        i = jax.nn.sigmoid(gates[:, 0 * H:1 * H])
        f = jax.nn.sigmoid(gates[:, 1 * H:2 * H])
        g = jnp.tanh(gates[:, 2 * H:3 * H])
        o = jax.nn.sigmoid(gates[:, 3 * H:4 * H])
        c = f * c + i * g
        return o * jnp.tanh(c), c

    def step(carry, x_t):
        h0, c0, h1, c1 = carry
        h0, c0 = cell(x_t, h0, c0, params["w_ih0_t"], params["w_hh0_t"], params["b0"])
        h1, c1 = cell(h0, h1, c1, params["w_ih1_t"], params["w_hh1_t"], params["b1"])
        return (h0, c0, h1, c1), None

    init = tuple(jnp.zeros((B, H), jnp.float32) for _ in range(4))
    (h0, c0, h1, c1), _ = lax.scan(step, init, jnp.transpose(x, (1, 0, 2)))
    return jax.nn.sigmoid(h1 @ params["w_fc_t"] + params["b_fc"])


# ----------------------------- main -----------------------------
if __name__ == "__main__":
    key = jax.random.PRNGKey(0)
    k_param, k_tok = jax.random.split(key)

    B, T = 2, 8
    params = init_params(k_param)
    tokens = jax.random.randint(k_tok, (B, T), 0, VOCAB_SIZE + 1, dtype=jnp.int32)

    ref = jax.block_until_ready(reference_forward(tokens, params))

    # f32 MXU operands: tight check against the plain-JAX reference.
    prep_f32 = prepare_weights(params, jnp.float32)
    out_f32 = jax.block_until_ready(
        sentiment_lstm_forward(tokens, params, prepared=prep_f32))
    assert out_f32.shape == (B, OUTPUT_SIZE)
    assert jnp.allclose(out_f32, ref, atol=3e-3, rtol=3e-3), (out_f32, ref)

    # bf16 MXU operands + bf16 x_proj stream (f32 accumulation / gate math):
    # relaxed tolerance. This is the default production path.
    prep_bf16 = prepare_weights(params, jnp.bfloat16)
    out_bf16 = jax.block_until_ready(
        sentiment_lstm_forward(tokens, params, prepared=prep_bf16))
    assert out_bf16.shape == (B, OUTPUT_SIZE)
    assert jnp.allclose(out_bf16, ref, atol=5e-2, rtol=5e-2), (out_bf16, ref)

    print("KERNEL_OK")
</pallas_src>

<mosaic_0001>
module attributes {stable_mosaic.version = 11 : i64} {
  func.func @sentiment_lstm_kernel(%arg0: i32, %arg1: memref<8x32x512xf32, #tpu.memory_space<vmem>>, %arg2: memref<128x512xf32, #tpu.memory_space<vmem>>, %arg3: memref<128x512xf32, #tpu.memory_space<vmem>>, %arg4: memref<128x512xf32, #tpu.memory_space<vmem>>, %arg5: memref<1x512xf32, #tpu.memory_space<vmem>>, %arg6: memref<128x128xf32, #tpu.memory_space<vmem>>, %arg7: memref<1x128xf32, #tpu.memory_space<vmem>>, %arg8: memref<32x128xf32, #tpu.memory_space<vmem>>) attributes {dimension_semantics = [#tpu.dimension_semantics<parallel>], iteration_bounds = array<i64: 1>, scalar_prefetch = 0 : i64, scratch_operands = 0 : i64, tpu.core_type = #tpu.core_type<tc>, window_params = [{transform_indices = @transform_0, window_bounds = array<i64: 8, 32, 512>}, {pipeline_mode = #tpu.pipeline_mode<synchronous>, transform_indices = @transform_1, window_bounds = array<i64: 128, 512>}, {pipeline_mode = #tpu.pipeline_mode<synchronous>, transform_indices = @transform_2, window_bounds = array<i64: 128, 512>}, {pipeline_mode = #tpu.pipeline_mode<synchronous>, transform_indices = @transform_3, window_bounds = array<i64: 128, 512>}, {pipeline_mode = #tpu.pipeline_mode<synchronous>, transform_indices = @transform_4, window_bounds = array<i64: 1, 512>}, {pipeline_mode = #tpu.pipeline_mode<synchronous>, transform_indices = @transform_5, window_bounds = array<i64: 128, 128>}, {pipeline_mode = #tpu.pipeline_mode<synchronous>, transform_indices = @transform_6, window_bounds = array<i64: 1, 128>}, {transform_indices = @transform_7, window_bounds = array<i64: 32, 128>}]} {
    %c0 = arith.constant 0 : index
    %c0_0 = arith.constant 0 : index
    %0 = vector.load %arg2[%c0, %c0_0] : memref<128x512xf32, #tpu.memory_space<vmem>>, vector<128x512xf32>
    %c0_1 = arith.constant 0 : index
    %c0_2 = arith.constant 0 : index
    %1 = vector.load %arg3[%c0_1, %c0_2] : memref<128x512xf32, #tpu.memory_space<vmem>>, vector<128x512xf32>
    %c0_3 = arith.constant 0 : index
    %c0_4 = arith.constant 0 : index
    %2 = vector.load %arg4[%c0_3, %c0_4] : memref<128x512xf32, #tpu.memory_space<vmem>>, vector<128x512xf32>
    %c0_5 = arith.constant 0 : index
    %c0_6 = arith.constant 0 : index
    %3 = vector.load %arg5[%c0_5, %c0_6] : memref<1x512xf32, #tpu.memory_space<vmem>>, vector<1x512xf32>
    %4 = vector.shape_cast %3 : vector<1x512xf32> to vector<1x512xf32>
    %5 = vector.broadcast %4 : vector<1x512xf32> to vector<32x512xf32>
    %cst = arith.constant 0.000000e+00 : f32
    %6 = vector.broadcast %cst : f32 to vector<32x128xf32>
    %cst_7 = arith.constant 0.000000e+00 : f32
    %7 = vector.broadcast %cst_7 : f32 to vector<32x128xf32>
    %cst_8 = arith.constant 0.000000e+00 : f32
    %8 = vector.broadcast %cst_8 : f32 to vector<32x128xf32>
    %cst_9 = arith.constant 0.000000e+00 : f32
    %9 = vector.broadcast %cst_9 : f32 to vector<32x128xf32>
    %c0_i32 = arith.constant 0 : i32
    %cst_10 = arith.constant dense<0.000000e+00> : vector<32x512xf32>
    %10 = tpu.matmul %6, %0, %cst_10 {dimension_numbers = #tpu.dot_dimension_numbers<[1], [0], [0], [1], [0, 0, 1, 1], [], []>} : vector<32x128xf32>, vector<128x512xf32>, vector<32x512xf32> -> vector<32x512xf32>
    %cst_11 = arith.constant dense<0.000000e+00> : vector<32x512xf32>
    %11 = tpu.matmul %8, %2, %cst_11 {dimension_numbers = #tpu.dot_dimension_numbers<[1], [0], [0], [1], [0, 0, 1, 1], [], []>} : vector<32x128xf32>, vector<128x512xf32>, vector<32x512xf32> -> vector<32x512xf32>
    %12 = arith.index_cast %c0_i32 : i32 to index
    %c0_12 = arith.constant 0 : index
    %c0_13 = arith.constant 0 : index
    %13 = vector.load %arg1[%12, %c0_12, %c0_13] : memref<8x32x512xf32, #tpu.memory_space<vmem>>, vector<1x32x512xf32>
    %14 = vector.shape_cast %13 : vector<1x32x512xf32> to vector<32x512xf32>
    %15 = arith.addf %14, %10 : vector<32x512xf32>
    %16 = vector.extract_strided_slice %15 {offsets = [0, 0], sizes = [32, 128], strides = [1, 1]} : vector<32x512xf32> to vector<32x128xf32>
    %17 = arith.negf %16 : vector<32x128xf32>
    %18 = math.exp %17 : vector<32x128xf32>
    %cst_14 = arith.constant 1.000000e+00 : f32
    %19 = vector.broadcast %cst_14 : f32 to vector<32x128xf32>
    %20 = arith.addf %19, %18 : vector<32x128xf32>
    %21 = arith.divf %19, %20 : vector<32x128xf32>
    %22 = vector.extract_strided_slice %15 {offsets = [0, 128], sizes = [32, 128], strides = [1, 1]} : vector<32x512xf32> to vector<32x128xf32>
    %23 = arith.negf %22 : vector<32x128xf32>
    %24 = math.exp %23 : vector<32x128xf32>
    %cst_15 = arith.constant 1.000000e+00 : f32
    %25 = vector.broadcast %cst_15 : f32 to vector<32x128xf32>
    %26 = arith.addf %25, %24 : vector<32x128xf32>
    %27 = arith.divf %25, %26 : vector<32x128xf32>
    %28 = vector.extract_strided_slice %15 {offsets = [0, 256], sizes = [32, 128], strides = [1, 1]} : vector<32x512xf32> to vector<32x128xf32>
    %29 = math.tanh %28 : vector<32x128xf32>
    %30 = vector.extract_strided_slice %15 {offsets = [0, 384], sizes = [32, 128], strides = [1, 1]} : vector<32x512xf32> to vector<32x128xf32>
    %31 = arith.negf %30 : vector<32x128xf32>
    %32 = math.exp %31 : vector<32x128xf32>
    %cst_16 = arith.constant 1.000000e+00 : f32
    %33 = vector.broadcast %cst_16 : f32 to vector<32x128xf32>
    %34 = arith.addf %33, %32 : vector<32x128xf32>
    %35 = arith.divf %33, %34 : vector<32x128xf32>
    %36 = arith.mulf %27, %7 : vector<32x128xf32>
    %37 = arith.mulf %21, %29 : vector<32x128xf32>
    %38 = arith.addf %36, %37 : vector<32x128xf32>
    %39 = math.tanh %38 : vector<32x128xf32>
    %40 = arith.mulf %35, %39 : vector<32x128xf32>
    %cst_17 = arith.constant dense<0.000000e+00> : vector<32x512xf32>
    %41 = tpu.matmul %40, %1, %cst_17 {dimension_numbers = #tpu.dot_dimension_numbers<[1], [0], [0], [1], [0, 0, 1, 1], [], []>} : vector<32x128xf32>, vector<128x512xf32>, vector<32x512xf32> -> vector<32x512xf32>
    %42 = arith.addf %41, %11 : vector<32x512xf32>
    %43 = arith.addf %42, %5 : vector<32x512xf32>
    %44 = vector.extract_strided_slice %43 {offsets = [0, 0], sizes = [32, 128], strides = [1, 1]} : vector<32x512xf32> to vector<32x128xf32>
    %45 = arith.negf %44 : vector<32x128xf32>
    %46 = math.exp %45 : vector<32x128xf32>
    %cst_18 = arith.constant 1.000000e+00 : f32
    %47 = vector.broadcast %cst_18 : f32 to vector<32x128xf32>
    %48 = arith.addf %47, %46 : vector<32x128xf32>
    %49 = arith.divf %47, %48 : vector<32x128xf32>
    %50 = vector.extract_strided_slice %43 {offsets = [0, 128], sizes = [32, 128], strides = [1, 1]} : vector<32x512xf32> to vector<32x128xf32>
    %51 = arith.negf %50 : vector<32x128xf32>
    %52 = math.exp %51 : vector<32x128xf32>
    %cst_19 = arith.constant 1.000000e+00 : f32
    %53 = vector.broadcast %cst_19 : f32 to vector<32x128xf32>
    %54 = arith.addf %53, %52 : vector<32x128xf32>
    %55 = arith.divf %53, %54 : vector<32x128xf32>
    %56 = vector.extract_strided_slice %43 {offsets = [0, 256], sizes = [32, 128], strides = [1, 1]} : vector<32x512xf32> to vector<32x128xf32>
    %57 = math.tanh %56 : vector<32x128xf32>
    %58 = vector.extract_strided_slice %43 {offsets = [0, 384], sizes = [32, 128], strides = [1, 1]} : vector<32x512xf32> to vector<32x128xf32>
    %59 = arith.negf %58 : vector<32x128xf32>
    %60 = math.exp %59 : vector<32x128xf32>
    %cst_20 = arith.constant 1.000000e+00 : f32
    %61 = vector.broadcast %cst_20 : f32 to vector<32x128xf32>
    %62 = arith.addf %61, %60 : vector<32x128xf32>
    %63 = arith.divf %61, %62 : vector<32x128xf32>
    %64 = arith.mulf %55, %9 : vector<32x128xf32>
    %65 = arith.mulf %49, %57 : vector<32x128xf32>
    %66 = arith.addf %64, %65 : vector<32x128xf32>
    %67 = math.tanh %66 : vector<32x128xf32>
    %68 = arith.mulf %63, %67 : vector<32x128xf32>
    %c1_i32 = arith.constant 1 : i32
    %cst_21 = arith.constant dense<0.000000e+00> : vector<32x512xf32>
    %69 = tpu.matmul %40, %0, %cst_21 {dimension_numbers = #tpu.dot_dimension_numbers<[1], [0], [0], [1], [0, 0, 1, 1], [], []>} : vector<32x128xf32>, vector<128x512xf32>, vector<32x512xf32> -> vector<32x512xf32>
    %cst_22 = arith.constant dense<0.000000e+00> : vector<32x512xf32>
    %70 = tpu.matmul %68, %2, %cst_22 {dimension_numbers = #tpu.dot_dimension_numbers<[1], [0], [0], [1], [0, 0, 1, 1], [], []>} : vector<32x128xf32>, vector<128x512xf32>, vector<32x512xf32> -> vector<32x512xf32>
    %71 = arith.index_cast %c1_i32 : i32 to index
    %c0_23 = arith.constant 0 : index
    %c0_24 = arith.constant 0 : index
    %72 = vector.load %arg1[%71, %c0_23, %c0_24] : memref<8x32x512xf32, #tpu.memory_space<vmem>>, vector<1x32x512xf32>
    %73 = vector.shape_cast %72 : vector<1x32x512xf32> to vector<32x512xf32>
    %74 = arith.addf %73, %69 : vector<32x512xf32>
    %75 = vector.extract_strided_slice %74 {offsets = [0, 0], sizes = [32, 128], strides = [1, 1]} : vector<32x512xf32> to vector<32x128xf32>
    %76 = arith.negf %75 : vector<32x128xf32>
    %77 = math.exp %76 : vector<32x128xf32>
    %cst_25 = arith.constant 1.000000e+00 : f32
    %78 = vector.broadcast %cst_25 : f32 to vector<32x128xf32>
    %79 = arith.addf %78, %77 : vector<32x128xf32>
    %80 = arith.divf %78, %79 : vector<32x128xf32>
    %81 = vector.extract_strided_slice %74 {offsets = [0, 128], sizes = [32, 128], strides = [1, 1]} : vector<32x512xf32> to vector<32x128xf32>
    %82 = arith.negf %81 : vector<32x128xf32>
    %83 = math.exp %82 : vector<32x128xf32>
    %cst_26 = arith.constant 1.000000e+00 : f32
    %84 = vector.broadcast %cst_26 : f32 to vector<32x128xf32>
    %85 = arith.addf %84, %83 : vector<32x128xf32>
    %86 = arith.divf %84, %85 : vector<32x128xf32>
    %87 = vector.extract_strided_slice %74 {offsets = [0, 256], sizes = [32, 128], strides = [1, 1]} : vector<32x512xf32> to vector<32x128xf32>
    %88 = math.tanh %87 : vector<32x128xf32>
    %89 = vector.extract_strided_slice %74 {offsets = [0, 384], sizes = [32, 128], strides = [1, 1]} : vector<32x512xf32> to vector<32x128xf32>
    %90 = arith.negf %89 : vector<32x128xf32>
    %91 = math.exp %90 : vector<32x128xf32>
    %cst_27 = arith.constant 1.000000e+00 : f32
    %92 = vector.broadcast %cst_27 : f32 to vector<32x128xf32>
    %93 = arith.addf %92, %91 : vector<32x128xf32>
    %94 = arith.divf %92, %93 : vector<32x128xf32>
    %95 = arith.mulf %86, %38 : vector<32x128xf32>
    %96 = arith.mulf %80, %88 : vector<32x128xf32>
    %97 = arith.addf %95, %96 : vector<32x128xf32>
    %98 = math.tanh %97 : vector<32x128xf32>
    %99 = arith.mulf %94, %98 : vector<32x128xf32>
    %cst_28 = arith.constant dense<0.000000e+00> : vector<32x512xf32>
    %100 = tpu.matmul %99, %1, %cst_28 {dimension_numbers = #tpu.dot_dimension_numbers<[1], [0], [0], [1], [0, 0, 1, 1], [], []>} : vector<32x128xf32>, vector<128x512xf32>, vector<32x512xf32> -> vector<32x512xf32>
    %101 = arith.addf %100, %70 : vector<32x512xf32>
    %102 = arith.addf %101, %5 : vector<32x512xf32>
    %103 = vector.extract_strided_slice %102 {offsets = [0, 0], sizes = [32, 128], strides = [1, 1]} : vector<32x512xf32> to vector<32x128xf32>
    %104 = arith.negf %103 : vector<32x128xf32>
    %105 = math.exp %104 : vector<32x128xf32>
    %cst_29 = arith.constant 1.000000e+00 : f32
    %106 = vector.broadcast %cst_29 : f32 to vector<32x128xf32>
    %107 = arith.addf %106, %105 : vector<32x128xf32>
    %108 = arith.divf %106, %107 : vector<32x128xf32>
    %109 = vector.extract_strided_slice %102 {offsets = [0, 128], sizes = [32, 128], strides = [1, 1]} : vector<32x512xf32> to vector<32x128xf32>
    %110 = arith.negf %109 : vector<32x128xf32>
    %111 = math.exp %110 : vector<32x128xf32>
    %cst_30 = arith.constant 1.000000e+00 : f32
    %112 = vector.broadcast %cst_30 : f32 to vector<32x128xf32>
    %113 = arith.addf %112, %111 : vector<32x128xf32>
    %114 = arith.divf %112, %113 : vector<32x128xf32>
    %115 = vector.extract_strided_slice %102 {offsets = [0, 256], sizes = [32, 128], strides = [1, 1]} : vector<32x512xf32> to vector<32x128xf32>
    %116 = math.tanh %115 : vector<32x128xf32>
    %117 = vector.extract_strided_slice %102 {offsets = [0, 384], sizes = [32, 128], strides = [1, 1]} : vector<32x512xf32> to vector<32x128xf32>
    %118 = arith.negf %117 : vector<32x128xf32>
    %119 = math.exp %118 : vector<32x128xf32>
    %cst_31 = arith.constant 1.000000e+00 : f32
    %120 = vector.broadcast %cst_31 : f32 to vector<32x128xf32>
    %121 = arith.addf %120, %119 : vector<32x128xf32>
    %122 = arith.divf %120, %121 : vector<32x128xf32>
    %123 = arith.mulf %114, %66 : vector<32x128xf32>
    %124 = arith.mulf %108, %116 : vector<32x128xf32>
    %125 = arith.addf %123, %124 : vector<32x128xf32>
    %126 = math.tanh %125 : vector<32x128xf32>
    %127 = arith.mulf %122, %126 : vector<32x128xf32>
    %c2_i32 = arith.constant 2 : i32
    %cst_32 = arith.constant dense<0.000000e+00> : vector<32x512xf32>
    %128 = tpu.matmul %99, %0, %cst_32 {dimension_numbers = #tpu.dot_dimension_numbers<[1], [0], [0], [1], [0, 0, 1, 1], [], []>} : vector<32x128xf32>, vector<128x512xf32>, vector<32x512xf32> -> vector<32x512xf32>
    %cst_33 = arith.constant dense<0.000000e+00> : vector<32x512xf32>
    %129 = tpu.matmul %127, %2, %cst_33 {dimension_numbers = #tpu.dot_dimension_numbers<[1], [0], [0], [1], [0, 0, 1, 1], [], []>} : vector<32x128xf32>, vector<128x512xf32>, vector<32x512xf32> -> vector<32x512xf32>
    %130 = arith.index_cast %c2_i32 : i32 to index
    %c0_34 = arith.constant 0 : index
    %c0_35 = arith.constant 0 : index
    %131 = vector.load %arg1[%130, %c0_34, %c0_35] : memref<8x32x512xf32, #tpu.memory_space<vmem>>, vector<1x32x512xf32>
    %132 = vector.shape_cast %131 : vector<1x32x512xf32> to vector<32x512xf32>
    %133 = arith.addf %132, %128 : vector<32x512xf32>
    %134 = vector.extract_strided_slice %133 {offsets = [0, 0], sizes = [32, 128], strides = [1, 1]} : vector<32x512xf32> to vector<32x128xf32>
    %135 = arith.negf %134 : vector<32x128xf32>
    %136 = math.exp %135 : vector<32x128xf32>
    %cst_36 = arith.constant 1.000000e+00 : f32
    %137 = vector.broadcast %cst_36 : f32 to vector<32x128xf32>
    %138 = arith.addf %137, %136 : vector<32x128xf32>
    %139 = arith.divf %137, %138 : vector<32x128xf32>
    %140 = vector.extract_strided_slice %133 {offsets = [0, 128], sizes = [32, 128], strides = [1, 1]} : vector<32x512xf32> to vector<32x128xf32>
    %141 = arith.negf %140 : vector<32x128xf32>
    %142 = math.exp %141 : vector<32x128xf32>
    %cst_37 = arith.constant 1.000000e+00 : f32
    %143 = vector.broadcast %cst_37 : f32 to vector<32x128xf32>
    %144 = arith.addf %143, %142 : vector<32x128xf32>
    %145 = arith.divf %143, %144 : vector<32x128xf32>
    %146 = vector.extract_strided_slice %133 {offsets = [0, 256], sizes = [32, 128], strides = [1, 1]} : vector<32x512xf32> to vector<32x128xf32>
    %147 = math.tanh %146 : vector<32x128xf32>
    %148 = vector.extract_strided_slice %133 {offsets = [0, 384], sizes = [32, 128], strides = [1, 1]} : vector<32x512xf32> to vector<32x128xf32>
    %149 = arith.negf %148 : vector<32x128xf32>
    %150 = math.exp %149 : vector<32x128xf32>
    %cst_38 = arith.constant 1.000000e+00 : f32
    %151 = vector.broadcast %cst_38 : f32 to vector<32x128xf32>
    %152 = arith.addf %151, %150 : vector<32x128xf32>
    %153 = arith.divf %151, %152 : vector<32x128xf32>
    %154 = arith.mulf %145, %97 : vector<32x128xf32>
    %155 = arith.mulf %139, %147 : vector<32x128xf32>
    %156 = arith.addf %154, %155 : vector<32x128xf32>
    %157 = math.tanh %156 : vector<32x128xf32>
    %158 = arith.mulf %153, %157 : vector<32x128xf32>
    %cst_39 = arith.constant dense<0.000000e+00> : vector<32x512xf32>
    %159 = tpu.matmul %158, %1, %cst_39 {dimension_numbers = #tpu.dot_dimension_numbers<[1], [0], [0], [1], [0, 0, 1, 1], [], []>} : vector<32x128xf32>, vector<128x512xf32>, vector<32x512xf32> -> vector<32x512xf32>
    %160 = arith.addf %159, %129 : vector<32x512xf32>
    %161 = arith.addf %160, %5 : vector<32x512xf32>
    %162 = vector.extract_strided_slice %161 {offsets = [0, 0], sizes = [32, 128], strides = [1, 1]} : vector<32x512xf32> to vector<32x128xf32>
    %163 = arith.negf %162 : vector<32x128xf32>
    %164 = math.exp %163 : vector<32x128xf32>
    %cst_40 = arith.constant 1.000000e+00 : f32
    %165 = vector.broadcast %cst_40 : f32 to vector<32x128xf32>
    %166 = arith.addf %165, %164 : vector<32x128xf32>
    %167 = arith.divf %165, %166 : vector<32x128xf32>
    %168 = vector.extract_strided_slice %161 {offsets = [0, 128], sizes = [32, 128], strides = [1, 1]} : vector<32x512xf32> to vector<32x128xf32>
    %169 = arith.negf %168 : vector<32x128xf32>
    %170 = math.exp %169 : vector<32x128xf32>
    %cst_41 = arith.constant 1.000000e+00 : f32
    %171 = vector.broadcast %cst_41 : f32 to vector<32x128xf32>
    %172 = arith.addf %171, %170 : vector<32x128xf32>
    %173 = arith.divf %171, %172 : vector<32x128xf32>
    %174 = vector.extract_strided_slice %161 {offsets = [0, 256], sizes = [32, 128], strides = [1, 1]} : vector<32x512xf32> to vector<32x128xf32>
    %175 = math.tanh %174 : vector<32x128xf32>
    %176 = vector.extract_strided_slice %161 {offsets = [0, 384], sizes = [32, 128], strides = [1, 1]} : vector<32x512xf32> to vector<32x128xf32>
    %177 = arith.negf %176 : vector<32x128xf32>
    %178 = math.exp %177 : vector<32x128xf32>
    %cst_42 = arith.constant 1.000000e+00 : f32
    %179 = vector.broadcast %cst_42 : f32 to vector<32x128xf32>
    %180 = arith.addf %179, %178 : vector<32x128xf32>
    %181 = arith.divf %179, %180 : vector<32x128xf32>
    %182 = arith.mulf %173, %125 : vector<32x128xf32>
    %183 = arith.mulf %167, %175 : vector<32x128xf32>
    %184 = arith.addf %182, %183 : vector<32x128xf32>
    %185 = math.tanh %184 : vector<32x128xf32>
    %186 = arith.mulf %181, %185 : vector<32x128xf32>
    %c3_i32 = arith.constant 3 : i32
    %cst_43 = arith.constant dense<0.000000e+00> : vector<32x512xf32>
    %187 = tpu.matmul %158, %0, %cst_43 {dimension_numbers = #tpu.dot_dimension_numbers<[1], [0], [0], [1], [0, 0, 1, 1], [], []>} : vector<32x128xf32>, vector<128x512xf32>, vector<32x512xf32> -> vector<32x512xf32>
    %cst_44 = arith.constant dense<0.000000e+00> : vector<32x512xf32>
    %188 = tpu.matmul %186, %2, %cst_44 {dimension_numbers = #tpu.dot_dimension_numbers<[1], [0], [0], [1], [0, 0, 1, 1], [], []>} : vector<32x128xf32>, vector<128x512xf32>, vector<32x512xf32> -> vector<32x512xf32>
    %189 = arith.index_cast %c3_i32 : i32 to index
    %c0_45 = arith.constant 0 : index
    %c0_46 = arith.constant 0 : index
    %190 = vector.load %arg1[%189, %c0_45, %c0_46] : memref<8x32x512xf32, #tpu.memory_space<vmem>>, vector<1x32x512xf32>
    %191 = vector.shape_cast %190 : vector<1x32x512xf32> to vector<32x512xf32>
    %192 = arith.addf %191, %187 : vector<32x512xf32>
    %193 = vector.extract_strided_slice %192 {offsets = [0, 0], sizes = [32, 128], strides = [1, 1]} : vector<32x512xf32> to vector<32x128xf32>
    %194 = arith.negf %193 : vector<32x128xf32>
    %195 = math.exp %194 : vector<32x128xf32>
    %cst_47 = arith.constant 1.000000e+00 : f32
    %196 = vector.broadcast %cst_47 : f32 to vector<32x128xf32>
    %197 = arith.addf %196, %195 : vector<32x128xf32>
    %198 = arith.divf %196, %197 : vector<32x128xf32>
    %199 = vector.extract_strided_slice %192 {offsets = [0, 128], sizes = [32, 128], strides = [1, 1]} : vector<32x512xf32> to vector<32x128xf32>
    %200 = arith.negf %199 : vector<32x128xf32>
    %201 = math.exp %200 : vector<32x128xf32>
    %cst_48 = arith.constant 1.000000e+00 : f32
    %202 = vector.broadcast %cst_48 : f32 to vector<32x128xf32>
    %203 = arith.addf %202, %201 : vector<32x128xf32>
    %204 = arith.divf %202, %203 : vector<32x128xf32>
    %205 = vector.extract_strided_slice %192 {offsets = [0, 256], sizes = [32, 128], strides = [1, 1]} : vector<32x512xf32> to vector<32x128xf32>
    %206 = math.tanh %205 : vector<32x128xf32>
    %207 = vector.extract_strided_slice %192 {offsets = [0, 384], sizes = [32, 128], strides = [1, 1]} : vector<32x512xf32> to vector<32x128xf32>
    %208 = arith.negf %207 : vector<32x128xf32>
    %209 = math.exp %208 : vector<32x128xf32>
    %cst_49 = arith.constant 1.000000e+00 : f32
    %210 = vector.broadcast %cst_49 : f32 to vector<32x128xf32>
    %211 = arith.addf %210, %209 : vector<32x128xf32>
    %212 = arith.divf %210, %211 : vector<32x128xf32>
    %213 = arith.mulf %204, %156 : vector<32x128xf32>
    %214 = arith.mulf %198, %206 : vector<32x128xf32>
    %215 = arith.addf %213, %214 : vector<32x128xf32>
    %216 = math.tanh %215 : vector<32x128xf32>
    %217 = arith.mulf %212, %216 : vector<32x128xf32>
    %cst_50 = arith.constant dense<0.000000e+00> : vector<32x512xf32>
    %218 = tpu.matmul %217, %1, %cst_50 {dimension_numbers = #tpu.dot_dimension_numbers<[1], [0], [0], [1], [0, 0, 1, 1], [], []>} : vector<32x128xf32>, vector<128x512xf32>, vector<32x512xf32> -> vector<32x512xf32>
    %219 = arith.addf %218, %188 : vector<32x512xf32>
    %220 = arith.addf %219, %5 : vector<32x512xf32>
    %221 = vector.extract_strided_slice %220 {offsets = [0, 0], sizes = [32, 128], strides = [1, 1]} : vector<32x512xf32> to vector<32x128xf32>
    %222 = arith.negf %221 : vector<32x128xf32>
    %223 = math.exp %222 : vector<32x128xf32>
    %cst_51 = arith.constant 1.000000e+00 : f32
    %224 = vector.broadcast %cst_51 : f32 to vector<32x128xf32>
    %225 = arith.addf %224, %223 : vector<32x128xf32>
    %226 = arith.divf %224, %225 : vector<32x128xf32>
    %227 = vector.extract_strided_slice %220 {offsets = [0, 128], sizes = [32, 128], strides = [1, 1]} : vector<32x512xf32> to vector<32x128xf32>
    %228 = arith.negf %227 : vector<32x128xf32>
    %229 = math.exp %228 : vector<32x128xf32>
    %cst_52 = arith.constant 1.000000e+00 : f32
    %230 = vector.broadcast %cst_52 : f32 to vector<32x128xf32>
    %231 = arith.addf %230, %229 : vector<32x128xf32>
    %232 = arith.divf %230, %231 : vector<32x128xf32>
    %233 = vector.extract_strided_slice %220 {offsets = [0, 256], sizes = [32, 128], strides = [1, 1]} : vector<32x512xf32> to vector<32x128xf32>
    %234 = math.tanh %233 : vector<32x128xf32>
    %235 = vector.extract_strided_slice %220 {offsets = [0, 384], sizes = [32, 128], strides = [1, 1]} : vector<32x512xf32> to vector<32x128xf32>
    %236 = arith.negf %235 : vector<32x128xf32>
    %237 = math.exp %236 : vector<32x128xf32>
    %cst_53 = arith.constant 1.000000e+00 : f32
    %238 = vector.broadcast %cst_53 : f32 to vector<32x128xf32>
    %239 = arith.addf %238, %237 : vector<32x128xf32>
    %240 = arith.divf %238, %239 : vector<32x128xf32>
    %241 = arith.mulf %232, %184 : vector<32x128xf32>
    %242 = arith.mulf %226, %234 : vector<32x128xf32>
    %243 = arith.addf %241, %242 : vector<32x128xf32>
    %244 = math.tanh %243 : vector<32x128xf32>
    %245 = arith.mulf %240, %244 : vector<32x128xf32>
    %c4_i32 = arith.constant 4 : i32
    %cst_54 = arith.constant dense<0.000000e+00> : vector<32x512xf32>
    %246 = tpu.matmul %217, %0, %cst_54 {dimension_numbers = #tpu.dot_dimension_numbers<[1], [0], [0], [1], [0, 0, 1, 1], [], []>} : vector<32x128xf32>, vector<128x512xf32>, vector<32x512xf32> -> vector<32x512xf32>
    %cst_55 = arith.constant dense<0.000000e+00> : vector<32x512xf32>
    %247 = tpu.matmul %245, %2, %cst_55 {dimension_numbers = #tpu.dot_dimension_numbers<[1], [0], [0], [1], [0, 0, 1, 1], [], []>} : vector<32x128xf32>, vector<128x512xf32>, vector<32x512xf32> -> vector<32x512xf32>
    %248 = arith.index_cast %c4_i32 : i32 to index
    %c0_56 = arith.constant 0 : index
    %c0_57 = arith.constant 0 : index
    %249 = vector.load %arg1[%248, %c0_56, %c0_57] : memref<8x32x512xf32, #tpu.memory_space<vmem>>, vector<1x32x512xf32>
    %250 = vector.shape_cast %249 : vector<1x32x512xf32> to vector<32x512xf32>
    %251 = arith.addf %250, %246 : vector<32x512xf32>
    %252 = vector.extract_strided_slice %251 {offsets = [0, 0], sizes = [32, 128], strides = [1, 1]} : vector<32x512xf32> to vector<32x128xf32>
    %253 = arith.negf %252 : vector<32x128xf32>
    %254 = math.exp %253 : vector<32x128xf32>
    %cst_58 = arith.constant 1.000000e+00 : f32
    %255 = vector.broadcast %cst_58 : f32 to vector<32x128xf32>
    %256 = arith.addf %255, %254 : vector<32x128xf32>
    %257 = arith.divf %255, %256 : vector<32x128xf32>
    %258 = vector.extract_strided_slice %251 {offsets = [0, 128], sizes = [32, 128], strides = [1, 1]} : vector<32x512xf32> to vector<32x128xf32>
    %259 = arith.negf %258 : vector<32x128xf32>
    %260 = math.exp %259 : vector<32x128xf32>
    %cst_59 = arith.constant 1.000000e+00 : f32
    %261 = vector.broadcast %cst_59 : f32 to vector<32x128xf32>
    %262 = arith.addf %261, %260 : vector<32x128xf32>
    %263 = arith.divf %261, %262 : vector<32x128xf32>
    %264 = vector.extract_strided_slice %251 {offsets = [0, 256], sizes = [32, 128], strides = [1, 1]} : vector<32x512xf32> to vector<32x128xf32>
    %265 = math.tanh %264 : vector<32x128xf32>
    %266 = vector.extract_strided_slice %251 {offsets = [0, 384], sizes = [32, 128], strides = [1, 1]} : vector<32x512xf32> to vector<32x128xf32>
    %267 = arith.negf %266 : vector<32x128xf32>
    %268 = math.exp %267 : vector<32x128xf32>
    %cst_60 = arith.constant 1.000000e+00 : f32
    %269 = vector.broadcast %cst_60 : f32 to vector<32x128xf32>
    %270 = arith.addf %269, %268 : vector<32x128xf32>
    %271 = arith.divf %269, %270 : vector<32x128xf32>
    %272 = arith.mulf %263, %215 : vector<32x128xf32>
    %273 = arith.mulf %257, %265 : vector<32x128xf32>
    %274 = arith.addf %272, %273 : vector<32x128xf32>
    %275 = math.tanh %274 : vector<32x128xf32>
    %276 = arith.mulf %271, %275 : vector<32x128xf32>
    %cst_61 = arith.constant dense<0.000000e+00> : vector<32x512xf32>
    %277 = tpu.matmul %276, %1, %cst_61 {dimension_numbers = #tpu.dot_dimension_numbers<[1], [0], [0], [1], [0, 0, 1, 1], [], []>} : vector<32x128xf32>, vector<128x512xf32>, vector<32x512xf32> -> vector<32x512xf32>
    %278 = arith.addf %277, %247 : vector<32x512xf32>
    %279 = arith.addf %278, %5 : vector<32x512xf32>
    %280 = vector.extract_strided_slice %279 {offsets = [0, 0], sizes = [32, 128], strides = [1, 1]} : vector<32x512xf32> to vector<32x128xf32>
    %281 = arith.negf %280 : vector<32x128xf32>
    %282 = math.exp %281 : vector<32x128xf32>
    %cst_62 = arith.constant 1.000000e+00 : f32
    %283 = vector.broadcast %cst_62 : f32 to vector<32x128xf32>
    %284 = arith.addf %283, %282 : vector<32x128xf32>
    %285 = arith.divf %283, %284 : vector<32x128xf32>
    %286 = vector.extract_strided_slice %279 {offsets = [0, 128], sizes = [32, 128], strides = [1, 1]} : vector<32x512xf32> to vector<32x128xf32>
    %287 = arith.negf %286 : vector<32x128xf32>
    %288 = math.exp %287 : vector<32x128xf32>
    %cst_63 = arith.constant 1.000000e+00 : f32
    %289 = vector.broadcast %cst_63 : f32 to vector<32x128xf32>
    %290 = arith.addf %289, %288 : vector<32x128xf32>
    %291 = arith.divf %289, %290 : vector<32x128xf32>
    %292 = vector.extract_strided_slice %279 {offsets = [0, 256], sizes = [32, 128], strides = [1, 1]} : vector<32x512xf32> to vector<32x128xf32>
    %293 = math.tanh %292 : vector<32x128xf32>
    %294 = vector.extract_strided_slice %279 {offsets = [0, 384], sizes = [32, 128], strides = [1, 1]} : vector<32x512xf32> to vector<32x128xf32>
    %295 = arith.negf %294 : vector<32x128xf32>
    %296 = math.exp %295 : vector<32x128xf32>
    %cst_64 = arith.constant 1.000000e+00 : f32
    %297 = vector.broadcast %cst_64 : f32 to vector<32x128xf32>
    %298 = arith.addf %297, %296 : vector<32x128xf32>
    %299 = arith.divf %297, %298 : vector<32x128xf32>
    %300 = arith.mulf %291, %243 : vector<32x128xf32>
    %301 = arith.mulf %285, %293 : vector<32x128xf32>
    %302 = arith.addf %300, %301 : vector<32x128xf32>
    %303 = math.tanh %302 : vector<32x128xf32>
    %304 = arith.mulf %299, %303 : vector<32x128xf32>
    %c5_i32 = arith.constant 5 : i32
    %cst_65 = arith.constant dense<0.000000e+00> : vector<32x512xf32>
    %305 = tpu.matmul %276, %0, %cst_65 {dimension_numbers = #tpu.dot_dimension_numbers<[1], [0], [0], [1], [0, 0, 1, 1], [], []>} : vector<32x128xf32>, vector<128x512xf32>, vector<32x512xf32> -> vector<32x512xf32>
    %cst_66 = arith.constant dense<0.000000e+00> : vector<32x512xf32>
    %306 = tpu.matmul %304, %2, %cst_66 {dimension_numbers = #tpu.dot_dimension_numbers<[1], [0], [0], [1], [0, 0, 1, 1], [], []>} : vector<32x128xf32>, vector<128x512xf32>, vector<32x512xf32> -> vector<32x512xf32>
    %307 = arith.index_cast %c5_i32 : i32 to index
    %c0_67 = arith.constant 0 : index
    %c0_68 = arith.constant 0 : index
    %308 = vector.load %arg1[%307, %c0_67, %c0_68] : memref<8x32x512xf32, #tpu.memory_space<vmem>>, vector<1x32x512xf32>
    %309 = vector.shape_cast %308 : vector<1x32x512xf32> to vector<32x512xf32>
    %310 = arith.addf %309, %305 : vector<32x512xf32>
    %311 = vector.extract_strided_slice %310 {offsets = [0, 0], sizes = [32, 128], strides = [1, 1]} : vector<32x512xf32> to vector<32x128xf32>
    %312 = arith.negf %311 : vector<32x128xf32>
    %313 = math.exp %312 : vector<32x128xf32>
    %cst_69 = arith.constant 1.000000e+00 : f32
    %314 = vector.broadcast %cst_69 : f32 to vector<32x128xf32>
    %315 = arith.addf %314, %313 : vector<32x128xf32>
    %316 = arith.divf %314, %315 : vector<32x128xf32>
    %317 = vector.extract_strided_slice %310 {offsets = [0, 128], sizes = [32, 128], strides = [1, 1]} : vector<32x512xf32> to vector<32x128xf32>
    %318 = arith.negf %317 : vector<32x128xf32>
    %319 = math.exp %318 : vector<32x128xf32>
    %cst_70 = arith.constant 1.000000e+00 : f32
    %320 = vector.broadcast %cst_70 : f32 to vector<32x128xf32>
    %321 = arith.addf %320, %319 : vector<32x128xf32>
    %322 = arith.divf %320, %321 : vector<32x128xf32>
    %323 = vector.extract_strided_slice %310 {offsets = [0, 256], sizes = [32, 128], strides = [1, 1]} : vector<32x512xf32> to vector<32x128xf32>
    %324 = math.tanh %323 : vector<32x128xf32>
    %325 = vector.extract_strided_slice %310 {offsets = [0, 384], sizes = [32, 128], strides = [1, 1]} : vector<32x512xf32> to vector<32x128xf32>
    %326 = arith.negf %325 : vector<32x128xf32>
    %327 = math.exp %326 : vector<32x128xf32>
    %cst_71 = arith.constant 1.000000e+00 : f32
    %328 = vector.broadcast %cst_71 : f32 to vector<32x128xf32>
    %329 = arith.addf %328, %327 : vector<32x128xf32>
    %330 = arith.divf %328, %329 : vector<32x128xf32>
    %331 = arith.mulf %322, %274 : vector<32x128xf32>
    %332 = arith.mulf %316, %324 : vector<32x128xf32>
    %333 = arith.addf %331, %332 : vector<32x128xf32>
    %334 = math.tanh %333 : vector<32x128xf32>
    %335 = arith.mulf %330, %334 : vector<32x128xf32>
    %cst_72 = arith.constant dense<0.000000e+00> : vector<32x512xf32>
    %336 = tpu.matmul %335, %1, %cst_72 {dimension_numbers = #tpu.dot_dimension_numbers<[1], [0], [0], [1], [0, 0, 1, 1], [], []>} : vector<32x128xf32>, vector<128x512xf32>, vector<32x512xf32> -> vector<32x512xf32>
    %337 = arith.addf %336, %306 : vector<32x512xf32>
    %338 = arith.addf %337, %5 : vector<32x512xf32>
    %339 = vector.extract_strided_slice %338 {offsets = [0, 0], sizes = [32, 128], strides = [1, 1]} : vector<32x512xf32> to vector<32x128xf32>
    %340 = arith.negf %339 : vector<32x128xf32>
    %341 = math.exp %340 : vector<32x128xf32>
    %cst_73 = arith.constant 1.000000e+00 : f32
    %342 = vector.broadcast %cst_73 : f32 to vector<32x128xf32>
    %343 = arith.addf %342, %341 : vector<32x128xf32>
    %344 = arith.divf %342, %343 : vector<32x128xf32>
    %345 = vector.extract_strided_slice %338 {offsets = [0, 128], sizes = [32, 128], strides = [1, 1]} : vector<32x512xf32> to vector<32x128xf32>
    %346 = arith.negf %345 : vector<32x128xf32>
    %347 = math.exp %346 : vector<32x128xf32>
    %cst_74 = arith.constant 1.000000e+00 : f32
    %348 = vector.broadcast %cst_74 : f32 to vector<32x128xf32>
    %349 = arith.addf %348, %347 : vector<32x128xf32>
    %350 = arith.divf %348, %349 : vector<32x128xf32>
    %351 = vector.extract_strided_slice %338 {offsets = [0, 256], sizes = [32, 128], strides = [1, 1]} : vector<32x512xf32> to vector<32x128xf32>
    %352 = math.tanh %351 : vector<32x128xf32>
    %353 = vector.extract_strided_slice %338 {offsets = [0, 384], sizes = [32, 128], strides = [1, 1]} : vector<32x512xf32> to vector<32x128xf32>
    %354 = arith.negf %353 : vector<32x128xf32>
    %355 = math.exp %354 : vector<32x128xf32>
    %cst_75 = arith.constant 1.000000e+00 : f32
    %356 = vector.broadcast %cst_75 : f32 to vector<32x128xf32>
    %357 = arith.addf %356, %355 : vector<32x128xf32>
    %358 = arith.divf %356, %357 : vector<32x128xf32>
    %359 = arith.mulf %350, %302 : vector<32x128xf32>
    %360 = arith.mulf %344, %352 : vector<32x128xf32>
    %361 = arith.addf %359, %360 : vector<32x128xf32>
    %362 = math.tanh %361 : vector<32x128xf32>
    %363 = arith.mulf %358, %362 : vector<32x128xf32>
    %c6_i32 = arith.constant 6 : i32
    %cst_76 = arith.constant dense<0.000000e+00> : vector<32x512xf32>
    %364 = tpu.matmul %335, %0, %cst_76 {dimension_numbers = #tpu.dot_dimension_numbers<[1], [0], [0], [1], [0, 0, 1, 1], [], []>} : vector<32x128xf32>, vector<128x512xf32>, vector<32x512xf32> -> vector<32x512xf32>
    %cst_77 = arith.constant dense<0.000000e+00> : vector<32x512xf32>
    %365 = tpu.matmul %363, %2, %cst_77 {dimension_numbers = #tpu.dot_dimension_numbers<[1], [0], [0], [1], [0, 0, 1, 1], [], []>} : vector<32x128xf32>, vector<128x512xf32>, vector<32x512xf32> -> vector<32x512xf32>
    %366 = arith.index_cast %c6_i32 : i32 to index
    %c0_78 = arith.constant 0 : index
    %c0_79 = arith.constant 0 : index
    %367 = vector.load %arg1[%366, %c0_78, %c0_79] : memref<8x32x512xf32, #tpu.memory_space<vmem>>, vector<1x32x512xf32>
    %368 = vector.shape_cast %367 : vector<1x32x512xf32> to vector<32x512xf32>
    %369 = arith.addf %368, %364 : vector<32x512xf32>
    %370 = vector.extract_strided_slice %369 {offsets = [0, 0], sizes = [32, 128], strides = [1, 1]} : vector<32x512xf32> to vector<32x128xf32>
    %371 = arith.negf %370 : vector<32x128xf32>
    %372 = math.exp %371 : vector<32x128xf32>
    %cst_80 = arith.constant 1.000000e+00 : f32
    %373 = vector.broadcast %cst_80 : f32 to vector<32x128xf32>
    %374 = arith.addf %373, %372 : vector<32x128xf32>
    %375 = arith.divf %373, %374 : vector<32x128xf32>
    %376 = vector.extract_strided_slice %369 {offsets = [0, 128], sizes = [32, 128], strides = [1, 1]} : vector<32x512xf32> to vector<32x128xf32>
    %377 = arith.negf %376 : vector<32x128xf32>
    %378 = math.exp %377 : vector<32x128xf32>
    %cst_81 = arith.constant 1.000000e+00 : f32
    %379 = vector.broadcast %cst_81 : f32 to vector<32x128xf32>
    %380 = arith.addf %379, %378 : vector<32x128xf32>
    %381 = arith.divf %379, %380 : vector<32x128xf32>
    %382 = vector.extract_strided_slice %369 {offsets = [0, 256], sizes = [32, 128], strides = [1, 1]} : vector<32x512xf32> to vector<32x128xf32>
    %383 = math.tanh %382 : vector<32x128xf32>
    %384 = vector.extract_strided_slice %369 {offsets = [0, 384], sizes = [32, 128], strides = [1, 1]} : vector<32x512xf32> to vector<32x128xf32>
    %385 = arith.negf %384 : vector<32x128xf32>
    %386 = math.exp %385 : vector<32x128xf32>
    %cst_82 = arith.constant 1.000000e+00 : f32
    %387 = vector.broadcast %cst_82 : f32 to vector<32x128xf32>
    %388 = arith.addf %387, %386 : vector<32x128xf32>
    %389 = arith.divf %387, %388 : vector<32x128xf32>
    %390 = arith.mulf %381, %333 : vector<32x128xf32>
    %391 = arith.mulf %375, %383 : vector<32x128xf32>
    %392 = arith.addf %390, %391 : vector<32x128xf32>
    %393 = math.tanh %392 : vector<32x128xf32>
    %394 = arith.mulf %389, %393 : vector<32x128xf32>
    %cst_83 = arith.constant dense<0.000000e+00> : vector<32x512xf32>
    %395 = tpu.matmul %394, %1, %cst_83 {dimension_numbers = #tpu.dot_dimension_numbers<[1], [0], [0], [1], [0, 0, 1, 1], [], []>} : vector<32x128xf32>, vector<128x512xf32>, vector<32x512xf32> -> vector<32x512xf32>
    %396 = arith.addf %395, %365 : vector<32x512xf32>
    %397 = arith.addf %396, %5 : vector<32x512xf32>
    %398 = vector.extract_strided_slice %397 {offsets = [0, 0], sizes = [32, 128], strides = [1, 1]} : vector<32x512xf32> to vector<32x128xf32>
    %399 = arith.negf %398 : vector<32x128xf32>
    %400 = math.exp %399 : vector<32x128xf32>
    %cst_84 = arith.constant 1.000000e+00 : f32
    %401 = vector.broadcast %cst_84 : f32 to vector<32x128xf32>
    %402 = arith.addf %401, %400 : vector<32x128xf32>
    %403 = arith.divf %401, %402 : vector<32x128xf32>
    %404 = vector.extract_strided_slice %397 {offsets = [0, 128], sizes = [32, 128], strides = [1, 1]} : vector<32x512xf32> to vector<32x128xf32>
    %405 = arith.negf %404 : vector<32x128xf32>
    %406 = math.exp %405 : vector<32x128xf32>
    %cst_85 = arith.constant 1.000000e+00 : f32
    %407 = vector.broadcast %cst_85 : f32 to vector<32x128xf32>
    %408 = arith.addf %407, %406 : vector<32x128xf32>
    %409 = arith.divf %407, %408 : vector<32x128xf32>
    %410 = vector.extract_strided_slice %397 {offsets = [0, 256], sizes = [32, 128], strides = [1, 1]} : vector<32x512xf32> to vector<32x128xf32>
    %411 = math.tanh %410 : vector<32x128xf32>
    %412 = vector.extract_strided_slice %397 {offsets = [0, 384], sizes = [32, 128], strides = [1, 1]} : vector<32x512xf32> to vector<32x128xf32>
    %413 = arith.negf %412 : vector<32x128xf32>
    %414 = math.exp %413 : vector<32x128xf32>
    %cst_86 = arith.constant 1.000000e+00 : f32
    %415 = vector.broadcast %cst_86 : f32 to vector<32x128xf32>
    %416 = arith.addf %415, %414 : vector<32x128xf32>
    %417 = arith.divf %415, %416 : vector<32x128xf32>
    %418 = arith.mulf %409, %361 : vector<32x128xf32>
    %419 = arith.mulf %403, %411 : vector<32x128xf32>
    %420 = arith.addf %418, %419 : vector<32x128xf32>
    %421 = math.tanh %420 : vector<32x128xf32>
    %422 = arith.mulf %417, %421 : vector<32x128xf32>
    %c7_i32 = arith.constant 7 : i32
    %cst_87 = arith.constant dense<0.000000e+00> : vector<32x512xf32>
    %423 = tpu.matmul %394, %0, %cst_87 {dimension_numbers = #tpu.dot_dimension_numbers<[1], [0], [0], [1], [0, 0, 1, 1], [], []>} : vector<32x128xf32>, vector<128x512xf32>, vector<32x512xf32> -> vector<32x512xf32>
    %cst_88 = arith.constant dense<0.000000e+00> : vector<32x512xf32>
    %424 = tpu.matmul %422, %2, %cst_88 {dimension_numbers = #tpu.dot_dimension_numbers<[1], [0], [0], [1], [0, 0, 1, 1], [], []>} : vector<32x128xf32>, vector<128x512xf32>, vector<32x512xf32> -> vector<32x512xf32>
    %425 = arith.index_cast %c7_i32 : i32 to index
    %c0_89 = arith.constant 0 : index
    %c0_90 = arith.constant 0 : index
    %426 = vector.load %arg1[%425, %c0_89, %c0_90] : memref<8x32x512xf32, #tpu.memory_space<vmem>>, vector<1x32x512xf32>
    %427 = vector.shape_cast %426 : vector<1x32x512xf32> to vector<32x512xf32>
    %428 = arith.addf %427, %423 : vector<32x512xf32>
    %429 = vector.extract_strided_slice %428 {offsets = [0, 0], sizes = [32, 128], strides = [1, 1]} : vector<32x512xf32> to vector<32x128xf32>
    %430 = arith.negf %429 : vector<32x128xf32>
    %431 = math.exp %430 : vector<32x128xf32>
    %cst_91 = arith.constant 1.000000e+00 : f32
    %432 = vector.broadcast %cst_91 : f32 to vector<32x128xf32>
    %433 = arith.addf %432, %431 : vector<32x128xf32>
    %434 = arith.divf %432, %433 : vector<32x128xf32>
    %435 = vector.extract_strided_slice %428 {offsets = [0, 128], sizes = [32, 128], strides = [1, 1]} : vector<32x512xf32> to vector<32x128xf32>
    %436 = arith.negf %435 : vector<32x128xf32>
    %437 = math.exp %436 : vector<32x128xf32>
    %cst_92 = arith.constant 1.000000e+00 : f32
    %438 = vector.broadcast %cst_92 : f32 to vector<32x128xf32>
    %439 = arith.addf %438, %437 : vector<32x128xf32>
    %440 = arith.divf %438, %439 : vector<32x128xf32>
    %441 = vector.extract_strided_slice %428 {offsets = [0, 256], sizes = [32, 128], strides = [1, 1]} : vector<32x512xf32> to vector<32x128xf32>
    %442 = math.tanh %441 : vector<32x128xf32>
    %443 = vector.extract_strided_slice %428 {offsets = [0, 384], sizes = [32, 128], strides = [1, 1]} : vector<32x512xf32> to vector<32x128xf32>
    %444 = arith.negf %443 : vector<32x128xf32>
    %445 = math.exp %444 : vector<32x128xf32>
    %cst_93 = arith.constant 1.000000e+00 : f32
    %446 = vector.broadcast %cst_93 : f32 to vector<32x128xf32>
    %447 = arith.addf %446, %445 : vector<32x128xf32>
    %448 = arith.divf %446, %447 : vector<32x128xf32>
    %449 = arith.mulf %440, %392 : vector<32x128xf32>
    %450 = arith.mulf %434, %442 : vector<32x128xf32>
    %451 = arith.addf %449, %450 : vector<32x128xf32>
    %452 = math.tanh %451 : vector<32x128xf32>
    %453 = arith.mulf %448, %452 : vector<32x128xf32>
    %cst_94 = arith.constant dense<0.000000e+00> : vector<32x512xf32>
    %454 = tpu.matmul %453, %1, %cst_94 {dimension_numbers = #tpu.dot_dimension_numbers<[1], [0], [0], [1], [0, 0, 1, 1], [], []>} : vector<32x128xf32>, vector<128x512xf32>, vector<32x512xf32> -> vector<32x512xf32>
    %455 = arith.addf %454, %424 : vector<32x512xf32>
    %456 = arith.addf %455, %5 : vector<32x512xf32>
    %457 = vector.extract_strided_slice %456 {offsets = [0, 0], sizes = [32, 128], strides = [1, 1]} : vector<32x512xf32> to vector<32x128xf32>
    %458 = arith.negf %457 : vector<32x128xf32>
    %459 = math.exp %458 : vector<32x128xf32>
    %cst_95 = arith.constant 1.000000e+00 : f32
    %460 = vector.broadcast %cst_95 : f32 to vector<32x128xf32>
    %461 = arith.addf %460, %459 : vector<32x128xf32>
    %462 = arith.divf %460, %461 : vector<32x128xf32>
    %463 = vector.extract_strided_slice %456 {offsets = [0, 128], sizes = [32, 128], strides = [1, 1]} : vector<32x512xf32> to vector<32x128xf32>
    %464 = arith.negf %463 : vector<32x128xf32>
    %465 = math.exp %464 : vector<32x128xf32>
    %cst_96 = arith.constant 1.000000e+00 : f32
    %466 = vector.broadcast %cst_96 : f32 to vector<32x128xf32>
    %467 = arith.addf %466, %465 : vector<32x128xf32>
    %468 = arith.divf %466, %467 : vector<32x128xf32>
    %469 = vector.extract_strided_slice %456 {offsets = [0, 256], sizes = [32, 128], strides = [1, 1]} : vector<32x512xf32> to vector<32x128xf32>
    %470 = math.tanh %469 : vector<32x128xf32>
    %471 = vector.extract_strided_slice %456 {offsets = [0, 384], sizes = [32, 128], strides = [1, 1]} : vector<32x512xf32> to vector<32x128xf32>
    %472 = arith.negf %471 : vector<32x128xf32>
    %473 = math.exp %472 : vector<32x128xf32>
    %cst_97 = arith.constant 1.000000e+00 : f32
    %474 = vector.broadcast %cst_97 : f32 to vector<32x128xf32>
    %475 = arith.addf %474, %473 : vector<32x128xf32>
    %476 = arith.divf %474, %475 : vector<32x128xf32>
    %477 = arith.mulf %468, %420 : vector<32x128xf32>
    %478 = arith.mulf %462, %470 : vector<32x128xf32>
    %479 = arith.addf %477, %478 : vector<32x128xf32>
    %480 = math.tanh %479 : vector<32x128xf32>
    %481 = arith.mulf %476, %480 : vector<32x128xf32>
    %c8_i32 = arith.constant 8 : i32
    %c0_98 = arith.constant 0 : index
    %c0_99 = arith.constant 0 : index
    %482 = vector.load %arg6[%c0_98, %c0_99] : memref<128x128xf32, #tpu.memory_space<vmem>>, vector<128x128xf32>
    %cst_100 = arith.constant dense<0.000000e+00> : vector<32x128xf32>
    %483 = tpu.matmul %481, %482, %cst_100 {dimension_numbers = #tpu.dot_dimension_numbers<[1], [0], [0], [1], [0, 0, 1, 1], [], []>} : vector<32x128xf32>, vector<128x128xf32>, vector<32x128xf32> -> vector<32x128xf32>
    %c0_101 = arith.constant 0 : index
    %c0_102 = arith.constant 0 : index
    %484 = vector.load %arg7[%c0_101, %c0_102] : memref<1x128xf32, #tpu.memory_space<vmem>>, vector<1x128xf32>
    %485 = vector.broadcast %484 : vector<1x128xf32> to vector<32x128xf32>
    %486 = arith.addf %483, %485 : vector<32x128xf32>
    %487 = arith.negf %486 : vector<32x128xf32>
    %488 = math.exp %487 : vector<32x128xf32>
    %cst_103 = arith.constant 1.000000e+00 : f32
    %489 = vector.broadcast %cst_103 : f32 to vector<32x128xf32>
    %490 = arith.addf %489, %488 : vector<32x128xf32>
    %491 = arith.divf %489, %490 : vector<32x128xf32>
    %c0_104 = arith.constant 0 : index
    %c0_105 = arith.constant 0 : index
    %492 = vector.load %arg8[%c0_104, %c0_105] : memref<32x128xf32, #tpu.memory_space<vmem>>, vector<32x128xf32>
    tpu.vector_store %arg8[%c0_104, %c0_105], %491 {strides = array<i32>} : memref<32x128xf32, #tpu.memory_space<vmem>>, vector<32x128xf32>,
    return
  }
  func.func @transform_0(%arg0: i32) -> (i32, i32, i32) {
    %c0_i32 = arith.constant 0 : i32
    %c0_i32_0 = arith.constant 0 : i32
    %c0_i32_1 = arith.constant 0 : i32
    return %c0_i32, %arg0, %c0_i32_0 : i32, i32, i32
  }
  func.func @transform_1(%arg0: i32) -> (i32, i32) {
    %c0_i32 = arith.constant 0 : i32
    %c0_i32_0 = arith.constant 0 : i32
    %c0_i32_1 = arith.constant 0 : i32
    return %c0_i32, %c0_i32_0 : i32, i32
  }
  func.func @transform_2(%arg0: i32) -> (i32, i32) {
    %c0_i32 = arith.constant 0 : i32
    %c0_i32_0 = arith.constant 0 : i32
    %c0_i32_1 = arith.constant 0 : i32
    return %c0_i32, %c0_i32_0 : i32, i32
  }
  func.func @transform_3(%arg0: i32) -> (i32, i32) {
    %c0_i32 = arith.constant 0 : i32
    %c0_i32_0 = arith.constant 0 : i32
    %c0_i32_1 = arith.constant 0 : i32
    return %c0_i32, %c0_i32_0 : i32, i32
  }
  func.func @transform_4(%arg0: i32) -> (i32, i32) {
    %c0_i32 = arith.constant 0 : i32
    %c0_i32_0 = arith.constant 0 : i32
    %c0_i32_1 = arith.constant 0 : i32
    return %c0_i32, %c0_i32_0 : i32, i32
  }
  func.func @transform_5(%arg0: i32) -> (i32, i32) {
    %c0_i32 = arith.constant 0 : i32
    %c0_i32_0 = arith.constant 0 : i32
    %c0_i32_1 = arith.constant 0 : i32
    return %c0_i32, %c0_i32_0 : i32, i32
  }
  func.func @transform_6(%arg0: i32) -> (i32, i32) {
    %c0_i32 = arith.constant 0 : i32
    %c0_i32_0 = arith.constant 0 : i32
    %c0_i32_1 = arith.constant 0 : i32
    return %c0_i32, %c0_i32_0 : i32, i32
  }
  func.func @transform_7(%arg0: i32) -> (i32, i32) {
    %c0_i32 = arith.constant 0 : i32
    %c0_i32_0 = arith.constant 0 : i32
    return %arg0, %c0_i32 : i32, i32
  }
}

</mosaic_0001>

<llo_original>
// kernel: tpu_custom_call.1
$region0: #{tpu_custom_call.1}
  #allocation0 [shape = 'u32[]', space=smem, size = 0x4, offset = 0x4, fixed_abs, tag = 'smem constant byte address 0x4 - core index']
  #allocation1 [shape = 'u32[144,128]{1,0:T(1,128)}', space=vmem, size = 0x12000, scoped, tag = 'internal scratch']
  %s0 = inlined_call_operand.hbm [shape: f32[8,32,512], index: 0, kind: input, shape index: {}]
  %s1 = inlined_call_operand.hbm [shape: f32[128,512], index: 1, kind: input, shape index: {}]
  %s2 = inlined_call_operand.hbm [shape: f32[128,512], index: 2, kind: input, shape index: {}]
  %s3 = inlined_call_operand.hbm [shape: f32[128,512], index: 3, kind: input, shape index: {}]
  %s4 = inlined_call_operand.vmem [shape: f32[1,512], index: 4, kind: input, shape index: {}]
  %s5 = inlined_call_operand.hbm [shape: f32[128,128], index: 5, kind: input, shape index: {}]
  %s6 = inlined_call_operand.vmem [shape: f32[1,128], index: 6, kind: input, shape index: {}]
  %s7 = inlined_call_operand.hbm [shape: f32[32,128], index: 7, kind: output, shape index: {}]
  %s8 = sld [smem:[#allocation0]]
  $region58: #{tpu_custom_call.1} parent=0
    _
  %s10 = ssub.s32 1, %s8
  %s11 = scalar_select 0, %s10, %s8
  $region1: #{tpu_custom_call.1} parent=0
    #allocation2 [shape = 'u8[524288]{0}', space=vmem, size = 0x80000, scoped, tag = 'input window, operand 0, single buffered']
    #allocation3 [shape = 's32[1]{0}', space=sflag, size = 0x4, scoped, tag = 'scoped memory for tpu_custom_call.1']
    #allocation4 [shape = 's32[1]{0}', space=sflag, size = 0x4, scoped, tag = 'scoped memory for tpu_custom_call.1']
    #allocation5 [shape = 'u8[262144]{0}', space=vmem, size = 0x40000, scoped, tag = 'input window, operand 1, single buffered']
    #allocation6 [shape = 's32[1]{0}', space=sflag, size = 0x4, scoped, tag = 'scoped memory for tpu_custom_call.1']
    #allocation7 [shape = 'u8[262144]{0}', space=vmem, size = 0x40000, scoped, tag = 'input window, operand 2, single buffered']
    #allocation8 [shape = 'u8[262144]{0}', space=vmem, size = 0x40000, scoped, tag = 'input window, operand 3, single buffered']
    #allocation9 [shape = 's32[1]{0}', space=sflag, size = 0x4, scoped, tag = 'scoped memory for tpu_custom_call.1']
    #allocation10 [shape = 'u8[65536]{0}', space=vmem, size = 0x10000, scoped, tag = 'input window, operand 5, single buffered']
    #allocation11 [shape = 'u8[16384]{0}', space=vmem, size = 0x4000, scoped, tag = 'output window, operand 0, single buffered']
    %12 = vsyncpa [#allocation3], 0
    %13 = vsyncpa [#allocation6], 0
    %14 = vsyncpa [#allocation9], 0
    %15 = vsyncpa [#allocation4], 0
    // Predicated region
    $region2: #{tpu_custom_call.1} parent=1 // pred_check
      _
    $region3: #{tpu_custom_call.1} parent=1 // pred_check_branch
      %17 = sbr.rel (0) target = $region5
    $region4: #{tpu_custom_call.1} parent=1 // pred_region
      %s19 = ssub.s32 16384, 16384
      %20 = vsyncadd [#allocation3], %s19
      %s21 = sshll.u32 [#allocation2], 4
      %s22 = int_to_ptr.vmem [resolvable:$true] %s21
      %27 = dma.hbm_to_vmem [thread:$0]  %s0, 16384, %s22, [#allocation3], 512, 512, 32
    $region5: #{tpu_custom_call.1} parent=1 // pred_fallthru
      _
    // Predicated region
    $region6: #{tpu_custom_call.1} parent=1 // pred_check
      _
    $region7: #{tpu_custom_call.1} parent=1 // pred_check_branch
      %29 = sbr.rel (0) target = $region9
    $region8: #{tpu_custom_call.1} parent=1 // pred_region
      %s31 = ssub.s32 8192, 8192
      %32 = vsyncadd [#allocation6], %s31
      %s33 = sshll.u32 [#allocation5], 4
      %s34 = int_to_ptr.vmem [resolvable:$true] %s33
      %39 = dma.hbm_to_vmem [thread:$0]  %s1, 8192, %s34, [#allocation6], 512, 512, 32
    $region9: #{tpu_custom_call.1} parent=1 // pred_fallthru
      _
    // Predicated region
    $region10: #{tpu_custom_call.1} parent=1 // pred_check
      _
    $region11: #{tpu_custom_call.1} parent=1 // pred_check_branch
      %41 = sbr.rel (0) target = $region13
    $region12: #{tpu_custom_call.1} parent=1 // pred_region
      %s43 = ssub.s32 8192, 8192
      %44 = vsyncadd [#allocation6], %s43
      %s45 = sshll.u32 [#allocation7], 4
      %s46 = int_to_ptr.vmem [resolvable:$true] %s45
      %51 = dma.hbm_to_vmem [thread:$0]  %s2, 8192, %s46, [#allocation6], 512, 512, 32
    $region13: #{tpu_custom_call.1} parent=1 // pred_fallthru
      _
    // Predicated region
    $region14: #{tpu_custom_call.1} parent=1 // pred_check
      _
    $region15: #{tpu_custom_call.1} parent=1 // pred_check_branch
      %53 = sbr.rel (0) target = $region17
    $region16: #{tpu_custom_call.1} parent=1 // pred_region
      %s55 = ssub.s32 8192, 8192
      %56 = vsyncadd [#allocation9], %s55
      %s57 = sshll.u32 [#allocation8], 4
      %s58 = int_to_ptr.vmem [resolvable:$true] %s57
      %63 = dma.hbm_to_vmem [thread:$0]  %s3, 8192, %s58, [#allocation9], 512, 512, 32
    $region17: #{tpu_custom_call.1} parent=1 // pred_fallthru
      _
    // Predicated region
    $region18: #{tpu_custom_call.1} parent=1 // pred_check
      _
    $region19: #{tpu_custom_call.1} parent=1 // pred_check_branch
      %65 = sbr.rel (0) target = $region21
    $region20: #{tpu_custom_call.1} parent=1 // pred_region
      _
    $region21: #{tpu_custom_call.1} parent=1 // pred_fallthru
      _
    // Predicated region
    $region22: #{tpu_custom_call.1} parent=1 // pred_check
      _
    $region23: #{tpu_custom_call.1} parent=1 // pred_check_branch
      %67 = sbr.rel (0) target = $region25
    $region24: #{tpu_custom_call.1} parent=1 // pred_region
      %s69 = ssub.s32 2048, 2048
      %70 = vsyncadd [#allocation9], %s69
      %s71 = sshll.u32 [#allocation10], 4
      %s72 = int_to_ptr.vmem [resolvable:$true] %s71
      %77 = dma.hbm_to_vmem [thread:$0]  %s5, 2048, %s72, [#allocation9], 128, 128, 8
    $region25: #{tpu_custom_call.1} parent=1 // pred_fallthru
      _
    // Predicated region
    $region26: #{tpu_custom_call.1} parent=1 // pred_check
      _
    $region27: #{tpu_custom_call.1} parent=1 // pred_check_branch
      %79 = sbr.rel (0) target = $region29
    $region28: #{tpu_custom_call.1} parent=1 // pred_region
      _
    $region29: #{tpu_custom_call.1} parent=1 // pred_fallthru
      _
    // Predicated region
    $region30: #{tpu_custom_call.1} parent=1 // pred_check
      _
    $region31: #{tpu_custom_call.1} parent=1 // pred_check_branch
      %81 = sbr.rel (0) target = $region33
    $region32: #{tpu_custom_call.1} parent=1 // pred_region
      %82 = dma.done [#allocation3], 16384
    $region33: #{tpu_custom_call.1} parent=1 // pred_fallthru
      _
    // Predicated region
    $region34: #{tpu_custom_call.1} parent=1 // pred_check
      _
    $region35: #{tpu_custom_call.1} parent=1 // pred_check_branch
      %84 = sbr.rel (0) target = $region37
    $region36: #{tpu_custom_call.1} parent=1 // pred_region
      %85 = dma.done [#allocation6], 8192
    $region37: #{tpu_custom_call.1} parent=1 // pred_fallthru
      _
    // Predicated region
    $region38: #{tpu_custom_call.1} parent=1 // pred_check
      _
    $region39: #{tpu_custom_call.1} parent=1 // pred_check_branch
      %87 = sbr.rel (0) target = $region41
    $region40: #{tpu_custom_call.1} parent=1 // pred_region
      %88 = dma.done [#allocation6], 8192
    $region41: #{tpu_custom_call.1} parent=1 // pred_fallthru
      _
    // Predicated region
    $region42: #{tpu_custom_call.1} parent=1 // pred_check
      _
    $region43: #{tpu_custom_call.1} parent=1 // pred_check_branch
      %90 = sbr.rel (0) target = $region45
    $region44: #{tpu_custom_call.1} parent=1 // pred_region
      %91 = dma.done [#allocation9], 8192
    $region45: #{tpu_custom_call.1} parent=1 // pred_fallthru
      _
    // Predicated region
    $region46: #{tpu_custom_call.1} parent=1 // pred_check
      _
    $region47: #{tpu_custom_call.1} parent=1 // pred_check_branch
      %93 = sbr.rel (0) target = $region49
    $region48: #{tpu_custom_call.1} parent=1 // pred_region
      %94 = dma.done [#allocation9], 2048
    $region49: #{tpu_custom_call.1} parent=1 // pred_fallthru
      _
    %v95 = vld [vmem:[#allocation5] sm:$0xff]
    %v96 = vld [vmem:[#allocation5 + $0x8] sm:$0xff]
    %v97 = vld [vmem:[#allocation5 + $0x10] sm:$0xff]
    %v98 = vld [vmem:[#allocation5 + $0x18] sm:$0xff]
    %v99 = vld [vmem:[#allocation5 + $0x20] sm:$0xff]
    %v100 = vld [vmem:[#allocation5 + $0x28] sm:$0xff]
    %v101 = vld [vmem:[#allocation5 + $0x30] sm:$0xff]
    %v102 = vld [vmem:[#allocation5 + $0x38] sm:$0xff]
    %v103 = vld [vmem:[#allocation5 + $0x40] sm:$0xff]
    %v104 = vld [vmem:[#allocation5 + $0x48] sm:$0xff]
    %v105 = vld [vmem:[#allocation5 + $0x50] sm:$0xff]
    %v106 = vld [vmem:[#allocation5 + $0x58] sm:$0xff]
    %v107 = vld [vmem:[#allocation5 + $0x60] sm:$0xff]
    %v108 = vld [vmem:[#allocation5 + $0x68] sm:$0xff]
    %v109 = vld [vmem:[#allocation5 + $0x70] sm:$0xff]
    %v110 = vld [vmem:[#allocation5 + $0x78] sm:$0xff]
    %v111 = vld [vmem:[#allocation5 + $0x80] sm:$0xff]
    %v112 = vld [vmem:[#allocation5 + $0x88] sm:$0xff]
    %v113 = vld [vmem:[#allocation5 + $0x90] sm:$0xff]
    %v114 = vld [vmem:[#allocation5 + $0x98] sm:$0xff]
    %v115 = vld [vmem:[#allocation5 + $0xa0] sm:$0xff]
    %v116 = vld [vmem:[#allocation5 + $0xa8] sm:$0xff]
    %v117 = vld [vmem:[#allocation5 + $0xb0] sm:$0xff]
    %v118 = vld [vmem:[#allocation5 + $0xb8] sm:$0xff]
    %v119 = vld [vmem:[#allocation5 + $0xc0] sm:$0xff]
    %v120 = vld [vmem:[#allocation5 + $0xc8] sm:$0xff]
    %v121 = vld [vmem:[#allocation5 + $0xd0] sm:$0xff]
    %v122 = vld [vmem:[#allocation5 + $0xd8] sm:$0xff]
    %v123 = vld [vmem:[#allocation5 + $0xe0] sm:$0xff]
    %v124 = vld [vmem:[#allocation5 + $0xe8] sm:$0xff]
    %v125 = vld [vmem:[#allocation5 + $0xf0] sm:$0xff]
    %v126 = vld [vmem:[#allocation5 + $0xf8] sm:$0xff]
    %v127 = vld [vmem:[#allocation5 + $0x100] sm:$0xff]
    %v128 = vld [vmem:[#allocation5 + $0x108] sm:$0xff]
    %v129 = vld [vmem:[#allocation5 + $0x110] sm:$0xff]
    %v130 = vld [vmem:[#allocation5 + $0x118] sm:$0xff]
    %v131 = vld [vmem:[#allocation5 + $0x120] sm:$0xff]
    %v132 = vld [vmem:[#allocation5 + $0x128] sm:$0xff]
    %v133 = vld [vmem:[#allocation5 + $0x130] sm:$0xff]
    %v134 = vld [vmem:[#allocation5 + $0x138] sm:$0xff]
    %v135 = vld [vmem:[#allocation5 + $0x140] sm:$0xff]
    %v136 = vld [vmem:[#allocation5 + $0x148] sm:$0xff]
    %v137 = vld [vmem:[#allocation5 + $0x150] sm:$0xff]
    %v138 = vld [vmem:[#allocation5 + $0x158] sm:$0xff]
    %v139 = vld [vmem:[#allocation5 + $0x160] sm:$0xff]
    %v140 = vld [vmem:[#allocation5 + $0x168] sm:$0xff]
    %v141 = vld [vmem:[#allocation5 + $0x170] sm:$0xff]
    %v142 = vld [vmem:[#allocation5 + $0x178] sm:$0xff]
    %v143 = vld [vmem:[#allocation5 + $0x180] sm:$0xff]
    %v144 = vld [vmem:[#allocation5 + $0x188] sm:$0xff]
    %v145 = vld [vmem:[#allocation5 + $0x190] sm:$0xff]
    %v146 = vld [vmem:[#allocation5 + $0x198] sm:$0xff]
    %v147 = vld [vmem:[#allocation5 + $0x1a0] sm:$0xff]
    %v148 = vld [vmem:[#allocation5 + $0x1a8] sm:$0xff]
    %v149 = vld [vmem:[#allocation5 + $0x1b0] sm:$0xff]
    %v150 = vld [vmem:[#allocation5 + $0x1b8] sm:$0xff]
    %v151 = vld [vmem:[#allocation5 + $0x1c0] sm:$0xff]
    %v152 = vld [vmem:[#allocation5 + $0x1c8] sm:$0xff]
    %v153 = vld [vmem:[#allocation5 + $0x1d0] sm:$0xff]
    %v154 = vld [vmem:[#allocation5 + $0x1d8] sm:$0xff]
    %v155 = vld [vmem:[#allocation5 + $0x1e0] sm:$0xff]
    %v156 = vld [vmem:[#allocation5 + $0x1e8] sm:$0xff]
    %v157 = vld [vmem:[#allocation5 + $0x1f0] sm:$0xff]
    %v158 = vld [vmem:[#allocation5 + $0x1f8] sm:$0xff]
    %v159 = vld [vmem:[#allocation7] sm:$0xff]
    %v160 = vld [vmem:[#allocation7 + $0x8] sm:$0xff]
    %v161 = vld [vmem:[#allocation7 + $0x10] sm:$0xff]
    %v162 = vld [vmem:[#allocation7 + $0x18] sm:$0xff]
    %v163 = vld [vmem:[#allocation7 + $0x20] sm:$0xff]
    %v164 = vld [vmem:[#allocation7 + $0x28] sm:$0xff]
    %v165 = vld [vmem:[#allocation7 + $0x30] sm:$0xff]
    %v166 = vld [vmem:[#allocation7 + $0x38] sm:$0xff]
    %v167 = vld [vmem:[#allocation7 + $0x40] sm:$0xff]
    %v168 = vld [vmem:[#allocation7 + $0x48] sm:$0xff]
    %v169 = vld [vmem:[#allocation7 + $0x50] sm:$0xff]
    %v170 = vld [vmem:[#allocation7 + $0x58] sm:$0xff]
    %v171 = vld [vmem:[#allocation7 + $0x60] sm:$0xff]
    %v172 = vld [vmem:[#allocation7 + $0x68] sm:$0xff]
    %v173 = vld [vmem:[#allocation7 + $0x70] sm:$0xff]
    %v174 = vld [vmem:[#allocation7 + $0x78] sm:$0xff]
    %v175 = vld [vmem:[#allocation7 + $0x80] sm:$0xff]
    %v176 = vld [vmem:[#allocation7 + $0x88] sm:$0xff]
    %v177 = vld [vmem:[#allocation7 + $0x90] sm:$0xff]
    %v178 = vld [vmem:[#allocation7 + $0x98] sm:$0xff]
    %v179 = vld [vmem:[#allocation7 + $0xa0] sm:$0xff]
    %v180 = vld [vmem:[#allocation7 + $0xa8] sm:$0xff]
    %v181 = vld [vmem:[#allocation7 + $0xb0] sm:$0xff]
    %v182 = vld [vmem:[#allocation7 + $0xb8] sm:$0xff]
    %v183 = vld [vmem:[#allocation7 + $0xc0] sm:$0xff]
    %v184 = vld [vmem:[#allocation7 + $0xc8] sm:$0xff]
    %v185 = vld [vmem:[#allocation7 + $0xd0] sm:$0xff]
    %v186 = vld [vmem:[#allocation7 + $0xd8] sm:$0xff]
    %v187 = vld [vmem:[#allocation7 + $0xe0] sm:$0xff]
    %v188 = vld [vmem:[#allocation7 + $0xe8] sm:$0xff]
    %v189 = vld [vmem:[#allocation7 + $0xf0] sm:$0xff]
    %v190 = vld [vmem:[#allocation7 + $0xf8] sm:$0xff]
    %v191 = vld [vmem:[#allocation7 + $0x100] sm:$0xff]
    %v192 = vld [vmem:[#allocation7 + $0x108] sm:$0xff]
    %v193 = vld [vmem:[#allocation7 + $0x110] sm:$0xff]
    %v194 = vld [vmem:[#allocation7 + $0x118] sm:$0xff]
    %v195 = vld [vmem:[#allocation7 + $0x120] sm:$0xff]
    %v196 = vld [vmem:[#allocation7 + $0x128] sm:$0xff]
    %v197 = vld [vmem:[#allocation7 + $0x130] sm:$0xff]
    %v198 = vld [vmem:[#allocation7 + $0x138] sm:$0xff]
    %v199 = vld [vmem:[#allocation7 + $0x140] sm:$0xff]
    %v200 = vld [vmem:[#allocation7 + $0x148] sm:$0xff]
    %v201 = vld [vmem:[#allocation7 + $0x150] sm:$0xff]
    %v202 = vld [vmem:[#allocation7 + $0x158] sm:$0xff]
    %v203 = vld [vmem:[#allocation7 + $0x160] sm:$0xff]
    %v204 = vld [vmem:[#allocation7 + $0x168] sm:$0xff]
    %v205 = vld [vmem:[#allocation7 + $0x170] sm:$0xff]
    %v206 = vld [vmem:[#allocation7 + $0x178] sm:$0xff]
    %v207 = vld [vmem:[#allocation7 + $0x180] sm:$0xff]
    %v208 = vld [vmem:[#allocation7 + $0x188] sm:$0xff]
    %v209 = vld [vmem:[#allocation7 + $0x190] sm:$0xff]
    %v210 = vld [vmem:[#allocation7 + $0x198] sm:$0xff]
    %v211 = vld [vmem:[#allocation7 + $0x1a0] sm:$0xff]
    %v212 = vld [vmem:[#allocation7 + $0x1a8] sm:$0xff]
    %v213 = vld [vmem:[#allocation7 + $0x1b0] sm:$0xff]
    %v214 = vld [vmem:[#allocation7 + $0x1b8] sm:$0xff]
    %v215 = vld [vmem:[#allocation7 + $0x1c0] sm:$0xff]
    %v216 = vld [vmem:[#allocation7 + $0x1c8] sm:$0xff]
    %v217 = vld [vmem:[#allocation7 + $0x1d0] sm:$0xff]
    %v218 = vld [vmem:[#allocation7 + $0x1d8] sm:$0xff]
    %v219 = vld [vmem:[#allocation7 + $0x1e0] sm:$0xff]
    %v220 = vld [vmem:[#allocation7 + $0x1e8] sm:$0xff]
    %v221 = vld [vmem:[#allocation7 + $0x1f0] sm:$0xff]
    %v222 = vld [vmem:[#allocation7 + $0x1f8] sm:$0xff]
    %v223 = vld [vmem:[#allocation8] sm:$0xff]
    %v224 = vld [vmem:[#allocation8 + $0x8] sm:$0xff]
    %v225 = vld [vmem:[#allocation8 + $0x10] sm:$0xff]
    %v226 = vld [vmem:[#allocation8 + $0x18] sm:$0xff]
    %v227 = vld [vmem:[#allocation8 + $0x20] sm:$0xff]
    %v228 = vld [vmem:[#allocation8 + $0x28] sm:$0xff]
    %v229 = vld [vmem:[#allocation8 + $0x30] sm:$0xff]
    %v230 = vld [vmem:[#allocation8 + $0x38] sm:$0xff]
    %v231 = vld [vmem:[#allocation8 + $0x40] sm:$0xff]
    %v232 = vld [vmem:[#allocation8 + $0x48] sm:$0xff]
    %v233 = vld [vmem:[#allocation8 + $0x50] sm:$0xff]
    %v234 = vld [vmem:[#allocation8 + $0x58] sm:$0xff]
    %v235 = vld [vmem:[#allocation8 + $0x60] sm:$0xff]
    %v236 = vld [vmem:[#allocation8 + $0x68] sm:$0xff]
    %v237 = vld [vmem:[#allocation8 + $0x70] sm:$0xff]
    %v238 = vld [vmem:[#allocation8 + $0x78] sm:$0xff]
    %v239 = vld [vmem:[#allocation8 + $0x80] sm:$0xff]
    %v240 = vld [vmem:[#allocation8 + $0x88] sm:$0xff]
    %v241 = vld [vmem:[#allocation8 + $0x90] sm:$0xff]
    %v242 = vld [vmem:[#allocation8 + $0x98] sm:$0xff]
    %v243 = vld [vmem:[#allocation8 + $0xa0] sm:$0xff]
    %v244 = vld [vmem:[#allocation8 + $0xa8] sm:$0xff]
    %v245 = vld [vmem:[#allocation8 + $0xb0] sm:$0xff]
    %v246 = vld [vmem:[#allocation8 + $0xb8] sm:$0xff]
    %v247 = vld [vmem:[#allocation8 + $0xc0] sm:$0xff]
    %v248 = vld [vmem:[#allocation8 + $0xc8] sm:$0xff]
    %v249 = vld [vmem:[#allocation8 + $0xd0] sm:$0xff]
    %v250 = vld [vmem:[#allocation8 + $0xd8] sm:$0xff]
    %v251 = vld [vmem:[#allocation8 + $0xe0] sm:$0xff]
    %v252 = vld [vmem:[#allocation8 + $0xe8] sm:$0xff]
    %v253 = vld [vmem:[#allocation8 + $0xf0] sm:$0xff]
    %v254 = vld [vmem:[#allocation8 + $0xf8] sm:$0xff]
    %v255 = vld [vmem:[#allocation8 + $0x100] sm:$0xff]
    %v256 = vld [vmem:[#allocation8 + $0x108] sm:$0xff]
    %v257 = vld [vmem:[#allocation8 + $0x110] sm:$0xff]
    %v258 = vld [vmem:[#allocation8 + $0x118] sm:$0xff]
    %v259 = vld [vmem:[#allocation8 + $0x120] sm:$0xff]
    %v260 = vld [vmem:[#allocation8 + $0x128] sm:$0xff]
    %v261 = vld [vmem:[#allocation8 + $0x130] sm:$0xff]
    %v262 = vld [vmem:[#allocation8 + $0x138] sm:$0xff]
    %v263 = vld [vmem:[#allocation8 + $0x140] sm:$0xff]
    %v264 = vld [vmem:[#allocation8 + $0x148] sm:$0xff]
    %v265 = vld [vmem:[#allocation8 + $0x150] sm:$0xff]
    %v266 = vld [vmem:[#allocation8 + $0x158] sm:$0xff]
    %v267 = vld [vmem:[#allocation8 + $0x160] sm:$0xff]
    %v268 = vld [vmem:[#allocation8 + $0x168] sm:$0xff]
    %v269 = vld [vmem:[#allocation8 + $0x170] sm:$0xff]
    %v270 = vld [vmem:[#allocation8 + $0x178] sm:$0xff]
    %v271 = vld [vmem:[#allocation8 + $0x180] sm:$0xff]
    %v272 = vld [vmem:[#allocation8 + $0x188] sm:$0xff]
    %v273 = vld [vmem:[#allocation8 + $0x190] sm:$0xff]
    %v274 = vld [vmem:[#allocation8 + $0x198] sm:$0xff]
    %v275 = vld [vmem:[#allocation8 + $0x1a0] sm:$0xff]
    %v276 = vld [vmem:[#allocation8 + $0x1a8] sm:$0xff]
    %v277 = vld [vmem:[#allocation8 + $0x1b0] sm:$0xff]
    %v278 = vld [vmem:[#allocation8 + $0x1b8] sm:$0xff]
    %v279 = vld [vmem:[#allocation8 + $0x1c0] sm:$0xff]
    %v280 = vld [vmem:[#allocation8 + $0x1c8] sm:$0xff]
    %v281 = vld [vmem:[#allocation8 + $0x1d0] sm:$0xff]
    %v282 = vld [vmem:[#allocation8 + $0x1d8] sm:$0xff]
    %v283 = vld [vmem:[#allocation8 + $0x1e0] sm:$0xff]
    %v284 = vld [vmem:[#allocation8 + $0x1e8] sm:$0xff]
    %v285 = vld [vmem:[#allocation8 + $0x1f0] sm:$0xff]
    %v286 = vld [vmem:[#allocation8 + $0x1f8] sm:$0xff]
    %v287 = vld [vmem:[%s4] sm:$0xf]
    %v289 = vlaneseq
    %v290 = vshrl.u32 %v289, 7
    %v291 = vsub.s32 0, %v290
    %v292 = vrot.slane %v287, %v291
    %v293 = vlaneseq
    %v294 = vshrl.u32 %v293, 7
    %v295 = vsub.s32 1, %v294
    %v296 = vrot.slane %v287, %v295
    %v297 = vlaneseq
    %v298 = vshrl.u32 %v297, 7
    %v299 = vsub.s32 2, %v298
    %v300 = vrot.slane %v287, %v299
    %v301 = vlaneseq
    %v302 = vshrl.u32 %v301, 7
    %v303 = vsub.s32 3, %v302
    %v304 = vrot.slane %v287, %v303
    %309 = vmatprep.subr.mxu0 %v96
    %310 = vmatpush1.msra.mxu0 %v95
    %311 = vmatprep.subr.mxu0 %v100
    %312 = vmatpush1.msra.mxu0 %v99
    %313 = vmatprep.subr.mxu0 %v104
    %314 = vmatpush1.msra.mxu0 %v103
    %315 = vmatprep.subr.mxu0 %v108
    %316 = vmatpush1.msra.mxu0 %v107
    %317 = vmatprep.subr.mxu0 %v112
    %318 = vmatpush1.msra.mxu0 %v111
    %319 = vmatprep.subr.mxu0 %v116
    %320 = vmatpush1.msra.mxu0 %v115
    %321 = vmatprep.subr.mxu0 %v120
    %322 = vmatpush1.msra.mxu0 %v119
    %323 = vmatprep.subr.mxu0 %v124
    %324 = vmatpush1.msra.mxu0 %v123
    %325 = vmatprep.subr.mxu0 %v128
    %326 = vmatpush1.msra.mxu0 %v127
    %327 = vmatprep.subr.mxu0 %v132
    %328 = vmatpush1.msra.mxu0 %v131
    %329 = vmatprep.subr.mxu0 %v136
    %330 = vmatpush1.msra.mxu0 %v135
    %331 = vmatprep.subr.mxu0 %v140
    %332 = vmatpush1.msra.mxu0 %v139
    %333 = vmatprep.subr.mxu0 %v144
    %334 = vmatpush1.msra.mxu0 %v143
    %335 = vmatprep.subr.mxu0 %v148
    %336 = vmatpush1.msra.mxu0 %v147
    %337 = vmatprep.subr.mxu0 %v152
    %338 = vmatpush1.msra.mxu0 %v151
    %339 = vmatprep.subr.mxu0 %v156
    %340 = vmatpush1.msra.mxu0 %v155
    %341 = vmatprep.subr.mxu0 0.0
    %342 = vmatpush1.msra.mxu0 0.0
    %343 = vmatprep.subr.mxu0 0.0
    %344 = vmatpush1.msra.mxu0 0.0
    %345 = vmatprep.subr.mxu0 0.0
    %346 = vmatpush1.msra.mxu0 0.0
    %347 = vmatprep.subr.mxu0 0.0
    %348 = vmatpush1.msra.mxu0 0.0
    %349 = vmatprep.subr.mxu0 0.0
    %350 = vmatpush1.msra.mxu0 0.0
    %351 = vmatprep.subr.mxu0 0.0
    %352 = vmatpush1.msra.mxu0 0.0
    %353 = vmatprep.subr.mxu0 0.0
    %354 = vmatpush1.msra.mxu0 0.0
    %355 = vmatprep.subr.mxu0 0.0
    %356 = vmatpush1.msra.mxu0 0.0
    %357 = vmatprep.subr.mxu0 0.0
    %358 = vmatpush1.msra.mxu0 0.0
    %359 = vmatprep.subr.mxu0 0.0
    %360 = vmatpush1.msra.mxu0 0.0
    %361 = vmatprep.subr.mxu0 0.0
    %362 = vmatpush1.msra.mxu0 0.0
    %363 = vmatprep.subr.mxu0 0.0
    %364 = vmatpush1.msra.mxu0 0.0
    %365 = vmatprep.subr.mxu0 0.0
    %366 = vmatpush1.msra.mxu0 0.0
    %367 = vmatprep.subr.mxu0 0.0
    %368 = vmatpush1.msra.mxu0 0.0
    %369 = vmatprep.subr.mxu0 0.0
    %370 = vmatpush1.msra.mxu0 0.0
    %371 = vmatprep.subr.mxu0 0.0
    %372 = vmatpush1.msra.mxu0 0.0
    %373 = vmatprep.mubr.f32.mxu0 0.0
    %374 = vmatmul.mubr.f32.gmra.mrb[0].mxu0 0.0
    %v375 = vpop.f32.mrb[0].mxu0
    %v376 = vadd.f32 0.0, %v375
    %v377 = vpop.f32.mrb[0].mxu0
    %v378 = vadd.f32 0.0, %v377
    %379 = vmatprep.mubr.f32.mxu0 0.0
    %380 = vmatmul.mubr.f32.gmra.mrb[0].mxu0 0.0
    %v381 = vpop.f32.mrb[0].mxu0
    %v382 = vadd.f32 0.0, %v381
    %v383 = vpop.f32.mrb[0].mxu0
    %v384 = vadd.f32 0.0, %v383
    %385 = vmatprep.mubr.f32.mxu0 0.0
    %386 = vmatmul.mubr.f32.gmra.mrb[0].mxu0 0.0
    %v387 = vpop.f32.mrb[0].mxu0
    %v388 = vadd.f32 0.0, %v387
    %v389 = vpop.f32.mrb[0].mxu0
    %v390 = vadd.f32 0.0, %v389
    %391 = vmatprep.mubr.f32.mxu0 0.0
    %392 = vmatmul.mubr.f32.gmra.mrb[0].mxu0 0.0
    %v393 = vpop.f32.mrb[0].mxu0
    %v394 = vadd.f32 0.0, %v393
    %v395 = vpop.f32.mrb[0].mxu0
    %v396 = vadd.f32 0.0, %v395
    %397 = vdwg.mxu0
    %398 = vmatprep.subr.mxu0 %v98
    %399 = vmatpush1.msra.mxu0 %v97
    %400 = vmatprep.subr.mxu0 %v102
    %401 = vmatpush1.msra.mxu0 %v101
    %402 = vmatprep.subr.mxu0 %v106
    %403 = vmatpush1.msra.mxu0 %v105
    %404 = vmatprep.subr.mxu0 %v110
    %405 = vmatpush1.msra.mxu0 %v109
    %406 = vmatprep.subr.mxu0 %v114
    %407 = vmatpush1.msra.mxu0 %v113
    %408 = vmatprep.subr.mxu0 %v118
    %409 = vmatpush1.msra.mxu0 %v117
    %410 = vmatprep.subr.mxu0 %v122
    %411 = vmatpush1.msra.mxu0 %v121
    %412 = vmatprep.subr.mxu0 %v126
    %413 = vmatpush1.msra.mxu0 %v125
    %414 = vmatprep.subr.mxu0 %v130
    %415 = vmatpush1.msra.mxu0 %v129
    %416 = vmatprep.subr.mxu0 %v134
    %417 = vmatpush1.msra.mxu0 %v133
    %418 = vmatprep.subr.mxu0 %v138
    %419 = vmatpush1.msra.mxu0 %v137
    %420 = vmatprep.subr.mxu0 %v142
    %421 = vmatpush1.msra.mxu0 %v141
    %422 = vmatprep.subr.mxu0 %v146
    %423 = vmatpush1.msra.mxu0 %v145
    %424 = vmatprep.subr.mxu0 %v150
    %425 = vmatpush1.msra.mxu0 %v149
    %426 = vmatprep.subr.mxu0 %v154
    %427 = vmatpush1.msra.mxu0 %v153
    %428 = vmatprep.subr.mxu0 %v158
    %429 = vmatpush1.msra.mxu0 %v157
    %430 = vmatprep.subr.mxu0 0.0
    %431 = vmatpush1.msra.mxu0 0.0
    %432 = vmatprep.subr.mxu0 0.0
    %433 = vmatpush1.msra.mxu0 0.0
    %434 = vmatprep.subr.mxu0 0.0
    %435 = vmatpush1.msra.mxu0 0.0
    %436 = vmatprep.subr.mxu0 0.0
    %437 = vmatpush1.msra.mxu0 0.0
    %438 = vmatprep.subr.mxu0 0.0
    %439 = vmatpush1.msra.mxu0 0.0
    %440 = vmatprep.subr.mxu0 0.0
    %441 = vmatpush1.msra.mxu0 0.0
    %442 = vmatprep.subr.mxu0 0.0
    %443 = vmatpush1.msra.mxu0 0.0
    %444 = vmatprep.subr.mxu0 0.0
    %445 = vmatpush1.msra.mxu0 0.0
    %446 = vmatprep.subr.mxu0 0.0
    %447 = vmatpush1.msra.mxu0 0.0
    %448 = vmatprep.subr.mxu0 0.0
    %449 = vmatpush1.msra.mxu0 0.0
    %450 = vmatprep.subr.mxu0 0.0
    %451 = vmatpush1.msra.mxu0 0.0
    %452 = vmatprep.subr.mxu0 0.0
    %453 = vmatpush1.msra.mxu0 0.0
    %454 = vmatprep.subr.mxu0 0.0
    %455 = vmatpush1.msra.mxu0 0.0
    %456 = vmatprep.subr.mxu0 0.0
    %457 = vmatpush1.msra.mxu0 0.0
    %458 = vmatprep.subr.mxu0 0.0
    %459 = vmatpush1.msra.mxu0 0.0
    %460 = vmatprep.subr.mxu0 0.0
    %461 = vmatpush1.msra.mxu0 0.0
    %462 = vmatprep.mubr.f32.mxu0 0.0
    %463 = vmatmul.mubr.f32.gmra.mrb[0].mxu0 0.0
    %v464 = vpop.f32.mrb[0].mxu0
    %v465 = vadd.f32 0.0, %v464
    %v466 = vpop.f32.mrb[0].mxu0
    %v467 = vadd.f32 0.0, %v466
    %468 = vmatprep.mubr.f32.mxu0 0.0
    %469 = vmatmul.mubr.f32.gmra.mrb[0].mxu0 0.0
    %v470 = vpop.f32.mrb[0].mxu0
    %v471 = vadd.f32 0.0, %v470
    %v472 = vpop.f32.mrb[0].mxu0
    %v473 = vadd.f32 0.0, %v472
    %474 = vmatprep.mubr.f32.mxu0 0.0
    %475 = vmatmul.mubr.f32.gmra.mrb[0].mxu0 0.0
    %v476 = vpop.f32.mrb[0].mxu0
    %v477 = vadd.f32 0.0, %v476
    %v478 = vpop.f32.mrb[0].mxu0
    %v479 = vadd.f32 0.0, %v478
    %480 = vmatprep.mubr.f32.mxu0 0.0
    %481 = vmatmul.mubr.f32.gmra.mrb[0].mxu0 0.0
    %v482 = vpop.f32.mrb[0].mxu0
    %v483 = vadd.f32 0.0, %v482
    %v484 = vpop.f32.mrb[0].mxu0
    %v485 = vadd.f32 0.0, %v484
    %486 = vdwg.mxu0
    %487 = vmatprep.subr.mxu0 %v224
    %488 = vmatpush1.msra.mxu0 %v223
    %489 = vmatprep.subr.mxu0 %v228
    %490 = vmatpush1.msra.mxu0 %v227
    %491 = vmatprep.subr.mxu0 %v232
    %492 = vmatpush1.msra.mxu0 %v231
    %493 = vmatprep.subr.mxu0 %v236
    %494 = vmatpush1.msra.mxu0 %v235
    %495 = vmatprep.subr.mxu0 %v240
    %496 = vmatpush1.msra.mxu0 %v239
    %497 = vmatprep.subr.mxu0 %v244
    %498 = vmatpush1.msra.mxu0 %v243
    %499 = vmatprep.subr.mxu0 %v248
    %500 = vmatpush1.msra.mxu0 %v247
    %501 = vmatprep.subr.mxu0 %v252
    %502 = vmatpush1.msra.mxu0 %v251
    %503 = vmatprep.subr.mxu0 %v256
    %504 = vmatpush1.msra.mxu0 %v255
    %505 = vmatprep.subr.mxu0 %v260
    %506 = vmatpush1.msra.mxu0 %v259
    %507 = vmatprep.subr.mxu0 %v264
    %508 = vmatpush1.msra.mxu0 %v263
    %509 = vmatprep.subr.mxu0 %v268
    %510 = vmatpush1.msra.mxu0 %v267
    %511 = vmatprep.subr.mxu0 %v272
    %512 = vmatpush1.msra.mxu0 %v271
    %513 = vmatprep.subr.mxu0 %v276
    %514 = vmatpush1.msra.mxu0 %v275
    %515 = vmatprep.subr.mxu0 %v280
    %516 = vmatpush1.msra.mxu0 %v279
    %517 = vmatprep.subr.mxu0 %v284
    %518 = vmatpush1.msra.mxu0 %v283
    %519 = vmatprep.subr.mxu0 0.0
    %520 = vmatpush1.msra.mxu0 0.0
    %521 = vmatprep.subr.mxu0 0.0
    %522 = vmatpush1.msra.mxu0 0.0
    %523 = vmatprep.subr.mxu0 0.0
    %524 = vmatpush1.msra.mxu0 0.0
    %525 = vmatprep.subr.mxu0 0.0
    %526 = vmatpush1.msra.mxu0 0.0
    %527 = vmatprep.subr.mxu0 0.0
    %528 = vmatpush1.msra.mxu0 0.0
    %529 = vmatprep.subr.mxu0 0.0
    %530 = vmatpush1.msra.mxu0 0.0
    %531 = vmatprep.subr.mxu0 0.0
    %532 = vmatpush1.msra.mxu0 0.0
    %533 = vmatprep.subr.mxu0 0.0
    %534 = vmatpush1.msra.mxu0 0.0
    %535 = vmatprep.subr.mxu0 0.0
    %536 = vmatpush1.msra.mxu0 0.0
    %537 = vmatprep.subr.mxu0 0.0
    %538 = vmatpush1.msra.mxu0 0.0
    %539 = vmatprep.subr.mxu0 0.0
    %540 = vmatpush1.msra.mxu0 0.0
    %541 = vmatprep.subr.mxu0 0.0
    %542 = vmatpush1.msra.mxu0 0.0
    %543 = vmatprep.subr.mxu0 0.0
    %544 = vmatpush1.msra.mxu0 0.0
    %545 = vmatprep.subr.mxu0 0.0
    %546 = vmatpush1.msra.mxu0 0.0
    %547 = vmatprep.subr.mxu0 0.0
    %548 = vmatpush1.msra.mxu0 0.0
    %549 = vmatprep.subr.mxu0 0.0
    %550 = vmatpush1.msra.mxu0 0.0
    %551 = vmatprep.mubr.f32.mxu0 0.0
    %552 = vmatmul.mubr.f32.gmra.mrb[0].mxu0 0.0
    %v553 = vpop.f32.mrb[0].mxu0
    %v554 = vadd.f32 0.0, %v553
    %v555 = vpop.f32.mrb[0].mxu0
    %v556 = vadd.f32 0.0, %v555
    %557 = vmatprep.mubr.f32.mxu0 0.0
    %558 = vmatmul.mubr.f32.gmra.mrb[0].mxu0 0.0
    %v559 = vpop.f32.mrb[0].mxu0
    %v560 = vadd.f32 0.0, %v559
    %v561 = vpop.f32.mrb[0].mxu0
    %v562 = vadd.f32 0.0, %v561
    %563 = vmatprep.mubr.f32.mxu0 0.0
    %564 = vmatmul.mubr.f32.gmra.mrb[0].mxu0 0.0
    %v565 = vpop.f32.mrb[0].mxu0
    %v566 = vadd.f32 0.0, %v565
    %v567 = vpop.f32.mrb[0].mxu0
    %v568 = vadd.f32 0.0, %v567
    %569 = vmatprep.mubr.f32.mxu0 0.0
    %570 = vmatmul.mubr.f32.gmra.mrb[0].mxu0 0.0
    %v571 = vpop.f32.mrb[0].mxu0
    %v572 = vadd.f32 0.0, %v571
    %v573 = vpop.f32.mrb[0].mxu0
    %v574 = vadd.f32 0.0, %v573
    %575 = vdwg.mxu0
    %576 = vmatprep.subr.mxu0 %v226
    %577 = vmatpush1.msra.mxu0 %v225
    %578 = vmatprep.subr.mxu0 %v230
    %579 = vmatpush1.msra.mxu0 %v229
    %580 = vmatprep.subr.mxu0 %v234
    %581 = vmatpush1.msra.mxu0 %v233
    %582 = vmatprep.subr.mxu0 %v238
    %583 = vmatpush1.msra.mxu0 %v237
    %584 = vmatprep.subr.mxu0 %v242
    %585 = vmatpush1.msra.mxu0 %v241
    %586 = vmatprep.subr.mxu0 %v246
    %587 = vmatpush1.msra.mxu0 %v245
    %588 = vmatprep.subr.mxu0 %v250
    %589 = vmatpush1.msra.mxu0 %v249
    %590 = vmatprep.subr.mxu0 %v254
    %591 = vmatpush1.msra.mxu0 %v253
    %592 = vmatprep.subr.mxu0 %v258
    %593 = vmatpush1.msra.mxu0 %v257
    %594 = vmatprep.subr.mxu0 %v262
    %595 = vmatpush1.msra.mxu0 %v261
    %596 = vmatprep.subr.mxu0 %v266
    %597 = vmatpush1.msra.mxu0 %v265
    %598 = vmatprep.subr.mxu0 %v270
    %599 = vmatpush1.msra.mxu0 %v269
    %600 = vmatprep.subr.mxu0 %v274
    %601 = vmatpush1.msra.mxu0 %v273
    %602 = vmatprep.subr.mxu0 %v278
    %603 = vmatpush1.msra.mxu0 %v277
    %604 = vmatprep.subr.mxu0 %v282
    %605 = vmatpush1.msra.mxu0 %v281
    %606 = vmatprep.subr.mxu0 %v286
    %607 = vmatpush1.msra.mxu0 %v285
    %608 = vmatprep.subr.mxu0 0.0
    %609 = vmatpush1.msra.mxu0 0.0
    %610 = vmatprep.subr.mxu0 0.0
    %611 = vmatpush1.msra.mxu0 0.0
    %612 = vmatprep.subr.mxu0 0.0
    %613 = vmatpush1.msra.mxu0 0.0
    %614 = vmatprep.subr.mxu0 0.0
    %615 = vmatpush1.msra.mxu0 0.0
    %616 = vmatprep.subr.mxu0 0.0
    %617 = vmatpush1.msra.mxu0 0.0
    %618 = vmatprep.subr.mxu0 0.0
    %619 = vmatpush1.msra.mxu0 0.0
    %620 = vmatprep.subr.mxu0 0.0
    %621 = vmatpush1.msra.mxu0 0.0
    %622 = vmatprep.subr.mxu0 0.0
    %623 = vmatpush1.msra.mxu0 0.0
    %624 = vmatprep.subr.mxu0 0.0
    %625 = vmatpush1.msra.mxu0 0.0
    %626 = vmatprep.subr.mxu0 0.0
    %627 = vmatpush1.msra.mxu0 0.0
    %628 = vmatprep.subr.mxu0 0.0
    %629 = vmatpush1.msra.mxu0 0.0
    %630 = vmatprep.subr.mxu0 0.0
    %631 = vmatpush1.msra.mxu0 0.0
    %632 = vmatprep.subr.mxu0 0.0
    %633 = vmatpush1.msra.mxu0 0.0
    %634 = vmatprep.subr.mxu0 0.0
    %635 = vmatpush1.msra.mxu0 0.0
    %636 = vmatprep.subr.mxu0 0.0
    %637 = vmatpush1.msra.mxu0 0.0
    %638 = vmatprep.subr.mxu0 0.0
    %639 = vmatpush1.msra.mxu0 0.0
    %640 = vmatprep.mubr.f32.mxu0 0.0
    %641 = vmatmul.mubr.f32.gmra.mrb[0].mxu0 0.0
    %v642 = vpop.f32.mrb[0].mxu0
    %v643 = vadd.f32 0.0, %v642
    %v644 = vpop.f32.mrb[0].mxu0
    %v645 = vadd.f32 0.0, %v644
    %646 = vmatprep.mubr.f32.mxu0 0.0
    %647 = vmatmul.mubr.f32.gmra.mrb[0].mxu0 0.0
    %v648 = vpop.f32.mrb[0].mxu0
    %v649 = vadd.f32 0.0, %v648
    %v650 = vpop.f32.mrb[0].mxu0
    %v651 = vadd.f32 0.0, %v650
    %652 = vmatprep.mubr.f32.mxu0 0.0
    %653 = vmatmul.mubr.f32.gmra.mrb[0].mxu0 0.0
    %v654 = vpop.f32.mrb[0].mxu0
    %v655 = vadd.f32 0.0, %v654
    %v656 = vpop.f32.mrb[0].mxu0
    %v657 = vadd.f32 0.0, %v656
    %658 = vmatprep.mubr.f32.mxu0 0.0
    %659 = vmatmul.mubr.f32.gmra.mrb[0].mxu0 0.0
    %v660 = vpop.f32.mrb[0].mxu0
    %v661 = vadd.f32 0.0, %v660
    %v662 = vpop.f32.mrb[0].mxu0
    %v663 = vadd.f32 0.0, %v662
    %664 = vdwg.mxu0
    %v665 = vld [vmem:[#allocation2] sm:$0xff]
    %v666 = vld [vmem:[#allocation2 + $0x8] sm:$0xff]
    %v667 = vld [vmem:[#allocation2 + $0x10] sm:$0xff]
    %v668 = vld [vmem:[#allocation2 + $0x18] sm:$0xff]
    %v669 = vld [vmem:[#allocation2 + $0x20] sm:$0xff]
    %v670 = vld [vmem:[#allocation2 + $0x28] sm:$0xff]
    %v671 = vld [vmem:[#allocation2 + $0x30] sm:$0xff]
    %v672 = vld [vmem:[#allocation2 + $0x38] sm:$0xff]
    %v673 = vld [vmem:[#allocation2 + $0x40] sm:$0xff]
    %v674 = vld [vmem:[#allocation2 + $0x48] sm:$0xff]
    %v675 = vld [vmem:[#allocation2 + $0x50] sm:$0xff]
    %v676 = vld [vmem:[#allocation2 + $0x58] sm:$0xff]
    %v677 = vld [vmem:[#allocation2 + $0x60] sm:$0xff]
    %v678 = vld [vmem:[#allocation2 + $0x68] sm:$0xff]
    %v679 = vld [vmem:[#allocation2 + $0x70] sm:$0xff]
    %v680 = vld [vmem:[#allocation2 + $0x78] sm:$0xff]
    %v681 = vadd.f32 %v665, %v376
    %v682 = vadd.f32 %v666, %v378
    %v683 = vadd.f32 %v667, %v465
    %v684 = vadd.f32 %v668, %v467
    %v685 = vadd.f32 %v669, %v382
    %v686 = vadd.f32 %v670, %v384
    %v687 = vadd.f32 %v671, %v471
    %v688 = vadd.f32 %v672, %v473
    %v689 = vadd.f32 %v673, %v388
    %v690 = vadd.f32 %v674, %v390
    %v691 = vadd.f32 %v675, %v477
    %v692 = vadd.f32 %v676, %v479
    %v693 = vadd.f32 %v677, %v394
    %v694 = vadd.f32 %v678, %v396
    %v695 = vadd.f32 %v679, %v483
    %v696 = vadd.f32 %v680, %v485
    %v697 = vxor.u32 %v681, 2147483648
    %v698 = vxor.u32 %v685, 2147483648
    %v699 = vxor.u32 %v689, 2147483648
    %v700 = vxor.u32 %v693, 2147483648
    %v701 = vmul.f32 %v697, 1.442695
    %v702 = vpow.pop %v701
    %v703 = vmul.f32 %v698, 1.442695
    %v704 = vpow.pop %v703
    %v705 = vmul.f32 %v699, 1.442695
    %v706 = vpow.pop %v705
    %v707 = vmul.f32 %v700, 1.442695
    %v708 = vpow.pop %v707
    %v709 = vadd.f32 %v702, 1.0
    %v710 = vadd.f32 %v704, 1.0
    %v711 = vadd.f32 %v706, 1.0
    %v712 = vadd.f32 %v708, 1.0
    %v713 = vrcp.pop %v709
    %v714 = vmul.f32 1.0, %v713
    %v715 = vrcp.pop %v710
    %v716 = vmul.f32 1.0, %v715
    %v717 = vrcp.pop %v711
    %v718 = vmul.f32 1.0, %v717
    %v719 = vrcp.pop %v712
    %v720 = vmul.f32 1.0, %v719
    %v721 = vxor.u32 %v682, 2147483648
    %v722 = vxor.u32 %v686, 2147483648
    %v723 = vxor.u32 %v690, 2147483648
    %v724 = vxor.u32 %v694, 2147483648
    %v725 = vmul.f32 %v721, 1.442695
    %v726 = vpow.pop %v725
    %v727 = vmul.f32 %v722, 1.442695
    %v728 = vpow.pop %v727
    %v729 = vmul.f32 %v723, 1.442695
    %v730 = vpow.pop %v729
    %v731 = vmul.f32 %v724, 1.442695
    %v732 = vpow.pop %v731
    %v733 = vadd.f32 %v726, 1.0
    %v734 = vadd.f32 %v728, 1.0
    %v735 = vadd.f32 %v730, 1.0
    %v736 = vadd.f32 %v732, 1.0
    %v737 = vrcp.pop %v733
    %v738 = vmul.f32 1.0, %v737
    %v739 = vrcp.pop %v734
    %v740 = vmul.f32 1.0, %v739
    %v741 = vrcp.pop %v735
    %v742 = vmul.f32 1.0, %v741
    %v743 = vrcp.pop %v736
    %v744 = vmul.f32 1.0, %v743
    %v745 = vtanh.pop %v683
    %v746 = vtanh.pop %v687
    %v747 = vtanh.pop %v691
    %v748 = vtanh.pop %v695
    %v749 = vxor.u32 %v684, 2147483648
    %v750 = vxor.u32 %v688, 2147483648
    %v751 = vxor.u32 %v692, 2147483648
    %v752 = vxor.u32 %v696, 2147483648
    %v753 = vmul.f32 %v749, 1.442695
    %v754 = vpow.pop %v753
    %v755 = vmul.f32 %v750, 1.442695
    %v756 = vpow.pop %v755
    %v757 = vmul.f32 %v751, 1.442695
    %v758 = vpow.pop %v757
    %v759 = vmul.f32 %v752, 1.442695
    %v760 = vpow.pop %v759
    %v761 = vadd.f32 %v754, 1.0
    %v762 = vadd.f32 %v756, 1.0
    %v763 = vadd.f32 %v758, 1.0
    %v764 = vadd.f32 %v760, 1.0
    %v765 = vrcp.pop %v761
    %v766 = vmul.f32 1.0, %v765
    %v767 = vrcp.pop %v762
    %v768 = vmul.f32 1.0, %v767
    %v769 = vrcp.pop %v763
    %v770 = vmul.f32 1.0, %v769
    %v771 = vrcp.pop %v764
    %v772 = vmul.f32 1.0, %v771
    %v773 = vmul.f32 %v738, 0.0
    %v774 = vmul.f32 %v740, 0.0
    %v775 = vmul.f32 %v742, 0.0
    %v776 = vmul.f32 %v744, 0.0
    %v777 = vmul.f32 %v714, %v745
    %v778 = vmul.f32 %v716, %v746
    %v779 = vmul.f32 %v718, %v747
    %v780 = vmul.f32 %v720, %v748
    %v781 = vadd.f32 %v773, %v777
    %v782 = vadd.f32 %v774, %v778
    %v783 = vadd.f32 %v775, %v779
    %v784 = vadd.f32 %v776, %v780
    %v785 = vtanh.pop %v781
    %v786 = vtanh.pop %v782
    %v787 = vtanh.pop %v783
    %v788 = vtanh.pop %v784
    %v789 = vmul.f32 %v766, %v785
    %v790 = vmul.f32 %v768, %v786
    %v791 = vmul.f32 %v770, %v787
    %v792 = vmul.f32 %v772, %v788
    %793 = vmatprep.subr.mxu0 %v160
    %794 = vmatpush1.msra.mxu0 %v159
    %795 = vmatprep.subr.mxu0 %v164
    %796 = vmatpush1.msra.mxu0 %v163
    %797 = vmatprep.subr.mxu0 %v168
    %798 = vmatpush1.msra.mxu0 %v167
    %799 = vmatprep.subr.mxu0 %v172
    %800 = vmatpush1.msra.mxu0 %v171
    %801 = vmatprep.subr.mxu0 %v176
    %802 = vmatpush1.msra.mxu0 %v175
    %803 = vmatprep.subr.mxu0 %v180
    %804 = vmatpush1.msra.mxu0 %v179
    %805 = vmatprep.subr.mxu0 %v184
    %806 = vmatpush1.msra.mxu0 %v183
    %807 = vmatprep.subr.mxu0 %v188
    %808 = vmatpush1.msra.mxu0 %v187
    %809 = vmatprep.subr.mxu0 %v192
    %810 = vmatpush1.msra.mxu0 %v191
    %811 = vmatprep.subr.mxu0 %v196
    %812 = vmatpush1.msra.mxu0 %v195
    %813 = vmatprep.subr.mxu0 %v200
    %814 = vmatpush1.msra.mxu0 %v199
    %815 = vmatprep.subr.mxu0 %v204
    %816 = vmatpush1.msra.mxu0 %v203
    %817 = vmatprep.subr.mxu0 %v208
    %818 = vmatpush1.msra.mxu0 %v207
    %819 = vmatprep.subr.mxu0 %v212
    %820 = vmatpush1.msra.mxu0 %v211
    %821 = vmatprep.subr.mxu0 %v216
    %822 = vmatpush1.msra.mxu0 %v215
    %823 = vmatprep.subr.mxu0 %v220
    %824 = vmatpush1.msra.mxu0 %v219
    %825 = vmatprep.subr.mxu0 0.0
    %826 = vmatpush1.msra.mxu0 0.0
    %827 = vmatprep.subr.mxu0 0.0
    %828 = vmatpush1.msra.mxu0 0.0
    %829 = vmatprep.subr.mxu0 0.0
    %830 = vmatpush1.msra.mxu0 0.0
    %831 = vmatprep.subr.mxu0 0.0
    %832 = vmatpush1.msra.mxu0 0.0
    %833 = vmatprep.subr.mxu0 0.0
    %834 = vmatpush1.msra.mxu0 0.0
    %835 = vmatprep.subr.mxu0 0.0
    %836 = vmatpush1.msra.mxu0 0.0
    %837 = vmatprep.subr.mxu0 0.0
    %838 = vmatpush1.msra.mxu0 0.0
    %839 = vmatprep.subr.mxu0 0.0
    %840 = vmatpush1.msra.mxu0 0.0
    %841 = vmatprep.subr.mxu0 0.0
    %842 = vmatpush1.msra.mxu0 0.0
    %843 = vmatprep.subr.mxu0 0.0
    %844 = vmatpush1.msra.mxu0 0.0
    %845 = vmatprep.subr.mxu0 0.0
    %846 = vmatpush1.msra.mxu0 0.0
    %847 = vmatprep.subr.mxu0 0.0
    %848 = vmatpush1.msra.mxu0 0.0
    %849 = vmatprep.subr.mxu0 0.0
    %850 = vmatpush1.msra.mxu0 0.0
    %851 = vmatprep.subr.mxu0 0.0
    %852 = vmatpush1.msra.mxu0 0.0
    %853 = vmatprep.subr.mxu0 0.0
    %854 = vmatpush1.msra.mxu0 0.0
    %855 = vmatprep.subr.mxu0 0.0
    %856 = vmatpush1.msra.mxu0 0.0
    %857 = vmatprep.mubr.f32.mxu0 0.0
    %858 = vmatmul.mubr.f32.gmra.mrb[0].mxu0 %v789
    %v859 = vpop.f32.mrb[0].mxu0
    %v860 = vadd.f32 %v554, %v859
    %v861 = vpop.f32.mrb[0].mxu0
    %v862 = vadd.f32 %v556, %v861
    %863 = vmatprep.mubr.f32.mxu0 0.0
    %864 = vmatmul.mubr.f32.gmra.mrb[0].mxu0 %v790
    %v865 = vpop.f32.mrb[0].mxu0
    %v866 = vadd.f32 %v560, %v865
    %v867 = vpop.f32.mrb[0].mxu0
    %v868 = vadd.f32 %v562, %v867
    %869 = vmatprep.mubr.f32.mxu0 0.0
    %870 = vmatmul.mubr.f32.gmra.mrb[0].mxu0 %v791
    %v871 = vpop.f32.mrb[0].mxu0
    %v872 = vadd.f32 %v566, %v871
    %v873 = vpop.f32.mrb[0].mxu0
    %v874 = vadd.f32 %v568, %v873
    %875 = vmatprep.mubr.f32.mxu0 0.0
    %876 = vmatmul.mubr.f32.gmra.mrb[0].mxu0 %v792
    %v877 = vpop.f32.mrb[0].mxu0
    %v878 = vadd.f32 %v572, %v877
    %v879 = vpop.f32.mrb[0].mxu0
    %v880 = vadd.f32 %v574, %v879
    %881 = vdwg.mxu0
    %882 = vmatprep.subr.mxu0 %v162
    %883 = vmatpush1.msra.mxu0 %v161
    %884 = vmatprep.subr.mxu0 %v166
    %885 = vmatpush1.msra.mxu0 %v165
    %886 = vmatprep.subr.mxu0 %v170
    %887 = vmatpush1.msra.mxu0 %v169
    %888 = vmatprep.subr.mxu0 %v174
    %889 = vmatpush1.msra.mxu0 %v173
    %890 = vmatprep.subr.mxu0 %v178
    %891 = vmatpush1.msra.mxu0 %v177
    %892 = vmatprep.subr.mxu0 %v182
    %893 = vmatpush1.msra.mxu0 %v181
    %894 = vmatprep.subr.mxu0 %v186
    %895 = vmatpush1.msra.mxu0 %v185
    %896 = vmatprep.subr.mxu0 %v190
    %897 = vmatpush1.msra.mxu0 %v189
    %898 = vmatprep.subr.mxu0 %v194
    %899 = vmatpush1.msra.mxu0 %v193
    %900 = vmatprep.subr.mxu0 %v198
    %901 = vmatpush1.msra.mxu0 %v197
    %902 = vmatprep.subr.mxu0 %v202
    %903 = vmatpush1.msra.mxu0 %v201
    %904 = vmatprep.subr.mxu0 %v206
    %905 = vmatpush1.msra.mxu0 %v205
    %906 = vmatprep.subr.mxu0 %v210
    %907 = vmatpush1.msra.mxu0 %v209
    %908 = vmatprep.subr.mxu0 %v214
    %909 = vmatpush1.msra.mxu0 %v213
    %910 = vmatprep.subr.mxu0 %v218
    %911 = vmatpush1.msra.mxu0 %v217
    %912 = vmatprep.subr.mxu0 %v222
    %913 = vmatpush1.msra.mxu0 %v221
    %914 = vmatprep.subr.mxu0 0.0
    %915 = vmatpush1.msra.mxu0 0.0
    %916 = vmatprep.subr.mxu0 0.0
    %917 = vmatpush1.msra.mxu0 0.0
    %918 = vmatprep.subr.mxu0 0.0
    %919 = vmatpush1.msra.mxu0 0.0
    %920 = vmatprep.subr.mxu0 0.0
    %921 = vmatpush1.msra.mxu0 0.0
    %922 = vmatprep.subr.mxu0 0.0
    %923 = vmatpush1.msra.mxu0 0.0
    %924 = vmatprep.subr.mxu0 0.0
    %925 = vmatpush1.msra.mxu0 0.0
    %926 = vmatprep.subr.mxu0 0.0
    %927 = vmatpush1.msra.mxu0 0.0
    %928 = vmatprep.subr.mxu0 0.0
    %929 = vmatpush1.msra.mxu0 0.0
    %930 = vmatprep.subr.mxu0 0.0
    %931 = vmatpush1.msra.mxu0 0.0
    %932 = vmatprep.subr.mxu0 0.0
    %933 = vmatpush1.msra.mxu0 0.0
    %934 = vmatprep.subr.mxu0 0.0
    %935 = vmatpush1.msra.mxu0 0.0
    %936 = vmatprep.subr.mxu0 0.0
    %937 = vmatpush1.msra.mxu0 0.0
    %938 = vmatprep.subr.mxu0 0.0
    %939 = vmatpush1.msra.mxu0 0.0
    %940 = vmatprep.subr.mxu0 0.0
    %941 = vmatpush1.msra.mxu0 0.0
    %942 = vmatprep.subr.mxu0 0.0
    %943 = vmatpush1.msra.mxu0 0.0
    %944 = vmatprep.subr.mxu0 0.0
    %945 = vmatpush1.msra.mxu0 0.0
    %946 = vmatprep.mubr.f32.mxu0 0.0
    %947 = vmatmul.mubr.f32.gmra.mrb[0].mxu0 %v789
    %v948 = vpop.f32.mrb[0].mxu0
    %v949 = vadd.f32 %v643, %v948
    %v950 = vpop.f32.mrb[0].mxu0
    %v951 = vadd.f32 %v645, %v950
    %952 = vmatprep.mubr.f32.mxu0 0.0
    %953 = vmatmul.mubr.f32.gmra.mrb[0].mxu0 %v790
    %v954 = vpop.f32.mrb[0].mxu0
    %v955 = vadd.f32 %v649, %v954
    %v956 = vpop.f32.mrb[0].mxu0
    %v957 = vadd.f32 %v651, %v956
    %958 = vmatprep.mubr.f32.mxu0 0.0
    %959 = vmatmul.mubr.f32.gmra.mrb[0].mxu0 %v791
    %v960 = vpop.f32.mrb[0].mxu0
    %v961 = vadd.f32 %v655, %v960
    %v962 = vpop.f32.mrb[0].mxu0
    %v963 = vadd.f32 %v657, %v962
    %964 = vmatprep.mubr.f32.mxu0 0.0
    %965 = vmatmul.mubr.f32.gmra.mrb[0].mxu0 %v792
    %v966 = vpop.f32.mrb[0].mxu0
    %v967 = vadd.f32 %v661, %v966
    %v968 = vpop.f32.mrb[0].mxu0
    %v969 = vadd.f32 %v663, %v968
    %970 = vdwg.mxu0
    %v971 = vadd.f32 %v860, %v292
    %v972 = vadd.f32 %v862, %v296
    %v973 = vadd.f32 %v949, %v300
    %v974 = vadd.f32 %v951, %v304
    %v975 = vadd.f32 %v866, %v292
    %v976 = vadd.f32 %v868, %v296
    %v977 = vadd.f32 %v955, %v300
    %v978 = vadd.f32 %v957, %v304
    %v979 = vadd.f32 %v872, %v292
    %v980 = vadd.f32 %v874, %v296
    %v981 = vadd.f32 %v961, %v300
    %v982 = vadd.f32 %v963, %v304
    %v983 = vadd.f32 %v878, %v292
    %v984 = vadd.f32 %v880, %v296
    %v985 = vadd.f32 %v967, %v300
    %v986 = vadd.f32 %v969, %v304
    %v987 = vxor.u32 %v971, 2147483648
    %v988 = vxor.u32 %v975, 2147483648
    %v989 = vxor.u32 %v979, 2147483648
    %v990 = vxor.u32 %v983, 2147483648
    %v991 = vmul.f32 %v987, 1.442695
    %v992 = vpow.pop %v991
    %v993 = vmul.f32 %v988, 1.442695
    %v994 = vpow.pop %v993
    %v995 = vmul.f32 %v989, 1.442695
    %v996 = vpow.pop %v995
    %v997 = vmul.f32 %v990, 1.442695
    %v998 = vpow.pop %v997
    %v999 = vadd.f32 %v992, 1.0
    %v1000 = vadd.f32 %v994, 1.0
    %v1001 = vadd.f32 %v996, 1.0
    %v1002 = vadd.f32 %v998, 1.0
    %v1003 = vrcp.pop %v999
    %v1004 = vmul.f32 1.0, %v1003
    %v1005 = vrcp.pop %v1000
    %v1006 = vmul.f32 1.0, %v1005
    %v1007 = vrcp.pop %v1001
    %v1008 = vmul.f32 1.0, %v1007
    %v1009 = vrcp.pop %v1002
    %v1010 = vmul.f32 1.0, %v1009
    %v1011 = vxor.u32 %v972, 2147483648
    %v1012 = vxor.u32 %v976, 2147483648
    %v1013 = vxor.u32 %v980, 2147483648
    %v1014 = vxor.u32 %v984, 2147483648
    %v1015 = vmul.f32 %v1011, 1.442695
    %v1016 = vpow.pop %v1015
    %v1017 = vmul.f32 %v1012, 1.442695
    %v1018 = vpow.pop %v1017
    %v1019 = vmul.f32 %v1013, 1.442695
    %v1020 = vpow.pop %v1019
    %v1021 = vmul.f32 %v1014, 1.442695
    %v1022 = vpow.pop %v1021
    %v1023 = vadd.f32 %v1016, 1.0
    %v1024 = vadd.f32 %v1018, 1.0
    %v1025 = vadd.f32 %v1020, 1.0
    %v1026 = vadd.f32 %v1022, 1.0
    %v1027 = vrcp.pop %v1023
    %v1028 = vmul.f32 1.0, %v1027
    %v1029 = vrcp.pop %v1024
    %v1030 = vmul.f32 1.0, %v1029
    %v1031 = vrcp.pop %v1025
    %v1032 = vmul.f32 1.0, %v1031
    %v1033 = vrcp.pop %v1026
    %v1034 = vmul.f32 1.0, %v1033
    %v1035 = vtanh.pop %v973
    %v1036 = vtanh.pop %v977
    %v1037 = vtanh.pop %v981
    %v1038 = vtanh.pop %v985
    %v1039 = vxor.u32 %v974, 2147483648
    %v1040 = vxor.u32 %v978, 2147483648
    %v1041 = vxor.u32 %v982, 2147483648
    %v1042 = vxor.u32 %v986, 2147483648
    %v1043 = vmul.f32 %v1039, 1.442695
    %v1044 = vpow.pop %v1043
    %v1045 = vmul.f32 %v1040, 1.442695
    %v1046 = vpow.pop %v1045
    %v1047 = vmul.f32 %v1041, 1.442695
    %v1048 = vpow.pop %v1047
    %v1049 = vmul.f32 %v1042, 1.442695
    %v1050 = vpow.pop %v1049
    %v1051 = vadd.f32 %v1044, 1.0
    %v1052 = vadd.f32 %v1046, 1.0
    %v1053 = vadd.f32 %v1048, 1.0
    %v1054 = vadd.f32 %v1050, 1.0
    %v1055 = vrcp.pop %v1051
    %v1056 = vmul.f32 1.0, %v1055
    %v1057 = vrcp.pop %v1052
    %v1058 = vmul.f32 1.0, %v1057
    %v1059 = vrcp.pop %v1053
    %v1060 = vmul.f32 1.0, %v1059
    %v1061 = vrcp.pop %v1054
    %v1062 = vmul.f32 1.0, %v1061
    %v1063 = vmul.f32 %v1028, 0.0
    %v1064 = vmul.f32 %v1030, 0.0
    %v1065 = vmul.f32 %v1032, 0.0
    %v1066 = vmul.f32 %v1034, 0.0
    %v1067 = vmul.f32 %v1004, %v1035
    %v1068 = vmul.f32 %v1006, %v1036
    %v1069 = vmul.f32 %v1008, %v1037
    %v1070 = vmul.f32 %v1010, %v1038
    %v1071 = vadd.f32 %v1063, %v1067
    %v1072 = vadd.f32 %v1064, %v1068
    %v1073 = vadd.f32 %v1065, %v1069
    %v1074 = vadd.f32 %v1066, %v1070
    %v1075 = vtanh.pop %v1071
    %v1076 = vtanh.pop %v1072
    %v1077 = vtanh.pop %v1073
    %v1078 = vtanh.pop %v1074
    %v1079 = vmul.f32 %v1056, %v1075
    %v1080 = vmul.f32 %v1058, %v1076
    %v1081 = vmul.f32 %v1060, %v1077
    %v1082 = vmul.f32 %v1062, %v1078
    %1083 = vmatprep.subr.mxu0 %v96
    %1084 = vmatpush1.msra.mxu0 %v95
    %1085 = vmatprep.subr.mxu0 %v100
    %1086 = vmatpush1.msra.mxu0 %v99
    %1087 = vmatprep.subr.mxu0 %v104
    %1088 = vmatpush1.msra.mxu0 %v103
    %1089 = vmatprep.subr.mxu0 %v108
    %1090 = vmatpush1.msra.mxu0 %v107
    %1091 = vmatprep.subr.mxu0 %v112
    %1092 = vmatpush1.msra.mxu0 %v111
    %1093 = vmatprep.subr.mxu0 %v116
    %1094 = vmatpush1.msra.mxu0 %v115
    %1095 = vmatprep.subr.mxu0 %v120
    %1096 = vmatpush1.msra.mxu0 %v119
    %1097 = vmatprep.subr.mxu0 %v124
    %1098 = vmatpush1.msra.mxu0 %v123
    %1099 = vmatprep.subr.mxu0 %v128
    %1100 = vmatpush1.msra.mxu0 %v127
    %1101 = vmatprep.subr.mxu0 %v132
    %1102 = vmatpush1.msra.mxu0 %v131
    %1103 = vmatprep.subr.mxu0 %v136
    %1104 = vmatpush1.msra.mxu0 %v135
    %1105 = vmatprep.subr.mxu0 %v140
    %1106 = vmatpush1.msra.mxu0 %v139
    %1107 = vmatprep.subr.mxu0 %v144
    %1108 = vmatpush1.msra.mxu0 %v143
    %1109 = vmatprep.subr.mxu0 %v148
    %1110 = vmatpush1.msra.mxu0 %v147
    %1111 = vmatprep.subr.mxu0 %v152
    %1112 = vmatpush1.msra.mxu0 %v151
    %1113 = vmatprep.subr.mxu0 %v156
    %1114 = vmatpush1.msra.mxu0 %v155
    %1115 = vmatprep.subr.mxu0 0.0
    %1116 = vmatpush1.msra.mxu0 0.0
    %1117 = vmatprep.subr.mxu0 0.0
    %1118 = vmatpush1.msra.mxu0 0.0
    %1119 = vmatprep.subr.mxu0 0.0
    %1120 = vmatpush1.msra.mxu0 0.0
    %1121 = vmatprep.subr.mxu0 0.0
    %1122 = vmatpush1.msra.mxu0 0.0
    %1123 = vmatprep.subr.mxu0 0.0
    %1124 = vmatpush1.msra.mxu0 0.0
    %1125 = vmatprep.subr.mxu0 0.0
    %1126 = vmatpush1.msra.mxu0 0.0
    %1127 = vmatprep.subr.mxu0 0.0
    %1128 = vmatpush1.msra.mxu0 0.0
    %1129 = vmatprep.subr.mxu0 0.0
    %1130 = vmatpush1.msra.mxu0 0.0
    %1131 = vmatprep.subr.mxu0 0.0
    %1132 = vmatpush1.msra.mxu0 0.0
    %1133 = vmatprep.subr.mxu0 0.0
    %1134 = vmatpush1.msra.mxu0 0.0
    %1135 = vmatprep.subr.mxu0 0.0
    %1136 = vmatpush1.msra.mxu0 0.0
    %1137 = vmatprep.subr.mxu0 0.0
    %1138 = vmatpush1.msra.mxu0 0.0
    %1139 = vmatprep.subr.mxu0 0.0
    %1140 = vmatpush1.msra.mxu0 0.0
    %1141 = vmatprep.subr.mxu0 0.0
    %1142 = vmatpush1.msra.mxu0 0.0
    %1143 = vmatprep.subr.mxu0 0.0
    %1144 = vmatpush1.msra.mxu0 0.0
    %1145 = vmatprep.subr.mxu0 0.0
    %1146 = vmatpush1.msra.mxu0 0.0
    %1147 = vmatprep.mubr.f32.mxu0 0.0
    %1148 = vmatmul.mubr.f32.gmra.mrb[0].mxu0 %v789
    %v1149 = vpop.f32.mrb[0].mxu0
    %v1150 = vadd.f32 0.0, %v1149
    %v1151 = vpop.f32.mrb[0].mxu0
    %v1152 = vadd.f32 0.0, %v1151
    %1153 = vmatprep.mubr.f32.mxu0 0.0
    %1154 = vmatmul.mubr.f32.gmra.mrb[0].mxu0 %v790
    %v1155 = vpop.f32.mrb[0].mxu0
    %v1156 = vadd.f32 0.0, %v1155
    %v1157 = vpop.f32.mrb[0].mxu0
    %v1158 = vadd.f32 0.0, %v1157
    %1159 = vmatprep.mubr.f32.mxu0 0.0
    %1160 = vmatmul.mubr.f32.gmra.mrb[0].mxu0 %v791
    %v1161 = vpop.f32.mrb[0].mxu0
    %v1162 = vadd.f32 0.0, %v1161
    %v1163 = vpop.f32.mrb[0].mxu0
    %v1164 = vadd.f32 0.0, %v1163
    %1165 = vmatprep.mubr.f32.mxu0 0.0
    %1166 = vmatmul.mubr.f32.gmra.mrb[0].mxu0 %v792
    %v1167 = vpop.f32.mrb[0].mxu0
    %v1168 = vadd.f32 0.0, %v1167
    %v1169 = vpop.f32.mrb[0].mxu0
    %v1170 = vadd.f32 0.0, %v1169
    %1171 = vdwg.mxu0
    %1172 = vmatprep.subr.mxu0 %v98
    %1173 = vmatpush1.msra.mxu0 %v97
    %1174 = vmatprep.subr.mxu0 %v102
    %1175 = vmatpush1.msra.mxu0 %v101
    %1176 = vmatprep.subr.mxu0 %v106
    %1177 = vmatpush1.msra.mxu0 %v105
    %1178 = vmatprep.subr.mxu0 %v110
    %1179 = vmatpush1.msra.mxu0 %v109
    %1180 = vmatprep.subr.mxu0 %v114
    %1181 = vmatpush1.msra.mxu0 %v113
    %1182 = vmatprep.subr.mxu0 %v118
    %1183 = vmatpush1.msra.mxu0 %v117
    %1184 = vmatprep.subr.mxu0 %v122
    %1185 = vmatpush1.msra.mxu0 %v121
    %1186 = vmatprep.subr.mxu0 %v126
    %1187 = vmatpush1.msra.mxu0 %v125
    %1188 = vmatprep.subr.mxu0 %v130
    %1189 = vmatpush1.msra.mxu0 %v129
    %1190 = vmatprep.subr.mxu0 %v134
    %1191 = vmatpush1.msra.mxu0 %v133
    %1192 = vmatprep.subr.mxu0 %v138
    %1193 = vmatpush1.msra.mxu0 %v137
    %1194 = vmatprep.subr.mxu0 %v142
    %1195 = vmatpush1.msra.mxu0 %v141
    %1196 = vmatprep.subr.mxu0 %v146
    %1197 = vmatpush1.msra.mxu0 %v145
    %1198 = vmatprep.subr.mxu0 %v150
    %1199 = vmatpush1.msra.mxu0 %v149
    %1200 = vmatprep.subr.mxu0 %v154
    %1201 = vmatpush1.msra.mxu0 %v153
    %1202 = vmatprep.subr.mxu0 %v158
    %1203 = vmatpush1.msra.mxu0 %v157
    %1204 = vmatprep.subr.mxu0 0.0
    %1205 = vmatpush1.msra.mxu0 0.0
    %1206 = vmatprep.subr.mxu0 0.0
    %1207 = vmatpush1.msra.mxu0 0.0
    %1208 = vmatprep.subr.mxu0 0.0
    %1209 = vmatpush1.msra.mxu0 0.0
    %1210 = vmatprep.subr.mxu0 0.0
    %1211 = vmatpush1.msra.mxu0 0.0
    %1212 = vmatprep.subr.mxu0 0.0
    %1213 = vmatpush1.msra.mxu0 0.0
    %1214 = vmatprep.subr.mxu0 0.0
    %1215 = vmatpush1.msra.mxu0 0.0
    %1216 = vmatprep.subr.mxu0 0.0
    %1217 = vmatpush1.msra.mxu0 0.0
    %1218 = vmatprep.subr.mxu0 0.0
    %1219 = vmatpush1.msra.mxu0 0.0
    %1220 = vmatprep.subr.mxu0 0.0
    %1221 = vmatpush1.msra.mxu0 0.0
    %1222 = vmatprep.subr.mxu0 0.0
    %1223 = vmatpush1.msra.mxu0 0.0
    %1224 = vmatprep.subr.mxu0 0.0
    %1225 = vmatpush1.msra.mxu0 0.0
    %1226 = vmatprep.subr.mxu0 0.0
    %1227 = vmatpush1.msra.mxu0 0.0
    %1228 = vmatprep.subr.mxu0 0.0
    %1229 = vmatpush1.msra.mxu0 0.0
    %1230 = vmatprep.subr.mxu0 0.0
    %1231 = vmatpush1.msra.mxu0 0.0
    %1232 = vmatprep.subr.mxu0 0.0
    %1233 = vmatpush1.msra.mxu0 0.0
    %1234 = vmatprep.subr.mxu0 0.0
    %1235 = vmatpush1.msra.mxu0 0.0
    %1236 = vmatprep.mubr.f32.mxu0 0.0
    %1237 = vmatmul.mubr.f32.gmra.mrb[0].mxu0 %v789
    %v1238 = vpop.f32.mrb[0].mxu0
    %v1239 = vadd.f32 0.0, %v1238
    %v1240 = vpop.f32.mrb[0].mxu0
    %v1241 = vadd.f32 0.0, %v1240
    %1242 = vmatprep.mubr.f32.mxu0 0.0
    %1243 = vmatmul.mubr.f32.gmra.mrb[0].mxu0 %v790
    %v1244 = vpop.f32.mrb[0].mxu0
    %v1245 = vadd.f32 0.0, %v1244
    %v1246 = vpop.f32.mrb[0].mxu0
    %v1247 = vadd.f32 0.0, %v1246
    %1248 = vmatprep.mubr.f32.mxu0 0.0
    %1249 = vmatmul.mubr.f32.gmra.mrb[0].mxu0 %v791
    %v1250 = vpop.f32.mrb[0].mxu0
    %v1251 = vadd.f32 0.0, %v1250
    %v1252 = vpop.f32.mrb[0].mxu0
    %v1253 = vadd.f32 0.0, %v1252
    %1254 = vmatprep.mubr.f32.mxu0 0.0
    %1255 = vmatmul.mubr.f32.gmra.mrb[0].mxu0 %v792
    %v1256 = vpop.f32.mrb[0].mxu0
    %v1257 = vadd.f32 0.0, %v1256
    %v1258 = vpop.f32.mrb[0].mxu0
    %v1259 = vadd.f32 0.0, %v1258
    %1260 = vdwg.mxu0
    %1261 = vmatprep.subr.mxu0 %v224
    %1262 = vmatpush1.msra.mxu0 %v223
    %1263 = vmatprep.subr.mxu0 %v228
    %1264 = vmatpush1.msra.mxu0 %v227
    %1265 = vmatprep.subr.mxu0 %v232
    %1266 = vmatpush1.msra.mxu0 %v231
    %1267 = vmatprep.subr.mxu0 %v236
    %1268 = vmatpush1.msra.mxu0 %v235
    %1269 = vmatprep.subr.mxu0 %v240
    %1270 = vmatpush1.msra.mxu0 %v239
    %1271 = vmatprep.subr.mxu0 %v244
    %1272 = vmatpush1.msra.mxu0 %v243
    %1273 = vmatprep.subr.mxu0 %v248
    %1274 = vmatpush1.msra.mxu0 %v247
    %1275 = vmatprep.subr.mxu0 %v252
    %1276 = vmatpush1.msra.mxu0 %v251
    %1277 = vmatprep.subr.mxu0 %v256
    %1278 = vmatpush1.msra.mxu0 %v255
    %1279 = vmatprep.subr.mxu0 %v260
    %1280 = vmatpush1.msra.mxu0 %v259
    %1281 = vmatprep.subr.mxu0 %v264
    %1282 = vmatpush1.msra.mxu0 %v263
    %1283 = vmatprep.subr.mxu0 %v268
    %1284 = vmatpush1.msra.mxu0 %v267
    %1285 = vmatprep.subr.mxu0 %v272
    %1286 = vmatpush1.msra.mxu0 %v271
    %1287 = vmatprep.subr.mxu0 %v276
    %1288 = vmatpush1.msra.mxu0 %v275
    %1289 = vmatprep.subr.mxu0 %v280
    %1290 = vmatpush1.msra.mxu0 %v279
    %1291 = vmatprep.subr.mxu0 %v284
    %1292 = vmatpush1.msra.mxu0 %v283
    %1293 = vmatprep.subr.mxu0 0.0
    %1294 = vmatpush1.msra.mxu0 0.0
    %1295 = vmatprep.subr.mxu0 0.0
    %1296 = vmatpush1.msra.mxu0 0.0
    %1297 = vmatprep.subr.mxu0 0.0
    %1298 = vmatpush1.msra.mxu0 0.0
    %1299 = vmatprep.subr.mxu0 0.0
    %1300 = vmatpush1.msra.mxu0 0.0
    %1301 = vmatprep.subr.mxu0 0.0
    %1302 = vmatpush1.msra.mxu0 0.0
    %1303 = vmatprep.subr.mxu0 0.0
    %1304 = vmatpush1.msra.mxu0 0.0
    %1305 = vmatprep.subr.mxu0 0.0
    %1306 = vmatpush1.msra.mxu0 0.0
    %1307 = vmatprep.subr.mxu0 0.0
    %1308 = vmatpush1.msra.mxu0 0.0
    %1309 = vmatprep.subr.mxu0 0.0
    %1310 = vmatpush1.msra.mxu0 0.0
    %1311 = vmatprep.subr.mxu0 0.0
    %1312 = vmatpush1.msra.mxu0 0.0
    %1313 = vmatprep.subr.mxu0 0.0
    %1314 = vmatpush1.msra.mxu0 0.0
    %1315 = vmatprep.subr.mxu0 0.0
    %1316 = vmatpush1.msra.mxu0 0.0
    %1317 = vmatprep.subr.mxu0 0.0
    %1318 = vmatpush1.msra.mxu0 0.0
    %1319 = vmatprep.subr.mxu0 0.0
    %1320 = vmatpush1.msra.mxu0 0.0
    %1321 = vmatprep.subr.mxu0 0.0
    %1322 = vmatpush1.msra.mxu0 0.0
    %1323 = vmatprep.subr.mxu0 0.0
    %1324 = vmatpush1.msra.mxu0 0.0
    %1325 = vmatprep.mubr.f32.mxu0 0.0
    %1326 = vmatmul.mubr.f32.gmra.mrb[0].mxu0 %v1079
    %v1327 = vpop.f32.mrb[0].mxu0
    %v1328 = vadd.f32 0.0, %v1327
    %v1329 = vpop.f32.mrb[0].mxu0
    %v1330 = vadd.f32 0.0, %v1329
    %1331 = vmatprep.mubr.f32.mxu0 0.0
    %1332 = vmatmul.mubr.f32.gmra.mrb[0].mxu0 %v1080
    %v1333 = vpop.f32.mrb[0].mxu0
    %v1334 = vadd.f32 0.0, %v1333
    %v1335 = vpop.f32.mrb[0].mxu0
    %v1336 = vadd.f32 0.0, %v1335
    %1337 = vmatprep.mubr.f32.mxu0 0.0
    %1338 = vmatmul.mubr.f32.gmra.mrb[0].mxu0 %v1081
    %v1339 = vpop.f32.mrb[0].mxu0
    %v1340 = vadd.f32 0.0, %v1339
    %v1341 = vpop.f32.mrb[0].mxu0
    %v1342 = vadd.f32 0.0, %v1341
    %1343 = vmatprep.mubr.f32.mxu0 0.0
    %1344 = vmatmul.mubr.f32.gmra.mrb[0].mxu0 %v1082
    %v1345 = vpop.f32.mrb[0].mxu0
    %v1346 = vadd.f32 0.0, %v1345
    %v1347 = vpop.f32.mrb[0].mxu0
    %v1348 = vadd.f32 0.0, %v1347
    %1349 = vdwg.mxu0
    %1350 = vmatprep.subr.mxu0 %v226
    %1351 = vmatpush1.msra.mxu0 %v225
    %1352 = vmatprep.subr.mxu0 %v230
    %1353 = vmatpush1.msra.mxu0 %v229
    %1354 = vmatprep.subr.mxu0 %v234
    %1355 = vmatpush1.msra.mxu0 %v233
    %1356 = vmatprep.subr.mxu0 %v238
    %1357 = vmatpush1.msra.mxu0 %v237
    %1358 = vmatprep.subr.mxu0 %v242
    %1359 = vmatpush1.msra.mxu0 %v241
    %1360 = vmatprep.subr.mxu0 %v246
    %1361 = vmatpush1.msra.mxu0 %v245
    %1362 = vmatprep.subr.mxu0 %v250
    %1363 = vmatpush1.msra.mxu0 %v249
    %1364 = vmatprep.subr.mxu0 %v254
    %1365 = vmatpush1.msra.mxu0 %v253
    %1366 = vmatprep.subr.mxu0 %v258
    %1367 = vmatpush1.msra.mxu0 %v257
    %1368 = vmatprep.subr.mxu0 %v262
    %1369 = vmatpush1.msra.mxu0 %v261
    %1370 = vmatprep.subr.mxu0 %v266
    %1371 = vmatpush1.msra.mxu0 %v265
    %1372 = vmatprep.subr.mxu0 %v270
    %1373 = vmatpush1.msra.mxu0 %v269
    %1374 = vmatprep.subr.mxu0 %v274
    %1375 = vmatpush1.msra.mxu0 %v273
    %1376 = vmatprep.subr.mxu0 %v278
    %1377 = vmatpush1.msra.mxu0 %v277
    %1378 = vmatprep.subr.mxu0 %v282
    %1379 = vmatpush1.msra.mxu0 %v281
    %1380 = vmatprep.subr.mxu0 %v286
    %1381 = vmatpush1.msra.mxu0 %v285
    %1382 = vmatprep.subr.mxu0 0.0
    %1383 = vmatpush1.msra.mxu0 0.0
    %1384 = vmatprep.subr.mxu0 0.0
    %1385 = vmatpush1.msra.mxu0 0.0
    %1386 = vmatprep.subr.mxu0 0.0
    %1387 = vmatpush1.msra.mxu0 0.0
    %1388 = vmatprep.subr.mxu0 0.0
    %1389 = vmatpush1.msra.mxu0 0.0
    %1390 = vmatprep.subr.mxu0 0.0
    %1391 = vmatpush1.msra.mxu0 0.0
    %1392 = vmatprep.subr.mxu0 0.0
    %1393 = vmatpush1.msra.mxu0 0.0
    %1394 = vmatprep.subr.mxu0 0.0
    %1395 = vmatpush1.msra.mxu0 0.0
    %1396 = vmatprep.subr.mxu0 0.0
    %1397 = vmatpush1.msra.mxu0 0.0
    %1398 = vmatprep.subr.mxu0 0.0
    %1399 = vmatpush1.msra.mxu0 0.0
    %1400 = vmatprep.subr.mxu0 0.0
    %1401 = vmatpush1.msra.mxu0 0.0
    %1402 = vmatprep.subr.mxu0 0.0
    %1403 = vmatpush1.msra.mxu0 0.0
    %1404 = vmatprep.subr.mxu0 0.0
    %1405 = vmatpush1.msra.mxu0 0.0
    %1406 = vmatprep.subr.mxu0 0.0
    %1407 = vmatpush1.msra.mxu0 0.0
    %1408 = vmatprep.subr.mxu0 0.0
    %1409 = vmatpush1.msra.mxu0 0.0
    %1410 = vmatprep.subr.mxu0 0.0
    %1411 = vmatpush1.msra.mxu0 0.0
    %1412 = vmatprep.subr.mxu0 0.0
    %1413 = vmatpush1.msra.mxu0 0.0
    %1414 = vmatprep.mubr.f32.mxu0 0.0
    %1415 = vmatmul.mubr.f32.gmra.mrb[0].mxu0 %v1079
    %v1416 = vpop.f32.mrb[0].mxu0
    %v1417 = vadd.f32 0.0, %v1416
    %v1418 = vpop.f32.mrb[0].mxu0
    %v1419 = vadd.f32 0.0, %v1418
    %1420 = vmatprep.mubr.f32.mxu0 0.0
    %1421 = vmatmul.mubr.f32.gmra.mrb[0].mxu0 %v1080
    %v1422 = vpop.f32.mrb[0].mxu0
    %v1423 = vadd.f32 0.0, %v1422
    %v1424 = vpop.f32.mrb[0].mxu0
    %v1425 = vadd.f32 0.0, %v1424
    %1426 = vmatprep.mubr.f32.mxu0 0.0
    %1427 = vmatmul.mubr.f32.gmra.mrb[0].mxu0 %v1081
    %v1428 = vpop.f32.mrb[0].mxu0
    %v1429 = vadd.f32 0.0, %v1428
    %v1430 = vpop.f32.mrb[0].mxu0
    %v1431 = vadd.f32 0.0, %v1430
    %1432 = vmatprep.mubr.f32.mxu0 0.0
    %1433 = vmatmul.mubr.f32.gmra.mrb[0].mxu0 %v1082
    %v1434 = vpop.f32.mrb[0].mxu0
    %v1435 = vadd.f32 0.0, %v1434
    %v1436 = vpop.f32.mrb[0].mxu0
    %v1437 = vadd.f32 0.0, %v1436
    %1438 = vdwg.mxu0
    %s1439 = scalar_lea.vmem [#allocation2], 128
    %v1440 = vld [vmem:[%s1439] sm:$0xff]
    %v1441 = vld [vmem:[%s1439 + $0x8] sm:$0xff]
    %v1442 = vld [vmem:[%s1439 + $0x10] sm:$0xff]
    %v1443 = vld [vmem:[%s1439 + $0x18] sm:$0xff]
    %v1444 = vld [vmem:[%s1439 + $0x20] sm:$0xff]
    %v1445 = vld [vmem:[%s1439 + $0x28] sm:$0xff]
    %v1446 = vld [vmem:[%s1439 + $0x30] sm:$0xff]
    %v1447 = vld [vmem:[%s1439 + $0x38] sm:$0xff]
    %v1448 = vld [vmem:[%s1439 + $0x40] sm:$0xff]
    %v1449 = vld [vmem:[%s1439 + $0x48] sm:$0xff]
    %v1450 = vld [vmem:[%s1439 + $0x50] sm:$0xff]
    %v1451 = vld [vmem:[%s1439 + $0x58] sm:$0xff]
    %v1452 = vld [vmem:[%s1439 + $0x60] sm:$0xff]
    %v1453 = vld [vmem:[%s1439 + $0x68] sm:$0xff]
    %v1454 = vld [vmem:[%s1439 + $0x70] sm:$0xff]
    %v1455 = vld [vmem:[%s1439 + $0x78] sm:$0xff]
    %v1456 = vadd.f32 %v1440, %v1150
    %v1457 = vadd.f32 %v1441, %v1152
    %v1458 = vadd.f32 %v1442, %v1239
    %v1459 = vadd.f32 %v1443, %v1241
    %v1460 = vadd.f32 %v1444, %v1156
    %v1461 = vadd.f32 %v1445, %v1158
    %v1462 = vadd.f32 %v1446, %v1245
    %v1463 = vadd.f32 %v1447, %v1247
    %v1464 = vadd.f32 %v1448, %v1162
    %v1465 = vadd.f32 %v1449, %v1164
    %v1466 = vadd.f32 %v1450, %v1251
    %v1467 = vadd.f32 %v1451, %v1253
    %v1468 = vadd.f32 %v1452, %v1168
    %v1469 = vadd.f32 %v1453, %v1170
    %v1470 = vadd.f32 %v1454, %v1257
    %v1471 = vadd.f32 %v1455, %v1259
    %v1472 = vxor.u32 %v1456, 2147483648
    %v1473 = vxor.u32 %v1460, 2147483648
    %v1474 = vxor.u32 %v1464, 2147483648
    %v1475 = vxor.u32 %v1468, 2147483648
    %v1476 = vmul.f32 %v1472, 1.442695
    %v1477 = vpow.pop %v1476
    %v1478 = vmul.f32 %v1473, 1.442695
    %v1479 = vpow.pop %v1478
    %v1480 = vmul.f32 %v1474, 1.442695
    %v1481 = vpow.pop %v1480
    %v1482 = vmul.f32 %v1475, 1.442695
    %v1483 = vpow.pop %v1482
    %v1484 = vadd.f32 %v1477, 1.0
    %v1485 = vadd.f32 %v1479, 1.0
    %v1486 = vadd.f32 %v1481, 1.0
    %v1487 = vadd.f32 %v1483, 1.0
    %v1488 = vrcp.pop %v1484
    %v1489 = vmul.f32 1.0, %v1488
    %v1490 = vrcp.pop %v1485
    %v1491 = vmul.f32 1.0, %v1490
    %v1492 = vrcp.pop %v1486
    %v1493 = vmul.f32 1.0, %v1492
    %v1494 = vrcp.pop %v1487
    %v1495 = vmul.f32 1.0, %v1494
    %v1496 = vxor.u32 %v1457, 2147483648
    %v1497 = vxor.u32 %v1461, 2147483648
    %v1498 = vxor.u32 %v1465, 2147483648
    %v1499 = vxor.u32 %v1469, 2147483648
    %v1500 = vmul.f32 %v1496, 1.442695
    %v1501 = vpow.pop %v1500
    %v1502 = vmul.f32 %v1497, 1.442695
    %v1503 = vpow.pop %v1502
    %v1504 = vmul.f32 %v1498, 1.442695
    %v1505 = vpow.pop %v1504
    %v1506 = vmul.f32 %v1499, 1.442695
    %v1507 = vpow.pop %v1506
    %v1508 = vadd.f32 %v1501, 1.0
    %v1509 = vadd.f32 %v1503, 1.0
    %v1510 = vadd.f32 %v1505, 1.0
    %v1511 = vadd.f32 %v1507, 1.0
    %v1512 = vrcp.pop %v1508
    %v1513 = vmul.f32 1.0, %v1512
    %v1514 = vrcp.pop %v1509
    %v1515 = vmul.f32 1.0, %v1514
    %v1516 = vrcp.pop %v1510
    %v1517 = vmul.f32 1.0, %v1516
    %v1518 = vrcp.pop %v1511
    %v1519 = vmul.f32 1.0, %v1518
    %v1520 = vtanh.pop %v1458
    %v1521 = vtanh.pop %v1462
    %v1522 = vtanh.pop %v1466
    %v1523 = vtanh.pop %v1470
    %v1524 = vxor.u32 %v1459, 2147483648
    %v1525 = vxor.u32 %v1463, 2147483648
    %v1526 = vxor.u32 %v1467, 2147483648
    %v1527 = vxor.u32 %v1471, 2147483648
    %v1528 = vmul.f32 %v1524, 1.442695
    %v1529 = vpow.pop %v1528
    %v1530 = vmul.f32 %v1525, 1.442695
    %v1531 = vpow.pop %v1530
    %v1532 = vmul.f32 %v1526, 1.442695
    %v1533 = vpow.pop %v1532
    %v1534 = vmul.f32 %v1527, 1.442695
    %v1535 = vpow.pop %v1534
    %v1536 = vadd.f32 %v1529, 1.0
    %v1537 = vadd.f32 %v1531, 1.0
    %v1538 = vadd.f32 %v1533, 1.0
    %v1539 = vadd.f32 %v1535, 1.0
    %v1540 = vrcp.pop %v1536
    %v1541 = vmul.f32 1.0, %v1540
    %v1542 = vrcp.pop %v1537
    %v1543 = vmul.f32 1.0, %v1542
    %v1544 = vrcp.pop %v1538
    %v1545 = vmul.f32 1.0, %v1544
    %v1546 = vrcp.pop %v1539
    %v1547 = vmul.f32 1.0, %v1546
    %v1548 = vmul.f32 %v1513, %v781
    %v1549 = vmul.f32 %v1515, %v782
    %v1550 = vmul.f32 %v1517, %v783
    %v1551 = vmul.f32 %v1519, %v784
    %v1552 = vmul.f32 %v1489, %v1520
    %v1553 = vmul.f32 %v1491, %v1521
    %v1554 = vmul.f32 %v1493, %v1522
    %v1555 = vmul.f32 %v1495, %v1523
    %v1556 = vadd.f32 %v1548, %v1552
    %v1557 = vadd.f32 %v1549, %v1553
    %v1558 = vadd.f32 %v1550, %v1554
    %v1559 = vadd.f32 %v1551, %v1555
    %v1560 = vtanh.pop %v1556
    %v1561 = vtanh.pop %v1557
    %v1562 = vtanh.pop %v1558
    %v1563 = vtanh.pop %v1559
    %v1564 = vmul.f32 %v1541, %v1560
    %v1565 = vmul.f32 %v1543, %v1561
    %v1566 = vmul.f32 %v1545, %v1562
    %v1567 = vmul.f32 %v1547, %v1563
    %1568 = vmatprep.subr.mxu0 %v160
    %1569 = vmatpush1.msra.mxu0 %v159
    %1570 = vmatprep.subr.mxu0 %v164
    %1571 = vmatpush1.msra.mxu0 %v163
    %1572 = vmatprep.subr.mxu0 %v168
    %1573 = vmatpush1.msra.mxu0 %v167
    %1574 = vmatprep.subr.mxu0 %v172
    %1575 = vmatpush1.msra.mxu0 %v171
    %1576 = vmatprep.subr.mxu0 %v176
    %1577 = vmatpush1.msra.mxu0 %v175
    %1578 = vmatprep.subr.mxu0 %v180
    %1579 = vmatpush1.msra.mxu0 %v179
    %1580 = vmatprep.subr.mxu0 %v184
    %1581 = vmatpush1.msra.mxu0 %v183
    %1582 = vmatprep.subr.mxu0 %v188
    %1583 = vmatpush1.msra.mxu0 %v187
    %1584 = vmatprep.subr.mxu0 %v192
    %1585 = vmatpush1.msra.mxu0 %v191
    %1586 = vmatprep.subr.mxu0 %v196
    %1587 = vmatpush1.msra.mxu0 %v195
    %1588 = vmatprep.subr.mxu0 %v200
    %1589 = vmatpush1.msra.mxu0 %v199
    %1590 = vmatprep.subr.mxu0 %v204
    %1591 = vmatpush1.msra.mxu0 %v203
    %1592 = vmatprep.subr.mxu0 %v208
    %1593 = vmatpush1.msra.mxu0 %v207
    %1594 = vmatprep.subr.mxu0 %v212
    %1595 = vmatpush1.msra.mxu0 %v211
    %1596 = vmatprep.subr.mxu0 %v216
    %1597 = vmatpush1.msra.mxu0 %v215
    %1598 = vmatprep.subr.mxu0 %v220
    %1599 = vmatpush1.msra.mxu0 %v219
    %1600 = vmatprep.subr.mxu0 0.0
    %1601 = vmatpush1.msra.mxu0 0.0
    %1602 = vmatprep.subr.mxu0 0.0
    %1603 = vmatpush1.msra.mxu0 0.0
    %1604 = vmatprep.subr.mxu0 0.0
    %1605 = vmatpush1.msra.mxu0 0.0
    %1606 = vmatprep.subr.mxu0 0.0
    %1607 = vmatpush1.msra.mxu0 0.0
    %1608 = vmatprep.subr.mxu0 0.0
    %1609 = vmatpush1.msra.mxu0 0.0
    %1610 = vmatprep.subr.mxu0 0.0
    %1611 = vmatpush1.msra.mxu0 0.0
    %1612 = vmatprep.subr.mxu0 0.0
    %1613 = vmatpush1.msra.mxu0 0.0
    %1614 = vmatprep.subr.mxu0 0.0
    %1615 = vmatpush1.msra.mxu0 0.0
    %1616 = vmatprep.subr.mxu0 0.0
    %1617 = vmatpush1.msra.mxu0 0.0
    %1618 = vmatprep.subr.mxu0 0.0
    %1619 = vmatpush1.msra.mxu0 0.0
    %1620 = vmatprep.subr.mxu0 0.0
    %1621 = vmatpush1.msra.mxu0 0.0
    %1622 = vmatprep.subr.mxu0 0.0
    %1623 = vmatpush1.msra.mxu0 0.0
    %1624 = vmatprep.subr.mxu0 0.0
    %1625 = vmatpush1.msra.mxu0 0.0
    %1626 = vmatprep.subr.mxu0 0.0
    %1627 = vmatpush1.msra.mxu0 0.0
    %1628 = vmatprep.subr.mxu0 0.0
    %1629 = vmatpush1.msra.mxu0 0.0
    %1630 = vmatprep.subr.mxu0 0.0
    %1631 = vmatpush1.msra.mxu0 0.0
    %1632 = vmatprep.mubr.f32.mxu0 0.0
    %1633 = vmatmul.mubr.f32.gmra.mrb[0].mxu0 %v1564
    %v1634 = vpop.f32.mrb[0].mxu0
    %v1635 = vadd.f32 %v1328, %v1634
    %v1636 = vpop.f32.mrb[0].mxu0
    %v1637 = vadd.f32 %v1330, %v1636
    %1638 = vmatprep.mubr.f32.mxu0 0.0
    %1639 = vmatmul.mubr.f32.gmra.mrb[0].mxu0 %v1565
    %v1640 = vpop.f32.mrb[0].mxu0
    %v1641 = vadd.f32 %v1334, %v1640
    %v1642 = vpop.f32.mrb[0].mxu0
    %v1643 = vadd.f32 %v1336, %v1642
    %1644 = vmatprep.mubr.f32.mxu0 0.0
    %1645 = vmatmul.mubr.f32.gmra.mrb[0].mxu0 %v1566
    %v1646 = vpop.f32.mrb[0].mxu0
    %v1647 = vadd.f32 %v1340, %v1646
    %v1648 = vpop.f32.mrb[0].mxu0
    %v1649 = vadd.f32 %v1342, %v1648
    %1650 = vmatprep.mubr.f32.mxu0 0.0
    %1651 = vmatmul.mubr.f32.gmra.mrb[0].mxu0 %v1567
    %v1652 = vpop.f32.mrb[0].mxu0
    %v1653 = vadd.f32 %v1346, %v1652
    %v1654 = vpop.f32.mrb[0].mxu0
    %v1655 = vadd.f32 %v1348, %v1654
    %1656 = vdwg.mxu0
    %1657 = vmatprep.subr.mxu0 %v162
    %1658 = vmatpush1.msra.mxu0 %v161
    %1659 = vmatprep.subr.mxu0 %v166
    %1660 = vmatpush1.msra.mxu0 %v165
    %1661 = vmatprep.subr.mxu0 %v170
    %1662 = vmatpush1.msra.mxu0 %v169
    %1663 = vmatprep.subr.mxu0 %v174
    %1664 = vmatpush1.msra.mxu0 %v173
    %1665 = vmatprep.subr.mxu0 %v178
    %1666 = vmatpush1.msra.mxu0 %v177
    %1667 = vmatprep.subr.mxu0 %v182
    %1668 = vmatpush1.msra.mxu0 %v181
    %1669 = vmatprep.subr.mxu0 %v186
    %1670 = vmatpush1.msra.mxu0 %v185
    %1671 = vmatprep.subr.mxu0 %v190
    %1672 = vmatpush1.msra.mxu0 %v189
    %1673 = vmatprep.subr.mxu0 %v194
    %1674 = vmatpush1.msra.mxu0 %v193
    %1675 = vmatprep.subr.mxu0 %v198
    %1676 = vmatpush1.msra.mxu0 %v197
    %1677 = vmatprep.subr.mxu0 %v202
    %1678 = vmatpush1.msra.mxu0 %v201
    %1679 = vmatprep.subr.mxu0 %v206
    %1680 = vmatpush1.msra.mxu0 %v205
    %1681 = vmatprep.subr.mxu0 %v210
    %1682 = vmatpush1.msra.mxu0 %v209
    %1683 = vmatprep.subr.mxu0 %v214
    %1684 = vmatpush1.msra.mxu0 %v213
    %1685 = vmatprep.subr.mxu0 %v218
    %1686 = vmatpush1.msra.mxu0 %v217
    %1687 = vmatprep.subr.mxu0 %v222
    %1688 = vmatpush1.msra.mxu0 %v221
    %1689 = vmatprep.subr.mxu0 0.0
    %1690 = vmatpush1.msra.mxu0 0.0
    %1691 = vmatprep.subr.mxu0 0.0
    %1692 = vmatpush1.msra.mxu0 0.0
    %1693 = vmatprep.subr.mxu0 0.0
    %1694 = vmatpush1.msra.mxu0 0.0
    %1695 = vmatprep.subr.mxu0 0.0
    %1696 = vmatpush1.msra.mxu0 0.0
    %1697 = vmatprep.subr.mxu0 0.0
    %1698 = vmatpush1.msra.mxu0 0.0
    %1699 = vmatprep.subr.mxu0 0.0
    %1700 = vmatpush1.msra.mxu0 0.0
    %1701 = vmatprep.subr.mxu0 0.0
    %1702 = vmatpush1.msra.mxu0 0.0
    %1703 = vmatprep.subr.mxu0 0.0
    %1704 = vmatpush1.msra.mxu0 0.0
    %1705 = vmatprep.subr.mxu0 0.0
    %1706 = vmatpush1.msra.mxu0 0.0
    %1707 = vmatprep.subr.mxu0 0.0
    %1708 = vmatpush1.msra.mxu0 0.0
    %1709 = vmatprep.subr.mxu0 0.0
    %1710 = vmatpush1.msra.mxu0 0.0
    %1711 = vmatprep.subr.mxu0 0.0
    %1712 = vmatpush1.msra.mxu0 0.0
    %1713 = vmatprep.subr.mxu0 0.0
    %1714 = vmatpush1.msra.mxu0 0.0
    %1715 = vmatprep.subr.mxu0 0.0
    %1716 = vmatpush1.msra.mxu0 0.0
    %1717 = vmatprep.subr.mxu0 0.0
    %1718 = vmatpush1.msra.mxu0 0.0
    %1719 = vmatprep.subr.mxu0 0.0
    %1720 = vmatpush1.msra.mxu0 0.0
    %1721 = vmatprep.mubr.f32.mxu0 0.0
    %1722 = vmatmul.mubr.f32.gmra.mrb[0].mxu0 %v1564
    %v1723 = vpop.f32.mrb[0].mxu0
    %v1724 = vadd.f32 %v1417, %v1723
    %v1725 = vpop.f32.mrb[0].mxu0
    %v1726 = vadd.f32 %v1419, %v1725
    %1727 = vmatprep.mubr.f32.mxu0 0.0
    %1728 = vmatmul.mubr.f32.gmra.mrb[0].mxu0 %v1565
    %v1729 = vpop.f32.mrb[0].mxu0
    %v1730 = vadd.f32 %v1423, %v1729
    %v1731 = vpop.f32.mrb[0].mxu0
    %v1732 = vadd.f32 %v1425, %v1731
    %1733 = vmatprep.mubr.f32.mxu0 0.0
    %1734 = vmatmul.mubr.f32.gmra.mrb[0].mxu0 %v1566
    %v1735 = vpop.f32.mrb[0].mxu0
    %v1736 = vadd.f32 %v1429, %v1735
    %v1737 = vpop.f32.mrb[0].mxu0
    %v1738 = vadd.f32 %v1431, %v1737
    %1739 = vmatprep.mubr.f32.mxu0 0.0
    %1740 = vmatmul.mubr.f32.gmra.mrb[0].mxu0 %v1567
    %v1741 = vpop.f32.mrb[0].mxu0
    %v1742 = vadd.f32 %v1435, %v1741
    %v1743 = vpop.f32.mrb[0].mxu0
    %v1744 = vadd.f32 %v1437, %v1743
    %1745 = vdwg.mxu0
    %v1746 = vadd.f32 %v1635, %v292
    %v1747 = vadd.f32 %v1637, %v296
    %v1748 = vadd.f32 %v1724, %v300
    %v1749 = vadd.f32 %v1726, %v304
    %v1750 = vadd.f32 %v1641, %v292
    %v1751 = vadd.f32 %v1643, %v296
    %v1752 = vadd.f32 %v1730, %v300
    %v1753 = vadd.f32 %v1732, %v304
    %v1754 = vadd.f32 %v1647, %v292
    %v1755 = vadd.f32 %v1649, %v296
    %v1756 = vadd.f32 %v1736, %v300
    %v1757 = vadd.f32 %v1738, %v304
    %v1758 = vadd.f32 %v1653, %v292
    %v1759 = vadd.f32 %v1655, %v296
    %v1760 = vadd.f32 %v1742, %v300
    %v1761 = vadd.f32 %v1744, %v304
    %v1762 = vxor.u32 %v1746, 2147483648
    %v1763 = vxor.u32 %v1750, 2147483648
    %v1764 = vxor.u32 %v1754, 2147483648
    %v1765 = vxor.u32 %v1758, 2147483648
    %v1766 = vmul.f32 %v1762, 1.442695
    %v1767 = vpow.pop %v1766
    %v1768 = vmul.f32 %v1763, 1.442695
    %v1769 = vpow.pop %v1768
    %v1770 = vmul.f32 %v1764, 1.442695
    %v1771 = vpow.pop %v1770
    %v1772 = vmul.f32 %v1765, 1.442695
    %v1773 = vpow.pop %v1772
    %v1774 = vadd.f32 %v1767, 1.0
    %v1775 = vadd.f32 %v1769, 1.0
    %v1776 = vadd.f32 %v1771, 1.0
    %v1777 = vadd.f32 %v1773, 1.0
    %v1778 = vrcp.pop %v1774
    %v1779 = vmul.f32 1.0, %v1778
    %v1780 = vrcp.pop %v1775
    %v1781 = vmul.f32 1.0, %v1780
    %v1782 = vrcp.pop %v1776
    %v1783 = vmul.f32 1.0, %v1782
    %v1784 = vrcp.pop %v1777
    %v1785 = vmul.f32 1.0, %v1784
    %v1786 = vxor.u32 %v1747, 2147483648
    %v1787 = vxor.u32 %v1751, 2147483648
    %v1788 = vxor.u32 %v1755, 2147483648
    %v1789 = vxor.u32 %v1759, 2147483648
    %v1790 = vmul.f32 %v1786, 1.442695
    %v1791 = vpow.pop %v1790
    %v1792 = vmul.f32 %v1787, 1.442695
    %v1793 = vpow.pop %v1792
    %v1794 = vmul.f32 %v1788, 1.442695
    %v1795 = vpow.pop %v1794
    %v1796 = vmul.f32 %v1789, 1.442695
    %v1797 = vpow.pop %v1796
    %v1798 = vadd.f32 %v1791, 1.0
    %v1799 = vadd.f32 %v1793, 1.0
    %v1800 = vadd.f32 %v1795, 1.0
    %v1801 = vadd.f32 %v1797, 1.0
    %v1802 = vrcp.pop %v1798
    %v1803 = vmul.f32 1.0, %v1802
    %v1804 = vrcp.pop %v1799
    %v1805 = vmul.f32 1.0, %v1804
    %v1806 = vrcp.pop %v1800
    %v1807 = vmul.f32 1.0, %v1806
    %v1808 = vrcp.pop %v1801
    %v1809 = vmul.f32 1.0, %v1808
    %v1810 = vtanh.pop %v1748
    %v1811 = vtanh.pop %v1752
    %v1812 = vtanh.pop %v1756
    %v1813 = vtanh.pop %v1760
    %v1814 = vxor.u32 %v1749, 2147483648
    %v1815 = vxor.u32 %v1753, 2147483648
    %v1816 = vxor.u32 %v1757, 2147483648
    %v1817 = vxor.u32 %v1761, 2147483648
    %v1818 = vmul.f32 %v1814, 1.442695
    %v1819 = vpow.pop %v1818
    %v1820 = vmul.f32 %v1815, 1.442695
    %v1821 = vpow.pop %v1820
    %v1822 = vmul.f32 %v1816, 1.442695
    %v1823 = vpow.pop %v1822
    %v1824 = vmul.f32 %v1817, 1.442695
    %v1825 = vpow.pop %v1824
    %v1826 = vadd.f32 %v1819, 1.0
    %v1827 = vadd.f32 %v1821, 1.0
    %v1828 = vadd.f32 %v1823, 1.0
    %v1829 = vadd.f32 %v1825, 1.0
    %v1830 = vrcp.pop %v1826
    %v1831 = vmul.f32 1.0, %v1830
    %v1832 = vrcp.pop %v1827
    %v1833 = vmul.f32 1.0, %v1832
    %v1834 = vrcp.pop %v1828
    %v1835 = vmul.f32 1.0, %v1834
    %v1836 = vrcp.pop %v1829
    %v1837 = vmul.f32 1.0, %v1836
    %v1838 = vmul.f32 %v1803, %v1071
    %v1839 = vmul.f32 %v1805, %v1072
    %v1840 = vmul.f32 %v1807, %v1073
    %v1841 = vmul.f32 %v1809, %v1074
    %v1842 = vmul.f32 %v1779, %v1810
    %v1843 = vmul.f32 %v1781, %v1811
    %v1844 = vmul.f32 %v1783, %v1812
    %v1845 = vmul.f32 %v1785, %v1813
    %v1846 = vadd.f32 %v1838, %v1842
    %v1847 = vadd.f32 %v1839, %v1843
    %v1848 = vadd.f32 %v1840, %v1844
    %v1849 = vadd.f32 %v1841, %v1845
    %v1850 = vtanh.pop %v1846
    %v1851 = vtanh.pop %v1847
    %v1852 = vtanh.pop %v1848
    %v1853 = vtanh.pop %v1849
    %v1854 = vmul.f32 %v1831, %v1850
    %v1855 = vmul.f32 %v1833, %v1851
    %v1856 = vmul.f32 %v1835, %v1852
    %v1857 = vmul.f32 %v1837, %v1853
    %1858 = vmatprep.subr.mxu0 %v96
    %1859 = vmatpush1.msra.mxu0 %v95
    %1860 = vmatprep.subr.mxu0 %v100
    %1861 = vmatpush1.msra.mxu0 %v99
    %1862 = vmatprep.subr.mxu0 %v104
    %1863 = vmatpush1.msra.mxu0 %v103
    %1864 = vmatprep.subr.mxu0 %v108
    %1865 = vmatpush1.msra.mxu0 %v107
    %1866 = vmatprep.subr.mxu0 %v112
    %1867 = vmatpush1.msra.mxu0 %v111
    %1868 = vmatprep.subr.mxu0 %v116
    %1869 = vmatpush1.msra.mxu0 %v115
    %1870 = vmatprep.subr.mxu0 %v120
    %1871 = vmatpush1.msra.mxu0 %v119
    %1872 = vmatprep.subr.mxu0 %v124
    %1873 = vmatpush1.msra.mxu0 %v123
    %1874 = vmatprep.subr.mxu0 %v128
    %1875 = vmatpush1.msra.mxu0 %v127
    %1876 = vmatprep.subr.mxu0 %v132
    %1877 = vmatpush1.msra.mxu0 %v131
    %1878 = vmatprep.subr.mxu0 %v136
    %1879 = vmatpush1.msra.mxu0 %v135
    %1880 = vmatprep.subr.mxu0 %v140
    %1881 = vmatpush1.msra.mxu0 %v139
    %1882 = vmatprep.subr.mxu0 %v144
    %1883 = vmatpush1.msra.mxu0 %v143
    %1884 = vmatprep.subr.mxu0 %v148
    %1885 = vmatpush1.msra.mxu0 %v147
    %1886 = vmatprep.subr.mxu0 %v152
    %1887 = vmatpush1.msra.mxu0 %v151
    %1888 = vmatprep.subr.mxu0 %v156
    %1889 = vmatpush1.msra.mxu0 %v155
    %1890 = vmatprep.subr.mxu0 0.0
    %1891 = vmatpush1.msra.mxu0 0.0
    %1892 = vmatprep.subr.mxu0 0.0
    %1893 = vmatpush1.msra.mxu0 0.0
    %1894 = vmatprep.subr.mxu0 0.0
    %1895 = vmatpush1.msra.mxu0 0.0
    %1896 = vmatprep.subr.mxu0 0.0
    %1897 = vmatpush1.msra.mxu0 0.0
    %1898 = vmatprep.subr.mxu0 0.0
    %1899 = vmatpush1.msra.mxu0 0.0
    %1900 = vmatprep.subr.mxu0 0.0
    %1901 = vmatpush1.msra.mxu0 0.0
    %1902 = vmatprep.subr.mxu0 0.0
    %1903 = vmatpush1.msra.mxu0 0.0
    %1904 = vmatprep.subr.mxu0 0.0
    %1905 = vmatpush1.msra.mxu0 0.0
    %1906 = vmatprep.subr.mxu0 0.0
    %1907 = vmatpush1.msra.mxu0 0.0
    %1908 = vmatprep.subr.mxu0 0.0
    %1909 = vmatpush1.msra.mxu0 0.0
    %1910 = vmatprep.subr.mxu0 0.0
    %1911 = vmatpush1.msra.mxu0 0.0
    %1912 = vmatprep.subr.mxu0 0.0
    %1913 = vmatpush1.msra.mxu0 0.0
    %1914 = vmatprep.subr.mxu0 0.0
    %1915 = vmatpush1.msra.mxu0 0.0
    %1916 = vmatprep.subr.mxu0 0.0
    %1917 = vmatpush1.msra.mxu0 0.0
    %1918 = vmatprep.subr.mxu0 0.0
    %1919 = vmatpush1.msra.mxu0 0.0
    %1920 = vmatprep.subr.mxu0 0.0
    %1921 = vmatpush1.msra.mxu0 0.0
    %1922 = vmatprep.mubr.f32.mxu0 0.0
    %1923 = vmatmul.mubr.f32.gmra.mrb[0].mxu0 %v1564
    %v1924 = vpop.f32.mrb[0].mxu0
    %v1925 = vadd.f32 0.0, %v1924
    %v1926 = vpop.f32.mrb[0].mxu0
    %v1927 = vadd.f32 0.0, %v1926
    %1928 = vmatprep.mubr.f32.mxu0 0.0
    %1929 = vmatmul.mubr.f32.gmra.mrb[0].mxu0 %v1565
    %v1930 = vpop.f32.mrb[0].mxu0
    %v1931 = vadd.f32 0.0, %v1930
    %v1932 = vpop.f32.mrb[0].mxu0
    %v1933 = vadd.f32 0.0, %v1932
    %1934 = vmatprep.mubr.f32.mxu0 0.0
    %1935 = vmatmul.mubr.f32.gmra.mrb[0].mxu0 %v1566
    %v1936 = vpop.f32.mrb[0].mxu0
    %v1937 = vadd.f32 0.0, %v1936
    %v1938 = vpop.f32.mrb[0].mxu0
    %v1939 = vadd.f32 0.0, %v1938
    %1940 = vmatprep.mubr.f32.mxu0 0.0
    %1941 = vmatmul.mubr.f32.gmra.mrb[0].mxu0 %v1567
    %v1942 = vpop.f32.mrb[0].mxu0
    %v1943 = vadd.f32 0.0, %v1942
    %v1944 = vpop.f32.mrb[0].mxu0
    %v1945 = vadd.f32 0.0, %v1944
    %1946 = vdwg.mxu0
    %1947 = vmatprep.subr.mxu0 %v98
    %1948 = vmatpush1.msra.mxu0 %v97
    %1949 = vmatprep.subr.mxu0 %v102
    %1950 = vmatpush1.msra.mxu0 %v101
    %1951 = vmatprep.subr.mxu0 %v106
    %1952 = vmatpush1.msra.mxu0 %v105
    %1953 = vmatprep.subr.mxu0 %v110
    %1954 = vmatpush1.msra.mxu0 %v109
    %1955 = vmatprep.subr.mxu0 %v114
    %1956 = vmatpush1.msra.mxu0 %v113
    %1957 = vmatprep.subr.mxu0 %v118
    %1958 = vmatpush1.msra.mxu0 %v117
    %1959 = vmatprep.subr.mxu0 %v122
    %1960 = vmatpush1.msra.mxu0 %v121
    %1961 = vmatprep.subr.mxu0 %v126
    %1962 = vmatpush1.msra.mxu0 %v125
    %1963 = vmatprep.subr.mxu0 %v130
    %1964 = vmatpush1.msra.mxu0 %v129
    %1965 = vmatprep.subr.mxu0 %v134
    %1966 = vmatpush1.msra.mxu0 %v133
    %1967 = vmatprep.subr.mxu0 %v138
    %1968 = vmatpush1.msra.mxu0 %v137
    %1969 = vmatprep.subr.mxu0 %v142
    %1970 = vmatpush1.msra.mxu0 %v141
    %1971 = vmatprep.subr.mxu0 %v146
    %1972 = vmatpush1.msra.mxu0 %v145
    %1973 = vmatprep.subr.mxu0 %v150
    %1974 = vmatpush1.msra.mxu0 %v149
    %1975 = vmatprep.subr.mxu0 %v154
    %1976 = vmatpush1.msra.mxu0 %v153
    %1977 = vmatprep.subr.mxu0 %v158
    %1978 = vmatpush1.msra.mxu0 %v157
    %1979 = vmatprep.subr.mxu0 0.0
    %1980 = vmatpush1.msra.mxu0 0.0
    %1981 = vmatprep.subr.mxu0 0.0
    %1982 = vmatpush1.msra.mxu0 0.0
    %1983 = vmatprep.subr.mxu0 0.0
    %1984 = vmatpush1.msra.mxu0 0.0
    %1985 = vmatprep.subr.mxu0 0.0
    %1986 = vmatpush1.msra.mxu0 0.0
    %1987 = vmatprep.subr.mxu0 0.0
    %1988 = vmatpush1.msra.mxu0 0.0
    %1989 = vmatprep.subr.mxu0 0.0
    %1990 = vmatpush1.msra.mxu0 0.0
    %1991 = vmatprep.subr.mxu0 0.0
    %1992 = vmatpush1.msra.mxu0 0.0
    %1993 = vmatprep.subr.mxu0 0.0
    %1994 = vmatpush1.msra.mxu0 0.0
    %1995 = vmatprep.subr.mxu0 0.0
    %1996 = vmatpush1.msra.mxu0 0.0
    %1997 = vmatprep.subr.mxu0 0.0
    %1998 = vmatpush1.msra.mxu0 0.0
    %1999 = vmatprep.subr.mxu0 0.0
    %2000 = vmatpush1.msra.mxu0 0.0
    %2001 = vmatprep.subr.mxu0 0.0
    %2002 = vmatpush1.msra.mxu0 0.0
    %2003 = vmatprep.subr.mxu0 0.0
    %2004 = vmatpush1.msra.mxu0 0.0
    %2005 = vmatprep.subr.mxu0 0.0
    %2006 = vmatpush1.msra.mxu0 0.0
    %2007 = vmatprep.subr.mxu0 0.0
    %2008 = vmatpush1.msra.mxu0 0.0
    %2009 = vmatprep.subr.mxu0 0.0
    %2010 = vmatpush1.msra.mxu0 0.0
    %2011 = vmatprep.mubr.f32.mxu0 0.0
    %2012 = vmatmul.mubr.f32.gmra.mrb[0].mxu0 %v1564
    %v2013 = vpop.f32.mrb[0].mxu0
    %v2014 = vadd.f32 0.0, %v2013
    %v2015 = vpop.f32.mrb[0].mxu0
    %v2016 = vadd.f32 0.0, %v2015
    %2017 = vmatprep.mubr.f32.mxu0 0.0
    %2018 = vmatmul.mubr.f32.gmra.mrb[0].mxu0 %v1565
    %v2019 = vpop.f32.mrb[0].mxu0
    %v2020 = vadd.f32 0.0, %v2019
    %v2021 = vpop.f32.mrb[0].mxu0
    %v2022 = vadd.f32 0.0, %v2021
    %2023 = vmatprep.mubr.f32.mxu0 0.0
    %2024 = vmatmul.mubr.f32.gmra.mrb[0].mxu0 %v1566
    %v2025 = vpop.f32.mrb[0].mxu0
    %v2026 = vadd.f32 0.0, %v2025
    %v2027 = vpop.f32.mrb[0].mxu0
    %v2028 = vadd.f32 0.0, %v2027
    %2029 = vmatprep.mubr.f32.mxu0 0.0
    %2030 = vmatmul.mubr.f32.gmra.mrb[0].mxu0 %v1567
    %v2031 = vpop.f32.mrb[0].mxu0
    %v2032 = vadd.f32 0.0, %v2031
    %v2033 = vpop.f32.mrb[0].mxu0
    %v2034 = vadd.f32 0.0, %v2033
    %2035 = vdwg.mxu0
    %2036 = vmatprep.subr.mxu0 %v224
    %2037 = vmatpush1.msra.mxu0 %v223
    %2038 = vmatprep.subr.mxu0 %v228
    %2039 = vmatpush1.msra.mxu0 %v227
    %2040 = vmatprep.subr.mxu0 %v232
    %2041 = vmatpush1.msra.mxu0 %v231
    %2042 = vmatprep.subr.mxu0 %v236
    %2043 = vmatpush1.msra.mxu0 %v235
    %2044 = vmatprep.subr.mxu0 %v240
    %2045 = vmatpush1.msra.mxu0 %v239
    %2046 = vmatprep.subr.mxu0 %v244
    %2047 = vmatpush1.msra.mxu0 %v243
    %2048 = vmatprep.subr.mxu0 %v248
    %2049 = vmatpush1.msra.mxu0 %v247
    %2050 = vmatprep.subr.mxu0 %v252
    %2051 = vmatpush1.msra.mxu0 %v251
    %2052 = vmatprep.subr.mxu0 %v256
    %2053 = vmatpush1.msra.mxu0 %v255
    %2054 = vmatprep.subr.mxu0 %v260
    %2055 = vmatpush1.msra.mxu0 %v259
    %2056 = vmatprep.subr.mxu0 %v264
    %2057 = vmatpush1.msra.mxu0 %v263
    %2058 = vmatprep.subr.mxu0 %v268
    %2059 = vmatpush1.msra.mxu0 %v267
    %2060 = vmatprep.subr.mxu0 %v272
    %2061 = vmatpush1.msra.mxu0 %v271
    %2062 = vmatprep.subr.mxu0 %v276
    %2063 = vmatpush1.msra.mxu0 %v275
    %2064 = vmatprep.subr.mxu0 %v280
    %2065 = vmatpush1.msra.mxu0 %v279
    %2066 = vmatprep.subr.mxu0 %v284
    %2067 = vmatpush1.msra.mxu0 %v283
    %2068 = vmatprep.subr.mxu0 0.0
    %2069 = vmatpush1.msra.mxu0 0.0
    %2070 = vmatprep.subr.mxu0 0.0
    %2071 = vmatpush1.msra.mxu0 0.0
    %2072 = vmatprep.subr.mxu0 0.0
    %2073 = vmatpush1.msra.mxu0 0.0
    %2074 = vmatprep.subr.mxu0 0.0
    %2075 = vmatpush1.msra.mxu0 0.0
    %2076 = vmatprep.subr.mxu0 0.0
    %2077 = vmatpush1.msra.mxu0 0.0
    %2078 = vmatprep.subr.mxu0 0.0
    %2079 = vmatpush1.msra.mxu0 0.0
    %2080 = vmatprep.subr.mxu0 0.0
    %2081 = vmatpush1.msra.mxu0 0.0
    %2082 = vmatprep.subr.mxu0 0.0
    %2083 = vmatpush1.msra.mxu0 0.0
    %2084 = vmatprep.subr.mxu0 0.0
    %2085 = vmatpush1.msra.mxu0 0.0
    %2086 = vmatprep.subr.mxu0 0.0
    %2087 = vmatpush1.msra.mxu0 0.0
    %2088 = vmatprep.subr.mxu0 0.0
    %2089 = vmatpush1.msra.mxu0 0.0
    %2090 = vmatprep.subr.mxu0 0.0
    %2091 = vmatpush1.msra.mxu0 0.0
    %2092 = vmatprep.subr.mxu0 0.0
    %2093 = vmatpush1.msra.mxu0 0.0
    %2094 = vmatprep.subr.mxu0 0.0
    %2095 = vmatpush1.msra.mxu0 0.0
    %2096 = vmatprep.subr.mxu0 0.0
    %2097 = vmatpush1.msra.mxu0 0.0
    %2098 = vmatprep.subr.mxu0 0.0
    %2099 = vmatpush1.msra.mxu0 0.0
    %2100 = vmatprep.mubr.f32.mxu0 0.0
    %2101 = vmatmul.mubr.f32.gmra.mrb[0].mxu0 %v1854
    %v2102 = vpop.f32.mrb[0].mxu0
    %v2103 = vadd.f32 0.0, %v2102
    %v2104 = vpop.f32.mrb[0].mxu0
    %v2105 = vadd.f32 0.0, %v2104
    %2106 = vmatprep.mubr.f32.mxu0 0.0
    %2107 = vmatmul.mubr.f32.gmra.mrb[0].mxu0 %v1855
    %v2108 = vpop.f32.mrb[0].mxu0
    %v2109 = vadd.f32 0.0, %v2108
    %v2110 = vpop.f32.mrb[0].mxu0
    %v2111 = vadd.f32 0.0, %v2110
    %2112 = vmatprep.mubr.f32.mxu0 0.0
    %2113 = vmatmul.mubr.f32.gmra.mrb[0].mxu0 %v1856
    %v2114 = vpop.f32.mrb[0].mxu0
    %v2115 = vadd.f32 0.0, %v2114
    %v2116 = vpop.f32.mrb[0].mxu0
    %v2117 = vadd.f32 0.0, %v2116
    %2118 = vmatprep.mubr.f32.mxu0 0.0
    %2119 = vmatmul.mubr.f32.gmra.mrb[0].mxu0 %v1857
    %v2120 = vpop.f32.mrb[0].mxu0
    %v2121 = vadd.f32 0.0, %v2120
    %v2122 = vpop.f32.mrb[0].mxu0
    %v2123 = vadd.f32 0.0, %v2122
    %2124 = vdwg.mxu0
    %2125 = vmatprep.subr.mxu0 %v226
    %2126 = vmatpush1.msra.mxu0 %v225
    %2127 = vmatprep.subr.mxu0 %v230
    %2128 = vmatpush1.msra.mxu0 %v229
    %2129 = vmatprep.subr.mxu0 %v234
    %2130 = vmatpush1.msra.mxu0 %v233
    %2131 = vmatprep.subr.mxu0 %v238
    %2132 = vmatpush1.msra.mxu0 %v237
    %2133 = vmatprep.subr.mxu0 %v242
    %2134 = vmatpush1.msra.mxu0 %v241
    %2135 = vmatprep.subr.mxu0 %v246
    %2136 = vmatpush1.msra.mxu0 %v245
    %2137 = vmatprep.subr.mxu0 %v250
    %2138 = vmatpush1.msra.mxu0 %v249
    %2139 = vmatprep.subr.mxu0 %v254
    %2140 = vmatpush1.msra.mxu0 %v253
    %2141 = vmatprep.subr.mxu0 %v258
    %2142 = vmatpush1.msra.mxu0 %v257
    %2143 = vmatprep.subr.mxu0 %v262
    %2144 = vmatpush1.msra.mxu0 %v261
    %2145 = vmatprep.subr.mxu0 %v266
    %2146 = vmatpush1.msra.mxu0 %v265
    %2147 = vmatprep.subr.mxu0 %v270
    %2148 = vmatpush1.msra.mxu0 %v269
    %2149 = vmatprep.subr.mxu0 %v274
    %2150 = vmatpush1.msra.mxu0 %v273
    %2151 = vmatprep.subr.mxu0 %v278
    %2152 = vmatpush1.msra.mxu0 %v277
    %2153 = vmatprep.subr.mxu0 %v282
    %2154 = vmatpush1.msra.mxu0 %v281
    %2155 = vmatprep.subr.mxu0 %v286
    %2156 = vmatpush1.msra.mxu0 %v285
    %2157 = vmatprep.subr.mxu0 0.0
    %2158 = vmatpush1.msra.mxu0 0.0
    %2159 = vmatprep.subr.mxu0 0.0
    %2160 = vmatpush1.msra.mxu0 0.0
    %2161 = vmatprep.subr.mxu0 0.0
    %2162 = vmatpush1.msra.mxu0 0.0
    %2163 = vmatprep.subr.mxu0 0.0
    %2164 = vmatpush1.msra.mxu0 0.0
    %2165 = vmatprep.subr.mxu0 0.0
    %2166 = vmatpush1.msra.mxu0 0.0
    %2167 = vmatprep.subr.mxu0 0.0
    %2168 = vmatpush1.msra.mxu0 0.0
    %2169 = vmatprep.subr.mxu0 0.0
    %2170 = vmatpush1.msra.mxu0 0.0
    %2171 = vmatprep.subr.mxu0 0.0
    %2172 = vmatpush1.msra.mxu0 0.0
    %2173 = vmatprep.subr.mxu0 0.0
    %2174 = vmatpush1.msra.mxu0 0.0
    %2175 = vmatprep.subr.mxu0 0.0
    %2176 = vmatpush1.msra.mxu0 0.0
    %2177 = vmatprep.subr.mxu0 0.0
    %2178 = vmatpush1.msra.mxu0 0.0
    %2179 = vmatprep.subr.mxu0 0.0
    %2180 = vmatpush1.msra.mxu0 0.0
    %2181 = vmatprep.subr.mxu0 0.0
    %2182 = vmatpush1.msra.mxu0 0.0
    %2183 = vmatprep.subr.mxu0 0.0
    %2184 = vmatpush1.msra.mxu0 0.0
    %2185 = vmatprep.subr.mxu0 0.0
    %2186 = vmatpush1.msra.mxu0 0.0
    %2187 = vmatprep.subr.mxu0 0.0
    %2188 = vmatpush1.msra.mxu0 0.0
    %2189 = vmatprep.mubr.f32.mxu0 0.0
    %2190 = vmatmul.mubr.f32.gmra.mrb[0].mxu0 %v1854
    %v2191 = vpop.f32.mrb[0].mxu0
    %v2192 = vadd.f32 0.0, %v2191
    %v2193 = vpop.f32.mrb[0].mxu0
    %v2194 = vadd.f32 0.0, %v2193
    %2195 = vmatprep.mubr.f32.mxu0 0.0
    %2196 = vmatmul.mubr.f32.gmra.mrb[0].mxu0 %v1855
    %v2197 = vpop.f32.mrb[0].mxu0
    %v2198 = vadd.f32 0.0, %v2197
    %v2199 = vpop.f32.mrb[0].mxu0
    %v2200 = vadd.f32 0.0, %v2199
    %2201 = vmatprep.mubr.f32.mxu0 0.0
    %2202 = vmatmul.mubr.f32.gmra.mrb[0].mxu0 %v1856
    %v2203 = vpop.f32.mrb[0].mxu0
    %v2204 = vadd.f32 0.0, %v2203
    %v2205 = vpop.f32.mrb[0].mxu0
    %v2206 = vadd.f32 0.0, %v2205
    %2207 = vmatprep.mubr.f32.mxu0 0.0
    %2208 = vmatmul.mubr.f32.gmra.mrb[0].mxu0 %v1857
    %v2209 = vpop.f32.mrb[0].mxu0
    %v2210 = vadd.f32 0.0, %v2209
    %v2211 = vpop.f32.mrb[0].mxu0
    %v2212 = vadd.f32 0.0, %v2211
    %2213 = vdwg.mxu0
    %s2214 = scalar_lea.vmem [#allocation2], 256
    %v2215 = vld [vmem:[%s2214] sm:$0xff]
    %v2216 = vld [vmem:[%s2214 + $0x8] sm:$0xff]
    %v2217 = vld [vmem:[%s2214 + $0x10] sm:$0xff]
    %v2218 = vld [vmem:[%s2214 + $0x18] sm:$0xff]
    %v2219 = vld [vmem:[%s2214 + $0x20] sm:$0xff]
    %v2220 = vld [vmem:[%s2214 + $0x28] sm:$0xff]
    %v2221 = vld [vmem:[%s2214 + $0x30] sm:$0xff]
    %v2222 = vld [vmem:[%s2214 + $0x38] sm:$0xff]
    %v2223 = vld [vmem:[%s2214 + $0x40] sm:$0xff]
    %v2224 = vld [vmem:[%s2214 + $0x48] sm:$0xff]
    %v2225 = vld [vmem:[%s2214 + $0x50] sm:$0xff]
    %v2226 = vld [vmem:[%s2214 + $0x58] sm:$0xff]
    %v2227 = vld [vmem:[%s2214 + $0x60] sm:$0xff]
    %v2228 = vld [vmem:[%s2214 + $0x68] sm:$0xff]
    %v2229 = vld [vmem:[%s2214 + $0x70] sm:$0xff]
    %v2230 = vld [vmem:[%s2214 + $0x78] sm:$0xff]
    %v2231 = vadd.f32 %v2215, %v1925
    %v2232 = vadd.f32 %v2216, %v1927
    %v2233 = vadd.f32 %v2217, %v2014
    %v2234 = vadd.f32 %v2218, %v2016
    %v2235 = vadd.f32 %v2219, %v1931
    %v2236 = vadd.f32 %v2220, %v1933
    %v2237 = vadd.f32 %v2221, %v2020
    %v2238 = vadd.f32 %v2222, %v2022
    %v2239 = vadd.f32 %v2223, %v1937
    %v2240 = vadd.f32 %v2224, %v1939
    %v2241 = vadd.f32 %v2225, %v2026
    %v2242 = vadd.f32 %v2226, %v2028
    %v2243 = vadd.f32 %v2227, %v1943
    %v2244 = vadd.f32 %v2228, %v1945
    %v2245 = vadd.f32 %v2229, %v2032
    %v2246 = vadd.f32 %v2230, %v2034
    %v2247 = vxor.u32 %v2231, 2147483648
    %v2248 = vxor.u32 %v2235, 2147483648
    %v2249 = vxor.u32 %v2239, 2147483648
    %v2250 = vxor.u32 %v2243, 2147483648
    %v2251 = vmul.f32 %v2247, 1.442695
    %v2252 = vpow.pop %v2251
    %v2253 = vmul.f32 %v2248, 1.442695
    %v2254 = vpow.pop %v2253
    %v2255 = vmul.f32 %v2249, 1.442695
    %v2256 = vpow.pop %v2255
    %v2257 = vmul.f32 %v2250, 1.442695
    %v2258 = vpow.pop %v2257
    %v2259 = vadd.f32 %v2252, 1.0
    %v2260 = vadd.f32 %v2254, 1.0
    %v2261 = vadd.f32 %v2256, 1.0
    %v2262 = vadd.f32 %v2258, 1.0
    %v2263 = vrcp.pop %v2259
    %v2264 = vmul.f32 1.0, %v2263
    %v2265 = vrcp.pop %v2260
    %v2266 = vmul.f32 1.0, %v2265
    %v2267 = vrcp.pop %v2261
    %v2268 = vmul.f32 1.0, %v2267
    %v2269 = vrcp.pop %v2262
    %v2270 = vmul.f32 1.0, %v2269
    %v2271 = vxor.u32 %v2232, 2147483648
    %v2272 = vxor.u32 %v2236, 2147483648
    %v2273 = vxor.u32 %v2240, 2147483648
    %v2274 = vxor.u32 %v2244, 2147483648
    %v2275 = vmul.f32 %v2271, 1.442695
    %v2276 = vpow.pop %v2275
    %v2277 = vmul.f32 %v2272, 1.442695
    %v2278 = vpow.pop %v2277
    %v2279 = vmul.f32 %v2273, 1.442695
    %v2280 = vpow.pop %v2279
    %v2281 = vmul.f32 %v2274, 1.442695
    %v2282 = vpow.pop %v2281
    %v2283 = vadd.f32 %v2276, 1.0
    %v2284 = vadd.f32 %v2278, 1.0
    %v2285 = vadd.f32 %v2280, 1.0
    %v2286 = vadd.f32 %v2282, 1.0
    %v2287 = vrcp.pop %v2283
    %v2288 = vmul.f32 1.0, %v2287
    %v2289 = vrcp.pop %v2284
    %v2290 = vmul.f32 1.0, %v2289
    %v2291 = vrcp.pop %v2285
    %v2292 = vmul.f32 1.0, %v2291
    %v2293 = vrcp.pop %v2286
    %v2294 = vmul.f32 1.0, %v2293
    %v2295 = vtanh.pop %v2233
    %v2296 = vtanh.pop %v2237
    %v2297 = vtanh.pop %v2241
    %v2298 = vtanh.pop %v2245
    %v2299 = vxor.u32 %v2234, 2147483648
    %v2300 = vxor.u32 %v2238, 2147483648
    %v2301 = vxor.u32 %v2242, 2147483648
    %v2302 = vxor.u32 %v2246, 2147483648
    %v2303 = vmul.f32 %v2299, 1.442695
    %v2304 = vpow.pop %v2303
    %v2305 = vmul.f32 %v2300, 1.442695
    %v2306 = vpow.pop %v2305
    %v2307 = vmul.f32 %v2301, 1.442695
    %v2308 = vpow.pop %v2307
    %v2309 = vmul.f32 %v2302, 1.442695
    %v2310 = vpow.pop %v2309
    %v2311 = vadd.f32 %v2304, 1.0
    %v2312 = vadd.f32 %v2306, 1.0
    %v2313 = vadd.f32 %v2308, 1.0
    %v2314 = vadd.f32 %v2310, 1.0
    %v2315 = vrcp.pop %v2311
    %v2316 = vmul.f32 1.0, %v2315
    %v2317 = vrcp.pop %v2312
    %v2318 = vmul.f32 1.0, %v2317
    %v2319 = vrcp.pop %v2313
    %v2320 = vmul.f32 1.0, %v2319
    %v2321 = vrcp.pop %v2314
    %v2322 = vmul.f32 1.0, %v2321
    %v2323 = vmul.f32 %v2288, %v1556
    %v2324 = vmul.f32 %v2290, %v1557
    %v2325 = vmul.f32 %v2292, %v1558
    %v2326 = vmul.f32 %v2294, %v1559
    %v2327 = vmul.f32 %v2264, %v2295
    %v2328 = vmul.f32 %v2266, %v2296
    %v2329 = vmul.f32 %v2268, %v2297
    %v2330 = vmul.f32 %v2270, %v2298
    %v2331 = vadd.f32 %v2323, %v2327
    %v2332 = vadd.f32 %v2324, %v2328
    %v2333 = vadd.f32 %v2325, %v2329
    %v2334 = vadd.f32 %v2326, %v2330
    %v2335 = vtanh.pop %v2331
    %v2336 = vtanh.pop %v2332
    %v2337 = vtanh.pop %v2333
    %v2338 = vtanh.pop %v2334
    %v2339 = vmul.f32 %v2316, %v2335
    %v2340 = vmul.f32 %v2318, %v2336
    %v2341 = vmul.f32 %v2320, %v2337
    %v2342 = vmul.f32 %v2322, %v2338
    %2343 = vmatprep.subr.mxu0 %v160
    %2344 = vmatpush1.msra.mxu0 %v159
    %2345 = vmatprep.subr.mxu0 %v164
    %2346 = vmatpush1.msra.mxu0 %v163
    %2347 = vmatprep.subr.mxu0 %v168
    %2348 = vmatpush1.msra.mxu0 %v167
    %2349 = vmatprep.subr.mxu0 %v172
    %2350 = vmatpush1.msra.mxu0 %v171
    %2351 = vmatprep.subr.mxu0 %v176
    %2352 = vmatpush1.msra.mxu0 %v175
    %2353 = vmatprep.subr.mxu0 %v180
    %2354 = vmatpush1.msra.mxu0 %v179
    %2355 = vmatprep.subr.mxu0 %v184
    %2356 = vmatpush1.msra.mxu0 %v183
    %2357 = vmatprep.subr.mxu0 %v188
    %2358 = vmatpush1.msra.mxu0 %v187
    %2359 = vmatprep.subr.mxu0 %v192
    %2360 = vmatpush1.msra.mxu0 %v191
    %2361 = vmatprep.subr.mxu0 %v196
    %2362 = vmatpush1.msra.mxu0 %v195
    %2363 = vmatprep.subr.mxu0 %v200
    %2364 = vmatpush1.msra.mxu0 %v199
    %2365 = vmatprep.subr.mxu0 %v204
    %2366 = vmatpush1.msra.mxu0 %v203
    %2367 = vmatprep.subr.mxu0 %v208
    %2368 = vmatpush1.msra.mxu0 %v207
    %2369 = vmatprep.subr.mxu0 %v212
    %2370 = vmatpush1.msra.mxu0 %v211
    %2371 = vmatprep.subr.mxu0 %v216
    %2372 = vmatpush1.msra.mxu0 %v215
    %2373 = vmatprep.subr.mxu0 %v220
    %2374 = vmatpush1.msra.mxu0 %v219
    %2375 = vmatprep.subr.mxu0 0.0
    %2376 = vmatpush1.msra.mxu0 0.0
    %2377 = vmatprep.subr.mxu0 0.0
    %2378 = vmatpush1.msra.mxu0 0.0
    %2379 = vmatprep.subr.mxu0 0.0
    %2380 = vmatpush1.msra.mxu0 0.0
    %2381 = vmatprep.subr.mxu0 0.0
    %2382 = vmatpush1.msra.mxu0 0.0
    %2383 = vmatprep.subr.mxu0 0.0
    %2384 = vmatpush1.msra.mxu0 0.0
    %2385 = vmatprep.subr.mxu0 0.0
    %2386 = vmatpush1.msra.mxu0 0.0
    %2387 = vmatprep.subr.mxu0 0.0
    %2388 = vmatpush1.msra.mxu0 0.0
    %2389 = vmatprep.subr.mxu0 0.0
    %2390 = vmatpush1.msra.mxu0 0.0
    %2391 = vmatprep.subr.mxu0 0.0
    %2392 = vmatpush1.msra.mxu0 0.0
    %2393 = vmatprep.subr.mxu0 0.0
    %2394 = vmatpush1.msra.mxu0 0.0
    %2395 = vmatprep.subr.mxu0 0.0
    %2396 = vmatpush1.msra.mxu0 0.0
    %2397 = vmatprep.subr.mxu0 0.0
    %2398 = vmatpush1.msra.mxu0 0.0
    %2399 = vmatprep.subr.mxu0 0.0
    %2400 = vmatpush1.msra.mxu0 0.0
    %2401 = vmatprep.subr.mxu0 0.0
    %2402 = vmatpush1.msra.mxu0 0.0
    %2403 = vmatprep.subr.mxu0 0.0
    %2404 = vmatpush1.msra.mxu0 0.0
    %2405 = vmatprep.subr.mxu0 0.0
    %2406 = vmatpush1.msra.mxu0 0.0
    %2407 = vmatprep.mubr.f32.mxu0 0.0
    %2408 = vmatmul.mubr.f32.gmra.mrb[0].mxu0 %v2339
    %v2409 = vpop.f32.mrb[0].mxu0
    %v2410 = vadd.f32 %v2103, %v2409
    %v2411 = vpop.f32.mrb[0].mxu0
    %v2412 = vadd.f32 %v2105, %v2411
    %2413 = vmatprep.mubr.f32.mxu0 0.0
    %2414 = vmatmul.mubr.f32.gmra.mrb[0].mxu0 %v2340
    %v2415 = vpop.f32.mrb[0].mxu0
    %v2416 = vadd.f32 %v2109, %v2415
    %v2417 = vpop.f32.mrb[0].mxu0
    %v2418 = vadd.f32 %v2111, %v2417
    %2419 = vmatprep.mubr.f32.mxu0 0.0
    %2420 = vmatmul.mubr.f32.gmra.mrb[0].mxu0 %v2341
    %v2421 = vpop.f32.mrb[0].mxu0
    %v2422 = vadd.f32 %v2115, %v2421
    %v2423 = vpop.f32.mrb[0].mxu0
    %v2424 = vadd.f32 %v2117, %v2423
    %2425 = vmatprep.mubr.f32.mxu0 0.0
    %2426 = vmatmul.mubr.f32.gmra.mrb[0].mxu0 %v2342
    %v2427 = vpop.f32.mrb[0].mxu0
    %v2428 = vadd.f32 %v2121, %v2427
    %v2429 = vpop.f32.mrb[0].mxu0
    %v2430 = vadd.f32 %v2123, %v2429
    %2431 = vdwg.mxu0
    %2432 = vmatprep.subr.mxu0 %v162
    %2433 = vmatpush1.msra.mxu0 %v161
    %2434 = vmatprep.subr.mxu0 %v166
    %2435 = vmatpush1.msra.mxu0 %v165
    %2436 = vmatprep.subr.mxu0 %v170
    %2437 = vmatpush1.msra.mxu0 %v169
    %2438 = vmatprep.subr.mxu0 %v174
    %2439 = vmatpush1.msra.mxu0 %v173
    %2440 = vmatprep.subr.mxu0 %v178
    %2441 = vmatpush1.msra.mxu0 %v177
    %2442 = vmatprep.subr.mxu0 %v182
    %2443 = vmatpush1.msra.mxu0 %v181
    %2444 = vmatprep.subr.mxu0 %v186
    %2445 = vmatpush1.msra.mxu0 %v185
    %2446 = vmatprep.subr.mxu0 %v190
    %2447 = vmatpush1.msra.mxu0 %v189
    %2448 = vmatprep.subr.mxu0 %v194
    %2449 = vmatpush1.msra.mxu0 %v193
    %2450 = vmatprep.subr.mxu0 %v198
    %2451 = vmatpush1.msra.mxu0 %v197
    %2452 = vmatprep.subr.mxu0 %v202
    %2453 = vmatpush1.msra.mxu0 %v201
    %2454 = vmatprep.subr.mxu0 %v206
    %2455 = vmatpush1.msra.mxu0 %v205
    %2456 = vmatprep.subr.mxu0 %v210
    %2457 = vmatpush1.msra.mxu0 %v209
    %2458 = vmatprep.subr.mxu0 %v214
    %2459 = vmatpush1.msra.mxu0 %v213
    %2460 = vmatprep.subr.mxu0 %v218
    %2461 = vmatpush1.msra.mxu0 %v217
    %2462 = vmatprep.subr.mxu0 %v222
    %2463 = vmatpush1.msra.mxu0 %v221
    %2464 = vmatprep.subr.mxu0 0.0
    %2465 = vmatpush1.msra.mxu0 0.0
    %2466 = vmatprep.subr.mxu0 0.0
    %2467 = vmatpush1.msra.mxu0 0.0
    %2468 = vmatprep.subr.mxu0 0.0
    %2469 = vmatpush1.msra.mxu0 0.0
    %2470 = vmatprep.subr.mxu0 0.0
    %2471 = vmatpush1.msra.mxu0 0.0
    %2472 = vmatprep.subr.mxu0 0.0
    %2473 = vmatpush1.msra.mxu0 0.0
    %2474 = vmatprep.subr.mxu0 0.0
    %2475 = vmatpush1.msra.mxu0 0.0
    %2476 = vmatprep.subr.mxu0 0.0
    %2477 = vmatpush1.msra.mxu0 0.0
    %2478 = vmatprep.subr.mxu0 0.0
    %2479 = vmatpush1.msra.mxu0 0.0
    %2480 = vmatprep.subr.mxu0 0.0
    %2481 = vmatpush1.msra.mxu0 0.0
    %2482 = vmatprep.subr.mxu0 0.0
    %2483 = vmatpush1.msra.mxu0 0.0
    %2484 = vmatprep.subr.mxu0 0.0
    %2485 = vmatpush1.msra.mxu0 0.0
    %2486 = vmatprep.subr.mxu0 0.0
    %2487 = vmatpush1.msra.mxu0 0.0
    %2488 = vmatprep.subr.mxu0 0.0
    %2489 = vmatpush1.msra.mxu0 0.0
    %2490 = vmatprep.subr.mxu0 0.0
    %2491 = vmatpush1.msra.mxu0 0.0
    %2492 = vmatprep.subr.mxu0 0.0
    %2493 = vmatpush1.msra.mxu0 0.0
    %2494 = vmatprep.subr.mxu0 0.0
    %2495 = vmatpush1.msra.mxu0 0.0
    %2496 = vmatprep.mubr.f32.mxu0 0.0
    %2497 = vmatmul.mubr.f32.gmra.mrb[0].mxu0 %v2339
    %v2498 = vpop.f32.mrb[0].mxu0
    %v2499 = vadd.f32 %v2192, %v2498
    %v2500 = vpop.f32.mrb[0].mxu0
    %v2501 = vadd.f32 %v2194, %v2500
    %2502 = vmatprep.mubr.f32.mxu0 0.0
    %2503 = vmatmul.mubr.f32.gmra.mrb[0].mxu0 %v2340
    %v2504 = vpop.f32.mrb[0].mxu0
    %v2505 = vadd.f32 %v2198, %v2504
    %v2506 = vpop.f32.mrb[0].mxu0
    %v2507 = vadd.f32 %v2200, %v2506
    %2508 = vmatprep.mubr.f32.mxu0 0.0
    %2509 = vmatmul.mubr.f32.gmra.mrb[0].mxu0 %v2341
    %v2510 = vpop.f32.mrb[0].mxu0
    %v2511 = vadd.f32 %v2204, %v2510
    %v2512 = vpop.f32.mrb[0].mxu0
    %v2513 = vadd.f32 %v2206, %v2512
    %2514 = vmatprep.mubr.f32.mxu0 0.0
    %2515 = vmatmul.mubr.f32.gmra.mrb[0].mxu0 %v2342
    %v2516 = vpop.f32.mrb[0].mxu0
    %v2517 = vadd.f32 %v2210, %v2516
    %v2518 = vpop.f32.mrb[0].mxu0
    %v2519 = vadd.f32 %v2212, %v2518
    %2520 = vdwg.mxu0
    %v2521 = vadd.f32 %v2410, %v292
    %v2522 = vadd.f32 %v2412, %v296
    %v2523 = vadd.f32 %v2499, %v300
    %v2524 = vadd.f32 %v2501, %v304
    %v2525 = vadd.f32 %v2416, %v292
    %v2526 = vadd.f32 %v2418, %v296
    %v2527 = vadd.f32 %v2505, %v300
    %v2528 = vadd.f32 %v2507, %v304
    %v2529 = vadd.f32 %v2422, %v292
    %v2530 = vadd.f32 %v2424, %v296
    %v2531 = vadd.f32 %v2511, %v300
    %v2532 = vadd.f32 %v2513, %v304
    %v2533 = vadd.f32 %v2428, %v292
    %v2534 = vadd.f32 %v2430, %v296
    %v2535 = vadd.f32 %v2517, %v300
    %v2536 = vadd.f32 %v2519, %v304
    %v2537 = vxor.u32 %v2521, 2147483648
    %v2538 = vxor.u32 %v2525, 2147483648
    %v2539 = vxor.u32 %v2529, 2147483648
    %v2540 = vxor.u32 %v2533, 2147483648
    %v2541 = vmul.f32 %v2537, 1.442695
    %v2542 = vpow.pop %v2541
    %v2543 = vmul.f32 %v2538, 1.442695
    %v2544 = vpow.pop %v2543
    %v2545 = vmul.f32 %v2539, 1.442695
    %v2546 = vpow.pop %v2545
    %v2547 = vmul.f32 %v2540, 1.442695
    %v2548 = vpow.pop %v2547
    %v2549 = vadd.f32 %v2542, 1.0
    %v2550 = vadd.f32 %v2544, 1.0
    %v2551 = vadd.f32 %v2546, 1.0
    %v2552 = vadd.f32 %v2548, 1.0
    %v2553 = vrcp.pop %v2549
    %v2554 = vmul.f32 1.0, %v2553
    %v2555 = vrcp.pop %v2550
    %v2556 = vmul.f32 1.0, %v2555
    %v2557 = vrcp.pop %v2551
    %v2558 = vmul.f32 1.0, %v2557
    %v2559 = vrcp.pop %v2552
    %v2560 = vmul.f32 1.0, %v2559
    %v2561 = vxor.u32 %v2522, 2147483648
    %v2562 = vxor.u32 %v2526, 2147483648
    %v2563 = vxor.u32 %v2530, 2147483648
    %v2564 = vxor.u32 %v2534, 2147483648
    %v2565 = vmul.f32 %v2561, 1.442695
    %v2566 = vpow.pop %v2565
    %v2567 = vmul.f32 %v2562, 1.442695
    %v2568 = vpow.pop %v2567
    %v2569 = vmul.f32 %v2563, 1.442695
    %v2570 = vpow.pop %v2569
    %v2571 = vmul.f32 %v2564, 1.442695
    %v2572 = vpow.pop %v2571
    %v2573 = vadd.f32 %v2566, 1.0
    %v2574 = vadd.f32 %v2568, 1.0
    %v2575 = vadd.f32 %v2570, 1.0
    %v2576 = vadd.f32 %v2572, 1.0
    %v2577 = vrcp.pop %v2573
    %v2578 = vmul.f32 1.0, %v2577
    %v2579 = vrcp.pop %v2574
    %v2580 = vmul.f32 1.0, %v2579
    %v2581 = vrcp.pop %v2575
    %v2582 = vmul.f32 1.0, %v2581
    %v2583 = vrcp.pop %v2576
    %v2584 = vmul.f32 1.0, %v2583
    %v2585 = vtanh.pop %v2523
    %v2586 = vtanh.pop %v2527
    %v2587 = vtanh.pop %v2531
    %v2588 = vtanh.pop %v2535
    %v2589 = vxor.u32 %v2524, 2147483648
    %v2590 = vxor.u32 %v2528, 2147483648
    %v2591 = vxor.u32 %v2532, 2147483648
    %v2592 = vxor.u32 %v2536, 2147483648
    %v2593 = vmul.f32 %v2589, 1.442695
    %v2594 = vpow.pop %v2593
    %v2595 = vmul.f32 %v2590, 1.442695
    %v2596 = vpow.pop %v2595
    %v2597 = vmul.f32 %v2591, 1.442695
    %v2598 = vpow.pop %v2597
    %v2599 = vmul.f32 %v2592, 1.442695
    %v2600 = vpow.pop %v2599
    %v2601 = vadd.f32 %v2594, 1.0
    %v2602 = vadd.f32 %v2596, 1.0
    %v2603 = vadd.f32 %v2598, 1.0
    %v2604 = vadd.f32 %v2600, 1.0
    %v2605 = vrcp.pop %v2601
    %v2606 = vmul.f32 1.0, %v2605
    %v2607 = vrcp.pop %v2602
    %v2608 = vmul.f32 1.0, %v2607
    %v2609 = vrcp.pop %v2603
    %v2610 = vmul.f32 1.0, %v2609
    %v2611 = vrcp.pop %v2604
    %v2612 = vmul.f32 1.0, %v2611
    %v2613 = vmul.f32 %v2578, %v1846
    %v2614 = vmul.f32 %v2580, %v1847
    %v2615 = vmul.f32 %v2582, %v1848
    %v2616 = vmul.f32 %v2584, %v1849
    %v2617 = vmul.f32 %v2554, %v2585
    %v2618 = vmul.f32 %v2556, %v2586
    %v2619 = vmul.f32 %v2558, %v2587
    %v2620 = vmul.f32 %v2560, %v2588
    %v2621 = vadd.f32 %v2613, %v2617
    %v2622 = vadd.f32 %v2614, %v2618
    %v2623 = vadd.f32 %v2615, %v2619
    %v2624 = vadd.f32 %v2616, %v2620
    %v2625 = vtanh.pop %v2621
    %v2626 = vtanh.pop %v2622
    %v2627 = vtanh.pop %v2623
    %v2628 = vtanh.pop %v2624
    %v2629 = vmul.f32 %v2606, %v2625
    %v2630 = vmul.f32 %v2608, %v2626
    %v2631 = vmul.f32 %v2610, %v2627
    %v2632 = vmul.f32 %v2612, %v2628
    %2633 = vmatprep.subr.mxu0 %v96
    %2634 = vmatpush1.msra.mxu0 %v95
    %2635 = vmatprep.subr.mxu0 %v100
    %2636 = vmatpush1.msra.mxu0 %v99
    %2637 = vmatprep.subr.mxu0 %v104
    %2638 = vmatpush1.msra.mxu0 %v103
    %2639 = vmatprep.subr.mxu0 %v108
    %2640 = vmatpush1.msra.mxu0 %v107
    %2641 = vmatprep.subr.mxu0 %v112
    %2642 = vmatpush1.msra.mxu0 %v111
    %2643 = vmatprep.subr.mxu0 %v116
    %2644 = vmatpush1.msra.mxu0 %v115
    %2645 = vmatprep.subr.mxu0 %v120
    %2646 = vmatpush1.msra.mxu0 %v119
    %2647 = vmatprep.subr.mxu0 %v124
    %2648 = vmatpush1.msra.mxu0 %v123
    %2649 = vmatprep.subr.mxu0 %v128
    %2650 = vmatpush1.msra.mxu0 %v127
    %2651 = vmatprep.subr.mxu0 %v132
    %2652 = vmatpush1.msra.mxu0 %v131
    %2653 = vmatprep.subr.mxu0 %v136
    %2654 = vmatpush1.msra.mxu0 %v135
    %2655 = vmatprep.subr.mxu0 %v140
    %2656 = vmatpush1.msra.mxu0 %v139
    %2657 = vmatprep.subr.mxu0 %v144
    %2658 = vmatpush1.msra.mxu0 %v143
    %2659 = vmatprep.subr.mxu0 %v148
    %2660 = vmatpush1.msra.mxu0 %v147
    %2661 = vmatprep.subr.mxu0 %v152
    %2662 = vmatpush1.msra.mxu0 %v151
    %2663 = vmatprep.subr.mxu0 %v156
    %2664 = vmatpush1.msra.mxu0 %v155
    %2665 = vmatprep.subr.mxu0 0.0
    %2666 = vmatpush1.msra.mxu0 0.0
    %2667 = vmatprep.subr.mxu0 0.0
    %2668 = vmatpush1.msra.mxu0 0.0
    %2669 = vmatprep.subr.mxu0 0.0
    %2670 = vmatpush1.msra.mxu0 0.0
    %2671 = vmatprep.subr.mxu0 0.0
    %2672 = vmatpush1.msra.mxu0 0.0
    %2673 = vmatprep.subr.mxu0 0.0
    %2674 = vmatpush1.msra.mxu0 0.0
    %2675 = vmatprep.subr.mxu0 0.0
    %2676 = vmatpush1.msra.mxu0 0.0
    %2677 = vmatprep.subr.mxu0 0.0
    %2678 = vmatpush1.msra.mxu0 0.0
    %2679 = vmatprep.subr.mxu0 0.0
    %2680 = vmatpush1.msra.mxu0 0.0
    %2681 = vmatprep.subr.mxu0 0.0
    %2682 = vmatpush1.msra.mxu0 0.0
    %2683 = vmatprep.subr.mxu0 0.0
    %2684 = vmatpush1.msra.mxu0 0.0
    %2685 = vmatprep.subr.mxu0 0.0
    %2686 = vmatpush1.msra.mxu0 0.0
    %2687 = vmatprep.subr.mxu0 0.0
    %2688 = vmatpush1.msra.mxu0 0.0
    %2689 = vmatprep.subr.mxu0 0.0
    %2690 = vmatpush1.msra.mxu0 0.0
    %2691 = vmatprep.subr.mxu0 0.0
    %2692 = vmatpush1.msra.mxu0 0.0
    %2693 = vmatprep.subr.mxu0 0.0
    %2694 = vmatpush1.msra.mxu0 0.0
    %2695 = vmatprep.subr.mxu0 0.0
    %2696 = vmatpush1.msra.mxu0 0.0
    %2697 = vmatprep.mubr.f32.mxu0 0.0
    %2698 = vmatmul.mubr.f32.gmra.mrb[0].mxu0 %v2339
    %v2699 = vpop.f32.mrb[0].mxu0
    %v2700 = vadd.f32 0.0, %v2699
    %v2701 = vpop.f32.mrb[0].mxu0
    %v2702 = vadd.f32 0.0, %v2701
    %2703 = vmatprep.mubr.f32.mxu0 0.0
    %2704 = vmatmul.mubr.f32.gmra.mrb[0].mxu0 %v2340
    %v2705 = vpop.f32.mrb[0].mxu0
    %v2706 = vadd.f32 0.0, %v2705
    %v2707 = vpop.f32.mrb[0].mxu0
    %v2708 = vadd.f32 0.0, %v2707
    %2709 = vmatprep.mubr.f32.mxu0 0.0
    %2710 = vmatmul.mubr.f32.gmra.mrb[0].mxu0 %v2341
    %v2711 = vpop.f32.mrb[0].mxu0
    %v2712 = vadd.f32 0.0, %v2711
    %v2713 = vpop.f32.mrb[0].mxu0
    %v2714 = vadd.f32 0.0, %v2713
    %2715 = vmatprep.mubr.f32.mxu0 0.0
    %2716 = vmatmul.mubr.f32.gmra.mrb[0].mxu0 %v2342
    %v2717 = vpop.f32.mrb[0].mxu0
    %v2718 = vadd.f32 0.0, %v2717
    %v2719 = vpop.f32.mrb[0].mxu0
    %v2720 = vadd.f32 0.0, %v2719
    %2721 = vdwg.mxu0
    %2722 = vmatprep.subr.mxu0 %v98
    %2723 = vmatpush1.msra.mxu0 %v97
    %2724 = vmatprep.subr.mxu0 %v102
    %2725 = vmatpush1.msra.mxu0 %v101
    %2726 = vmatprep.subr.mxu0 %v106
    %2727 = vmatpush1.msra.mxu0 %v105
    %2728 = vmatprep.subr.mxu0 %v110
    %2729 = vmatpush1.msra.mxu0 %v109
    %2730 = vmatprep.subr.mxu0 %v114
    %2731 = vmatpush1.msra.mxu0 %v113
    %2732 = vmatprep.subr.mxu0 %v118
    %2733 = vmatpush1.msra.mxu0 %v117
    %2734 = vmatprep.subr.mxu0 %v122
    %2735 = vmatpush1.msra.mxu0 %v121
    %2736 = vmatprep.subr.mxu0 %v126
    %2737 = vmatpush1.msra.mxu0 %v125
    %2738 = vmatprep.subr.mxu0 %v130
    %2739 = vmatpush1.msra.mxu0 %v129
    %2740 = vmatprep.subr.mxu0 %v134
    %2741 = vmatpush1.msra.mxu0 %v133
    %2742 = vmatprep.subr.mxu0 %v138
    %2743 = vmatpush1.msra.mxu0 %v137
    %2744 = vmatprep.subr.mxu0 %v142
    %2745 = vmatpush1.msra.mxu0 %v141
    %2746 = vmatprep.subr.mxu0 %v146
    %2747 = vmatpush1.msra.mxu0 %v145
    %2748 = vmatprep.subr.mxu0 %v150
    %2749 = vmatpush1.msra.mxu0 %v149
    %2750 = vmatprep.subr.mxu0 %v154
    %2751 = vmatpush1.msra.mxu0 %v153
    %2752 = vmatprep.subr.mxu0 %v158
    %2753 = vmatpush1.msra.mxu0 %v157
    %2754 = vmatprep.subr.mxu0 0.0
    %2755 = vmatpush1.msra.mxu0 0.0
    %2756 = vmatprep.subr.mxu0 0.0
    %2757 = vmatpush1.msra.mxu0 0.0
    %2758 = vmatprep.subr.mxu0 0.0
    %2759 = vmatpush1.msra.mxu0 0.0
    %2760 = vmatprep.subr.mxu0 0.0
    %2761 = vmatpush1.msra.mxu0 0.0
    %2762 = vmatprep.subr.mxu0 0.0
    %2763 = vmatpush1.msra.mxu0 0.0
    %2764 = vmatprep.subr.mxu0 0.0
    %2765 = vmatpush1.msra.mxu0 0.0
    %2766 = vmatprep.subr.mxu0 0.0
    %2767 = vmatpush1.msra.mxu0 0.0
    %2768 = vmatprep.subr.mxu0 0.0
    %2769 = vmatpush1.msra.mxu0 0.0
    %2770 = vmatprep.subr.mxu0 0.0
    %2771 = vmatpush1.msra.mxu0 0.0
    %2772 = vmatprep.subr.mxu0 0.0
    %2773 = vmatpush1.msra.mxu0 0.0
    %2774 = vmatprep.subr.mxu0 0.0
    %2775 = vmatpush1.msra.mxu0 0.0
    %2776 = vmatprep.subr.mxu0 0.0
    %2777 = vmatpush1.msra.mxu0 0.0
    %2778 = vmatprep.subr.mxu0 0.0
    %2779 = vmatpush1.msra.mxu0 0.0
    %2780 = vmatprep.subr.mxu0 0.0
    %2781 = vmatpush1.msra.mxu0 0.0
    %2782 = vmatprep.subr.mxu0 0.0
    %2783 = vmatpush1.msra.mxu0 0.0
    %2784 = vmatprep.subr.mxu0 0.0
    %2785 = vmatpush1.msra.mxu0 0.0
    %2786 = vmatprep.mubr.f32.mxu0 0.0
    %2787 = vmatmul.mubr.f32.gmra.mrb[0].mxu0 %v2339
    %v2788 = vpop.f32.mrb[0].mxu0
    %v2789 = vadd.f32 0.0, %v2788
    %v2790 = vpop.f32.mrb[0].mxu0
    %v2791 = vadd.f32 0.0, %v2790
    %2792 = vmatprep.mubr.f32.mxu0 0.0
    %2793 = vmatmul.mubr.f32.gmra.mrb[0].mxu0 %v2340
    %v2794 = vpop.f32.mrb[0].mxu0
    %v2795 = vadd.f32 0.0, %v2794
    %v2796 = vpop.f32.mrb[0].mxu0
    %v2797 = vadd.f32 0.0, %v2796
    %2798 = vmatprep.mubr.f32.mxu0 0.0
    %2799 = vmatmul.mubr.f32.gmra.mrb[0].mxu0 %v2341
    %v2800 = vpop.f32.mrb[0].mxu0
    %v2801 = vadd.f32 0.0, %v2800
    %v2802 = vpop.f32.mrb[0].mxu0
    %v2803 = vadd.f32 0.0, %v2802
    %2804 = vmatprep.mubr.f32.mxu0 0.0
    %2805 = vmatmul.mubr.f32.gmra.mrb[0].mxu0 %v2342
    %v2806 = vpop.f32.mrb[0].mxu0
    %v2807 = vadd.f32 0.0, %v2806
    %v2808 = vpop.f32.mrb[0].mxu0
    %v2809 = vadd.f32 0.0, %v2808
    %2810 = vdwg.mxu0
    %2811 = vmatprep.subr.mxu0 %v224
    %2812 = vmatpush1.msra.mxu0 %v223
    %2813 = vmatprep.subr.mxu0 %v228
    %2814 = vmatpush1.msra.mxu0 %v227
    %2815 = vmatprep.subr.mxu0 %v232
    %2816 = vmatpush1.msra.mxu0 %v231
    %2817 = vmatprep.subr.mxu0 %v236
    %2818 = vmatpush1.msra.mxu0 %v235
    %2819 = vmatprep.subr.mxu0 %v240
    %2820 = vmatpush1.msra.mxu0 %v239
    %2821 = vmatprep.subr.mxu0 %v244
    %2822 = vmatpush1.msra.mxu0 %v243
    %2823 = vmatprep.subr.mxu0 %v248
    %2824 = vmatpush1.msra.mxu0 %v247
    %2825 = vmatprep.subr.mxu0 %v252
    %2826 = vmatpush1.msra.mxu0 %v251
    %2827 = vmatprep.subr.mxu0 %v256
    %2828 = vmatpush1.msra.mxu0 %v255
    %2829 = vmatprep.subr.mxu0 %v260
    %2830 = vmatpush1.msra.mxu0 %v259
    %2831 = vmatprep.subr.mxu0 %v264
    %2832 = vmatpush1.msra.mxu0 %v263
    %2833 = vmatprep.subr.mxu0 %v268
    %2834 = vmatpush1.msra.mxu0 %v267
    %2835 = vmatprep.subr.mxu0 %v272
    %2836 = vmatpush1.msra.mxu0 %v271
    %2837 = vmatprep.subr.mxu0 %v276
    %2838 = vmatpush1.msra.mxu0 %v275
    %2839 = vmatprep.subr.mxu0 %v280
    %2840 = vmatpush1.msra.mxu0 %v279
    %2841 = vmatprep.subr.mxu0 %v284
    %2842 = vmatpush1.msra.mxu0 %v283
    %2843 = vmatprep.subr.mxu0 0.0
    %2844 = vmatpush1.msra.mxu0 0.0
    %2845 = vmatprep.subr.mxu0 0.0
    %2846 = vmatpush1.msra.mxu0 0.0
    %2847 = vmatprep.subr.mxu0 0.0
    %2848 = vmatpush1.msra.mxu0 0.0
    %2849 = vmatprep.subr.mxu0 0.0
    %2850 = vmatpush1.msra.mxu0 0.0
    %2851 = vmatprep.subr.mxu0 0.0
    %2852 = vmatpush1.msra.mxu0 0.0
    %2853 = vmatprep.subr.mxu0 0.0
    %2854 = vmatpush1.msra.mxu0 0.0
    %2855 = vmatprep.subr.mxu0 0.0
    %2856 = vmatpush1.msra.mxu0 0.0
    %2857 = vmatprep.subr.mxu0 0.0
    %2858 = vmatpush1.msra.mxu0 0.0
    %2859 = vmatprep.subr.mxu0 0.0
    %2860 = vmatpush1.msra.mxu0 0.0
    %2861 = vmatprep.subr.mxu0 0.0
    %2862 = vmatpush1.msra.mxu0 0.0
    %2863 = vmatprep.subr.mxu0 0.0
    %2864 = vmatpush1.msra.mxu0 0.0
    %2865 = vmatprep.subr.mxu0 0.0
    %2866 = vmatpush1.msra.mxu0 0.0
    %2867 = vmatprep.subr.mxu0 0.0
    %2868 = vmatpush1.msra.mxu0 0.0
    %2869 = vmatprep.subr.mxu0 0.0
    %2870 = vmatpush1.msra.mxu0 0.0
    %2871 = vmatprep.subr.mxu0 0.0
    %2872 = vmatpush1.msra.mxu0 0.0
    %2873 = vmatprep.subr.mxu0 0.0
    %2874 = vmatpush1.msra.mxu0 0.0
    %2875 = vmatprep.mubr.f32.mxu0 0.0
    %2876 = vmatmul.mubr.f32.gmra.mrb[0].mxu0 %v2629
    %v2877 = vpop.f32.mrb[0].mxu0
    %v2878 = vadd.f32 0.0, %v2877
    %v2879 = vpop.f32.mrb[0].mxu0
    %v2880 = vadd.f32 0.0, %v2879
    %2881 = vmatprep.mubr.f32.mxu0 0.0
    %2882 = vmatmul.mubr.f32.gmra.mrb[0].mxu0 %v2630
    %v2883 = vpop.f32.mrb[0].mxu0
    %v2884 = vadd.f32 0.0, %v2883
    %v2885 = vpop.f32.mrb[0].mxu0
    %v2886 = vadd.f32 0.0, %v2885
    %2887 = vmatprep.mubr.f32.mxu0 0.0
    %2888 = vmatmul.mubr.f32.gmra.mrb[0].mxu0 %v2631
    %v2889 = vpop.f32.mrb[0].mxu0
    %v2890 = vadd.f32 0.0, %v2889
    %v2891 = vpop.f32.mrb[0].mxu0
    %v2892 = vadd.f32 0.0, %v2891
    %2893 = vmatprep.mubr.f32.mxu0 0.0
    %2894 = vmatmul.mubr.f32.gmra.mrb[0].mxu0 %v2632
    %v2895 = vpop.f32.mrb[0].mxu0
    %v2896 = vadd.f32 0.0, %v2895
    %v2897 = vpop.f32.mrb[0].mxu0
    %v2898 = vadd.f32 0.0, %v2897
    %2899 = vdwg.mxu0
    %2900 = vmatprep.subr.mxu0 %v226
    %2901 = vmatpush1.msra.mxu0 %v225
    %2902 = vmatprep.subr.mxu0 %v230
    %2903 = vmatpush1.msra.mxu0 %v229
    %2904 = vmatprep.subr.mxu0 %v234
    %2905 = vmatpush1.msra.mxu0 %v233
    %2906 = vmatprep.subr.mxu0 %v238
    %2907 = vmatpush1.msra.mxu0 %v237
    %2908 = vmatprep.subr.mxu0 %v242
    %2909 = vmatpush1.msra.mxu0 %v241
    %2910 = vmatprep.subr.mxu0 %v246
    %2911 = vmatpush1.msra.mxu0 %v245
    %2912 = vmatprep.subr.mxu0 %v250
    %2913 = vmatpush1.msra.mxu0 %v249
    %2914 = vmatprep.subr.mxu0 %v254
    %2915 = vmatpush1.msra.mxu0 %v253
    %2916 = vmatprep.subr.mxu0 %v258
    %2917 = vmatpush1.msra.mxu0 %v257
    %2918 = vmatprep.subr.mxu0 %v262
    %2919 = vmatpush1.msra.mxu0 %v261
    %2920 = vmatprep.subr.mxu0 %v266
    %2921 = vmatpush1.msra.mxu0 %v265
    %2922 = vmatprep.subr.mxu0 %v270
    %2923 = vmatpush1.msra.mxu0 %v269
    %2924 = vmatprep.subr.mxu0 %v274
    %2925 = vmatpush1.msra.mxu0 %v273
    %2926 = vmatprep.subr.mxu0 %v278
    %2927 = vmatpush1.msra.mxu0 %v277
    %2928 = vmatprep.subr.mxu0 %v282
    %2929 = vmatpush1.msra.mxu0 %v281
    %2930 = vmatprep.subr.mxu0 %v286
    %2931 = vmatpush1.msra.mxu0 %v285
    %2932 = vmatprep.subr.mxu0 0.0
    %2933 = vmatpush1.msra.mxu0 0.0
    %2934 = vmatprep.subr.mxu0 0.0
    %2935 = vmatpush1.msra.mxu0 0.0
    %2936 = vmatprep.subr.mxu0 0.0
    %2937 = vmatpush1.msra.mxu0 0.0
    %2938 = vmatprep.subr.mxu0 0.0
    %2939 = vmatpush1.msra.mxu0 0.0
    %2940 = vmatprep.subr.mxu0 0.0
    %2941 = vmatpush1.msra.mxu0 0.0
    %2942 = vmatprep.subr.mxu0 0.0
    %2943 = vmatpush1.msra.mxu0 0.0
    %2944 = vmatprep.subr.mxu0 0.0
    %2945 = vmatpush1.msra.mxu0 0.0
    %2946 = vmatprep.subr.mxu0 0.0
    %2947 = vmatpush1.msra.mxu0 0.0
    %2948 = vmatprep.subr.mxu0 0.0
    %2949 = vmatpush1.msra.mxu0 0.0
    %2950 = vmatprep.subr.mxu0 0.0
    %2951 = vmatpush1.msra.mxu0 0.0
    %2952 = vmatprep.subr.mxu0 0.0
    %2953 = vmatpush1.msra.mxu0 0.0
    %2954 = vmatprep.subr.mxu0 0.0
    %2955 = vmatpush1.msra.mxu0 0.0
    %2956 = vmatprep.subr.mxu0 0.0
    %2957 = vmatpush1.msra.mxu0 0.0
    %2958 = vmatprep.subr.mxu0 0.0
    %2959 = vmatpush1.msra.mxu0 0.0
    %2960 = vmatprep.subr.mxu0 0.0
    %2961 = vmatpush1.msra.mxu0 0.0
    %2962 = vmatprep.subr.mxu0 0.0
    %2963 = vmatpush1.msra.mxu0 0.0
    %2964 = vmatprep.mubr.f32.mxu0 0.0
    %2965 = vmatmul.mubr.f32.gmra.mrb[0].mxu0 %v2629
    %v2966 = vpop.f32.mrb[0].mxu0
    %v2967 = vadd.f32 0.0, %v2966
    %v2968 = vpop.f32.mrb[0].mxu0
    %v2969 = vadd.f32 0.0, %v2968
    %2970 = vmatprep.mubr.f32.mxu0 0.0
    %2971 = vmatmul.mubr.f32.gmra.mrb[0].mxu0 %v2630
    %v2972 = vpop.f32.mrb[0].mxu0
    %v2973 = vadd.f32 0.0, %v2972
    %v2974 = vpop.f32.mrb[0].mxu0
    %v2975 = vadd.f32 0.0, %v2974
    %2976 = vmatprep.mubr.f32.mxu0 0.0
    %2977 = vmatmul.mubr.f32.gmra.mrb[0].mxu0 %v2631
    %v2978 = vpop.f32.mrb[0].mxu0
    %v2979 = vadd.f32 0.0, %v2978
    %v2980 = vpop.f32.mrb[0].mxu0
    %v2981 = vadd.f32 0.0, %v2980
    %2982 = vmatprep.mubr.f32.mxu0 0.0
    %2983 = vmatmul.mubr.f32.gmra.mrb[0].mxu0 %v2632
    %v2984 = vpop.f32.mrb[0].mxu0
    %v2985 = vadd.f32 0.0, %v2984
    %v2986 = vpop.f32.mrb[0].mxu0
    %v2987 = vadd.f32 0.0, %v2986
    %2988 = vdwg.mxu0
    %s2989 = scalar_lea.vmem [#allocation2], 384
    %v2990 = vld [vmem:[%s2989] sm:$0xff]
    %v2991 = vld [vmem:[%s2989 + $0x8] sm:$0xff]
    %v2992 = vld [vmem:[%s2989 + $0x10] sm:$0xff]
    %v2993 = vld [vmem:[%s2989 + $0x18] sm:$0xff]
    %v2994 = vld [vmem:[%s2989 + $0x20] sm:$0xff]
    %v2995 = vld [vmem:[%s2989 + $0x28] sm:$0xff]
    %v2996 = vld [vmem:[%s2989 + $0x30] sm:$0xff]
    %v2997 = vld [vmem:[%s2989 + $0x38] sm:$0xff]
    %v2998 = vld [vmem:[%s2989 + $0x40] sm:$0xff]
    %v2999 = vld [vmem:[%s2989 + $0x48] sm:$0xff]
    %v3000 = vld [vmem:[%s2989 + $0x50] sm:$0xff]
    %v3001 = vld [vmem:[%s2989 + $0x58] sm:$0xff]
    %v3002 = vld [vmem:[%s2989 + $0x60] sm:$0xff]
    %v3003 = vld [vmem:[%s2989 + $0x68] sm:$0xff]
    %v3004 = vld [vmem:[%s2989 + $0x70] sm:$0xff]
    %v3005 = vld [vmem:[%s2989 + $0x78] sm:$0xff]
    %v3006 = vadd.f32 %v2990, %v2700
    %v3007 = vadd.f32 %v2991, %v2702
    %v3008 = vadd.f32 %v2992, %v2789
    %v3009 = vadd.f32 %v2993, %v2791
    %v3010 = vadd.f32 %v2994, %v2706
    %v3011 = vadd.f32 %v2995, %v2708
    %v3012 = vadd.f32 %v2996, %v2795
    %v3013 = vadd.f32 %v2997, %v2797
    %v3014 = vadd.f32 %v2998, %v2712
    %v3015 = vadd.f32 %v2999, %v2714
    %v3016 = vadd.f32 %v3000, %v2801
    %v3017 = vadd.f32 %v3001, %v2803
    %v3018 = vadd.f32 %v3002, %v2718
    %v3019 = vadd.f32 %v3003, %v2720
    %v3020 = vadd.f32 %v3004, %v2807
    %v3021 = vadd.f32 %v3005, %v2809
    %v3022 = vxor.u32 %v3006, 2147483648
    %v3023 = vxor.u32 %v3010, 2147483648
    %v3024 = vxor.u32 %v3014, 2147483648
    %v3025 = vxor.u32 %v3018, 2147483648
    %v3026 = vmul.f32 %v3022, 1.442695
    %v3027 = vpow.pop %v3026
    %v3028 = vmul.f32 %v3023, 1.442695
    %v3029 = vpow.pop %v3028
    %v3030 = vmul.f32 %v3024, 1.442695
    %v3031 = vpow.pop %v3030
    %v3032 = vmul.f32 %v3025, 1.442695
    %v3033 = vpow.pop %v3032
    %v3034 = vadd.f32 %v3027, 1.0
    %v3035 = vadd.f32 %v3029, 1.0
    %v3036 = vadd.f32 %v3031, 1.0
    %v3037 = vadd.f32 %v3033, 1.0
    %v3038 = vrcp.pop %v3034
    %v3039 = vmul.f32 1.0, %v3038
    %v3040 = vrcp.pop %v3035
    %v3041 = vmul.f32 1.0, %v3040
    %v3042 = vrcp.pop %v3036
    %v3043 = vmul.f32 1.0, %v3042
    %v3044 = vrcp.pop %v3037
    %v3045 = vmul.f32 1.0, %v3044
    %v3046 = vxor.u32 %v3007, 2147483648
    %v3047 = vxor.u32 %v3011, 2147483648
    %v3048 = vxor.u32 %v3015, 2147483648
    %v3049 = vxor.u32 %v3019, 2147483648
    %v3050 = vmul.f32 %v3046, 1.442695
    %v3051 = vpow.pop %v3050
    %v3052 = vmul.f32 %v3047, 1.442695
    %v3053 = vpow.pop %v3052
    %v3054 = vmul.f32 %v3048, 1.442695
    %v3055 = vpow.pop %v3054
    %v3056 = vmul.f32 %v3049, 1.442695
    %v3057 = vpow.pop %v3056
    %v3058 = vadd.f32 %v3051, 1.0
    %v3059 = vadd.f32 %v3053, 1.0
    %v3060 = vadd.f32 %v3055, 1.0
    %v3061 = vadd.f32 %v3057, 1.0
    %v3062 = vrcp.pop %v3058
    %v3063 = vmul.f32 1.0, %v3062
    %v3064 = vrcp.pop %v3059
    %v3065 = vmul.f32 1.0, %v3064
    %v3066 = vrcp.pop %v3060
    %v3067 = vmul.f32 1.0, %v3066
    %v3068 = vrcp.pop %v3061
    %v3069 = vmul.f32 1.0, %v3068
    %v3070 = vtanh.pop %v3008
    %v3071 = vtanh.pop %v3012
    %v3072 = vtanh.pop %v3016
    %v3073 = vtanh.pop %v3020
    %v3074 = vxor.u32 %v3009, 2147483648
    %v3075 = vxor.u32 %v3013, 2147483648
    %v3076 = vxor.u32 %v3017, 2147483648
    %v3077 = vxor.u32 %v3021, 2147483648
    %v3078 = vmul.f32 %v3074, 1.442695
    %v3079 = vpow.pop %v3078
    %v3080 = vmul.f32 %v3075, 1.442695
    %v3081 = vpow.pop %v3080
    %v3082 = vmul.f32 %v3076, 1.442695
    %v3083 = vpow.pop %v3082
    %v3084 = vmul.f32 %v3077, 1.442695
    %v3085 = vpow.pop %v3084
    %v3086 = vadd.f32 %v3079, 1.0
    %v3087 = vadd.f32 %v3081, 1.0
    %v3088 = vadd.f32 %v3083, 1.0
    %v3089 = vadd.f32 %v3085, 1.0
    %v3090 = vrcp.pop %v3086
    %v3091 = vmul.f32 1.0, %v3090
    %v3092 = vrcp.pop %v3087
    %v3093 = vmul.f32 1.0, %v3092
    %v3094 = vrcp.pop %v3088
    %v3095 = vmul.f32 1.0, %v3094
    %v3096 = vrcp.pop %v3089
    %v3097 = vmul.f32 1.0, %v3096
    %v3098 = vmul.f32 %v3063, %v2331
    %v3099 = vmul.f32 %v3065, %v2332
    %v3100 = vmul.f32 %v3067, %v2333
    %v3101 = vmul.f32 %v3069, %v2334
    %v3102 = vmul.f32 %v3039, %v3070
    %v3103 = vmul.f32 %v3041, %v3071
    %v3104 = vmul.f32 %v3043, %v3072
    %v3105 = vmul.f32 %v3045, %v3073
    %v3106 = vadd.f32 %v3098, %v3102
    %v3107 = vadd.f32 %v3099, %v3103
    %v3108 = vadd.f32 %v3100, %v3104
    %v3109 = vadd.f32 %v3101, %v3105
    %v3110 = vtanh.pop %v3106
    %v3111 = vtanh.pop %v3107
    %v3112 = vtanh.pop %v3108
    %v3113 = vtanh.pop %v3109
    %v3114 = vmul.f32 %v3091, %v3110
    %v3115 = vmul.f32 %v3093, %v3111
    %v3116 = vmul.f32 %v3095, %v3112
    %v3117 = vmul.f32 %v3097, %v3113
    %3118 = vmatprep.subr.mxu0 %v160
    %3119 = vmatpush1.msra.mxu0 %v159
    %3120 = vmatprep.subr.mxu0 %v164
    %3121 = vmatpush1.msra.mxu0 %v163
    %3122 = vmatprep.subr.mxu0 %v168
    %3123 = vmatpush1.msra.mxu0 %v167
    %3124 = vmatprep.subr.mxu0 %v172
    %3125 = vmatpush1.msra.mxu0 %v171
    %3126 = vmatprep.subr.mxu0 %v176
    %3127 = vmatpush1.msra.mxu0 %v175
    %3128 = vmatprep.subr.mxu0 %v180
    %3129 = vmatpush1.msra.mxu0 %v179
    %3130 = vmatprep.subr.mxu0 %v184
    %3131 = vmatpush1.msra.mxu0 %v183
    %3132 = vmatprep.subr.mxu0 %v188
    %3133 = vmatpush1.msra.mxu0 %v187
    %3134 = vmatprep.subr.mxu0 %v192
    %3135 = vmatpush1.msra.mxu0 %v191
    %3136 = vmatprep.subr.mxu0 %v196
    %3137 = vmatpush1.msra.mxu0 %v195
    %3138 = vmatprep.subr.mxu0 %v200
    %3139 = vmatpush1.msra.mxu0 %v199
    %3140 = vmatprep.subr.mxu0 %v204
    %3141 = vmatpush1.msra.mxu0 %v203
    %3142 = vmatprep.subr.mxu0 %v208
    %3143 = vmatpush1.msra.mxu0 %v207
    %3144 = vmatprep.subr.mxu0 %v212
    %3145 = vmatpush1.msra.mxu0 %v211
    %3146 = vmatprep.subr.mxu0 %v216
    %3147 = vmatpush1.msra.mxu0 %v215
    %3148 = vmatprep.subr.mxu0 %v220
    %3149 = vmatpush1.msra.mxu0 %v219
    %3150 = vmatprep.subr.mxu0 0.0
    %3151 = vmatpush1.msra.mxu0 0.0
    %3152 = vmatprep.subr.mxu0 0.0
    %3153 = vmatpush1.msra.mxu0 0.0
    %3154 = vmatprep.subr.mxu0 0.0
    %3155 = vmatpush1.msra.mxu0 0.0
    %3156 = vmatprep.subr.mxu0 0.0
    %3157 = vmatpush1.msra.mxu0 0.0
    %3158 = vmatprep.subr.mxu0 0.0
    %3159 = vmatpush1.msra.mxu0 0.0
    %3160 = vmatprep.subr.mxu0 0.0
    %3161 = vmatpush1.msra.mxu0 0.0
    %3162 = vmatprep.subr.mxu0 0.0
    %3163 = vmatpush1.msra.mxu0 0.0
    %3164 = vmatprep.subr.mxu0 0.0
    %3165 = vmatpush1.msra.mxu0 0.0
    %3166 = vmatprep.subr.mxu0 0.0
    %3167 = vmatpush1.msra.mxu0 0.0
    %3168 = vmatprep.subr.mxu0 0.0
    %3169 = vmatpush1.msra.mxu0 0.0
    %3170 = vmatprep.subr.mxu0 0.0
    %3171 = vmatpush1.msra.mxu0 0.0
    %3172 = vmatprep.subr.mxu0 0.0
    %3173 = vmatpush1.msra.mxu0 0.0
    %3174 = vmatprep.subr.mxu0 0.0
    %3175 = vmatpush1.msra.mxu0 0.0
    %3176 = vmatprep.subr.mxu0 0.0
    %3177 = vmatpush1.msra.mxu0 0.0
    %3178 = vmatprep.subr.mxu0 0.0
    %3179 = vmatpush1.msra.mxu0 0.0
    %3180 = vmatprep.subr.mxu0 0.0
    %3181 = vmatpush1.msra.mxu0 0.0
    %3182 = vmatprep.mubr.f32.mxu0 0.0
    %3183 = vmatmul.mubr.f32.gmra.mrb[0].mxu0 %v3114
    %v3184 = vpop.f32.mrb[0].mxu0
    %v3185 = vadd.f32 %v2878, %v3184
    %v3186 = vpop.f32.mrb[0].mxu0
    %v3187 = vadd.f32 %v2880, %v3186
    %3188 = vmatprep.mubr.f32.mxu0 0.0
    %3189 = vmatmul.mubr.f32.gmra.mrb[0].mxu0 %v3115
    %v3190 = vpop.f32.mrb[0].mxu0
    %v3191 = vadd.f32 %v2884, %v3190
    %v3192 = vpop.f32.mrb[0].mxu0
    %v3193 = vadd.f32 %v2886, %v3192
    %3194 = vmatprep.mubr.f32.mxu0 0.0
    %3195 = vmatmul.mubr.f32.gmra.mrb[0].mxu0 %v3116
    %v3196 = vpop.f32.mrb[0].mxu0
    %v3197 = vadd.f32 %v2890, %v3196
    %v3198 = vpop.f32.mrb[0].mxu0
    %v3199 = vadd.f32 %v2892, %v3198
    %3200 = vmatprep.mubr.f32.mxu0 0.0
    %3201 = vmatmul.mubr.f32.gmra.mrb[0].mxu0 %v3117
    %v3202 = vpop.f32.mrb[0].mxu0
    %v3203 = vadd.f32 %v2896, %v3202
    %v3204 = vpop.f32.mrb[0].mxu0
    %v3205 = vadd.f32 %v2898, %v3204
    %3206 = vdwg.mxu0
    %3207 = vmatprep.subr.mxu0 %v162
    %3208 = vmatpush1.msra.mxu0 %v161
    %3209 = vmatprep.subr.mxu0 %v166
    %3210 = vmatpush1.msra.mxu0 %v165
    %3211 = vmatprep.subr.mxu0 %v170
    %3212 = vmatpush1.msra.mxu0 %v169
    %3213 = vmatprep.subr.mxu0 %v174
    %3214 = vmatpush1.msra.mxu0 %v173
    %3215 = vmatprep.subr.mxu0 %v178
    %3216 = vmatpush1.msra.mxu0 %v177
    %3217 = vmatprep.subr.mxu0 %v182
    %3218 = vmatpush1.msra.mxu0 %v181
    %3219 = vmatprep.subr.mxu0 %v186
    %3220 = vmatpush1.msra.mxu0 %v185
    %3221 = vmatprep.subr.mxu0 %v190
    %3222 = vmatpush1.msra.mxu0 %v189
    %3223 = vmatprep.subr.mxu0 %v194
    %3224 = vmatpush1.msra.mxu0 %v193
    %3225 = vmatprep.subr.mxu0 %v198
    %3226 = vmatpush1.msra.mxu0 %v197
    %3227 = vmatprep.subr.mxu0 %v202
    %3228 = vmatpush1.msra.mxu0 %v201
    %3229 = vmatprep.subr.mxu0 %v206
    %3230 = vmatpush1.msra.mxu0 %v205
    %3231 = vmatprep.subr.mxu0 %v210
    %3232 = vmatpush1.msra.mxu0 %v209
    %3233 = vmatprep.subr.mxu0 %v214
    %3234 = vmatpush1.msra.mxu0 %v213
    %3235 = vmatprep.subr.mxu0 %v218
    %3236 = vmatpush1.msra.mxu0 %v217
    %3237 = vmatprep.subr.mxu0 %v222
    %3238 = vmatpush1.msra.mxu0 %v221
    %3239 = vmatprep.subr.mxu0 0.0
    %3240 = vmatpush1.msra.mxu0 0.0
    %3241 = vmatprep.subr.mxu0 0.0
    %3242 = vmatpush1.msra.mxu0 0.0
    %3243 = vmatprep.subr.mxu0 0.0
    %3244 = vmatpush1.msra.mxu0 0.0
    %3245 = vmatprep.subr.mxu0 0.0
    %3246 = vmatpush1.msra.mxu0 0.0
    %3247 = vmatprep.subr.mxu0 0.0
    %3248 = vmatpush1.msra.mxu0 0.0
    %3249 = vmatprep.subr.mxu0 0.0
    %3250 = vmatpush1.msra.mxu0 0.0
    %3251 = vmatprep.subr.mxu0 0.0
    %3252 = vmatpush1.msra.mxu0 0.0
    %3253 = vmatprep.subr.mxu0 0.0
    %3254 = vmatpush1.msra.mxu0 0.0
    %3255 = vmatprep.subr.mxu0 0.0
    %3256 = vmatpush1.msra.mxu0 0.0
    %3257 = vmatprep.subr.mxu0 0.0
    %3258 = vmatpush1.msra.mxu0 0.0
    %3259 = vmatprep.subr.mxu0 0.0
    %3260 = vmatpush1.msra.mxu0 0.0
    %3261 = vmatprep.subr.mxu0 0.0
    %3262 = vmatpush1.msra.mxu0 0.0
    %3263 = vmatprep.subr.mxu0 0.0
    %3264 = vmatpush1.msra.mxu0 0.0
    %3265 = vmatprep.subr.mxu0 0.0
    %3266 = vmatpush1.msra.mxu0 0.0
    %3267 = vmatprep.subr.mxu0 0.0
    %3268 = vmatpush1.msra.mxu0 0.0
    %3269 = vmatprep.subr.mxu0 0.0
    %3270 = vmatpush1.msra.mxu0 0.0
    %3271 = vmatprep.mubr.f32.mxu0 0.0
    %3272 = vmatmul.mubr.f32.gmra.mrb[0].mxu0 %v3114
    %v3273 = vpop.f32.mrb[0].mxu0
    %v3274 = vadd.f32 %v2967, %v3273
    %v3275 = vpop.f32.mrb[0].mxu0
    %v3276 = vadd.f32 %v2969, %v3275
    %3277 = vmatprep.mubr.f32.mxu0 0.0
    %3278 = vmatmul.mubr.f32.gmra.mrb[0].mxu0 %v3115
    %v3279 = vpop.f32.mrb[0].mxu0
    %v3280 = vadd.f32 %v2973, %v3279
    %v3281 = vpop.f32.mrb[0].mxu0
    %v3282 = vadd.f32 %v2975, %v3281
    %3283 = vmatprep.mubr.f32.mxu0 0.0
    %3284 = vmatmul.mubr.f32.gmra.mrb[0].mxu0 %v3116
    %v3285 = vpop.f32.mrb[0].mxu0
    %v3286 = vadd.f32 %v2979, %v3285
    %v3287 = vpop.f32.mrb[0].mxu0
    %v3288 = vadd.f32 %v2981, %v3287
    %3289 = vmatprep.mubr.f32.mxu0 0.0
    %3290 = vmatmul.mubr.f32.gmra.mrb[0].mxu0 %v3117
    %v3291 = vpop.f32.mrb[0].mxu0
    %v3292 = vadd.f32 %v2985, %v3291
    %v3293 = vpop.f32.mrb[0].mxu0
    %v3294 = vadd.f32 %v2987, %v3293
    %3295 = vdwg.mxu0
    %v3296 = vadd.f32 %v3185, %v292
    %v3297 = vadd.f32 %v3187, %v296
    %v3298 = vadd.f32 %v3274, %v300
    %v3299 = vadd.f32 %v3276, %v304
    %v3300 = vadd.f32 %v3191, %v292
    %v3301 = vadd.f32 %v3193, %v296
    %v3302 = vadd.f32 %v3280, %v300
    %v3303 = vadd.f32 %v3282, %v304
    %v3304 = vadd.f32 %v3197, %v292
    %v3305 = vadd.f32 %v3199, %v296
    %v3306 = vadd.f32 %v3286, %v300
    %v3307 = vadd.f32 %v3288, %v304
    %v3308 = vadd.f32 %v3203, %v292
    %v3309 = vadd.f32 %v3205, %v296
    %v3310 = vadd.f32 %v3292, %v300
    %v3311 = vadd.f32 %v3294, %v304
    %v3312 = vxor.u32 %v3296, 2147483648
    %v3313 = vxor.u32 %v3300, 2147483648
    %v3314 = vxor.u32 %v3304, 2147483648
    %v3315 = vxor.u32 %v3308, 2147483648
    %v3316 = vmul.f32 %v3312, 1.442695
    %v3317 = vpow.pop %v3316
    %v3318 = vmul.f32 %v3313, 1.442695
    %v3319 = vpow.pop %v3318
    %v3320 = vmul.f32 %v3314, 1.442695
    %v3321 = vpow.pop %v3320
    %v3322 = vmul.f32 %v3315, 1.442695
    %v3323 = vpow.pop %v3322
    %v3324 = vadd.f32 %v3317, 1.0
    %v3325 = vadd.f32 %v3319, 1.0
    %v3326 = vadd.f32 %v3321, 1.0
    %v3327 = vadd.f32 %v3323, 1.0
    %v3328 = vrcp.pop %v3324
    %v3329 = vmul.f32 1.0, %v3328
    %v3330 = vrcp.pop %v3325
    %v3331 = vmul.f32 1.0, %v3330
    %v3332 = vrcp.pop %v3326
    %v3333 = vmul.f32 1.0, %v3332
    %v3334 = vrcp.pop %v3327
    %v3335 = vmul.f32 1.0, %v3334
    %v3336 = vxor.u32 %v3297, 2147483648
    %v3337 = vxor.u32 %v3301, 2147483648
    %v3338 = vxor.u32 %v3305, 2147483648
    %v3339 = vxor.u32 %v3309, 2147483648
    %v3340 = vmul.f32 %v3336, 1.442695
    %v3341 = vpow.pop %v3340
    %v3342 = vmul.f32 %v3337, 1.442695
    %v3343 = vpow.pop %v3342
    %v3344 = vmul.f32 %v3338, 1.442695
    %v3345 = vpow.pop %v3344
    %v3346 = vmul.f32 %v3339, 1.442695
    %v3347 = vpow.pop %v3346
    %v3348 = vadd.f32 %v3341, 1.0
    %v3349 = vadd.f32 %v3343, 1.0
    %v3350 = vadd.f32 %v3345, 1.0
    %v3351 = vadd.f32 %v3347, 1.0
    %v3352 = vrcp.pop %v3348
    %v3353 = vmul.f32 1.0, %v3352
    %v3354 = vrcp.pop %v3349
    %v3355 = vmul.f32 1.0, %v3354
    %v3356 = vrcp.pop %v3350
    %v3357 = vmul.f32 1.0, %v3356
    %v3358 = vrcp.pop %v3351
    %v3359 = vmul.f32 1.0, %v3358
    %v3360 = vtanh.pop %v3298
    %v3361 = vtanh.pop %v3302
    %v3362 = vtanh.pop %v3306
    %v3363 = vtanh.pop %v3310
    %v3364 = vxor.u32 %v3299, 2147483648
    %v3365 = vxor.u32 %v3303, 2147483648
    %v3366 = vxor.u32 %v3307, 2147483648
    %v3367 = vxor.u32 %v3311, 2147483648
    %v3368 = vmul.f32 %v3364, 1.442695
    %v3369 = vpow.pop %v3368
    %v3370 = vmul.f32 %v3365, 1.442695
    %v3371 = vpow.pop %v3370
    %v3372 = vmul.f32 %v3366, 1.442695
    %v3373 = vpow.pop %v3372
    %v3374 = vmul.f32 %v3367, 1.442695
    %v3375 = vpow.pop %v3374
    %v3376 = vadd.f32 %v3369, 1.0
    %v3377 = vadd.f32 %v3371, 1.0
    %v3378 = vadd.f32 %v3373, 1.0
    %v3379 = vadd.f32 %v3375, 1.0
    %v3380 = vrcp.pop %v3376
    %v3381 = vmul.f32 1.0, %v3380
    %v3382 = vrcp.pop %v3377
    %v3383 = vmul.f32 1.0, %v3382
    %v3384 = vrcp.pop %v3378
    %v3385 = vmul.f32 1.0, %v3384
    %v3386 = vrcp.pop %v3379
    %v3387 = vmul.f32 1.0, %v3386
    %v3388 = vmul.f32 %v3353, %v2621
    %v3389 = vmul.f32 %v3355, %v2622
    %v3390 = vmul.f32 %v3357, %v2623
    %v3391 = vmul.f32 %v3359, %v2624
    %v3392 = vmul.f32 %v3329, %v3360
    %v3393 = vmul.f32 %v3331, %v3361
    %v3394 = vmul.f32 %v3333, %v3362
    %v3395 = vmul.f32 %v3335, %v3363
    %v3396 = vadd.f32 %v3388, %v3392
    %v3397 = vadd.f32 %v3389, %v3393
    %v3398 = vadd.f32 %v3390, %v3394
    %v3399 = vadd.f32 %v3391, %v3395
    %v3400 = vtanh.pop %v3396
    %v3401 = vtanh.pop %v3397
    %v3402 = vtanh.pop %v3398
    %v3403 = vtanh.pop %v3399
    %v3404 = vmul.f32 %v3381, %v3400
    %v3405 = vmul.f32 %v3383, %v3401
    %v3406 = vmul.f32 %v3385, %v3402
    %v3407 = vmul.f32 %v3387, %v3403
    %3408 = vmatprep.subr.mxu0 %v96
    %3409 = vmatpush1.msra.mxu0 %v95
    %3410 = vmatprep.subr.mxu0 %v100
    %3411 = vmatpush1.msra.mxu0 %v99
    %3412 = vmatprep.subr.mxu0 %v104
    %3413 = vmatpush1.msra.mxu0 %v103
    %3414 = vmatprep.subr.mxu0 %v108
    %3415 = vmatpush1.msra.mxu0 %v107
    %3416 = vmatprep.subr.mxu0 %v112
    %3417 = vmatpush1.msra.mxu0 %v111
    %3418 = vmatprep.subr.mxu0 %v116
    %3419 = vmatpush1.msra.mxu0 %v115
    %3420 = vmatprep.subr.mxu0 %v120
    %3421 = vmatpush1.msra.mxu0 %v119
    %3422 = vmatprep.subr.mxu0 %v124
    %3423 = vmatpush1.msra.mxu0 %v123
    %3424 = vmatprep.subr.mxu0 %v128
    %3425 = vmatpush1.msra.mxu0 %v127
    %3426 = vmatprep.subr.mxu0 %v132
    %3427 = vmatpush1.msra.mxu0 %v131
    %3428 = vmatprep.subr.mxu0 %v136
    %3429 = vmatpush1.msra.mxu0 %v135
    %3430 = vmatprep.subr.mxu0 %v140
    %3431 = vmatpush1.msra.mxu0 %v139
    %3432 = vmatprep.subr.mxu0 %v144
    %3433 = vmatpush1.msra.mxu0 %v143
    %3434 = vmatprep.subr.mxu0 %v148
    %3435 = vmatpush1.msra.mxu0 %v147
    %3436 = vmatprep.subr.mxu0 %v152
    %3437 = vmatpush1.msra.mxu0 %v151
    %3438 = vmatprep.subr.mxu0 %v156
    %3439 = vmatpush1.msra.mxu0 %v155
    %3440 = vmatprep.subr.mxu0 0.0
    %3441 = vmatpush1.msra.mxu0 0.0
    %3442 = vmatprep.subr.mxu0 0.0
    %3443 = vmatpush1.msra.mxu0 0.0
    %3444 = vmatprep.subr.mxu0 0.0
    %3445 = vmatpush1.msra.mxu0 0.0
    %3446 = vmatprep.subr.mxu0 0.0
    %3447 = vmatpush1.msra.mxu0 0.0
    %3448 = vmatprep.subr.mxu0 0.0
    %3449 = vmatpush1.msra.mxu0 0.0
    %3450 = vmatprep.subr.mxu0 0.0
    %3451 = vmatpush1.msra.mxu0 0.0
    %3452 = vmatprep.subr.mxu0 0.0
    %3453 = vmatpush1.msra.mxu0 0.0
    %3454 = vmatprep.subr.mxu0 0.0
    %3455 = vmatpush1.msra.mxu0 0.0
    %3456 = vmatprep.subr.mxu0 0.0
    %3457 = vmatpush1.msra.mxu0 0.0
    %3458 = vmatprep.subr.mxu0 0.0
    %3459 = vmatpush1.msra.mxu0 0.0
    %3460 = vmatprep.subr.mxu0 0.0
    %3461 = vmatpush1.msra.mxu0 0.0
    %3462 = vmatprep.subr.mxu0 0.0
    %3463 = vmatpush1.msra.mxu0 0.0
    %3464 = vmatprep.subr.mxu0 0.0
    %3465 = vmatpush1.msra.mxu0 0.0
    %3466 = vmatprep.subr.mxu0 0.0
    %3467 = vmatpush1.msra.mxu0 0.0
    %3468 = vmatprep.subr.mxu0 0.0
    %3469 = vmatpush1.msra.mxu0 0.0
    %3470 = vmatprep.subr.mxu0 0.0
    %3471 = vmatpush1.msra.mxu0 0.0
    %3472 = vmatprep.mubr.f32.mxu0 0.0
    %3473 = vmatmul.mubr.f32.gmra.mrb[0].mxu0 %v3114
    %v3474 = vpop.f32.mrb[0].mxu0
    %v3475 = vadd.f32 0.0, %v3474
    %v3476 = vpop.f32.mrb[0].mxu0
    %v3477 = vadd.f32 0.0, %v3476
    %3478 = vmatprep.mubr.f32.mxu0 0.0
    %3479 = vmatmul.mubr.f32.gmra.mrb[0].mxu0 %v3115
    %v3480 = vpop.f32.mrb[0].mxu0
    %v3481 = vadd.f32 0.0, %v3480
    %v3482 = vpop.f32.mrb[0].mxu0
    %v3483 = vadd.f32 0.0, %v3482
    %3484 = vmatprep.mubr.f32.mxu0 0.0
    %3485 = vmatmul.mubr.f32.gmra.mrb[0].mxu0 %v3116
    %v3486 = vpop.f32.mrb[0].mxu0
    %v3487 = vadd.f32 0.0, %v3486
    %v3488 = vpop.f32.mrb[0].mxu0
    %v3489 = vadd.f32 0.0, %v3488
    %3490 = vmatprep.mubr.f32.mxu0 0.0
    %3491 = vmatmul.mubr.f32.gmra.mrb[0].mxu0 %v3117
    %v3492 = vpop.f32.mrb[0].mxu0
    %v3493 = vadd.f32 0.0, %v3492
    %v3494 = vpop.f32.mrb[0].mxu0
    %v3495 = vadd.f32 0.0, %v3494
    %3496 = vdwg.mxu0
    %3497 = vmatprep.subr.mxu0 %v98
    %3498 = vmatpush1.msra.mxu0 %v97
    %3499 = vmatprep.subr.mxu0 %v102
    %3500 = vmatpush1.msra.mxu0 %v101
    %3501 = vmatprep.subr.mxu0 %v106
    %3502 = vmatpush1.msra.mxu0 %v105
    %3503 = vmatprep.subr.mxu0 %v110
    %3504 = vmatpush1.msra.mxu0 %v109
    %3505 = vmatprep.subr.mxu0 %v114
    %3506 = vmatpush1.msra.mxu0 %v113
    %3507 = vmatprep.subr.mxu0 %v118
    %3508 = vmatpush1.msra.mxu0 %v117
    %3509 = vmatprep.subr.mxu0 %v122
    %3510 = vmatpush1.msra.mxu0 %v121
    %3511 = vmatprep.subr.mxu0 %v126
    %3512 = vmatpush1.msra.mxu0 %v125
    %3513 = vmatprep.subr.mxu0 %v130
    %3514 = vmatpush1.msra.mxu0 %v129
    %3515 = vmatprep.subr.mxu0 %v134
    %3516 = vmatpush1.msra.mxu0 %v133
    %3517 = vmatprep.subr.mxu0 %v138
    %3518 = vmatpush1.msra.mxu0 %v137
    %3519 = vmatprep.subr.mxu0 %v142
    %3520 = vmatpush1.msra.mxu0 %v141
    %3521 = vmatprep.subr.mxu0 %v146
    %3522 = vmatpush1.msra.mxu0 %v145
    %3523 = vmatprep.subr.mxu0 %v150
    %3524 = vmatpush1.msra.mxu0 %v149
    %3525 = vmatprep.subr.mxu0 %v154
    %3526 = vmatpush1.msra.mxu0 %v153
    %3527 = vmatprep.subr.mxu0 %v158
    %3528 = vmatpush1.msra.mxu0 %v157
    %3529 = vmatprep.subr.mxu0 0.0
    %3530 = vmatpush1.msra.mxu0 0.0
    %3531 = vmatprep.subr.mxu0 0.0
    %3532 = vmatpush1.msra.mxu0 0.0
    %3533 = vmatprep.subr.mxu0 0.0
    %3534 = vmatpush1.msra.mxu0 0.0
    %3535 = vmatprep.subr.mxu0 0.0
    %3536 = vmatpush1.msra.mxu0 0.0
    %3537 = vmatprep.subr.mxu0 0.0
    %3538 = vmatpush1.msra.mxu0 0.0
    %3539 = vmatprep.subr.mxu0 0.0
    %3540 = vmatpush1.msra.mxu0 0.0
    %3541 = vmatprep.subr.mxu0 0.0
    %3542 = vmatpush1.msra.mxu0 0.0
    %3543 = vmatprep.subr.mxu0 0.0
    %3544 = vmatpush1.msra.mxu0 0.0
    %3545 = vmatprep.subr.mxu0 0.0
    %3546 = vmatpush1.msra.mxu0 0.0
    %3547 = vmatprep.subr.mxu0 0.0
    %3548 = vmatpush1.msra.mxu0 0.0
    %3549 = vmatprep.subr.mxu0 0.0
    %3550 = vmatpush1.msra.mxu0 0.0
    %3551 = vmatprep.subr.mxu0 0.0
    %3552 = vmatpush1.msra.mxu0 0.0
    %3553 = vmatprep.subr.mxu0 0.0
    %3554 = vmatpush1.msra.mxu0 0.0
    %3555 = vmatprep.subr.mxu0 0.0
    %3556 = vmatpush1.msra.mxu0 0.0
    %3557 = vmatprep.subr.mxu0 0.0
    %3558 = vmatpush1.msra.mxu0 0.0
    %3559 = vmatprep.subr.mxu0 0.0
    %3560 = vmatpush1.msra.mxu0 0.0
    %3561 = vmatprep.mubr.f32.mxu0 0.0
    %3562 = vmatmul.mubr.f32.gmra.mrb[0].mxu0 %v3114
    %v3563 = vpop.f32.mrb[0].mxu0
    %v3564 = vadd.f32 0.0, %v3563
    %v3565 = vpop.f32.mrb[0].mxu0
    %v3566 = vadd.f32 0.0, %v3565
    %3567 = vmatprep.mubr.f32.mxu0 0.0
    %3568 = vmatmul.mubr.f32.gmra.mrb[0].mxu0 %v3115
    %v3569 = vpop.f32.mrb[0].mxu0
    %v3570 = vadd.f32 0.0, %v3569
    %v3571 = vpop.f32.mrb[0].mxu0
    %v3572 = vadd.f32 0.0, %v3571
    %3573 = vmatprep.mubr.f32.mxu0 0.0
    %3574 = vmatmul.mubr.f32.gmra.mrb[0].mxu0 %v3116
    %v3575 = vpop.f32.mrb[0].mxu0
    %v3576 = vadd.f32 0.0, %v3575
    %v3577 = vpop.f32.mrb[0].mxu0
    %v3578 = vadd.f32 0.0, %v3577
    %3579 = vmatprep.mubr.f32.mxu0 0.0
    %3580 = vmatmul.mubr.f32.gmra.mrb[0].mxu0 %v3117
    %v3581 = vpop.f32.mrb[0].mxu0
    %v3582 = vadd.f32 0.0, %v3581
    %v3583 = vpop.f32.mrb[0].mxu0
    %v3584 = vadd.f32 0.0, %v3583
    %3585 = vdwg.mxu0
    %3586 = vmatprep.subr.mxu0 %v224
    %3587 = vmatpush1.msra.mxu0 %v223
    %3588 = vmatprep.subr.mxu0 %v228
    %3589 = vmatpush1.msra.mxu0 %v227
    %3590 = vmatprep.subr.mxu0 %v232
    %3591 = vmatpush1.msra.mxu0 %v231
    %3592 = vmatprep.subr.mxu0 %v236
    %3593 = vmatpush1.msra.mxu0 %v235
    %3594 = vmatprep.subr.mxu0 %v240
    %3595 = vmatpush1.msra.mxu0 %v239
    %3596 = vmatprep.subr.mxu0 %v244
    %3597 = vmatpush1.msra.mxu0 %v243
    %3598 = vmatprep.subr.mxu0 %v248
    %3599 = vmatpush1.msra.mxu0 %v247
    %3600 = vmatprep.subr.mxu0 %v252
    %3601 = vmatpush1.msra.mxu0 %v251
    %3602 = vmatprep.subr.mxu0 %v256
    %3603 = vmatpush1.msra.mxu0 %v255
    %3604 = vmatprep.subr.mxu0 %v260
    %3605 = vmatpush1.msra.mxu0 %v259
    %3606 = vmatprep.subr.mxu0 %v264
    %3607 = vmatpush1.msra.mxu0 %v263
    %3608 = vmatprep.subr.mxu0 %v268
    %3609 = vmatpush1.msra.mxu0 %v267
    %3610 = vmatprep.subr.mxu0 %v272
    %3611 = vmatpush1.msra.mxu0 %v271
    %3612 = vmatprep.subr.mxu0 %v276
    %3613 = vmatpush1.msra.mxu0 %v275
    %3614 = vmatprep.subr.mxu0 %v280
    %3615 = vmatpush1.msra.mxu0 %v279
    %3616 = vmatprep.subr.mxu0 %v284
    %3617 = vmatpush1.msra.mxu0 %v283
    %3618 = vmatprep.subr.mxu0 0.0
    %3619 = vmatpush1.msra.mxu0 0.0
    %3620 = vmatprep.subr.mxu0 0.0
    %3621 = vmatpush1.msra.mxu0 0.0
    %3622 = vmatprep.subr.mxu0 0.0
    %3623 = vmatpush1.msra.mxu0 0.0
    %3624 = vmatprep.subr.mxu0 0.0
    %3625 = vmatpush1.msra.mxu0 0.0
    %3626 = vmatprep.subr.mxu0 0.0
    %3627 = vmatpush1.msra.mxu0 0.0
    %3628 = vmatprep.subr.mxu0 0.0
    %3629 = vmatpush1.msra.mxu0 0.0
    %3630 = vmatprep.subr.mxu0 0.0
    %3631 = vmatpush1.msra.mxu0 0.0
    %3632 = vmatprep.subr.mxu0 0.0
    %3633 = vmatpush1.msra.mxu0 0.0
    %3634 = vmatprep.subr.mxu0 0.0
    %3635 = vmatpush1.msra.mxu0 0.0
    %3636 = vmatprep.subr.mxu0 0.0
    %3637 = vmatpush1.msra.mxu0 0.0
    %3638 = vmatprep.subr.mxu0 0.0
    %3639 = vmatpush1.msra.mxu0 0.0
    %3640 = vmatprep.subr.mxu0 0.0
    %3641 = vmatpush1.msra.mxu0 0.0
    %3642 = vmatprep.subr.mxu0 0.0
    %3643 = vmatpush1.msra.mxu0 0.0
    %3644 = vmatprep.subr.mxu0 0.0
    %3645 = vmatpush1.msra.mxu0 0.0
    %3646 = vmatprep.subr.mxu0 0.0
    %3647 = vmatpush1.msra.mxu0 0.0
    %3648 = vmatprep.subr.mxu0 0.0
    %3649 = vmatpush1.msra.mxu0 0.0
    %3650 = vmatprep.mubr.f32.mxu0 0.0
    %3651 = vmatmul.mubr.f32.gmra.mrb[0].mxu0 %v3404
    %v3652 = vpop.f32.mrb[0].mxu0
    %v3653 = vadd.f32 0.0, %v3652
    %v3654 = vpop.f32.mrb[0].mxu0
    %v3655 = vadd.f32 0.0, %v3654
    %3656 = vmatprep.mubr.f32.mxu0 0.0
    %3657 = vmatmul.mubr.f32.gmra.mrb[0].mxu0 %v3405
    %v3658 = vpop.f32.mrb[0].mxu0
    %v3659 = vadd.f32 0.0, %v3658
    %v3660 = vpop.f32.mrb[0].mxu0
    %v3661 = vadd.f32 0.0, %v3660
    %3662 = vmatprep.mubr.f32.mxu0 0.0
    %3663 = vmatmul.mubr.f32.gmra.mrb[0].mxu0 %v3406
    %v3664 = vpop.f32.mrb[0].mxu0
    %v3665 = vadd.f32 0.0, %v3664
    %v3666 = vpop.f32.mrb[0].mxu0
    %v3667 = vadd.f32 0.0, %v3666
    %3668 = vmatprep.mubr.f32.mxu0 0.0
    %3669 = vmatmul.mubr.f32.gmra.mrb[0].mxu0 %v3407
    %v3670 = vpop.f32.mrb[0].mxu0
    %v3671 = vadd.f32 0.0, %v3670
    %v3672 = vpop.f32.mrb[0].mxu0
    %v3673 = vadd.f32 0.0, %v3672
    %3674 = vdwg.mxu0
    %3675 = vmatprep.subr.mxu0 %v226
    %3676 = vmatpush1.msra.mxu0 %v225
    %3677 = vmatprep.subr.mxu0 %v230
    %3678 = vmatpush1.msra.mxu0 %v229
    %3679 = vmatprep.subr.mxu0 %v234
    %3680 = vmatpush1.msra.mxu0 %v233
    %3681 = vmatprep.subr.mxu0 %v238
    %3682 = vmatpush1.msra.mxu0 %v237
    %3683 = vmatprep.subr.mxu0 %v242
    %3684 = vmatpush1.msra.mxu0 %v241
    %3685 = vmatprep.subr.mxu0 %v246
    %3686 = vmatpush1.msra.mxu0 %v245
    %3687 = vmatprep.subr.mxu0 %v250
    %3688 = vmatpush1.msra.mxu0 %v249
    %3689 = vmatprep.subr.mxu0 %v254
    %3690 = vmatpush1.msra.mxu0 %v253
    %3691 = vmatprep.subr.mxu0 %v258
    %3692 = vmatpush1.msra.mxu0 %v257
    %3693 = vmatprep.subr.mxu0 %v262
    %3694 = vmatpush1.msra.mxu0 %v261
    %3695 = vmatprep.subr.mxu0 %v266
    %3696 = vmatpush1.msra.mxu0 %v265
    %3697 = vmatprep.subr.mxu0 %v270
    %3698 = vmatpush1.msra.mxu0 %v269
    %3699 = vmatprep.subr.mxu0 %v274
    %3700 = vmatpush1.msra.mxu0 %v273
    %3701 = vmatprep.subr.mxu0 %v278
    %3702 = vmatpush1.msra.mxu0 %v277
    %3703 = vmatprep.subr.mxu0 %v282
    %3704 = vmatpush1.msra.mxu0 %v281
    %3705 = vmatprep.subr.mxu0 %v286
    %3706 = vmatpush1.msra.mxu0 %v285
    %3707 = vmatprep.subr.mxu0 0.0
    %3708 = vmatpush1.msra.mxu0 0.0
    %3709 = vmatprep.subr.mxu0 0.0
    %3710 = vmatpush1.msra.mxu0 0.0
    %3711 = vmatprep.subr.mxu0 0.0
    %3712 = vmatpush1.msra.mxu0 0.0
    %3713 = vmatprep.subr.mxu0 0.0
    %3714 = vmatpush1.msra.mxu0 0.0
    %3715 = vmatprep.subr.mxu0 0.0
    %3716 = vmatpush1.msra.mxu0 0.0
    %3717 = vmatprep.subr.mxu0 0.0
    %3718 = vmatpush1.msra.mxu0 0.0
    %3719 = vmatprep.subr.mxu0 0.0
    %3720 = vmatpush1.msra.mxu0 0.0
    %3721 = vmatprep.subr.mxu0 0.0
    %3722 = vmatpush1.msra.mxu0 0.0
    %3723 = vmatprep.subr.mxu0 0.0
    %3724 = vmatpush1.msra.mxu0 0.0
    %3725 = vmatprep.subr.mxu0 0.0
    %3726 = vmatpush1.msra.mxu0 0.0
    %3727 = vmatprep.subr.mxu0 0.0
    %3728 = vmatpush1.msra.mxu0 0.0
    %3729 = vmatprep.subr.mxu0 0.0
    %3730 = vmatpush1.msra.mxu0 0.0
    %3731 = vmatprep.subr.mxu0 0.0
    %3732 = vmatpush1.msra.mxu0 0.0
    %3733 = vmatprep.subr.mxu0 0.0
    %3734 = vmatpush1.msra.mxu0 0.0
    %3735 = vmatprep.subr.mxu0 0.0
    %3736 = vmatpush1.msra.mxu0 0.0
    %3737 = vmatprep.subr.mxu0 0.0
    %3738 = vmatpush1.msra.mxu0 0.0
    %3739 = vmatprep.mubr.f32.mxu0 0.0
    %3740 = vmatmul.mubr.f32.gmra.mrb[0].mxu0 %v3404
    %v3741 = vpop.f32.mrb[0].mxu0
    %v3742 = vadd.f32 0.0, %v3741
    %v3743 = vpop.f32.mrb[0].mxu0
    %v3744 = vadd.f32 0.0, %v3743
    %3745 = vmatprep.mubr.f32.mxu0 0.0
    %3746 = vmatmul.mubr.f32.gmra.mrb[0].mxu0 %v3405
    %v3747 = vpop.f32.mrb[0].mxu0
    %v3748 = vadd.f32 0.0, %v3747
    %v3749 = vpop.f32.mrb[0].mxu0
    %v3750 = vadd.f32 0.0, %v3749
    %3751 = vmatprep.mubr.f32.mxu0 0.0
    %3752 = vmatmul.mubr.f32.gmra.mrb[0].mxu0 %v3406
    %v3753 = vpop.f32.mrb[0].mxu0
    %v3754 = vadd.f32 0.0, %v3753
    %v3755 = vpop.f32.mrb[0].mxu0
    %v3756 = vadd.f32 0.0, %v3755
    %3757 = vmatprep.mubr.f32.mxu0 0.0
    %3758 = vmatmul.mubr.f32.gmra.mrb[0].mxu0 %v3407
    %v3759 = vpop.f32.mrb[0].mxu0
    %v3760 = vadd.f32 0.0, %v3759
    %v3761 = vpop.f32.mrb[0].mxu0
    %v3762 = vadd.f32 0.0, %v3761
    %3763 = vdwg.mxu0
    %s3764 = scalar_lea.vmem [#allocation2], 512
    %v3765 = vld [vmem:[%s3764] sm:$0xff]
    %v3766 = vld [vmem:[%s3764 + $0x8] sm:$0xff]
    %v3767 = vld [vmem:[%s3764 + $0x10] sm:$0xff]
    %v3768 = vld [vmem:[%s3764 + $0x18] sm:$0xff]
    %v3769 = vld [vmem:[%s3764 + $0x20] sm:$0xff]
    %v3770 = vld [vmem:[%s3764 + $0x28] sm:$0xff]
    %v3771 = vld [vmem:[%s3764 + $0x30] sm:$0xff]
    %v3772 = vld [vmem:[%s3764 + $0x38] sm:$0xff]
    %v3773 = vld [vmem:[%s3764 + $0x40] sm:$0xff]
    %v3774 = vld [vmem:[%s3764 + $0x48] sm:$0xff]
    %v3775 = vld [vmem:[%s3764 + $0x50] sm:$0xff]
    %v3776 = vld [vmem:[%s3764 + $0x58] sm:$0xff]
    %v3777 = vld [vmem:[%s3764 + $0x60] sm:$0xff]
    %v3778 = vld [vmem:[%s3764 + $0x68] sm:$0xff]
    %v3779 = vld [vmem:[%s3764 + $0x70] sm:$0xff]
    %v3780 = vld [vmem:[%s3764 + $0x78] sm:$0xff]
    %v3781 = vadd.f32 %v3765, %v3475
    %v3782 = vadd.f32 %v3766, %v3477
    %v3783 = vadd.f32 %v3767, %v3564
    %v3784 = vadd.f32 %v3768, %v3566
    %v3785 = vadd.f32 %v3769, %v3481
    %v3786 = vadd.f32 %v3770, %v3483
    %v3787 = vadd.f32 %v3771, %v3570
    %v3788 = vadd.f32 %v3772, %v3572
    %v3789 = vadd.f32 %v3773, %v3487
    %v3790 = vadd.f32 %v3774, %v3489
    %v3791 = vadd.f32 %v3775, %v3576
    %v3792 = vadd.f32 %v3776, %v3578
    %v3793 = vadd.f32 %v3777, %v3493
    %v3794 = vadd.f32 %v3778, %v3495
    %v3795 = vadd.f32 %v3779, %v3582
    %v3796 = vadd.f32 %v3780, %v3584
    %v3797 = vxor.u32 %v3781, 2147483648
    %v3798 = vxor.u32 %v3785, 2147483648
    %v3799 = vxor.u32 %v3789, 2147483648
    %v3800 = vxor.u32 %v3793, 2147483648
    %v3801 = vmul.f32 %v3797, 1.442695
    %v3802 = vpow.pop %v3801
    %v3803 = vmul.f32 %v3798, 1.442695
    %v3804 = vpow.pop %v3803
    %v3805 = vmul.f32 %v3799, 1.442695
    %v3806 = vpow.pop %v3805
    %v3807 = vmul.f32 %v3800, 1.442695
    %v3808 = vpow.pop %v3807
    %v3809 = vadd.f32 %v3802, 1.0
    %v3810 = vadd.f32 %v3804, 1.0
    %v3811 = vadd.f32 %v3806, 1.0
    %v3812 = vadd.f32 %v3808, 1.0
    %v3813 = vrcp.pop %v3809
    %v3814 = vmul.f32 1.0, %v3813
    %v3815 = vrcp.pop %v3810
    %v3816 = vmul.f32 1.0, %v3815
    %v3817 = vrcp.pop %v3811
    %v3818 = vmul.f32 1.0, %v3817
    %v3819 = vrcp.pop %v3812
    %v3820 = vmul.f32 1.0, %v3819
    %v3821 = vxor.u32 %v3782, 2147483648
    %v3822 = vxor.u32 %v3786, 2147483648
    %v3823 = vxor.u32 %v3790, 2147483648
    %v3824 = vxor.u32 %v3794, 2147483648
    %v3825 = vmul.f32 %v3821, 1.442695
    %v3826 = vpow.pop %v3825
    %v3827 = vmul.f32 %v3822, 1.442695
    %v3828 = vpow.pop %v3827
    %v3829 = vmul.f32 %v3823, 1.442695
    %v3830 = vpow.pop %v3829
    %v3831 = vmul.f32 %v3824, 1.442695
    %v3832 = vpow.pop %v3831
    %v3833 = vadd.f32 %v3826, 1.0
    %v3834 = vadd.f32 %v3828, 1.0
    %v3835 = vadd.f32 %v3830, 1.0
    %v3836 = vadd.f32 %v3832, 1.0
    %v3837 = vrcp.pop %v3833
    %v3838 = vmul.f32 1.0, %v3837
    %v3839 = vrcp.pop %v3834
    %v3840 = vmul.f32 1.0, %v3839
    %v3841 = vrcp.pop %v3835
    %v3842 = vmul.f32 1.0, %v3841
    %v3843 = vrcp.pop %v3836
    %v3844 = vmul.f32 1.0, %v3843
    %v3845 = vtanh.pop %v3783
    %v3846 = vtanh.pop %v3787
    %v3847 = vtanh.pop %v3791
    %v3848 = vtanh.pop %v3795
    %v3849 = vxor.u32 %v3784, 2147483648
    %v3850 = vxor.u32 %v3788, 2147483648
    %v3851 = vxor.u32 %v3792, 2147483648
    %v3852 = vxor.u32 %v3796, 2147483648
    %v3853 = vmul.f32 %v3849, 1.442695
    %v3854 = vpow.pop %v3853
    %v3855 = vmul.f32 %v3850, 1.442695
    %v3856 = vpow.pop %v3855
    %v3857 = vmul.f32 %v3851, 1.442695
    %v3858 = vpow.pop %v3857
    %v3859 = vmul.f32 %v3852, 1.442695
    %v3860 = vpow.pop %v3859
    %v3861 = vadd.f32 %v3854, 1.0
    %v3862 = vadd.f32 %v3856, 1.0
    %v3863 = vadd.f32 %v3858, 1.0
    %v3864 = vadd.f32 %v3860, 1.0
    %v3865 = vrcp.pop %v3861
    %v3866 = vmul.f32 1.0, %v3865
    %v3867 = vrcp.pop %v3862
    %v3868 = vmul.f32 1.0, %v3867
    %v3869 = vrcp.pop %v3863
    %v3870 = vmul.f32 1.0, %v3869
    %v3871 = vrcp.pop %v3864
    %v3872 = vmul.f32 1.0, %v3871
    %v3873 = vmul.f32 %v3838, %v3106
    %v3874 = vmul.f32 %v3840, %v3107
    %v3875 = vmul.f32 %v3842, %v3108
    %v3876 = vmul.f32 %v3844, %v3109
    %v3877 = vmul.f32 %v3814, %v3845
    %v3878 = vmul.f32 %v3816, %v3846
    %v3879 = vmul.f32 %v3818, %v3847
    %v3880 = vmul.f32 %v3820, %v3848
    %v3881 = vadd.f32 %v3873, %v3877
    %v3882 = vadd.f32 %v3874, %v3878
    %v3883 = vadd.f32 %v3875, %v3879
    %v3884 = vadd.f32 %v3876, %v3880
    %v3885 = vtanh.pop %v3881
    %v3886 = vtanh.pop %v3882
    %v3887 = vtanh.pop %v3883
    %v3888 = vtanh.pop %v3884
    %v3889 = vmul.f32 %v3866, %v3885
    %v3890 = vmul.f32 %v3868, %v3886
    %v3891 = vmul.f32 %v3870, %v3887
    %v3892 = vmul.f32 %v3872, %v3888
    %3893 = vmatprep.subr.mxu0 %v160
    %3894 = vmatpush1.msra.mxu0 %v159
    %3895 = vmatprep.subr.mxu0 %v164
    %3896 = vmatpush1.msra.mxu0 %v163
    %3897 = vmatprep.subr.mxu0 %v168
    %3898 = vmatpush1.msra.mxu0 %v167
    %3899 = vmatprep.subr.mxu0 %v172
    %3900 = vmatpush1.msra.mxu0 %v171
    %3901 = vmatprep.subr.mxu0 %v176
    %3902 = vmatpush1.msra.mxu0 %v175
    %3903 = vmatprep.subr.mxu0 %v180
    %3904 = vmatpush1.msra.mxu0 %v179
    %3905 = vmatprep.subr.mxu0 %v184
    %3906 = vmatpush1.msra.mxu0 %v183
    %3907 = vmatprep.subr.mxu0 %v188
    %3908 = vmatpush1.msra.mxu0 %v187
    %3909 = vmatprep.subr.mxu0 %v192
    %3910 = vmatpush1.msra.mxu0 %v191
    %3911 = vmatprep.subr.mxu0 %v196
    %3912 = vmatpush1.msra.mxu0 %v195
    %3913 = vmatprep.subr.mxu0 %v200
    %3914 = vmatpush1.msra.mxu0 %v199
    %3915 = vmatprep.subr.mxu0 %v204
    %3916 = vmatpush1.msra.mxu0 %v203
    %3917 = vmatprep.subr.mxu0 %v208
    %3918 = vmatpush1.msra.mxu0 %v207
    %3919 = vmatprep.subr.mxu0 %v212
    %3920 = vmatpush1.msra.mxu0 %v211
    %3921 = vmatprep.subr.mxu0 %v216
    %3922 = vmatpush1.msra.mxu0 %v215
    %3923 = vmatprep.subr.mxu0 %v220
    %3924 = vmatpush1.msra.mxu0 %v219
    %3925 = vmatprep.subr.mxu0 0.0
    %3926 = vmatpush1.msra.mxu0 0.0
    %3927 = vmatprep.subr.mxu0 0.0
    %3928 = vmatpush1.msra.mxu0 0.0
    %3929 = vmatprep.subr.mxu0 0.0
    %3930 = vmatpush1.msra.mxu0 0.0
    %3931 = vmatprep.subr.mxu0 0.0
    %3932 = vmatpush1.msra.mxu0 0.0
    %3933 = vmatprep.subr.mxu0 0.0
    %3934 = vmatpush1.msra.mxu0 0.0
    %3935 = vmatprep.subr.mxu0 0.0
    %3936 = vmatpush1.msra.mxu0 0.0
    %3937 = vmatprep.subr.mxu0 0.0
    %3938 = vmatpush1.msra.mxu0 0.0
    %3939 = vmatprep.subr.mxu0 0.0
    %3940 = vmatpush1.msra.mxu0 0.0
    %3941 = vmatprep.subr.mxu0 0.0
    %3942 = vmatpush1.msra.mxu0 0.0
    %3943 = vmatprep.subr.mxu0 0.0
    %3944 = vmatpush1.msra.mxu0 0.0
    %3945 = vmatprep.subr.mxu0 0.0
    %3946 = vmatpush1.msra.mxu0 0.0
    %3947 = vmatprep.subr.mxu0 0.0
    %3948 = vmatpush1.msra.mxu0 0.0
    %3949 = vmatprep.subr.mxu0 0.0
    %3950 = vmatpush1.msra.mxu0 0.0
    %3951 = vmatprep.subr.mxu0 0.0
    %3952 = vmatpush1.msra.mxu0 0.0
    %3953 = vmatprep.subr.mxu0 0.0
    %3954 = vmatpush1.msra.mxu0 0.0
    %3955 = vmatprep.subr.mxu0 0.0
    %3956 = vmatpush1.msra.mxu0 0.0
    %3957 = vmatprep.mubr.f32.mxu0 0.0
    %3958 = vmatmul.mubr.f32.gmra.mrb[0].mxu0 %v3889
    %v3959 = vpop.f32.mrb[0].mxu0
    %v3960 = vadd.f32 %v3653, %v3959
    %v3961 = vpop.f32.mrb[0].mxu0
    %v3962 = vadd.f32 %v3655, %v3961
    %3963 = vmatprep.mubr.f32.mxu0 0.0
    %3964 = vmatmul.mubr.f32.gmra.mrb[0].mxu0 %v3890
    %v3965 = vpop.f32.mrb[0].mxu0
    %v3966 = vadd.f32 %v3659, %v3965
    %v3967 = vpop.f32.mrb[0].mxu0
    %v3968 = vadd.f32 %v3661, %v3967
    %3969 = vmatprep.mubr.f32.mxu0 0.0
    %3970 = vmatmul.mubr.f32.gmra.mrb[0].mxu0 %v3891
    %v3971 = vpop.f32.mrb[0].mxu0
    %v3972 = vadd.f32 %v3665, %v3971
    %v3973 = vpop.f32.mrb[0].mxu0
    %v3974 = vadd.f32 %v3667, %v3973
    %3975 = vmatprep.mubr.f32.mxu0 0.0
    %3976 = vmatmul.mubr.f32.gmra.mrb[0].mxu0 %v3892
    %v3977 = vpop.f32.mrb[0].mxu0
    %v3978 = vadd.f32 %v3671, %v3977
    %v3979 = vpop.f32.mrb[0].mxu0
    %v3980 = vadd.f32 %v3673, %v3979
    %3981 = vdwg.mxu0
    %3982 = vmatprep.subr.mxu0 %v162
    %3983 = vmatpush1.msra.mxu0 %v161
    %3984 = vmatprep.subr.mxu0 %v166
    %3985 = vmatpush1.msra.mxu0 %v165
    %3986 = vmatprep.subr.mxu0 %v170
    %3987 = vmatpush1.msra.mxu0 %v169
    %3988 = vmatprep.subr.mxu0 %v174
    %3989 = vmatpush1.msra.mxu0 %v173
    %3990 = vmatprep.subr.mxu0 %v178
    %3991 = vmatpush1.msra.mxu0 %v177
    %3992 = vmatprep.subr.mxu0 %v182
    %3993 = vmatpush1.msra.mxu0 %v181
    %3994 = vmatprep.subr.mxu0 %v186
    %3995 = vmatpush1.msra.mxu0 %v185
    %3996 = vmatprep.subr.mxu0 %v190
    %3997 = vmatpush1.msra.mxu0 %v189
    %3998 = vmatprep.subr.mxu0 %v194
    %3999 = vmatpush1.msra.mxu0 %v193
    %4000 = vmatprep.subr.mxu0 %v198
    %4001 = vmatpush1.msra.mxu0 %v197
    %4002 = vmatprep.subr.mxu0 %v202
    %4003 = vmatpush1.msra.mxu0 %v201
    %4004 = vmatprep.subr.mxu0 %v206
    %4005 = vmatpush1.msra.mxu0 %v205
    %4006 = vmatprep.subr.mxu0 %v210
    %4007 = vmatpush1.msra.mxu0 %v209
    %4008 = vmatprep.subr.mxu0 %v214
    %4009 = vmatpush1.msra.mxu0 %v213
    %4010 = vmatprep.subr.mxu0 %v218
    %4011 = vmatpush1.msra.mxu0 %v217
    %4012 = vmatprep.subr.mxu0 %v222
    %4013 = vmatpush1.msra.mxu0 %v221
    %4014 = vmatprep.subr.mxu0 0.0
    %4015 = vmatpush1.msra.mxu0 0.0
    %4016 = vmatprep.subr.mxu0 0.0
    %4017 = vmatpush1.msra.mxu0 0.0
    %4018 = vmatprep.subr.mxu0 0.0
    %4019 = vmatpush1.msra.mxu0 0.0
    %4020 = vmatprep.subr.mxu0 0.0
    %4021 = vmatpush1.msra.mxu0 0.0
    %4022 = vmatprep.subr.mxu0 0.0
    %4023 = vmatpush1.msra.mxu0 0.0
    %4024 = vmatprep.subr.mxu0 0.0
    %4025 = vmatpush1.msra.mxu0 0.0
    %4026 = vmatprep.subr.mxu0 0.0
    %4027 = vmatpush1.msra.mxu0 0.0
    %4028 = vmatprep.subr.mxu0 0.0
    %4029 = vmatpush1.msra.mxu0 0.0
    %4030 = vmatprep.subr.mxu0 0.0
    %4031 = vmatpush1.msra.mxu0 0.0
    %4032 = vmatprep.subr.mxu0 0.0
    %4033 = vmatpush1.msra.mxu0 0.0
    %4034 = vmatprep.subr.mxu0 0.0
    %4035 = vmatpush1.msra.mxu0 0.0
    %4036 = vmatprep.subr.mxu0 0.0
    %4037 = vmatpush1.msra.mxu0 0.0
    %4038 = vmatprep.subr.mxu0 0.0
    %4039 = vmatpush1.msra.mxu0 0.0
    %4040 = vmatprep.subr.mxu0 0.0
    %4041 = vmatpush1.msra.mxu0 0.0
    %4042 = vmatprep.subr.mxu0 0.0
    %4043 = vmatpush1.msra.mxu0 0.0
    %4044 = vmatprep.subr.mxu0 0.0
    %4045 = vmatpush1.msra.mxu0 0.0
    %4046 = vmatprep.mubr.f32.mxu0 0.0
    %4047 = vmatmul.mubr.f32.gmra.mrb[0].mxu0 %v3889
    %v4048 = vpop.f32.mrb[0].mxu0
    %v4049 = vadd.f32 %v3742, %v4048
    %v4050 = vpop.f32.mrb[0].mxu0
    %v4051 = vadd.f32 %v3744, %v4050
    %4052 = vmatprep.mubr.f32.mxu0 0.0
    %4053 = vmatmul.mubr.f32.gmra.mrb[0].mxu0 %v3890
    %v4054 = vpop.f32.mrb[0].mxu0
    %v4055 = vadd.f32 %v3748, %v4054
    %v4056 = vpop.f32.mrb[0].mxu0
    %v4057 = vadd.f32 %v3750, %v4056
    %4058 = vmatprep.mubr.f32.mxu0 0.0
    %4059 = vmatmul.mubr.f32.gmra.mrb[0].mxu0 %v3891
    %v4060 = vpop.f32.mrb[0].mxu0
    %v4061 = vadd.f32 %v3754, %v4060
    %v4062 = vpop.f32.mrb[0].mxu0
    %v4063 = vadd.f32 %v3756, %v4062
    %4064 = vmatprep.mubr.f32.mxu0 0.0
    %4065 = vmatmul.mubr.f32.gmra.mrb[0].mxu0 %v3892
    %v4066 = vpop.f32.mrb[0].mxu0
    %v4067 = vadd.f32 %v3760, %v4066
    %v4068 = vpop.f32.mrb[0].mxu0
    %v4069 = vadd.f32 %v3762, %v4068
    %4070 = vdwg.mxu0
    %v4071 = vadd.f32 %v3960, %v292
    %v4072 = vadd.f32 %v3962, %v296
    %v4073 = vadd.f32 %v4049, %v300
    %v4074 = vadd.f32 %v4051, %v304
    %v4075 = vadd.f32 %v3966, %v292
    %v4076 = vadd.f32 %v3968, %v296
    %v4077 = vadd.f32 %v4055, %v300
    %v4078 = vadd.f32 %v4057, %v304
    %v4079 = vadd.f32 %v3972, %v292
    %v4080 = vadd.f32 %v3974, %v296
    %v4081 = vadd.f32 %v4061, %v300
    %v4082 = vadd.f32 %v4063, %v304
    %v4083 = vadd.f32 %v3978, %v292
    %v4084 = vadd.f32 %v3980, %v296
    %v4085 = vadd.f32 %v4067, %v300
    %v4086 = vadd.f32 %v4069, %v304
    %v4087 = vxor.u32 %v4071, 2147483648
    %v4088 = vxor.u32 %v4075, 2147483648
    %v4089 = vxor.u32 %v4079, 2147483648
    %v4090 = vxor.u32 %v4083, 2147483648
    %v4091 = vmul.f32 %v4087, 1.442695
    %v4092 = vpow.pop %v4091
    %v4093 = vmul.f32 %v4088, 1.442695
    %v4094 = vpow.pop %v4093
    %v4095 = vmul.f32 %v4089, 1.442695
    %v4096 = vpow.pop %v4095
    %v4097 = vmul.f32 %v4090, 1.442695
    %v4098 = vpow.pop %v4097
    %v4099 = vadd.f32 %v4092, 1.0
    %v4100 = vadd.f32 %v4094, 1.0
    %v4101 = vadd.f32 %v4096, 1.0
    %v4102 = vadd.f32 %v4098, 1.0
    %v4103 = vrcp.pop %v4099
    %v4104 = vmul.f32 1.0, %v4103
    %v4105 = vrcp.pop %v4100
    %v4106 = vmul.f32 1.0, %v4105
    %v4107 = vrcp.pop %v4101
    %v4108 = vmul.f32 1.0, %v4107
    %v4109 = vrcp.pop %v4102
    %v4110 = vmul.f32 1.0, %v4109
    %v4111 = vxor.u32 %v4072, 2147483648
    %v4112 = vxor.u32 %v4076, 2147483648
    %v4113 = vxor.u32 %v4080, 2147483648
    %v4114 = vxor.u32 %v4084, 2147483648
    %v4115 = vmul.f32 %v4111, 1.442695
    %v4116 = vpow.pop %v4115
    %v4117 = vmul.f32 %v4112, 1.442695
    %v4118 = vpow.pop %v4117
    %v4119 = vmul.f32 %v4113, 1.442695
    %v4120 = vpow.pop %v4119
    %v4121 = vmul.f32 %v4114, 1.442695
    %v4122 = vpow.pop %v4121
    %v4123 = vadd.f32 %v4116, 1.0
    %v4124 = vadd.f32 %v4118, 1.0
    %v4125 = vadd.f32 %v4120, 1.0
    %v4126 = vadd.f32 %v4122, 1.0
    %v4127 = vrcp.pop %v4123
    %v4128 = vmul.f32 1.0, %v4127
    %v4129 = vrcp.pop %v4124
    %v4130 = vmul.f32 1.0, %v4129
    %v4131 = vrcp.pop %v4125
    %v4132 = vmul.f32 1.0, %v4131
    %v4133 = vrcp.pop %v4126
    %v4134 = vmul.f32 1.0, %v4133
    %v4135 = vtanh.pop %v4073
    %v4136 = vtanh.pop %v4077
    %v4137 = vtanh.pop %v4081
    %v4138 = vtanh.pop %v4085
    %v4139 = vxor.u32 %v4074, 2147483648
    %v4140 = vxor.u32 %v4078, 2147483648
    %v4141 = vxor.u32 %v4082, 2147483648
    %v4142 = vxor.u32 %v4086, 2147483648
    %v4143 = vmul.f32 %v4139, 1.442695
    %v4144 = vpow.pop %v4143
    %v4145 = vmul.f32 %v4140, 1.442695
    %v4146 = vpow.pop %v4145
    %v4147 = vmul.f32 %v4141, 1.442695
    %v4148 = vpow.pop %v4147
    %v4149 = vmul.f32 %v4142, 1.442695
    %v4150 = vpow.pop %v4149
    %v4151 = vadd.f32 %v4144, 1.0
    %v4152 = vadd.f32 %v4146, 1.0
    %v4153 = vadd.f32 %v4148, 1.0
    %v4154 = vadd.f32 %v4150, 1.0
    %v4155 = vrcp.pop %v4151
    %v4156 = vmul.f32 1.0, %v4155
    %v4157 = vrcp.pop %v4152
    %v4158 = vmul.f32 1.0, %v4157
    %v4159 = vrcp.pop %v4153
    %v4160 = vmul.f32 1.0, %v4159
    %v4161 = vrcp.pop %v4154
    %v4162 = vmul.f32 1.0, %v4161
    %v4163 = vmul.f32 %v4128, %v3396
    %v4164 = vmul.f32 %v4130, %v3397
    %v4165 = vmul.f32 %v4132, %v3398
    %v4166 = vmul.f32 %v4134, %v3399
    %v4167 = vmul.f32 %v4104, %v4135
    %v4168 = vmul.f32 %v4106, %v4136
    %v4169 = vmul.f32 %v4108, %v4137
    %v4170 = vmul.f32 %v4110, %v4138
    %v4171 = vadd.f32 %v4163, %v4167
    %v4172 = vadd.f32 %v4164, %v4168
    %v4173 = vadd.f32 %v4165, %v4169
    %v4174 = vadd.f32 %v4166, %v4170
    %v4175 = vtanh.pop %v4171
    %v4176 = vtanh.pop %v4172
    %v4177 = vtanh.pop %v4173
    %v4178 = vtanh.pop %v4174
    %v4179 = vmul.f32 %v4156, %v4175
    %v4180 = vmul.f32 %v4158, %v4176
    %v4181 = vmul.f32 %v4160, %v4177
    %v4182 = vmul.f32 %v4162, %v4178
    %4183 = vmatprep.subr.mxu0 %v96
    %4184 = vmatpush1.msra.mxu0 %v95
    %4185 = vmatprep.subr.mxu0 %v100
    %4186 = vmatpush1.msra.mxu0 %v99
    %4187 = vmatprep.subr.mxu0 %v104
    %4188 = vmatpush1.msra.mxu0 %v103
    %4189 = vmatprep.subr.mxu0 %v108
    %4190 = vmatpush1.msra.mxu0 %v107
    %4191 = vmatprep.subr.mxu0 %v112
    %4192 = vmatpush1.msra.mxu0 %v111
    %4193 = vmatprep.subr.mxu0 %v116
    %4194 = vmatpush1.msra.mxu0 %v115
    %4195 = vmatprep.subr.mxu0 %v120
    %4196 = vmatpush1.msra.mxu0 %v119
    %4197 = vmatprep.subr.mxu0 %v124
    %4198 = vmatpush1.msra.mxu0 %v123
    %4199 = vmatprep.subr.mxu0 %v128
    %4200 = vmatpush1.msra.mxu0 %v127
    %4201 = vmatprep.subr.mxu0 %v132
    %4202 = vmatpush1.msra.mxu0 %v131
    %4203 = vmatprep.subr.mxu0 %v136
    %4204 = vmatpush1.msra.mxu0 %v135
    %4205 = vmatprep.subr.mxu0 %v140
    %4206 = vmatpush1.msra.mxu0 %v139
    %4207 = vmatprep.subr.mxu0 %v144
    %4208 = vmatpush1.msra.mxu0 %v143
    %4209 = vmatprep.subr.mxu0 %v148
    %4210 = vmatpush1.msra.mxu0 %v147
    %4211 = vmatprep.subr.mxu0 %v152
    %4212 = vmatpush1.msra.mxu0 %v151
    %4213 = vmatprep.subr.mxu0 %v156
    %4214 = vmatpush1.msra.mxu0 %v155
    %4215 = vmatprep.subr.mxu0 0.0
    %4216 = vmatpush1.msra.mxu0 0.0
    %4217 = vmatprep.subr.mxu0 0.0
    %4218 = vmatpush1.msra.mxu0 0.0
    %4219 = vmatprep.subr.mxu0 0.0
    %4220 = vmatpush1.msra.mxu0 0.0
    %4221 = vmatprep.subr.mxu0 0.0
    %4222 = vmatpush1.msra.mxu0 0.0
    %4223 = vmatprep.subr.mxu0 0.0
    %4224 = vmatpush1.msra.mxu0 0.0
    %4225 = vmatprep.subr.mxu0 0.0
    %4226 = vmatpush1.msra.mxu0 0.0
    %4227 = vmatprep.subr.mxu0 0.0
    %4228 = vmatpush1.msra.mxu0 0.0
    %4229 = vmatprep.subr.mxu0 0.0
    %4230 = vmatpush1.msra.mxu0 0.0
    %4231 = vmatprep.subr.mxu0 0.0
    %4232 = vmatpush1.msra.mxu0 0.0
    %4233 = vmatprep.subr.mxu0 0.0
    %4234 = vmatpush1.msra.mxu0 0.0
    %4235 = vmatprep.subr.mxu0 0.0
    %4236 = vmatpush1.msra.mxu0 0.0
    %4237 = vmatprep.subr.mxu0 0.0
    %4238 = vmatpush1.msra.mxu0 0.0
    %4239 = vmatprep.subr.mxu0 0.0
    %4240 = vmatpush1.msra.mxu0 0.0
    %4241 = vmatprep.subr.mxu0 0.0
    %4242 = vmatpush1.msra.mxu0 0.0
    %4243 = vmatprep.subr.mxu0 0.0
    %4244 = vmatpush1.msra.mxu0 0.0
    %4245 = vmatprep.subr.mxu0 0.0
    %4246 = vmatpush1.msra.mxu0 0.0
    %4247 = vmatprep.mubr.f32.mxu0 0.0
    %4248 = vmatmul.mubr.f32.gmra.mrb[0].mxu0 %v3889
    %v4249 = vpop.f32.mrb[0].mxu0
    %v4250 = vadd.f32 0.0, %v4249
    %v4251 = vpop.f32.mrb[0].mxu0
    %v4252 = vadd.f32 0.0, %v4251
    %4253 = vmatprep.mubr.f32.mxu0 0.0
    %4254 = vmatmul.mubr.f32.gmra.mrb[0].mxu0 %v3890
    %v4255 = vpop.f32.mrb[0].mxu0
    %v4256 = vadd.f32 0.0, %v4255
    %v4257 = vpop.f32.mrb[0].mxu0
    %v4258 = vadd.f32 0.0, %v4257
    %4259 = vmatprep.mubr.f32.mxu0 0.0
    %4260 = vmatmul.mubr.f32.gmra.mrb[0].mxu0 %v3891
    %v4261 = vpop.f32.mrb[0].mxu0
    %v4262 = vadd.f32 0.0, %v4261
    %v4263 = vpop.f32.mrb[0].mxu0
    %v4264 = vadd.f32 0.0, %v4263
    %4265 = vmatprep.mubr.f32.mxu0 0.0
    %4266 = vmatmul.mubr.f32.gmra.mrb[0].mxu0 %v3892
    %v4267 = vpop.f32.mrb[0].mxu0
    %v4268 = vadd.f32 0.0, %v4267
    %v4269 = vpop.f32.mrb[0].mxu0
    %v4270 = vadd.f32 0.0, %v4269
    %4271 = vdwg.mxu0
    %4272 = vmatprep.subr.mxu0 %v98
    %4273 = vmatpush1.msra.mxu0 %v97
    %4274 = vmatprep.subr.mxu0 %v102
    %4275 = vmatpush1.msra.mxu0 %v101
    %4276 = vmatprep.subr.mxu0 %v106
    %4277 = vmatpush1.msra.mxu0 %v105
    %4278 = vmatprep.subr.mxu0 %v110
    %4279 = vmatpush1.msra.mxu0 %v109
    %4280 = vmatprep.subr.mxu0 %v114
    %4281 = vmatpush1.msra.mxu0 %v113
    %4282 = vmatprep.subr.mxu0 %v118
    %4283 = vmatpush1.msra.mxu0 %v117
    %4284 = vmatprep.subr.mxu0 %v122
    %4285 = vmatpush1.msra.mxu0 %v121
    %4286 = vmatprep.subr.mxu0 %v126
    %4287 = vmatpush1.msra.mxu0 %v125
    %4288 = vmatprep.subr.mxu0 %v130
    %4289 = vmatpush1.msra.mxu0 %v129
    %4290 = vmatprep.subr.mxu0 %v134
    %4291 = vmatpush1.msra.mxu0 %v133
    %4292 = vmatprep.subr.mxu0 %v138
    %4293 = vmatpush1.msra.mxu0 %v137
    %4294 = vmatprep.subr.mxu0 %v142
    %4295 = vmatpush1.msra.mxu0 %v141
    %4296 = vmatprep.subr.mxu0 %v146
    %4297 = vmatpush1.msra.mxu0 %v145
    %4298 = vmatprep.subr.mxu0 %v150
    %4299 = vmatpush1.msra.mxu0 %v149
    %4300 = vmatprep.subr.mxu0 %v154
    %4301 = vmatpush1.msra.mxu0 %v153
    %4302 = vmatprep.subr.mxu0 %v158
    %4303 = vmatpush1.msra.mxu0 %v157
    %4304 = vmatprep.subr.mxu0 0.0
    %4305 = vmatpush1.msra.mxu0 0.0
    %4306 = vmatprep.subr.mxu0 0.0
    %4307 = vmatpush1.msra.mxu0 0.0
    %4308 = vmatprep.subr.mxu0 0.0
    %4309 = vmatpush1.msra.mxu0 0.0
    %4310 = vmatprep.subr.mxu0 0.0
    %4311 = vmatpush1.msra.mxu0 0.0
    %4312 = vmatprep.subr.mxu0 0.0
    %4313 = vmatpush1.msra.mxu0 0.0
    %4314 = vmatprep.subr.mxu0 0.0
    %4315 = vmatpush1.msra.mxu0 0.0
    %4316 = vmatprep.subr.mxu0 0.0
    %4317 = vmatpush1.msra.mxu0 0.0
    %4318 = vmatprep.subr.mxu0 0.0
    %4319 = vmatpush1.msra.mxu0 0.0
    %4320 = vmatprep.subr.mxu0 0.0
    %4321 = vmatpush1.msra.mxu0 0.0
    %4322 = vmatprep.subr.mxu0 0.0
    %4323 = vmatpush1.msra.mxu0 0.0
    %4324 = vmatprep.subr.mxu0 0.0
    %4325 = vmatpush1.msra.mxu0 0.0
    %4326 = vmatprep.subr.mxu0 0.0
    %4327 = vmatpush1.msra.mxu0 0.0
    %4328 = vmatprep.subr.mxu0 0.0
    %4329 = vmatpush1.msra.mxu0 0.0
    %4330 = vmatprep.subr.mxu0 0.0
    %4331 = vmatpush1.msra.mxu0 0.0
    %4332 = vmatprep.subr.mxu0 0.0
    %4333 = vmatpush1.msra.mxu0 0.0
    %4334 = vmatprep.subr.mxu0 0.0
    %4335 = vmatpush1.msra.mxu0 0.0
    %4336 = vmatprep.mubr.f32.mxu0 0.0
    %4337 = vmatmul.mubr.f32.gmra.mrb[0].mxu0 %v3889
    %v4338 = vpop.f32.mrb[0].mxu0
    %v4339 = vadd.f32 0.0, %v4338
    %v4340 = vpop.f32.mrb[0].mxu0
    %v4341 = vadd.f32 0.0, %v4340
    %4342 = vmatprep.mubr.f32.mxu0 0.0
    %4343 = vmatmul.mubr.f32.gmra.mrb[0].mxu0 %v3890
    %v4344 = vpop.f32.mrb[0].mxu0
    %v4345 = vadd.f32 0.0, %v4344
    %v4346 = vpop.f32.mrb[0].mxu0
    %v4347 = vadd.f32 0.0, %v4346
    %4348 = vmatprep.mubr.f32.mxu0 0.0
    %4349 = vmatmul.mubr.f32.gmra.mrb[0].mxu0 %v3891
    %v4350 = vpop.f32.mrb[0].mxu0
    %v4351 = vadd.f32 0.0, %v4350
    %v4352 = vpop.f32.mrb[0].mxu0
    %v4353 = vadd.f32 0.0, %v4352
    %4354 = vmatprep.mubr.f32.mxu0 0.0
    %4355 = vmatmul.mubr.f32.gmra.mrb[0].mxu0 %v3892
    %v4356 = vpop.f32.mrb[0].mxu0
    %v4357 = vadd.f32 0.0, %v4356
    %v4358 = vpop.f32.mrb[0].mxu0
    %v4359 = vadd.f32 0.0, %v4358
    %4360 = vdwg.mxu0
    %4361 = vmatprep.subr.mxu0 %v224
    %4362 = vmatpush1.msra.mxu0 %v223
    %4363 = vmatprep.subr.mxu0 %v228
    %4364 = vmatpush1.msra.mxu0 %v227
    %4365 = vmatprep.subr.mxu0 %v232
    %4366 = vmatpush1.msra.mxu0 %v231
    %4367 = vmatprep.subr.mxu0 %v236
    %4368 = vmatpush1.msra.mxu0 %v235
    %4369 = vmatprep.subr.mxu0 %v240
    %4370 = vmatpush1.msra.mxu0 %v239
    %4371 = vmatprep.subr.mxu0 %v244
    %4372 = vmatpush1.msra.mxu0 %v243
    %4373 = vmatprep.subr.mxu0 %v248
    %4374 = vmatpush1.msra.mxu0 %v247
    %4375 = vmatprep.subr.mxu0 %v252
    %4376 = vmatpush1.msra.mxu0 %v251
    %4377 = vmatprep.subr.mxu0 %v256
    %4378 = vmatpush1.msra.mxu0 %v255
    %4379 = vmatprep.subr.mxu0 %v260
    %4380 = vmatpush1.msra.mxu0 %v259
    %4381 = vmatprep.subr.mxu0 %v264
    %4382 = vmatpush1.msra.mxu0 %v263
    %4383 = vmatprep.subr.mxu0 %v268
    %4384 = vmatpush1.msra.mxu0 %v267
    %4385 = vmatprep.subr.mxu0 %v272
    %4386 = vmatpush1.msra.mxu0 %v271
    %4387 = vmatprep.subr.mxu0 %v276
    %4388 = vmatpush1.msra.mxu0 %v275
    %4389 = vmatprep.subr.mxu0 %v280
    %4390 = vmatpush1.msra.mxu0 %v279
    %4391 = vmatprep.subr.mxu0 %v284
    %4392 = vmatpush1.msra.mxu0 %v283
    %4393 = vmatprep.subr.mxu0 0.0
    %4394 = vmatpush1.msra.mxu0 0.0
    %4395 = vmatprep.subr.mxu0 0.0
    %4396 = vmatpush1.msra.mxu0 0.0
    %4397 = vmatprep.subr.mxu0 0.0
    %4398 = vmatpush1.msra.mxu0 0.0
    %4399 = vmatprep.subr.mxu0 0.0
    %4400 = vmatpush1.msra.mxu0 0.0
    %4401 = vmatprep.subr.mxu0 0.0
    %4402 = vmatpush1.msra.mxu0 0.0
    %4403 = vmatprep.subr.mxu0 0.0
    %4404 = vmatpush1.msra.mxu0 0.0
    %4405 = vmatprep.subr.mxu0 0.0
    %4406 = vmatpush1.msra.mxu0 0.0
    %4407 = vmatprep.subr.mxu0 0.0
    %4408 = vmatpush1.msra.mxu0 0.0
    %4409 = vmatprep.subr.mxu0 0.0
    %4410 = vmatpush1.msra.mxu0 0.0
    %4411 = vmatprep.subr.mxu0 0.0
    %4412 = vmatpush1.msra.mxu0 0.0
    %4413 = vmatprep.subr.mxu0 0.0
    %4414 = vmatpush1.msra.mxu0 0.0
    %4415 = vmatprep.subr.mxu0 0.0
    %4416 = vmatpush1.msra.mxu0 0.0
    %4417 = vmatprep.subr.mxu0 0.0
    %4418 = vmatpush1.msra.mxu0 0.0
    %4419 = vmatprep.subr.mxu0 0.0
    %4420 = vmatpush1.msra.mxu0 0.0
    %4421 = vmatprep.subr.mxu0 0.0
    %4422 = vmatpush1.msra.mxu0 0.0
    %4423 = vmatprep.subr.mxu0 0.0
    %4424 = vmatpush1.msra.mxu0 0.0
    %4425 = vmatprep.mubr.f32.mxu0 0.0
    %4426 = vmatmul.mubr.f32.gmra.mrb[0].mxu0 %v4179
    %v4427 = vpop.f32.mrb[0].mxu0
    %v4428 = vadd.f32 0.0, %v4427
    %v4429 = vpop.f32.mrb[0].mxu0
    %v4430 = vadd.f32 0.0, %v4429
    %4431 = vmatprep.mubr.f32.mxu0 0.0
    %4432 = vmatmul.mubr.f32.gmra.mrb[0].mxu0 %v4180
    %v4433 = vpop.f32.mrb[0].mxu0
    %v4434 = vadd.f32 0.0, %v4433
    %v4435 = vpop.f32.mrb[0].mxu0
    %v4436 = vadd.f32 0.0, %v4435
    %4437 = vmatprep.mubr.f32.mxu0 0.0
    %4438 = vmatmul.mubr.f32.gmra.mrb[0].mxu0 %v4181
    %v4439 = vpop.f32.mrb[0].mxu0
    %v4440 = vadd.f32 0.0, %v4439
    %v4441 = vpop.f32.mrb[0].mxu0
    %v4442 = vadd.f32 0.0, %v4441
    %4443 = vmatprep.mubr.f32.mxu0 0.0
    %4444 = vmatmul.mubr.f32.gmra.mrb[0].mxu0 %v4182
    %v4445 = vpop.f32.mrb[0].mxu0
    %v4446 = vadd.f32 0.0, %v4445
    %v4447 = vpop.f32.mrb[0].mxu0
    %v4448 = vadd.f32 0.0, %v4447
    %4449 = vdwg.mxu0
    %4450 = vmatprep.subr.mxu0 %v226
    %4451 = vmatpush1.msra.mxu0 %v225
    %4452 = vmatprep.subr.mxu0 %v230
    %4453 = vmatpush1.msra.mxu0 %v229
    %4454 = vmatprep.subr.mxu0 %v234
    %4455 = vmatpush1.msra.mxu0 %v233
    %4456 = vmatprep.subr.mxu0 %v238
    %4457 = vmatpush1.msra.mxu0 %v237
    %4458 = vmatprep.subr.mxu0 %v242
    %4459 = vmatpush1.msra.mxu0 %v241
    %4460 = vmatprep.subr.mxu0 %v246
    %4461 = vmatpush1.msra.mxu0 %v245
    %4462 = vmatprep.subr.mxu0 %v250
    %4463 = vmatpush1.msra.mxu0 %v249
    %4464 = vmatprep.subr.mxu0 %v254
    %4465 = vmatpush1.msra.mxu0 %v253
    %4466 = vmatprep.subr.mxu0 %v258
    %4467 = vmatpush1.msra.mxu0 %v257
    %4468 = vmatprep.subr.mxu0 %v262
    %4469 = vmatpush1.msra.mxu0 %v261
    %4470 = vmatprep.subr.mxu0 %v266
    %4471 = vmatpush1.msra.mxu0 %v265
    %4472 = vmatprep.subr.mxu0 %v270
    %4473 = vmatpush1.msra.mxu0 %v269
    %4474 = vmatprep.subr.mxu0 %v274
    %4475 = vmatpush1.msra.mxu0 %v273
    %4476 = vmatprep.subr.mxu0 %v278
    %4477 = vmatpush1.msra.mxu0 %v277
    %4478 = vmatprep.subr.mxu0 %v282
    %4479 = vmatpush1.msra.mxu0 %v281
    %4480 = vmatprep.subr.mxu0 %v286
    %4481 = vmatpush1.msra.mxu0 %v285
    %4482 = vmatprep.subr.mxu0 0.0
    %4483 = vmatpush1.msra.mxu0 0.0
    %4484 = vmatprep.subr.mxu0 0.0
    %4485 = vmatpush1.msra.mxu0 0.0
    %4486 = vmatprep.subr.mxu0 0.0
    %4487 = vmatpush1.msra.mxu0 0.0
    %4488 = vmatprep.subr.mxu0 0.0
    %4489 = vmatpush1.msra.mxu0 0.0
    %4490 = vmatprep.subr.mxu0 0.0
    %4491 = vmatpush1.msra.mxu0 0.0
    %4492 = vmatprep.subr.mxu0 0.0
    %4493 = vmatpush1.msra.mxu0 0.0
    %4494 = vmatprep.subr.mxu0 0.0
    %4495 = vmatpush1.msra.mxu0 0.0
    %4496 = vmatprep.subr.mxu0 0.0
    %4497 = vmatpush1.msra.mxu0 0.0
    %4498 = vmatprep.subr.mxu0 0.0
    %4499 = vmatpush1.msra.mxu0 0.0
    %4500 = vmatprep.subr.mxu0 0.0
    %4501 = vmatpush1.msra.mxu0 0.0
    %4502 = vmatprep.subr.mxu0 0.0
    %4503 = vmatpush1.msra.mxu0 0.0
    %4504 = vmatprep.subr.mxu0 0.0
    %4505 = vmatpush1.msra.mxu0 0.0
    %4506 = vmatprep.subr.mxu0 0.0
    %4507 = vmatpush1.msra.mxu0 0.0
    %4508 = vmatprep.subr.mxu0 0.0
    %4509 = vmatpush1.msra.mxu0 0.0
    %4510 = vmatprep.subr.mxu0 0.0
    %4511 = vmatpush1.msra.mxu0 0.0
    %4512 = vmatprep.subr.mxu0 0.0
    %4513 = vmatpush1.msra.mxu0 0.0
    %4514 = vmatprep.mubr.f32.mxu0 0.0
    %4515 = vmatmul.mubr.f32.gmra.mrb[0].mxu0 %v4179
    %v4516 = vpop.f32.mrb[0].mxu0
    %v4517 = vadd.f32 0.0, %v4516
    %v4518 = vpop.f32.mrb[0].mxu0
    %v4519 = vadd.f32 0.0, %v4518
    %4520 = vmatprep.mubr.f32.mxu0 0.0
    %4521 = vmatmul.mubr.f32.gmra.mrb[0].mxu0 %v4180
    %v4522 = vpop.f32.mrb[0].mxu0
    %v4523 = vadd.f32 0.0, %v4522
    %v4524 = vpop.f32.mrb[0].mxu0
    %v4525 = vadd.f32 0.0, %v4524
    %4526 = vmatprep.mubr.f32.mxu0 0.0
    %4527 = vmatmul.mubr.f32.gmra.mrb[0].mxu0 %v4181
    %v4528 = vpop.f32.mrb[0].mxu0
    %v4529 = vadd.f32 0.0, %v4528
    %v4530 = vpop.f32.mrb[0].mxu0
    %v4531 = vadd.f32 0.0, %v4530
    %4532 = vmatprep.mubr.f32.mxu0 0.0
    %4533 = vmatmul.mubr.f32.gmra.mrb[0].mxu0 %v4182
    %v4534 = vpop.f32.mrb[0].mxu0
    %v4535 = vadd.f32 0.0, %v4534
    %v4536 = vpop.f32.mrb[0].mxu0
    %v4537 = vadd.f32 0.0, %v4536
    %4538 = vdwg.mxu0
    %s4539 = scalar_lea.vmem [#allocation2], 640
    %v4540 = vld [vmem:[%s4539] sm:$0xff]
    %v4541 = vld [vmem:[%s4539 + $0x8] sm:$0xff]
    %v4542 = vld [vmem:[%s4539 + $0x10] sm:$0xff]
    %v4543 = vld [vmem:[%s4539 + $0x18] sm:$0xff]
    %v4544 = vld [vmem:[%s4539 + $0x20] sm:$0xff]
    %v4545 = vld [vmem:[%s4539 + $0x28] sm:$0xff]
    %v4546 = vld [vmem:[%s4539 + $0x30] sm:$0xff]
    %v4547 = vld [vmem:[%s4539 + $0x38] sm:$0xff]
    %v4548 = vld [vmem:[%s4539 + $0x40] sm:$0xff]
    %v4549 = vld [vmem:[%s4539 + $0x48] sm:$0xff]
    %v4550 = vld [vmem:[%s4539 + $0x50] sm:$0xff]
    %v4551 = vld [vmem:[%s4539 + $0x58] sm:$0xff]
    %v4552 = vld [vmem:[%s4539 + $0x60] sm:$0xff]
    %v4553 = vld [vmem:[%s4539 + $0x68] sm:$0xff]
    %v4554 = vld [vmem:[%s4539 + $0x70] sm:$0xff]
    %v4555 = vld [vmem:[%s4539 + $0x78] sm:$0xff]
    %v4556 = vadd.f32 %v4540, %v4250
    %v4557 = vadd.f32 %v4541, %v4252
    %v4558 = vadd.f32 %v4542, %v4339
    %v4559 = vadd.f32 %v4543, %v4341
    %v4560 = vadd.f32 %v4544, %v4256
    %v4561 = vadd.f32 %v4545, %v4258
    %v4562 = vadd.f32 %v4546, %v4345
    %v4563 = vadd.f32 %v4547, %v4347
    %v4564 = vadd.f32 %v4548, %v4262
    %v4565 = vadd.f32 %v4549, %v4264
    %v4566 = vadd.f32 %v4550, %v4351
    %v4567 = vadd.f32 %v4551, %v4353
    %v4568 = vadd.f32 %v4552, %v4268
    %v4569 = vadd.f32 %v4553, %v4270
    %v4570 = vadd.f32 %v4554, %v4357
    %v4571 = vadd.f32 %v4555, %v4359
    %v4572 = vxor.u32 %v4556, 2147483648
    %v4573 = vxor.u32 %v4560, 2147483648
    %v4574 = vxor.u32 %v4564, 2147483648
    %v4575 = vxor.u32 %v4568, 2147483648
    %v4576 = vmul.f32 %v4572, 1.442695
    %v4577 = vpow.pop %v4576
    %v4578 = vmul.f32 %v4573, 1.442695
    %v4579 = vpow.pop %v4578
    %v4580 = vmul.f32 %v4574, 1.442695
    %v4581 = vpow.pop %v4580
    %v4582 = vmul.f32 %v4575, 1.442695
    %v4583 = vpow.pop %v4582
    %v4584 = vadd.f32 %v4577, 1.0
    %v4585 = vadd.f32 %v4579, 1.0
    %v4586 = vadd.f32 %v4581, 1.0
    %v4587 = vadd.f32 %v4583, 1.0
    %v4588 = vrcp.pop %v4584
    %v4589 = vmul.f32 1.0, %v4588
    %v4590 = vrcp.pop %v4585
    %v4591 = vmul.f32 1.0, %v4590
    %v4592 = vrcp.pop %v4586
    %v4593 = vmul.f32 1.0, %v4592
    %v4594 = vrcp.pop %v4587
    %v4595 = vmul.f32 1.0, %v4594
    %v4596 = vxor.u32 %v4557, 2147483648
    %v4597 = vxor.u32 %v4561, 2147483648
    %v4598 = vxor.u32 %v4565, 2147483648
    %v4599 = vxor.u32 %v4569, 2147483648
    %v4600 = vmul.f32 %v4596, 1.442695
    %v4601 = vpow.pop %v4600
    %v4602 = vmul.f32 %v4597, 1.442695
    %v4603 = vpow.pop %v4602
    %v4604 = vmul.f32 %v4598, 1.442695
    %v4605 = vpow.pop %v4604
    %v4606 = vmul.f32 %v4599, 1.442695
    %v4607 = vpow.pop %v4606
    %v4608 = vadd.f32 %v4601, 1.0
    %v4609 = vadd.f32 %v4603, 1.0
    %v4610 = vadd.f32 %v4605, 1.0
    %v4611 = vadd.f32 %v4607, 1.0
    %v4612 = vrcp.pop %v4608
    %v4613 = vmul.f32 1.0, %v4612
    %v4614 = vrcp.pop %v4609
    %v4615 = vmul.f32 1.0, %v4614
    %v4616 = vrcp.pop %v4610
    %v4617 = vmul.f32 1.0, %v4616
    %v4618 = vrcp.pop %v4611
    %v4619 = vmul.f32 1.0, %v4618
    %v4620 = vtanh.pop %v4558
    %v4621 = vtanh.pop %v4562
    %v4622 = vtanh.pop %v4566
    %v4623 = vtanh.pop %v4570
    %v4624 = vxor.u32 %v4559, 2147483648
    %v4625 = vxor.u32 %v4563, 2147483648
    %v4626 = vxor.u32 %v4567, 2147483648
    %v4627 = vxor.u32 %v4571, 2147483648
    %v4628 = vmul.f32 %v4624, 1.442695
    %v4629 = vpow.pop %v4628
    %v4630 = vmul.f32 %v4625, 1.442695
    %v4631 = vpow.pop %v4630
    %v4632 = vmul.f32 %v4626, 1.442695
    %v4633 = vpow.pop %v4632
    %v4634 = vmul.f32 %v4627, 1.442695
    %v4635 = vpow.pop %v4634
    %v4636 = vadd.f32 %v4629, 1.0
    %v4637 = vadd.f32 %v4631, 1.0
    %v4638 = vadd.f32 %v4633, 1.0
    %v4639 = vadd.f32 %v4635, 1.0
    %v4640 = vrcp.pop %v4636
    %v4641 = vmul.f32 1.0, %v4640
    %v4642 = vrcp.pop %v4637
    %v4643 = vmul.f32 1.0, %v4642
    %v4644 = vrcp.pop %v4638
    %v4645 = vmul.f32 1.0, %v4644
    %v4646 = vrcp.pop %v4639
    %v4647 = vmul.f32 1.0, %v4646
    %v4648 = vmul.f32 %v4613, %v3881
    %v4649 = vmul.f32 %v4615, %v3882
    %v4650 = vmul.f32 %v4617, %v3883
    %v4651 = vmul.f32 %v4619, %v3884
    %v4652 = vmul.f32 %v4589, %v4620
    %v4653 = vmul.f32 %v4591, %v4621
    %v4654 = vmul.f32 %v4593, %v4622
    %v4655 = vmul.f32 %v4595, %v4623
    %v4656 = vadd.f32 %v4648, %v4652
    %v4657 = vadd.f32 %v4649, %v4653
    %v4658 = vadd.f32 %v4650, %v4654
    %v4659 = vadd.f32 %v4651, %v4655
    %v4660 = vtanh.pop %v4656
    %v4661 = vtanh.pop %v4657
    %v4662 = vtanh.pop %v4658
    %v4663 = vtanh.pop %v4659
    %v4664 = vmul.f32 %v4641, %v4660
    %v4665 = vmul.f32 %v4643, %v4661
    %v4666 = vmul.f32 %v4645, %v4662
    %v4667 = vmul.f32 %v4647, %v4663
    %4668 = vmatprep.subr.mxu0 %v160
    %4669 = vmatpush1.msra.mxu0 %v159
    %4670 = vmatprep.subr.mxu0 %v164
    %4671 = vmatpush1.msra.mxu0 %v163
    %4672 = vmatprep.subr.mxu0 %v168
    %4673 = vmatpush1.msra.mxu0 %v167
    %4674 = vmatprep.subr.mxu0 %v172
    %4675 = vmatpush1.msra.mxu0 %v171
    %4676 = vmatprep.subr.mxu0 %v176
    %4677 = vmatpush1.msra.mxu0 %v175
    %4678 = vmatprep.subr.mxu0 %v180
    %4679 = vmatpush1.msra.mxu0 %v179
    %4680 = vmatprep.subr.mxu0 %v184
    %4681 = vmatpush1.msra.mxu0 %v183
    %4682 = vmatprep.subr.mxu0 %v188
    %4683 = vmatpush1.msra.mxu0 %v187
    %4684 = vmatprep.subr.mxu0 %v192
    %4685 = vmatpush1.msra.mxu0 %v191
    %4686 = vmatprep.subr.mxu0 %v196
    %4687 = vmatpush1.msra.mxu0 %v195
    %4688 = vmatprep.subr.mxu0 %v200
    %4689 = vmatpush1.msra.mxu0 %v199
    %4690 = vmatprep.subr.mxu0 %v204
    %4691 = vmatpush1.msra.mxu0 %v203
    %4692 = vmatprep.subr.mxu0 %v208
    %4693 = vmatpush1.msra.mxu0 %v207
    %4694 = vmatprep.subr.mxu0 %v212
    %4695 = vmatpush1.msra.mxu0 %v211
    %4696 = vmatprep.subr.mxu0 %v216
    %4697 = vmatpush1.msra.mxu0 %v215
    %4698 = vmatprep.subr.mxu0 %v220
    %4699 = vmatpush1.msra.mxu0 %v219
    %4700 = vmatprep.subr.mxu0 0.0
    %4701 = vmatpush1.msra.mxu0 0.0
    %4702 = vmatprep.subr.mxu0 0.0
    %4703 = vmatpush1.msra.mxu0 0.0
    %4704 = vmatprep.subr.mxu0 0.0
    %4705 = vmatpush1.msra.mxu0 0.0
    %4706 = vmatprep.subr.mxu0 0.0
    %4707 = vmatpush1.msra.mxu0 0.0
    %4708 = vmatprep.subr.mxu0 0.0
    %4709 = vmatpush1.msra.mxu0 0.0
    %4710 = vmatprep.subr.mxu0 0.0
    %4711 = vmatpush1.msra.mxu0 0.0
    %4712 = vmatprep.subr.mxu0 0.0
    %4713 = vmatpush1.msra.mxu0 0.0
    %4714 = vmatprep.subr.mxu0 0.0
    %4715 = vmatpush1.msra.mxu0 0.0
    %4716 = vmatprep.subr.mxu0 0.0
    %4717 = vmatpush1.msra.mxu0 0.0
    %4718 = vmatprep.subr.mxu0 0.0
    %4719 = vmatpush1.msra.mxu0 0.0
    %4720 = vmatprep.subr.mxu0 0.0
    %4721 = vmatpush1.msra.mxu0 0.0
    %4722 = vmatprep.subr.mxu0 0.0
    %4723 = vmatpush1.msra.mxu0 0.0
    %4724 = vmatprep.subr.mxu0 0.0
    %4725 = vmatpush1.msra.mxu0 0.0
    %4726 = vmatprep.subr.mxu0 0.0
    %4727 = vmatpush1.msra.mxu0 0.0
    %4728 = vmatprep.subr.mxu0 0.0
    %4729 = vmatpush1.msra.mxu0 0.0
    %4730 = vmatprep.subr.mxu0 0.0
    %4731 = vmatpush1.msra.mxu0 0.0
    %4732 = vmatprep.mubr.f32.mxu0 0.0
    %4733 = vmatmul.mubr.f32.gmra.mrb[0].mxu0 %v4664
    %v4734 = vpop.f32.mrb[0].mxu0
    %v4735 = vadd.f32 %v4428, %v4734
    %v4736 = vpop.f32.mrb[0].mxu0
    %v4737 = vadd.f32 %v4430, %v4736
    %4738 = vmatprep.mubr.f32.mxu0 0.0
    %4739 = vmatmul.mubr.f32.gmra.mrb[0].mxu0 %v4665
    %v4740 = vpop.f32.mrb[0].mxu0
    %v4741 = vadd.f32 %v4434, %v4740
    %v4742 = vpop.f32.mrb[0].mxu0
    %v4743 = vadd.f32 %v4436, %v4742
    %4744 = vmatprep.mubr.f32.mxu0 0.0
    %4745 = vmatmul.mubr.f32.gmra.mrb[0].mxu0 %v4666
    %v4746 = vpop.f32.mrb[0].mxu0
    %v4747 = vadd.f32 %v4440, %v4746
    %v4748 = vpop.f32.mrb[0].mxu0
    %v4749 = vadd.f32 %v4442, %v4748
    %4750 = vmatprep.mubr.f32.mxu0 0.0
    %4751 = vmatmul.mubr.f32.gmra.mrb[0].mxu0 %v4667
    %v4752 = vpop.f32.mrb[0].mxu0
    %v4753 = vadd.f32 %v4446, %v4752
    %v4754 = vpop.f32.mrb[0].mxu0
    %v4755 = vadd.f32 %v4448, %v4754
    %4756 = vdwg.mxu0
    %4757 = vmatprep.subr.mxu0 %v162
    %4758 = vmatpush1.msra.mxu0 %v161
    %4759 = vmatprep.subr.mxu0 %v166
    %4760 = vmatpush1.msra.mxu0 %v165
    %4761 = vmatprep.subr.mxu0 %v170
    %4762 = vmatpush1.msra.mxu0 %v169
    %4763 = vmatprep.subr.mxu0 %v174
    %4764 = vmatpush1.msra.mxu0 %v173
    %4765 = vmatprep.subr.mxu0 %v178
    %4766 = vmatpush1.msra.mxu0 %v177
    %4767 = vmatprep.subr.mxu0 %v182
    %4768 = vmatpush1.msra.mxu0 %v181
    %4769 = vmatprep.subr.mxu0 %v186
    %4770 = vmatpush1.msra.mxu0 %v185
    %4771 = vmatprep.subr.mxu0 %v190
    %4772 = vmatpush1.msra.mxu0 %v189
    %4773 = vmatprep.subr.mxu0 %v194
    %4774 = vmatpush1.msra.mxu0 %v193
    %4775 = vmatprep.subr.mxu0 %v198
    %4776 = vmatpush1.msra.mxu0 %v197
    %4777 = vmatprep.subr.mxu0 %v202
    %4778 = vmatpush1.msra.mxu0 %v201
    %4779 = vmatprep.subr.mxu0 %v206
    %4780 = vmatpush1.msra.mxu0 %v205
    %4781 = vmatprep.subr.mxu0 %v210
    %4782 = vmatpush1.msra.mxu0 %v209
    %4783 = vmatprep.subr.mxu0 %v214
    %4784 = vmatpush1.msra.mxu0 %v213
    %4785 = vmatprep.subr.mxu0 %v218
    %4786 = vmatpush1.msra.mxu0 %v217
    %4787 = vmatprep.subr.mxu0 %v222
    %4788 = vmatpush1.msra.mxu0 %v221
    %4789 = vmatprep.subr.mxu0 0.0
    %4790 = vmatpush1.msra.mxu0 0.0
    %4791 = vmatprep.subr.mxu0 0.0
    %4792 = vmatpush1.msra.mxu0 0.0
    %4793 = vmatprep.subr.mxu0 0.0
    %4794 = vmatpush1.msra.mxu0 0.0
    %4795 = vmatprep.subr.mxu0 0.0
    %4796 = vmatpush1.msra.mxu0 0.0
    %4797 = vmatprep.subr.mxu0 0.0
    %4798 = vmatpush1.msra.mxu0 0.0
    %4799 = vmatprep.subr.mxu0 0.0
    %4800 = vmatpush1.msra.mxu0 0.0
    %4801 = vmatprep.subr.mxu0 0.0
    %4802 = vmatpush1.msra.mxu0 0.0
    %4803 = vmatprep.subr.mxu0 0.0
    %4804 = vmatpush1.msra.mxu0 0.0
    %4805 = vmatprep.subr.mxu0 0.0
    %4806 = vmatpush1.msra.mxu0 0.0
    %4807 = vmatprep.subr.mxu0 0.0
    %4808 = vmatpush1.msra.mxu0 0.0
    %4809 = vmatprep.subr.mxu0 0.0
    %4810 = vmatpush1.msra.mxu0 0.0
    %4811 = vmatprep.subr.mxu0 0.0
    %4812 = vmatpush1.msra.mxu0 0.0
    %4813 = vmatprep.subr.mxu0 0.0
    %4814 = vmatpush1.msra.mxu0 0.0
    %4815 = vmatprep.subr.mxu0 0.0
    %4816 = vmatpush1.msra.mxu0 0.0
    %4817 = vmatprep.subr.mxu0 0.0
    %4818 = vmatpush1.msra.mxu0 0.0
    %4819 = vmatprep.subr.mxu0 0.0
    %4820 = vmatpush1.msra.mxu0 0.0
    %4821 = vmatprep.mubr.f32.mxu0 0.0
    %4822 = vmatmul.mubr.f32.gmra.mrb[0].mxu0 %v4664
    %v4823 = vpop.f32.mrb[0].mxu0
    %v4824 = vadd.f32 %v4517, %v4823
    %v4825 = vpop.f32.mrb[0].mxu0
    %v4826 = vadd.f32 %v4519, %v4825
    %4827 = vmatprep.mubr.f32.mxu0 0.0
    %4828 = vmatmul.mubr.f32.gmra.mrb[0].mxu0 %v4665
    %v4829 = vpop.f32.mrb[0].mxu0
    %v4830 = vadd.f32 %v4523, %v4829
    %v4831 = vpop.f32.mrb[0].mxu0
    %v4832 = vadd.f32 %v4525, %v4831
    %4833 = vmatprep.mubr.f32.mxu0 0.0
    %4834 = vmatmul.mubr.f32.gmra.mrb[0].mxu0 %v4666
    %v4835 = vpop.f32.mrb[0].mxu0
    %v4836 = vadd.f32 %v4529, %v4835
    %v4837 = vpop.f32.mrb[0].mxu0
    %v4838 = vadd.f32 %v4531, %v4837
    %4839 = vmatprep.mubr.f32.mxu0 0.0
    %4840 = vmatmul.mubr.f32.gmra.mrb[0].mxu0 %v4667
    %v4841 = vpop.f32.mrb[0].mxu0
    %v4842 = vadd.f32 %v4535, %v4841
    %v4843 = vpop.f32.mrb[0].mxu0
    %v4844 = vadd.f32 %v4537, %v4843
    %4845 = vdwg.mxu0
    %v4846 = vadd.f32 %v4735, %v292
    %v4847 = vadd.f32 %v4737, %v296
    %v4848 = vadd.f32 %v4824, %v300
    %v4849 = vadd.f32 %v4826, %v304
    %v4850 = vadd.f32 %v4741, %v292
    %v4851 = vadd.f32 %v4743, %v296
    %v4852 = vadd.f32 %v4830, %v300
    %v4853 = vadd.f32 %v4832, %v304
    %v4854 = vadd.f32 %v4747, %v292
    %v4855 = vadd.f32 %v4749, %v296
    %v4856 = vadd.f32 %v4836, %v300
    %v4857 = vadd.f32 %v4838, %v304
    %v4858 = vadd.f32 %v4753, %v292
    %v4859 = vadd.f32 %v4755, %v296
    %v4860 = vadd.f32 %v4842, %v300
    %v4861 = vadd.f32 %v4844, %v304
    %v4862 = vxor.u32 %v4846, 2147483648
    %v4863 = vxor.u32 %v4850, 2147483648
    %v4864 = vxor.u32 %v4854, 2147483648
    %v4865 = vxor.u32 %v4858, 2147483648
    %v4866 = vmul.f32 %v4862, 1.442695
    %v4867 = vpow.pop %v4866
    %v4868 = vmul.f32 %v4863, 1.442695
    %v4869 = vpow.pop %v4868
    %v4870 = vmul.f32 %v4864, 1.442695
    %v4871 = vpow.pop %v4870
    %v4872 = vmul.f32 %v4865, 1.442695
    %v4873 = vpow.pop %v4872
    %v4874 = vadd.f32 %v4867, 1.0
    %v4875 = vadd.f32 %v4869, 1.0
    %v4876 = vadd.f32 %v4871, 1.0
    %v4877 = vadd.f32 %v4873, 1.0
    %v4878 = vrcp.pop %v4874
    %v4879 = vmul.f32 1.0, %v4878
    %v4880 = vrcp.pop %v4875
    %v4881 = vmul.f32 1.0, %v4880
    %v4882 = vrcp.pop %v4876
    %v4883 = vmul.f32 1.0, %v4882
    %v4884 = vrcp.pop %v4877
    %v4885 = vmul.f32 1.0, %v4884
    %v4886 = vxor.u32 %v4847, 2147483648
    %v4887 = vxor.u32 %v4851, 2147483648
    %v4888 = vxor.u32 %v4855, 2147483648
    %v4889 = vxor.u32 %v4859, 2147483648
    %v4890 = vmul.f32 %v4886, 1.442695
    %v4891 = vpow.pop %v4890
    %v4892 = vmul.f32 %v4887, 1.442695
    %v4893 = vpow.pop %v4892
    %v4894 = vmul.f32 %v4888, 1.442695
    %v4895 = vpow.pop %v4894
    %v4896 = vmul.f32 %v4889, 1.442695
    %v4897 = vpow.pop %v4896
    %v4898 = vadd.f32 %v4891, 1.0
    %v4899 = vadd.f32 %v4893, 1.0
    %v4900 = vadd.f32 %v4895, 1.0
    %v4901 = vadd.f32 %v4897, 1.0
    %v4902 = vrcp.pop %v4898
    %v4903 = vmul.f32 1.0, %v4902
    %v4904 = vrcp.pop %v4899
    %v4905 = vmul.f32 1.0, %v4904
    %v4906 = vrcp.pop %v4900
    %v4907 = vmul.f32 1.0, %v4906
    %v4908 = vrcp.pop %v4901
    %v4909 = vmul.f32 1.0, %v4908
    %v4910 = vtanh.pop %v4848
    %v4911 = vtanh.pop %v4852
    %v4912 = vtanh.pop %v4856
    %v4913 = vtanh.pop %v4860
    %v4914 = vxor.u32 %v4849, 2147483648
    %v4915 = vxor.u32 %v4853, 2147483648
    %v4916 = vxor.u32 %v4857, 2147483648
    %v4917 = vxor.u32 %v4861, 2147483648
    %v4918 = vmul.f32 %v4914, 1.442695
    %v4919 = vpow.pop %v4918
    %v4920 = vmul.f32 %v4915, 1.442695
    %v4921 = vpow.pop %v4920
    %v4922 = vmul.f32 %v4916, 1.442695
    %v4923 = vpow.pop %v4922
    %v4924 = vmul.f32 %v4917, 1.442695
    %v4925 = vpow.pop %v4924
    %v4926 = vadd.f32 %v4919, 1.0
    %v4927 = vadd.f32 %v4921, 1.0
    %v4928 = vadd.f32 %v4923, 1.0
    %v4929 = vadd.f32 %v4925, 1.0
    %v4930 = vrcp.pop %v4926
    %v4931 = vmul.f32 1.0, %v4930
    %v4932 = vrcp.pop %v4927
    %v4933 = vmul.f32 1.0, %v4932
    %v4934 = vrcp.pop %v4928
    %v4935 = vmul.f32 1.0, %v4934
    %v4936 = vrcp.pop %v4929
    %v4937 = vmul.f32 1.0, %v4936
    %v4938 = vmul.f32 %v4903, %v4171
    %v4939 = vmul.f32 %v4905, %v4172
    %v4940 = vmul.f32 %v4907, %v4173
    %v4941 = vmul.f32 %v4909, %v4174
    %v4942 = vmul.f32 %v4879, %v4910
    %v4943 = vmul.f32 %v4881, %v4911
    %v4944 = vmul.f32 %v4883, %v4912
    %v4945 = vmul.f32 %v4885, %v4913
    %v4946 = vadd.f32 %v4938, %v4942
    %v4947 = vadd.f32 %v4939, %v4943
    %v4948 = vadd.f32 %v4940, %v4944
    %v4949 = vadd.f32 %v4941, %v4945
    %v4950 = vtanh.pop %v4946
    %v4951 = vtanh.pop %v4947
    %v4952 = vtanh.pop %v4948
    %v4953 = vtanh.pop %v4949
    %v4954 = vmul.f32 %v4931, %v4950
    %v4955 = vmul.f32 %v4933, %v4951
    %v4956 = vmul.f32 %v4935, %v4952
    %v4957 = vmul.f32 %v4937, %v4953
    %4958 = vmatprep.subr.mxu0 %v96
    %4959 = vmatpush1.msra.mxu0 %v95
    %4960 = vmatprep.subr.mxu0 %v100
    %4961 = vmatpush1.msra.mxu0 %v99
    %4962 = vmatprep.subr.mxu0 %v104
    %4963 = vmatpush1.msra.mxu0 %v103
    %4964 = vmatprep.subr.mxu0 %v108
    %4965 = vmatpush1.msra.mxu0 %v107
    %4966 = vmatprep.subr.mxu0 %v112
    %4967 = vmatpush1.msra.mxu0 %v111
    %4968 = vmatprep.subr.mxu0 %v116
    %4969 = vmatpush1.msra.mxu0 %v115
    %4970 = vmatprep.subr.mxu0 %v120
    %4971 = vmatpush1.msra.mxu0 %v119
    %4972 = vmatprep.subr.mxu0 %v124
    %4973 = vmatpush1.msra.mxu0 %v123
    %4974 = vmatprep.subr.mxu0 %v128
    %4975 = vmatpush1.msra.mxu0 %v127
    %4976 = vmatprep.subr.mxu0 %v132
    %4977 = vmatpush1.msra.mxu0 %v131
    %4978 = vmatprep.subr.mxu0 %v136
    %4979 = vmatpush1.msra.mxu0 %v135
    %4980 = vmatprep.subr.mxu0 %v140
    %4981 = vmatpush1.msra.mxu0 %v139
    %4982 = vmatprep.subr.mxu0 %v144
    %4983 = vmatpush1.msra.mxu0 %v143
    %4984 = vmatprep.subr.mxu0 %v148
    %4985 = vmatpush1.msra.mxu0 %v147
    %4986 = vmatprep.subr.mxu0 %v152
    %4987 = vmatpush1.msra.mxu0 %v151
    %4988 = vmatprep.subr.mxu0 %v156
    %4989 = vmatpush1.msra.mxu0 %v155
    %4990 = vmatprep.subr.mxu0 0.0
    %4991 = vmatpush1.msra.mxu0 0.0
    %4992 = vmatprep.subr.mxu0 0.0
    %4993 = vmatpush1.msra.mxu0 0.0
    %4994 = vmatprep.subr.mxu0 0.0
    %4995 = vmatpush1.msra.mxu0 0.0
    %4996 = vmatprep.subr.mxu0 0.0
    %4997 = vmatpush1.msra.mxu0 0.0
    %4998 = vmatprep.subr.mxu0 0.0
    %4999 = vmatpush1.msra.mxu0 0.0
    %5000 = vmatprep.subr.mxu0 0.0
    %5001 = vmatpush1.msra.mxu0 0.0
    %5002 = vmatprep.subr.mxu0 0.0
    %5003 = vmatpush1.msra.mxu0 0.0
    %5004 = vmatprep.subr.mxu0 0.0
    %5005 = vmatpush1.msra.mxu0 0.0
    %5006 = vmatprep.subr.mxu0 0.0
    %5007 = vmatpush1.msra.mxu0 0.0
    %5008 = vmatprep.subr.mxu0 0.0
    %5009 = vmatpush1.msra.mxu0 0.0
    %5010 = vmatprep.subr.mxu0 0.0
    %5011 = vmatpush1.msra.mxu0 0.0
    %5012 = vmatprep.subr.mxu0 0.0
    %5013 = vmatpush1.msra.mxu0 0.0
    %5014 = vmatprep.subr.mxu0 0.0
    %5015 = vmatpush1.msra.mxu0 0.0
    %5016 = vmatprep.subr.mxu0 0.0
    %5017 = vmatpush1.msra.mxu0 0.0
    %5018 = vmatprep.subr.mxu0 0.0
    %5019 = vmatpush1.msra.mxu0 0.0
    %5020 = vmatprep.subr.mxu0 0.0
    %5021 = vmatpush1.msra.mxu0 0.0
    %5022 = vmatprep.mubr.f32.mxu0 0.0
    %5023 = vmatmul.mubr.f32.gmra.mrb[0].mxu0 %v4664
    %v5024 = vpop.f32.mrb[0].mxu0
    %v5025 = vadd.f32 0.0, %v5024
    %v5026 = vpop.f32.mrb[0].mxu0
    %v5027 = vadd.f32 0.0, %v5026
    %5028 = vmatprep.mubr.f32.mxu0 0.0
    %5029 = vmatmul.mubr.f32.gmra.mrb[0].mxu0 %v4665
    %v5030 = vpop.f32.mrb[0].mxu0
    %v5031 = vadd.f32 0.0, %v5030
    %v5032 = vpop.f32.mrb[0].mxu0
    %v5033 = vadd.f32 0.0, %v5032
    %5034 = vmatprep.mubr.f32.mxu0 0.0
    %5035 = vmatmul.mubr.f32.gmra.mrb[0].mxu0 %v4666
    %v5036 = vpop.f32.mrb[0].mxu0
    %v5037 = vadd.f32 0.0, %v5036
    %v5038 = vpop.f32.mrb[0].mxu0
    %v5039 = vadd.f32 0.0, %v5038
    %5040 = vmatprep.mubr.f32.mxu0 0.0
    %5041 = vmatmul.mubr.f32.gmra.mrb[0].mxu0 %v4667
    %v5042 = vpop.f32.mrb[0].mxu0
    %v5043 = vadd.f32 0.0, %v5042
    %v5044 = vpop.f32.mrb[0].mxu0
    %v5045 = vadd.f32 0.0, %v5044
    %5046 = vdwg.mxu0
    %5047 = vmatprep.subr.mxu0 %v98
    %5048 = vmatpush1.msra.mxu0 %v97
    %5049 = vmatprep.subr.mxu0 %v102
    %5050 = vmatpush1.msra.mxu0 %v101
    %5051 = vmatprep.subr.mxu0 %v106
    %5052 = vmatpush1.msra.mxu0 %v105
    %5053 = vmatprep.subr.mxu0 %v110
    %5054 = vmatpush1.msra.mxu0 %v109
    %5055 = vmatprep.subr.mxu0 %v114
    %5056 = vmatpush1.msra.mxu0 %v113
    %5057 = vmatprep.subr.mxu0 %v118
    %5058 = vmatpush1.msra.mxu0 %v117
    %5059 = vmatprep.subr.mxu0 %v122
    %5060 = vmatpush1.msra.mxu0 %v121
    %5061 = vmatprep.subr.mxu0 %v126
    %5062 = vmatpush1.msra.mxu0 %v125
    %5063 = vmatprep.subr.mxu0 %v130
    %5064 = vmatpush1.msra.mxu0 %v129
    %5065 = vmatprep.subr.mxu0 %v134
    %5066 = vmatpush1.msra.mxu0 %v133
    %5067 = vmatprep.subr.mxu0 %v138
    %5068 = vmatpush1.msra.mxu0 %v137
    %5069 = vmatprep.subr.mxu0 %v142
    %5070 = vmatpush1.msra.mxu0 %v141
    %5071 = vmatprep.subr.mxu0 %v146
    %5072 = vmatpush1.msra.mxu0 %v145
    %5073 = vmatprep.subr.mxu0 %v150
    %5074 = vmatpush1.msra.mxu0 %v149
    %5075 = vmatprep.subr.mxu0 %v154
    %5076 = vmatpush1.msra.mxu0 %v153
    %5077 = vmatprep.subr.mxu0 %v158
    %5078 = vmatpush1.msra.mxu0 %v157
    %5079 = vmatprep.subr.mxu0 0.0
    %5080 = vmatpush1.msra.mxu0 0.0
    %5081 = vmatprep.subr.mxu0 0.0
    %5082 = vmatpush1.msra.mxu0 0.0
    %5083 = vmatprep.subr.mxu0 0.0
    %5084 = vmatpush1.msra.mxu0 0.0
    %5085 = vmatprep.subr.mxu0 0.0
    %5086 = vmatpush1.msra.mxu0 0.0
    %5087 = vmatprep.subr.mxu0 0.0
    %5088 = vmatpush1.msra.mxu0 0.0
    %5089 = vmatprep.subr.mxu0 0.0
    %5090 = vmatpush1.msra.mxu0 0.0
    %5091 = vmatprep.subr.mxu0 0.0
    %5092 = vmatpush1.msra.mxu0 0.0
    %5093 = vmatprep.subr.mxu0 0.0
    %5094 = vmatpush1.msra.mxu0 0.0
    %5095 = vmatprep.subr.mxu0 0.0
    %5096 = vmatpush1.msra.mxu0 0.0
    %5097 = vmatprep.subr.mxu0 0.0
    %5098 = vmatpush1.msra.mxu0 0.0
    %5099 = vmatprep.subr.mxu0 0.0
    %5100 = vmatpush1.msra.mxu0 0.0
    %5101 = vmatprep.subr.mxu0 0.0
    %5102 = vmatpush1.msra.mxu0 0.0
    %5103 = vmatprep.subr.mxu0 0.0
    %5104 = vmatpush1.msra.mxu0 0.0
    %5105 = vmatprep.subr.mxu0 0.0
    %5106 = vmatpush1.msra.mxu0 0.0
    %5107 = vmatprep.subr.mxu0 0.0
    %5108 = vmatpush1.msra.mxu0 0.0
    %5109 = vmatprep.subr.mxu0 0.0
    %5110 = vmatpush1.msra.mxu0 0.0
    %5111 = vmatprep.mubr.f32.mxu0 0.0
    %5112 = vmatmul.mubr.f32.gmra.mrb[0].mxu0 %v4664
    %v5113 = vpop.f32.mrb[0].mxu0
    %v5114 = vadd.f32 0.0, %v5113
    %v5115 = vpop.f32.mrb[0].mxu0
    %v5116 = vadd.f32 0.0, %v5115
    %5117 = vmatprep.mubr.f32.mxu0 0.0
    %5118 = vmatmul.mubr.f32.gmra.mrb[0].mxu0 %v4665
    %v5119 = vpop.f32.mrb[0].mxu0
    %v5120 = vadd.f32 0.0, %v5119
    %v5121 = vpop.f32.mrb[0].mxu0
    %v5122 = vadd.f32 0.0, %v5121
    %5123 = vmatprep.mubr.f32.mxu0 0.0
    %5124 = vmatmul.mubr.f32.gmra.mrb[0].mxu0 %v4666
    %v5125 = vpop.f32.mrb[0].mxu0
    %v5126 = vadd.f32 0.0, %v5125
    %v5127 = vpop.f32.mrb[0].mxu0
    %v5128 = vadd.f32 0.0, %v5127
    %5129 = vmatprep.mubr.f32.mxu0 0.0
    %5130 = vmatmul.mubr.f32.gmra.mrb[0].mxu0 %v4667
    %v5131 = vpop.f32.mrb[0].mxu0
    %v5132 = vadd.f32 0.0, %v5131
    %v5133 = vpop.f32.mrb[0].mxu0
    %v5134 = vadd.f32 0.0, %v5133
    %5135 = vdwg.mxu0
    %5136 = vmatprep.subr.mxu0 %v224
    %5137 = vmatpush1.msra.mxu0 %v223
    %5138 = vmatprep.subr.mxu0 %v228
    %5139 = vmatpush1.msra.mxu0 %v227
    %5140 = vmatprep.subr.mxu0 %v232
    %5141 = vmatpush1.msra.mxu0 %v231
    %5142 = vmatprep.subr.mxu0 %v236
    %5143 = vmatpush1.msra.mxu0 %v235
    %5144 = vmatprep.subr.mxu0 %v240
    %5145 = vmatpush1.msra.mxu0 %v239
    %5146 = vmatprep.subr.mxu0 %v244
    %5147 = vmatpush1.msra.mxu0 %v243
    %5148 = vmatprep.subr.mxu0 %v248
    %5149 = vmatpush1.msra.mxu0 %v247
    %5150 = vmatprep.subr.mxu0 %v252
    %5151 = vmatpush1.msra.mxu0 %v251
    %5152 = vmatprep.subr.mxu0 %v256
    %5153 = vmatpush1.msra.mxu0 %v255
    %5154 = vmatprep.subr.mxu0 %v260
    %5155 = vmatpush1.msra.mxu0 %v259
    %5156 = vmatprep.subr.mxu0 %v264
    %5157 = vmatpush1.msra.mxu0 %v263
    %5158 = vmatprep.subr.mxu0 %v268
    %5159 = vmatpush1.msra.mxu0 %v267
    %5160 = vmatprep.subr.mxu0 %v272
    %5161 = vmatpush1.msra.mxu0 %v271
    %5162 = vmatprep.subr.mxu0 %v276
    %5163 = vmatpush1.msra.mxu0 %v275
    %5164 = vmatprep.subr.mxu0 %v280
    %5165 = vmatpush1.msra.mxu0 %v279
    %5166 = vmatprep.subr.mxu0 %v284
    %5167 = vmatpush1.msra.mxu0 %v283
    %5168 = vmatprep.subr.mxu0 0.0
    %5169 = vmatpush1.msra.mxu0 0.0
    %5170 = vmatprep.subr.mxu0 0.0
    %5171 = vmatpush1.msra.mxu0 0.0
    %5172 = vmatprep.subr.mxu0 0.0
    %5173 = vmatpush1.msra.mxu0 0.0
    %5174 = vmatprep.subr.mxu0 0.0
    %5175 = vmatpush1.msra.mxu0 0.0
    %5176 = vmatprep.subr.mxu0 0.0
    %5177 = vmatpush1.msra.mxu0 0.0
    %5178 = vmatprep.subr.mxu0 0.0
    %5179 = vmatpush1.msra.mxu0 0.0
    %5180 = vmatprep.subr.mxu0 0.0
    %5181 = vmatpush1.msra.mxu0 0.0
    %5182 = vmatprep.subr.mxu0 0.0
    %5183 = vmatpush1.msra.mxu0 0.0
    %5184 = vmatprep.subr.mxu0 0.0
    %5185 = vmatpush1.msra.mxu0 0.0
    %5186 = vmatprep.subr.mxu0 0.0
    %5187 = vmatpush1.msra.mxu0 0.0
    %5188 = vmatprep.subr.mxu0 0.0
    %5189 = vmatpush1.msra.mxu0 0.0
    %5190 = vmatprep.subr.mxu0 0.0
    %5191 = vmatpush1.msra.mxu0 0.0
    %5192 = vmatprep.subr.mxu0 0.0
    %5193 = vmatpush1.msra.mxu0 0.0
    %5194 = vmatprep.subr.mxu0 0.0
    %5195 = vmatpush1.msra.mxu0 0.0
    %5196 = vmatprep.subr.mxu0 0.0
    %5197 = vmatpush1.msra.mxu0 0.0
    %5198 = vmatprep.subr.mxu0 0.0
    %5199 = vmatpush1.msra.mxu0 0.0
    %5200 = vmatprep.mubr.f32.mxu0 0.0
    %5201 = vmatmul.mubr.f32.gmra.mrb[0].mxu0 %v4954
    %v5202 = vpop.f32.mrb[0].mxu0
    %v5203 = vadd.f32 0.0, %v5202
    %v5204 = vpop.f32.mrb[0].mxu0
    %v5205 = vadd.f32 0.0, %v5204
    %5206 = vmatprep.mubr.f32.mxu0 0.0
    %5207 = vmatmul.mubr.f32.gmra.mrb[0].mxu0 %v4955
    %v5208 = vpop.f32.mrb[0].mxu0
    %v5209 = vadd.f32 0.0, %v5208
    %v5210 = vpop.f32.mrb[0].mxu0
    %v5211 = vadd.f32 0.0, %v5210
    %5212 = vmatprep.mubr.f32.mxu0 0.0
    %5213 = vmatmul.mubr.f32.gmra.mrb[0].mxu0 %v4956
    %v5214 = vpop.f32.mrb[0].mxu0
    %v5215 = vadd.f32 0.0, %v5214
    %v5216 = vpop.f32.mrb[0].mxu0
    %v5217 = vadd.f32 0.0, %v5216
    %5218 = vmatprep.mubr.f32.mxu0 0.0
    %5219 = vmatmul.mubr.f32.gmra.mrb[0].mxu0 %v4957
    %v5220 = vpop.f32.mrb[0].mxu0
    %v5221 = vadd.f32 0.0, %v5220
    %v5222 = vpop.f32.mrb[0].mxu0
    %v5223 = vadd.f32 0.0, %v5222
    %5224 = vdwg.mxu0
    %5225 = vmatprep.subr.mxu0 %v226
    %5226 = vmatpush1.msra.mxu0 %v225
    %5227 = vmatprep.subr.mxu0 %v230
    %5228 = vmatpush1.msra.mxu0 %v229
    %5229 = vmatprep.subr.mxu0 %v234
    %5230 = vmatpush1.msra.mxu0 %v233
    %5231 = vmatprep.subr.mxu0 %v238
    %5232 = vmatpush1.msra.mxu0 %v237
    %5233 = vmatprep.subr.mxu0 %v242
    %5234 = vmatpush1.msra.mxu0 %v241
    %5235 = vmatprep.subr.mxu0 %v246
    %5236 = vmatpush1.msra.mxu0 %v245
    %5237 = vmatprep.subr.mxu0 %v250
    %5238 = vmatpush1.msra.mxu0 %v249
    %5239 = vmatprep.subr.mxu0 %v254
    %5240 = vmatpush1.msra.mxu0 %v253
    %5241 = vmatprep.subr.mxu0 %v258
    %5242 = vmatpush1.msra.mxu0 %v257
    %5243 = vmatprep.subr.mxu0 %v262
    %5244 = vmatpush1.msra.mxu0 %v261
    %5245 = vmatprep.subr.mxu0 %v266
    %5246 = vmatpush1.msra.mxu0 %v265
    %5247 = vmatprep.subr.mxu0 %v270
    %5248 = vmatpush1.msra.mxu0 %v269
    %5249 = vmatprep.subr.mxu0 %v274
    %5250 = vmatpush1.msra.mxu0 %v273
    %5251 = vmatprep.subr.mxu0 %v278
    %5252 = vmatpush1.msra.mxu0 %v277
    %5253 = vmatprep.subr.mxu0 %v282
    %5254 = vmatpush1.msra.mxu0 %v281
    %5255 = vmatprep.subr.mxu0 %v286
    %5256 = vmatpush1.msra.mxu0 %v285
    %5257 = vmatprep.subr.mxu0 0.0
    %5258 = vmatpush1.msra.mxu0 0.0
    %5259 = vmatprep.subr.mxu0 0.0
    %5260 = vmatpush1.msra.mxu0 0.0
    %5261 = vmatprep.subr.mxu0 0.0
    %5262 = vmatpush1.msra.mxu0 0.0
    %5263 = vmatprep.subr.mxu0 0.0
    %5264 = vmatpush1.msra.mxu0 0.0
    %5265 = vmatprep.subr.mxu0 0.0
    %5266 = vmatpush1.msra.mxu0 0.0
    %5267 = vmatprep.subr.mxu0 0.0
    %5268 = vmatpush1.msra.mxu0 0.0
    %5269 = vmatprep.subr.mxu0 0.0
    %5270 = vmatpush1.msra.mxu0 0.0
    %5271 = vmatprep.subr.mxu0 0.0
    %5272 = vmatpush1.msra.mxu0 0.0
    %5273 = vmatprep.subr.mxu0 0.0
    %5274 = vmatpush1.msra.mxu0 0.0
    %5275 = vmatprep.subr.mxu0 0.0
    %5276 = vmatpush1.msra.mxu0 0.0
    %5277 = vmatprep.subr.mxu0 0.0
    %5278 = vmatpush1.msra.mxu0 0.0
    %5279 = vmatprep.subr.mxu0 0.0
    %5280 = vmatpush1.msra.mxu0 0.0
    %5281 = vmatprep.subr.mxu0 0.0
    %5282 = vmatpush1.msra.mxu0 0.0
    %5283 = vmatprep.subr.mxu0 0.0
    %5284 = vmatpush1.msra.mxu0 0.0
    %5285 = vmatprep.subr.mxu0 0.0
    %5286 = vmatpush1.msra.mxu0 0.0
    %5287 = vmatprep.subr.mxu0 0.0
    %5288 = vmatpush1.msra.mxu0 0.0
    %5289 = vmatprep.mubr.f32.mxu0 0.0
    %5290 = vmatmul.mubr.f32.gmra.mrb[0].mxu0 %v4954
    %v5291 = vpop.f32.mrb[0].mxu0
    %v5292 = vadd.f32 0.0, %v5291
    %v5293 = vpop.f32.mrb[0].mxu0
    %v5294 = vadd.f32 0.0, %v5293
    %5295 = vmatprep.mubr.f32.mxu0 0.0
    %5296 = vmatmul.mubr.f32.gmra.mrb[0].mxu0 %v4955
    %v5297 = vpop.f32.mrb[0].mxu0
    %v5298 = vadd.f32 0.0, %v5297
    %v5299 = vpop.f32.mrb[0].mxu0
    %v5300 = vadd.f32 0.0, %v5299
    %5301 = vmatprep.mubr.f32.mxu0 0.0
    %5302 = vmatmul.mubr.f32.gmra.mrb[0].mxu0 %v4956
    %v5303 = vpop.f32.mrb[0].mxu0
    %v5304 = vadd.f32 0.0, %v5303
    %v5305 = vpop.f32.mrb[0].mxu0
    %v5306 = vadd.f32 0.0, %v5305
    %5307 = vmatprep.mubr.f32.mxu0 0.0
    %5308 = vmatmul.mubr.f32.gmra.mrb[0].mxu0 %v4957
    %v5309 = vpop.f32.mrb[0].mxu0
    %v5310 = vadd.f32 0.0, %v5309
    %v5311 = vpop.f32.mrb[0].mxu0
    %v5312 = vadd.f32 0.0, %v5311
    %5313 = vdwg.mxu0
    %s5314 = scalar_lea.vmem [#allocation2], 768
    %v5315 = vld [vmem:[%s5314] sm:$0xff]
    %v5316 = vld [vmem:[%s5314 + $0x8] sm:$0xff]
    %v5317 = vld [vmem:[%s5314 + $0x10] sm:$0xff]
    %v5318 = vld [vmem:[%s5314 + $0x18] sm:$0xff]
    %v5319 = vld [vmem:[%s5314 + $0x20] sm:$0xff]
    %v5320 = vld [vmem:[%s5314 + $0x28] sm:$0xff]
    %v5321 = vld [vmem:[%s5314 + $0x30] sm:$0xff]
    %v5322 = vld [vmem:[%s5314 + $0x38] sm:$0xff]
    %v5323 = vld [vmem:[%s5314 + $0x40] sm:$0xff]
    %v5324 = vld [vmem:[%s5314 + $0x48] sm:$0xff]
    %v5325 = vld [vmem:[%s5314 + $0x50] sm:$0xff]
    %v5326 = vld [vmem:[%s5314 + $0x58] sm:$0xff]
    %v5327 = vld [vmem:[%s5314 + $0x60] sm:$0xff]
    %v5328 = vld [vmem:[%s5314 + $0x68] sm:$0xff]
    %v5329 = vld [vmem:[%s5314 + $0x70] sm:$0xff]
    %v5330 = vld [vmem:[%s5314 + $0x78] sm:$0xff]
    %v5331 = vadd.f32 %v5315, %v5025
    %v5332 = vadd.f32 %v5316, %v5027
    %v5333 = vadd.f32 %v5317, %v5114
    %v5334 = vadd.f32 %v5318, %v5116
    %v5335 = vadd.f32 %v5319, %v5031
    %v5336 = vadd.f32 %v5320, %v5033
    %v5337 = vadd.f32 %v5321, %v5120
    %v5338 = vadd.f32 %v5322, %v5122
    %v5339 = vadd.f32 %v5323, %v5037
    %v5340 = vadd.f32 %v5324, %v5039
    %v5341 = vadd.f32 %v5325, %v5126
    %v5342 = vadd.f32 %v5326, %v5128
    %v5343 = vadd.f32 %v5327, %v5043
    %v5344 = vadd.f32 %v5328, %v5045
    %v5345 = vadd.f32 %v5329, %v5132
    %v5346 = vadd.f32 %v5330, %v5134
    %v5347 = vxor.u32 %v5331, 2147483648
    %v5348 = vxor.u32 %v5335, 2147483648
    %v5349 = vxor.u32 %v5339, 2147483648
    %v5350 = vxor.u32 %v5343, 2147483648
    %v5351 = vmul.f32 %v5347, 1.442695
    %v5352 = vpow.pop %v5351
    %v5353 = vmul.f32 %v5348, 1.442695
    %v5354 = vpow.pop %v5353
    %v5355 = vmul.f32 %v5349, 1.442695
    %v5356 = vpow.pop %v5355
    %v5357 = vmul.f32 %v5350, 1.442695
    %v5358 = vpow.pop %v5357
    %v5359 = vadd.f32 %v5352, 1.0
    %v5360 = vadd.f32 %v5354, 1.0
    %v5361 = vadd.f32 %v5356, 1.0
    %v5362 = vadd.f32 %v5358, 1.0
    %v5363 = vrcp.pop %v5359
    %v5364 = vmul.f32 1.0, %v5363
    %v5365 = vrcp.pop %v5360
    %v5366 = vmul.f32 1.0, %v5365
    %v5367 = vrcp.pop %v5361
    %v5368 = vmul.f32 1.0, %v5367
    %v5369 = vrcp.pop %v5362
    %v5370 = vmul.f32 1.0, %v5369
    %v5371 = vxor.u32 %v5332, 2147483648
    %v5372 = vxor.u32 %v5336, 2147483648
    %v5373 = vxor.u32 %v5340, 2147483648
    %v5374 = vxor.u32 %v5344, 2147483648
    %v5375 = vmul.f32 %v5371, 1.442695
    %v5376 = vpow.pop %v5375
    %v5377 = vmul.f32 %v5372, 1.442695
    %v5378 = vpow.pop %v5377
    %v5379 = vmul.f32 %v5373, 1.442695
    %v5380 = vpow.pop %v5379
    %v5381 = vmul.f32 %v5374, 1.442695
    %v5382 = vpow.pop %v5381
    %v5383 = vadd.f32 %v5376, 1.0
    %v5384 = vadd.f32 %v5378, 1.0
    %v5385 = vadd.f32 %v5380, 1.0
    %v5386 = vadd.f32 %v5382, 1.0
    %v5387 = vrcp.pop %v5383
    %v5388 = vmul.f32 1.0, %v5387
    %v5389 = vrcp.pop %v5384
    %v5390 = vmul.f32 1.0, %v5389
    %v5391 = vrcp.pop %v5385
    %v5392 = vmul.f32 1.0, %v5391
    %v5393 = vrcp.pop %v5386
    %v5394 = vmul.f32 1.0, %v5393
    %v5395 = vtanh.pop %v5333
    %v5396 = vtanh.pop %v5337
    %v5397 = vtanh.pop %v5341
    %v5398 = vtanh.pop %v5345
    %v5399 = vxor.u32 %v5334, 2147483648
    %v5400 = vxor.u32 %v5338, 2147483648
    %v5401 = vxor.u32 %v5342, 2147483648
    %v5402 = vxor.u32 %v5346, 2147483648
    %v5403 = vmul.f32 %v5399, 1.442695
    %v5404 = vpow.pop %v5403
    %v5405 = vmul.f32 %v5400, 1.442695
    %v5406 = vpow.pop %v5405
    %v5407 = vmul.f32 %v5401, 1.442695
    %v5408 = vpow.pop %v5407
    %v5409 = vmul.f32 %v5402, 1.442695
    %v5410 = vpow.pop %v5409
    %v5411 = vadd.f32 %v5404, 1.0
    %v5412 = vadd.f32 %v5406, 1.0
    %v5413 = vadd.f32 %v5408, 1.0
    %v5414 = vadd.f32 %v5410, 1.0
    %v5415 = vrcp.pop %v5411
    %v5416 = vmul.f32 1.0, %v5415
    %v5417 = vrcp.pop %v5412
    %v5418 = vmul.f32 1.0, %v5417
    %v5419 = vrcp.pop %v5413
    %v5420 = vmul.f32 1.0, %v5419
    %v5421 = vrcp.pop %v5414
    %v5422 = vmul.f32 1.0, %v5421
    %v5423 = vmul.f32 %v5388, %v4656
    %v5424 = vmul.f32 %v5390, %v4657
    %v5425 = vmul.f32 %v5392, %v4658
    %v5426 = vmul.f32 %v5394, %v4659
    %v5427 = vmul.f32 %v5364, %v5395
    %v5428 = vmul.f32 %v5366, %v5396
    %v5429 = vmul.f32 %v5368, %v5397
    %v5430 = vmul.f32 %v5370, %v5398
    %v5431 = vadd.f32 %v5423, %v5427
    %v5432 = vadd.f32 %v5424, %v5428
    %v5433 = vadd.f32 %v5425, %v5429
    %v5434 = vadd.f32 %v5426, %v5430
    %v5435 = vtanh.pop %v5431
    %v5436 = vtanh.pop %v5432
    %v5437 = vtanh.pop %v5433
    %v5438 = vtanh.pop %v5434
    %v5439 = vmul.f32 %v5416, %v5435
    %v5440 = vmul.f32 %v5418, %v5436
    %v5441 = vmul.f32 %v5420, %v5437
    %v5442 = vmul.f32 %v5422, %v5438
    %5443 = vmatprep.subr.mxu0 %v160
    %5444 = vmatpush1.msra.mxu0 %v159
    %5445 = vmatprep.subr.mxu0 %v164
    %5446 = vmatpush1.msra.mxu0 %v163
    %5447 = vmatprep.subr.mxu0 %v168
    %5448 = vmatpush1.msra.mxu0 %v167
    %5449 = vmatprep.subr.mxu0 %v172
    %5450 = vmatpush1.msra.mxu0 %v171
    %5451 = vmatprep.subr.mxu0 %v176
    %5452 = vmatpush1.msra.mxu0 %v175
    %5453 = vmatprep.subr.mxu0 %v180
    %5454 = vmatpush1.msra.mxu0 %v179
    %5455 = vmatprep.subr.mxu0 %v184
    %5456 = vmatpush1.msra.mxu0 %v183
    %5457 = vmatprep.subr.mxu0 %v188
    %5458 = vmatpush1.msra.mxu0 %v187
    %5459 = vmatprep.subr.mxu0 %v192
    %5460 = vmatpush1.msra.mxu0 %v191
    %5461 = vmatprep.subr.mxu0 %v196
    %5462 = vmatpush1.msra.mxu0 %v195
    %5463 = vmatprep.subr.mxu0 %v200
    %5464 = vmatpush1.msra.mxu0 %v199
    %5465 = vmatprep.subr.mxu0 %v204
    %5466 = vmatpush1.msra.mxu0 %v203
    %5467 = vmatprep.subr.mxu0 %v208
    %5468 = vmatpush1.msra.mxu0 %v207
    %5469 = vmatprep.subr.mxu0 %v212
    %5470 = vmatpush1.msra.mxu0 %v211
    %5471 = vmatprep.subr.mxu0 %v216
    %5472 = vmatpush1.msra.mxu0 %v215
    %5473 = vmatprep.subr.mxu0 %v220
    %5474 = vmatpush1.msra.mxu0 %v219
    %5475 = vmatprep.subr.mxu0 0.0
    %5476 = vmatpush1.msra.mxu0 0.0
    %5477 = vmatprep.subr.mxu0 0.0
    %5478 = vmatpush1.msra.mxu0 0.0
    %5479 = vmatprep.subr.mxu0 0.0
    %5480 = vmatpush1.msra.mxu0 0.0
    %5481 = vmatprep.subr.mxu0 0.0
    %5482 = vmatpush1.msra.mxu0 0.0
    %5483 = vmatprep.subr.mxu0 0.0
    %5484 = vmatpush1.msra.mxu0 0.0
    %5485 = vmatprep.subr.mxu0 0.0
    %5486 = vmatpush1.msra.mxu0 0.0
    %5487 = vmatprep.subr.mxu0 0.0
    %5488 = vmatpush1.msra.mxu0 0.0
    %5489 = vmatprep.subr.mxu0 0.0
    %5490 = vmatpush1.msra.mxu0 0.0
    %5491 = vmatprep.subr.mxu0 0.0
    %5492 = vmatpush1.msra.mxu0 0.0
    %5493 = vmatprep.subr.mxu0 0.0
    %5494 = vmatpush1.msra.mxu0 0.0
    %5495 = vmatprep.subr.mxu0 0.0
    %5496 = vmatpush1.msra.mxu0 0.0
    %5497 = vmatprep.subr.mxu0 0.0
    %5498 = vmatpush1.msra.mxu0 0.0
    %5499 = vmatprep.subr.mxu0 0.0
    %5500 = vmatpush1.msra.mxu0 0.0
    %5501 = vmatprep.subr.mxu0 0.0
    %5502 = vmatpush1.msra.mxu0 0.0
    %5503 = vmatprep.subr.mxu0 0.0
    %5504 = vmatpush1.msra.mxu0 0.0
    %5505 = vmatprep.subr.mxu0 0.0
    %5506 = vmatpush1.msra.mxu0 0.0
    %5507 = vmatprep.mubr.f32.mxu0 0.0
    %5508 = vmatmul.mubr.f32.gmra.mrb[0].mxu0 %v5439
    %v5509 = vpop.f32.mrb[0].mxu0
    %v5510 = vadd.f32 %v5203, %v5509
    %v5511 = vpop.f32.mrb[0].mxu0
    %v5512 = vadd.f32 %v5205, %v5511
    %5513 = vmatprep.mubr.f32.mxu0 0.0
    %5514 = vmatmul.mubr.f32.gmra.mrb[0].mxu0 %v5440
    %v5515 = vpop.f32.mrb[0].mxu0
    %v5516 = vadd.f32 %v5209, %v5515
    %v5517 = vpop.f32.mrb[0].mxu0
    %v5518 = vadd.f32 %v5211, %v5517
    %5519 = vmatprep.mubr.f32.mxu0 0.0
    %5520 = vmatmul.mubr.f32.gmra.mrb[0].mxu0 %v5441
    %v5521 = vpop.f32.mrb[0].mxu0
    %v5522 = vadd.f32 %v5215, %v5521
    %v5523 = vpop.f32.mrb[0].mxu0
    %v5524 = vadd.f32 %v5217, %v5523
    %5525 = vmatprep.mubr.f32.mxu0 0.0
    %5526 = vmatmul.mubr.f32.gmra.mrb[0].mxu0 %v5442
    %v5527 = vpop.f32.mrb[0].mxu0
    %v5528 = vadd.f32 %v5221, %v5527
    %v5529 = vpop.f32.mrb[0].mxu0
    %v5530 = vadd.f32 %v5223, %v5529
    %5531 = vdwg.mxu0
    %5532 = vmatprep.subr.mxu0 %v162
    %5533 = vmatpush1.msra.mxu0 %v161
    %5534 = vmatprep.subr.mxu0 %v166
    %5535 = vmatpush1.msra.mxu0 %v165
    %5536 = vmatprep.subr.mxu0 %v170
    %5537 = vmatpush1.msra.mxu0 %v169
    %5538 = vmatprep.subr.mxu0 %v174
    %5539 = vmatpush1.msra.mxu0 %v173
    %5540 = vmatprep.subr.mxu0 %v178
    %5541 = vmatpush1.msra.mxu0 %v177
    %5542 = vmatprep.subr.mxu0 %v182
    %5543 = vmatpush1.msra.mxu0 %v181
    %5544 = vmatprep.subr.mxu0 %v186
    %5545 = vmatpush1.msra.mxu0 %v185
    %5546 = vmatprep.subr.mxu0 %v190
    %5547 = vmatpush1.msra.mxu0 %v189
    %5548 = vmatprep.subr.mxu0 %v194
    %5549 = vmatpush1.msra.mxu0 %v193
    %5550 = vmatprep.subr.mxu0 %v198
    %5551 = vmatpush1.msra.mxu0 %v197
    %5552 = vmatprep.subr.mxu0 %v202
    %5553 = vmatpush1.msra.mxu0 %v201
    %5554 = vmatprep.subr.mxu0 %v206
    %5555 = vmatpush1.msra.mxu0 %v205
    %5556 = vmatprep.subr.mxu0 %v210
    %5557 = vmatpush1.msra.mxu0 %v209
    %5558 = vmatprep.subr.mxu0 %v214
    %5559 = vmatpush1.msra.mxu0 %v213
    %5560 = vmatprep.subr.mxu0 %v218
    %5561 = vmatpush1.msra.mxu0 %v217
    %5562 = vmatprep.subr.mxu0 %v222
    %5563 = vmatpush1.msra.mxu0 %v221
    %5564 = vmatprep.subr.mxu0 0.0
    %5565 = vmatpush1.msra.mxu0 0.0
    %5566 = vmatprep.subr.mxu0 0.0
    %5567 = vmatpush1.msra.mxu0 0.0
    %5568 = vmatprep.subr.mxu0 0.0
    %5569 = vmatpush1.msra.mxu0 0.0
    %5570 = vmatprep.subr.mxu0 0.0
    %5571 = vmatpush1.msra.mxu0 0.0
    %5572 = vmatprep.subr.mxu0 0.0
    %5573 = vmatpush1.msra.mxu0 0.0
    %5574 = vmatprep.subr.mxu0 0.0
    %5575 = vmatpush1.msra.mxu0 0.0
    %5576 = vmatprep.subr.mxu0 0.0
    %5577 = vmatpush1.msra.mxu0 0.0
    %5578 = vmatprep.subr.mxu0 0.0
    %5579 = vmatpush1.msra.mxu0 0.0
    %5580 = vmatprep.subr.mxu0 0.0
    %5581 = vmatpush1.msra.mxu0 0.0
    %5582 = vmatprep.subr.mxu0 0.0
    %5583 = vmatpush1.msra.mxu0 0.0
    %5584 = vmatprep.subr.mxu0 0.0
    %5585 = vmatpush1.msra.mxu0 0.0
    %5586 = vmatprep.subr.mxu0 0.0
    %5587 = vmatpush1.msra.mxu0 0.0
    %5588 = vmatprep.subr.mxu0 0.0
    %5589 = vmatpush1.msra.mxu0 0.0
    %5590 = vmatprep.subr.mxu0 0.0
    %5591 = vmatpush1.msra.mxu0 0.0
    %5592 = vmatprep.subr.mxu0 0.0
    %5593 = vmatpush1.msra.mxu0 0.0
    %5594 = vmatprep.subr.mxu0 0.0
    %5595 = vmatpush1.msra.mxu0 0.0
    %5596 = vmatprep.mubr.f32.mxu0 0.0
    %5597 = vmatmul.mubr.f32.gmra.mrb[0].mxu0 %v5439
    %v5598 = vpop.f32.mrb[0].mxu0
    %v5599 = vadd.f32 %v5292, %v5598
    %v5600 = vpop.f32.mrb[0].mxu0
    %v5601 = vadd.f32 %v5294, %v5600
    %5602 = vmatprep.mubr.f32.mxu0 0.0
    %5603 = vmatmul.mubr.f32.gmra.mrb[0].mxu0 %v5440
    %v5604 = vpop.f32.mrb[0].mxu0
    %v5605 = vadd.f32 %v5298, %v5604
    %v5606 = vpop.f32.mrb[0].mxu0
    %v5607 = vadd.f32 %v5300, %v5606
    %5608 = vmatprep.mubr.f32.mxu0 0.0
    %5609 = vmatmul.mubr.f32.gmra.mrb[0].mxu0 %v5441
    %v5610 = vpop.f32.mrb[0].mxu0
    %v5611 = vadd.f32 %v5304, %v5610
    %v5612 = vpop.f32.mrb[0].mxu0
    %v5613 = vadd.f32 %v5306, %v5612
    %5614 = vmatprep.mubr.f32.mxu0 0.0
    %5615 = vmatmul.mubr.f32.gmra.mrb[0].mxu0 %v5442
    %v5616 = vpop.f32.mrb[0].mxu0
    %v5617 = vadd.f32 %v5310, %v5616
    %v5618 = vpop.f32.mrb[0].mxu0
    %v5619 = vadd.f32 %v5312, %v5618
    %5620 = vdwg.mxu0
    %v5621 = vadd.f32 %v5510, %v292
    %v5622 = vadd.f32 %v5512, %v296
    %v5623 = vadd.f32 %v5599, %v300
    %v5624 = vadd.f32 %v5601, %v304
    %v5625 = vadd.f32 %v5516, %v292
    %v5626 = vadd.f32 %v5518, %v296
    %v5627 = vadd.f32 %v5605, %v300
    %v5628 = vadd.f32 %v5607, %v304
    %v5629 = vadd.f32 %v5522, %v292
    %v5630 = vadd.f32 %v5524, %v296
    %v5631 = vadd.f32 %v5611, %v300
    %v5632 = vadd.f32 %v5613, %v304
    %v5633 = vadd.f32 %v5528, %v292
    %v5634 = vadd.f32 %v5530, %v296
    %v5635 = vadd.f32 %v5617, %v300
    %v5636 = vadd.f32 %v5619, %v304
    %v5637 = vxor.u32 %v5621, 2147483648
    %v5638 = vxor.u32 %v5625, 2147483648
    %v5639 = vxor.u32 %v5629, 2147483648
    %v5640 = vxor.u32 %v5633, 2147483648
    %v5641 = vmul.f32 %v5637, 1.442695
    %v5642 = vpow.pop %v5641
    %v5643 = vmul.f32 %v5638, 1.442695
    %v5644 = vpow.pop %v5643
    %v5645 = vmul.f32 %v5639, 1.442695
    %v5646 = vpow.pop %v5645
    %v5647 = vmul.f32 %v5640, 1.442695
    %v5648 = vpow.pop %v5647
    %v5649 = vadd.f32 %v5642, 1.0
    %v5650 = vadd.f32 %v5644, 1.0
    %v5651 = vadd.f32 %v5646, 1.0
    %v5652 = vadd.f32 %v5648, 1.0
    %v5653 = vrcp.pop %v5649
    %v5654 = vmul.f32 1.0, %v5653
    %v5655 = vrcp.pop %v5650
    %v5656 = vmul.f32 1.0, %v5655
    %v5657 = vrcp.pop %v5651
    %v5658 = vmul.f32 1.0, %v5657
    %v5659 = vrcp.pop %v5652
    %v5660 = vmul.f32 1.0, %v5659
    %v5661 = vxor.u32 %v5622, 2147483648
    %v5662 = vxor.u32 %v5626, 2147483648
    %v5663 = vxor.u32 %v5630, 2147483648
    %v5664 = vxor.u32 %v5634, 2147483648
    %v5665 = vmul.f32 %v5661, 1.442695
    %v5666 = vpow.pop %v5665
    %v5667 = vmul.f32 %v5662, 1.442695
    %v5668 = vpow.pop %v5667
    %v5669 = vmul.f32 %v5663, 1.442695
    %v5670 = vpow.pop %v5669
    %v5671 = vmul.f32 %v5664, 1.442695
    %v5672 = vpow.pop %v5671
    %v5673 = vadd.f32 %v5666, 1.0
    %v5674 = vadd.f32 %v5668, 1.0
    %v5675 = vadd.f32 %v5670, 1.0
    %v5676 = vadd.f32 %v5672, 1.0
    %v5677 = vrcp.pop %v5673
    %v5678 = vmul.f32 1.0, %v5677
    %v5679 = vrcp.pop %v5674
    %v5680 = vmul.f32 1.0, %v5679
    %v5681 = vrcp.pop %v5675
    %v5682 = vmul.f32 1.0, %v5681
    %v5683 = vrcp.pop %v5676
    %v5684 = vmul.f32 1.0, %v5683
    %v5685 = vtanh.pop %v5623
    %v5686 = vtanh.pop %v5627
    %v5687 = vtanh.pop %v5631
    %v5688 = vtanh.pop %v5635
    %v5689 = vxor.u32 %v5624, 2147483648
    %v5690 = vxor.u32 %v5628, 2147483648
    %v5691 = vxor.u32 %v5632, 2147483648
    %v5692 = vxor.u32 %v5636, 2147483648
    %v5693 = vmul.f32 %v5689, 1.442695
    %v5694 = vpow.pop %v5693
    %v5695 = vmul.f32 %v5690, 1.442695
    %v5696 = vpow.pop %v5695
    %v5697 = vmul.f32 %v5691, 1.442695
    %v5698 = vpow.pop %v5697
    %v5699 = vmul.f32 %v5692, 1.442695
    %v5700 = vpow.pop %v5699
    %v5701 = vadd.f32 %v5694, 1.0
    %v5702 = vadd.f32 %v5696, 1.0
    %v5703 = vadd.f32 %v5698, 1.0
    %v5704 = vadd.f32 %v5700, 1.0
    %v5705 = vrcp.pop %v5701
    %v5706 = vmul.f32 1.0, %v5705
    %v5707 = vrcp.pop %v5702
    %v5708 = vmul.f32 1.0, %v5707
    %v5709 = vrcp.pop %v5703
    %v5710 = vmul.f32 1.0, %v5709
    %v5711 = vrcp.pop %v5704
    %v5712 = vmul.f32 1.0, %v5711
    %v5713 = vmul.f32 %v5678, %v4946
    %v5714 = vmul.f32 %v5680, %v4947
    %v5715 = vmul.f32 %v5682, %v4948
    %v5716 = vmul.f32 %v5684, %v4949
    %v5717 = vmul.f32 %v5654, %v5685
    %v5718 = vmul.f32 %v5656, %v5686
    %v5719 = vmul.f32 %v5658, %v5687
    %v5720 = vmul.f32 %v5660, %v5688
    %v5721 = vadd.f32 %v5713, %v5717
    %v5722 = vadd.f32 %v5714, %v5718
    %v5723 = vadd.f32 %v5715, %v5719
    %v5724 = vadd.f32 %v5716, %v5720
    %v5725 = vtanh.pop %v5721
    %v5726 = vtanh.pop %v5722
    %v5727 = vtanh.pop %v5723
    %v5728 = vtanh.pop %v5724
    %v5729 = vmul.f32 %v5706, %v5725
    %v5730 = vmul.f32 %v5708, %v5726
    %v5731 = vmul.f32 %v5710, %v5727
    %v5732 = vmul.f32 %v5712, %v5728
    %5733 = vmatprep.subr.mxu0 %v96
    %5734 = vmatpush1.msra.mxu0 %v95
    %5735 = vmatprep.subr.mxu0 %v100
    %5736 = vmatpush1.msra.mxu0 %v99
    %5737 = vmatprep.subr.mxu0 %v104
    %5738 = vmatpush1.msra.mxu0 %v103
    %5739 = vmatprep.subr.mxu0 %v108
    %5740 = vmatpush1.msra.mxu0 %v107
    %5741 = vmatprep.subr.mxu0 %v112
    %5742 = vmatpush1.msra.mxu0 %v111
    %5743 = vmatprep.subr.mxu0 %v116
    %5744 = vmatpush1.msra.mxu0 %v115
    %5745 = vmatprep.subr.mxu0 %v120
    %5746 = vmatpush1.msra.mxu0 %v119
    %5747 = vmatprep.subr.mxu0 %v124
    %5748 = vmatpush1.msra.mxu0 %v123
    %5749 = vmatprep.subr.mxu0 %v128
    %5750 = vmatpush1.msra.mxu0 %v127
    %5751 = vmatprep.subr.mxu0 %v132
    %5752 = vmatpush1.msra.mxu0 %v131
    %5753 = vmatprep.subr.mxu0 %v136
    %5754 = vmatpush1.msra.mxu0 %v135
    %5755 = vmatprep.subr.mxu0 %v140
    %5756 = vmatpush1.msra.mxu0 %v139
    %5757 = vmatprep.subr.mxu0 %v144
    %5758 = vmatpush1.msra.mxu0 %v143
    %5759 = vmatprep.subr.mxu0 %v148
    %5760 = vmatpush1.msra.mxu0 %v147
    %5761 = vmatprep.subr.mxu0 %v152
    %5762 = vmatpush1.msra.mxu0 %v151
    %5763 = vmatprep.subr.mxu0 %v156
    %5764 = vmatpush1.msra.mxu0 %v155
    %5765 = vmatprep.subr.mxu0 0.0
    %5766 = vmatpush1.msra.mxu0 0.0
    %5767 = vmatprep.subr.mxu0 0.0
    %5768 = vmatpush1.msra.mxu0 0.0
    %5769 = vmatprep.subr.mxu0 0.0
    %5770 = vmatpush1.msra.mxu0 0.0
    %5771 = vmatprep.subr.mxu0 0.0
    %5772 = vmatpush1.msra.mxu0 0.0
    %5773 = vmatprep.subr.mxu0 0.0
    %5774 = vmatpush1.msra.mxu0 0.0
    %5775 = vmatprep.subr.mxu0 0.0
    %5776 = vmatpush1.msra.mxu0 0.0
    %5777 = vmatprep.subr.mxu0 0.0
    %5778 = vmatpush1.msra.mxu0 0.0
    %5779 = vmatprep.subr.mxu0 0.0
    %5780 = vmatpush1.msra.mxu0 0.0
    %5781 = vmatprep.subr.mxu0 0.0
    %5782 = vmatpush1.msra.mxu0 0.0
    %5783 = vmatprep.subr.mxu0 0.0
    %5784 = vmatpush1.msra.mxu0 0.0
    %5785 = vmatprep.subr.mxu0 0.0
    %5786 = vmatpush1.msra.mxu0 0.0
    %5787 = vmatprep.subr.mxu0 0.0
    %5788 = vmatpush1.msra.mxu0 0.0
    %5789 = vmatprep.subr.mxu0 0.0
    %5790 = vmatpush1.msra.mxu0 0.0
    %5791 = vmatprep.subr.mxu0 0.0
    %5792 = vmatpush1.msra.mxu0 0.0
    %5793 = vmatprep.subr.mxu0 0.0
    %5794 = vmatpush1.msra.mxu0 0.0
    %5795 = vmatprep.subr.mxu0 0.0
    %5796 = vmatpush1.msra.mxu0 0.0
    %5797 = vmatprep.mubr.f32.mxu0 0.0
    %5798 = vmatmul.mubr.f32.gmra.mrb[0].mxu0 %v5439
    %v5799 = vpop.f32.mrb[0].mxu0
    %v5800 = vadd.f32 0.0, %v5799
    %v5801 = vpop.f32.mrb[0].mxu0
    %v5802 = vadd.f32 0.0, %v5801
    %5803 = vmatprep.mubr.f32.mxu0 0.0
    %5804 = vmatmul.mubr.f32.gmra.mrb[0].mxu0 %v5440
    %v5805 = vpop.f32.mrb[0].mxu0
    %v5806 = vadd.f32 0.0, %v5805
    %v5807 = vpop.f32.mrb[0].mxu0
    %v5808 = vadd.f32 0.0, %v5807
    %5809 = vmatprep.mubr.f32.mxu0 0.0
    %5810 = vmatmul.mubr.f32.gmra.mrb[0].mxu0 %v5441
    %v5811 = vpop.f32.mrb[0].mxu0
    %v5812 = vadd.f32 0.0, %v5811
    %v5813 = vpop.f32.mrb[0].mxu0
    %v5814 = vadd.f32 0.0, %v5813
    %5815 = vmatprep.mubr.f32.mxu0 0.0
    %5816 = vmatmul.mubr.f32.gmra.mrb[0].mxu0 %v5442
    %v5817 = vpop.f32.mrb[0].mxu0
    %v5818 = vadd.f32 0.0, %v5817
    %v5819 = vpop.f32.mrb[0].mxu0
    %v5820 = vadd.f32 0.0, %v5819
    %5821 = vdwg.mxu0
    %5822 = vmatprep.subr.mxu0 %v98
    %5823 = vmatpush1.msra.mxu0 %v97
    %5824 = vmatprep.subr.mxu0 %v102
    %5825 = vmatpush1.msra.mxu0 %v101
    %5826 = vmatprep.subr.mxu0 %v106
    %5827 = vmatpush1.msra.mxu0 %v105
    %5828 = vmatprep.subr.mxu0 %v110
    %5829 = vmatpush1.msra.mxu0 %v109
    %5830 = vmatprep.subr.mxu0 %v114
    %5831 = vmatpush1.msra.mxu0 %v113
    %5832 = vmatprep.subr.mxu0 %v118
    %5833 = vmatpush1.msra.mxu0 %v117
    %5834 = vmatprep.subr.mxu0 %v122
    %5835 = vmatpush1.msra.mxu0 %v121
    %5836 = vmatprep.subr.mxu0 %v126
    %5837 = vmatpush1.msra.mxu0 %v125
    %5838 = vmatprep.subr.mxu0 %v130
    %5839 = vmatpush1.msra.mxu0 %v129
    %5840 = vmatprep.subr.mxu0 %v134
    %5841 = vmatpush1.msra.mxu0 %v133
    %5842 = vmatprep.subr.mxu0 %v138
    %5843 = vmatpush1.msra.mxu0 %v137
    %5844 = vmatprep.subr.mxu0 %v142
    %5845 = vmatpush1.msra.mxu0 %v141
    %5846 = vmatprep.subr.mxu0 %v146
    %5847 = vmatpush1.msra.mxu0 %v145
    %5848 = vmatprep.subr.mxu0 %v150
    %5849 = vmatpush1.msra.mxu0 %v149
    %5850 = vmatprep.subr.mxu0 %v154
    %5851 = vmatpush1.msra.mxu0 %v153
    %5852 = vmatprep.subr.mxu0 %v158
    %5853 = vmatpush1.msra.mxu0 %v157
    %5854 = vmatprep.subr.mxu0 0.0
    %5855 = vmatpush1.msra.mxu0 0.0
    %5856 = vmatprep.subr.mxu0 0.0
    %5857 = vmatpush1.msra.mxu0 0.0
    %5858 = vmatprep.subr.mxu0 0.0
    %5859 = vmatpush1.msra.mxu0 0.0
    %5860 = vmatprep.subr.mxu0 0.0
    %5861 = vmatpush1.msra.mxu0 0.0
    %5862 = vmatprep.subr.mxu0 0.0
    %5863 = vmatpush1.msra.mxu0 0.0
    %5864 = vmatprep.subr.mxu0 0.0
    %5865 = vmatpush1.msra.mxu0 0.0
    %5866 = vmatprep.subr.mxu0 0.0
    %5867 = vmatpush1.msra.mxu0 0.0
    %5868 = vmatprep.subr.mxu0 0.0
    %5869 = vmatpush1.msra.mxu0 0.0
    %5870 = vmatprep.subr.mxu0 0.0
    %5871 = vmatpush1.msra.mxu0 0.0
    %5872 = vmatprep.subr.mxu0 0.0
    %5873 = vmatpush1.msra.mxu0 0.0
    %5874 = vmatprep.subr.mxu0 0.0
    %5875 = vmatpush1.msra.mxu0 0.0
    %5876 = vmatprep.subr.mxu0 0.0
    %5877 = vmatpush1.msra.mxu0 0.0
    %5878 = vmatprep.subr.mxu0 0.0
    %5879 = vmatpush1.msra.mxu0 0.0
    %5880 = vmatprep.subr.mxu0 0.0
    %5881 = vmatpush1.msra.mxu0 0.0
    %5882 = vmatprep.subr.mxu0 0.0
    %5883 = vmatpush1.msra.mxu0 0.0
    %5884 = vmatprep.subr.mxu0 0.0
    %5885 = vmatpush1.msra.mxu0 0.0
    %5886 = vmatprep.mubr.f32.mxu0 0.0
    %5887 = vmatmul.mubr.f32.gmra.mrb[0].mxu0 %v5439
    %v5888 = vpop.f32.mrb[0].mxu0
    %v5889 = vadd.f32 0.0, %v5888
    %v5890 = vpop.f32.mrb[0].mxu0
    %v5891 = vadd.f32 0.0, %v5890
    %5892 = vmatprep.mubr.f32.mxu0 0.0
    %5893 = vmatmul.mubr.f32.gmra.mrb[0].mxu0 %v5440
    %v5894 = vpop.f32.mrb[0].mxu0
    %v5895 = vadd.f32 0.0, %v5894
    %v5896 = vpop.f32.mrb[0].mxu0
    %v5897 = vadd.f32 0.0, %v5896
    %5898 = vmatprep.mubr.f32.mxu0 0.0
    %5899 = vmatmul.mubr.f32.gmra.mrb[0].mxu0 %v5441
    %v5900 = vpop.f32.mrb[0].mxu0
    %v5901 = vadd.f32 0.0, %v5900
    %v5902 = vpop.f32.mrb[0].mxu0
    %v5903 = vadd.f32 0.0, %v5902
    %5904 = vmatprep.mubr.f32.mxu0 0.0
    %5905 = vmatmul.mubr.f32.gmra.mrb[0].mxu0 %v5442
    %v5906 = vpop.f32.mrb[0].mxu0
    %v5907 = vadd.f32 0.0, %v5906
    %v5908 = vpop.f32.mrb[0].mxu0
    %v5909 = vadd.f32 0.0, %v5908
    %5910 = vdwg.mxu0
    %5911 = vmatprep.subr.mxu0 %v224
    %5912 = vmatpush1.msra.mxu0 %v223
    %5913 = vmatprep.subr.mxu0 %v228
    %5914 = vmatpush1.msra.mxu0 %v227
    %5915 = vmatprep.subr.mxu0 %v232
    %5916 = vmatpush1.msra.mxu0 %v231
    %5917 = vmatprep.subr.mxu0 %v236
    %5918 = vmatpush1.msra.mxu0 %v235
    %5919 = vmatprep.subr.mxu0 %v240
    %5920 = vmatpush1.msra.mxu0 %v239
    %5921 = vmatprep.subr.mxu0 %v244
    %5922 = vmatpush1.msra.mxu0 %v243
    %5923 = vmatprep.subr.mxu0 %v248
    %5924 = vmatpush1.msra.mxu0 %v247
    %5925 = vmatprep.subr.mxu0 %v252
    %5926 = vmatpush1.msra.mxu0 %v251
    %5927 = vmatprep.subr.mxu0 %v256
    %5928 = vmatpush1.msra.mxu0 %v255
    %5929 = vmatprep.subr.mxu0 %v260
    %5930 = vmatpush1.msra.mxu0 %v259
    %5931 = vmatprep.subr.mxu0 %v264
    %5932 = vmatpush1.msra.mxu0 %v263
    %5933 = vmatprep.subr.mxu0 %v268
    %5934 = vmatpush1.msra.mxu0 %v267
    %5935 = vmatprep.subr.mxu0 %v272
    %5936 = vmatpush1.msra.mxu0 %v271
    %5937 = vmatprep.subr.mxu0 %v276
    %5938 = vmatpush1.msra.mxu0 %v275
    %5939 = vmatprep.subr.mxu0 %v280
    %5940 = vmatpush1.msra.mxu0 %v279
    %5941 = vmatprep.subr.mxu0 %v284
    %5942 = vmatpush1.msra.mxu0 %v283
    %5943 = vmatprep.subr.mxu0 0.0
    %5944 = vmatpush1.msra.mxu0 0.0
    %5945 = vmatprep.subr.mxu0 0.0
    %5946 = vmatpush1.msra.mxu0 0.0
    %5947 = vmatprep.subr.mxu0 0.0
    %5948 = vmatpush1.msra.mxu0 0.0
    %5949 = vmatprep.subr.mxu0 0.0
    %5950 = vmatpush1.msra.mxu0 0.0
    %5951 = vmatprep.subr.mxu0 0.0
    %5952 = vmatpush1.msra.mxu0 0.0
    %5953 = vmatprep.subr.mxu0 0.0
    %5954 = vmatpush1.msra.mxu0 0.0
    %5955 = vmatprep.subr.mxu0 0.0
    %5956 = vmatpush1.msra.mxu0 0.0
    %5957 = vmatprep.subr.mxu0 0.0
    %5958 = vmatpush1.msra.mxu0 0.0
    %5959 = vmatprep.subr.mxu0 0.0
    %5960 = vmatpush1.msra.mxu0 0.0
    %5961 = vmatprep.subr.mxu0 0.0
    %5962 = vmatpush1.msra.mxu0 0.0
    %5963 = vmatprep.subr.mxu0 0.0
    %5964 = vmatpush1.msra.mxu0 0.0
    %5965 = vmatprep.subr.mxu0 0.0
    %5966 = vmatpush1.msra.mxu0 0.0
    %5967 = vmatprep.subr.mxu0 0.0
    %5968 = vmatpush1.msra.mxu0 0.0
    %5969 = vmatprep.subr.mxu0 0.0
    %5970 = vmatpush1.msra.mxu0 0.0
    %5971 = vmatprep.subr.mxu0 0.0
    %5972 = vmatpush1.msra.mxu0 0.0
    %5973 = vmatprep.subr.mxu0 0.0
    %5974 = vmatpush1.msra.mxu0 0.0
    %5975 = vmatprep.mubr.f32.mxu0 0.0
    %5976 = vmatmul.mubr.f32.gmra.mrb[0].mxu0 %v5729
    %v5977 = vpop.f32.mrb[0].mxu0
    %v5978 = vadd.f32 0.0, %v5977
    %v5979 = vpop.f32.mrb[0].mxu0
    %v5980 = vadd.f32 0.0, %v5979
    %5981 = vmatprep.mubr.f32.mxu0 0.0
    %5982 = vmatmul.mubr.f32.gmra.mrb[0].mxu0 %v5730
    %v5983 = vpop.f32.mrb[0].mxu0
    %v5984 = vadd.f32 0.0, %v5983
    %v5985 = vpop.f32.mrb[0].mxu0
    %v5986 = vadd.f32 0.0, %v5985
    %5987 = vmatprep.mubr.f32.mxu0 0.0
    %5988 = vmatmul.mubr.f32.gmra.mrb[0].mxu0 %v5731
    %v5989 = vpop.f32.mrb[0].mxu0
    %v5990 = vadd.f32 0.0, %v5989
    %v5991 = vpop.f32.mrb[0].mxu0
    %v5992 = vadd.f32 0.0, %v5991
    %5993 = vmatprep.mubr.f32.mxu0 0.0
    %5994 = vmatmul.mubr.f32.gmra.mrb[0].mxu0 %v5732
    %v5995 = vpop.f32.mrb[0].mxu0
    %v5996 = vadd.f32 0.0, %v5995
    %v5997 = vpop.f32.mrb[0].mxu0
    %v5998 = vadd.f32 0.0, %v5997
    %5999 = vdwg.mxu0
    %6000 = vmatprep.subr.mxu0 %v226
    %6001 = vmatpush1.msra.mxu0 %v225
    %6002 = vmatprep.subr.mxu0 %v230
    %6003 = vmatpush1.msra.mxu0 %v229
    %6004 = vmatprep.subr.mxu0 %v234
    %6005 = vmatpush1.msra.mxu0 %v233
    %6006 = vmatprep.subr.mxu0 %v238
    %6007 = vmatpush1.msra.mxu0 %v237
    %6008 = vmatprep.subr.mxu0 %v242
    %6009 = vmatpush1.msra.mxu0 %v241
    %6010 = vmatprep.subr.mxu0 %v246
    %6011 = vmatpush1.msra.mxu0 %v245
    %6012 = vmatprep.subr.mxu0 %v250
    %6013 = vmatpush1.msra.mxu0 %v249
    %6014 = vmatprep.subr.mxu0 %v254
    %6015 = vmatpush1.msra.mxu0 %v253
    %6016 = vmatprep.subr.mxu0 %v258
    %6017 = vmatpush1.msra.mxu0 %v257
    %6018 = vmatprep.subr.mxu0 %v262
    %6019 = vmatpush1.msra.mxu0 %v261
    %6020 = vmatprep.subr.mxu0 %v266
    %6021 = vmatpush1.msra.mxu0 %v265
    %6022 = vmatprep.subr.mxu0 %v270
    %6023 = vmatpush1.msra.mxu0 %v269
    %6024 = vmatprep.subr.mxu0 %v274
    %6025 = vmatpush1.msra.mxu0 %v273
    %6026 = vmatprep.subr.mxu0 %v278
    %6027 = vmatpush1.msra.mxu0 %v277
    %6028 = vmatprep.subr.mxu0 %v282
    %6029 = vmatpush1.msra.mxu0 %v281
    %6030 = vmatprep.subr.mxu0 %v286
    %6031 = vmatpush1.msra.mxu0 %v285
    %6032 = vmatprep.subr.mxu0 0.0
    %6033 = vmatpush1.msra.mxu0 0.0
    %6034 = vmatprep.subr.mxu0 0.0
    %6035 = vmatpush1.msra.mxu0 0.0
    %6036 = vmatprep.subr.mxu0 0.0
    %6037 = vmatpush1.msra.mxu0 0.0
    %6038 = vmatprep.subr.mxu0 0.0
    %6039 = vmatpush1.msra.mxu0 0.0
    %6040 = vmatprep.subr.mxu0 0.0
    %6041 = vmatpush1.msra.mxu0 0.0
    %6042 = vmatprep.subr.mxu0 0.0
    %6043 = vmatpush1.msra.mxu0 0.0
    %6044 = vmatprep.subr.mxu0 0.0
    %6045 = vmatpush1.msra.mxu0 0.0
    %6046 = vmatprep.subr.mxu0 0.0
    %6047 = vmatpush1.msra.mxu0 0.0
    %6048 = vmatprep.subr.mxu0 0.0
    %6049 = vmatpush1.msra.mxu0 0.0
    %6050 = vmatprep.subr.mxu0 0.0
    %6051 = vmatpush1.msra.mxu0 0.0
    %6052 = vmatprep.subr.mxu0 0.0
    %6053 = vmatpush1.msra.mxu0 0.0
    %6054 = vmatprep.subr.mxu0 0.0
    %6055 = vmatpush1.msra.mxu0 0.0
    %6056 = vmatprep.subr.mxu0 0.0
    %6057 = vmatpush1.msra.mxu0 0.0
    %6058 = vmatprep.subr.mxu0 0.0
    %6059 = vmatpush1.msra.mxu0 0.0
    %6060 = vmatprep.subr.mxu0 0.0
    %6061 = vmatpush1.msra.mxu0 0.0
    %6062 = vmatprep.subr.mxu0 0.0
    %6063 = vmatpush1.msra.mxu0 0.0
    %6064 = vmatprep.mubr.f32.mxu0 0.0
    %6065 = vmatmul.mubr.f32.gmra.mrb[0].mxu0 %v5729
    %v6066 = vpop.f32.mrb[0].mxu0
    %v6067 = vadd.f32 0.0, %v6066
    %v6068 = vpop.f32.mrb[0].mxu0
    %v6069 = vadd.f32 0.0, %v6068
    %6070 = vmatprep.mubr.f32.mxu0 0.0
    %6071 = vmatmul.mubr.f32.gmra.mrb[0].mxu0 %v5730
    %v6072 = vpop.f32.mrb[0].mxu0
    %v6073 = vadd.f32 0.0, %v6072
    %v6074 = vpop.f32.mrb[0].mxu0
    %v6075 = vadd.f32 0.0, %v6074
    %6076 = vmatprep.mubr.f32.mxu0 0.0
    %6077 = vmatmul.mubr.f32.gmra.mrb[0].mxu0 %v5731
    %v6078 = vpop.f32.mrb[0].mxu0
    %v6079 = vadd.f32 0.0, %v6078
    %v6080 = vpop.f32.mrb[0].mxu0
    %v6081 = vadd.f32 0.0, %v6080
    %6082 = vmatprep.mubr.f32.mxu0 0.0
    %6083 = vmatmul.mubr.f32.gmra.mrb[0].mxu0 %v5732
    %v6084 = vpop.f32.mrb[0].mxu0
    %v6085 = vadd.f32 0.0, %v6084
    %v6086 = vpop.f32.mrb[0].mxu0
    %v6087 = vadd.f32 0.0, %v6086
    %6088 = vdwg.mxu0
    %s6089 = scalar_lea.vmem [#allocation2], 896
    %v6090 = vld [vmem:[%s6089] sm:$0xff]
    %v6091 = vld [vmem:[%s6089 + $0x8] sm:$0xff]
    %v6092 = vld [vmem:[%s6089 + $0x10] sm:$0xff]
    %v6093 = vld [vmem:[%s6089 + $0x18] sm:$0xff]
    %v6094 = vld [vmem:[%s6089 + $0x20] sm:$0xff]
    %v6095 = vld [vmem:[%s6089 + $0x28] sm:$0xff]
    %v6096 = vld [vmem:[%s6089 + $0x30] sm:$0xff]
    %v6097 = vld [vmem:[%s6089 + $0x38] sm:$0xff]
    %v6098 = vld [vmem:[%s6089 + $0x40] sm:$0xff]
    %v6099 = vld [vmem:[%s6089 + $0x48] sm:$0xff]
    %v6100 = vld [vmem:[%s6089 + $0x50] sm:$0xff]
    %v6101 = vld [vmem:[%s6089 + $0x58] sm:$0xff]
    %v6102 = vld [vmem:[%s6089 + $0x60] sm:$0xff]
    %v6103 = vld [vmem:[%s6089 + $0x68] sm:$0xff]
    %v6104 = vld [vmem:[%s6089 + $0x70] sm:$0xff]
    %v6105 = vld [vmem:[%s6089 + $0x78] sm:$0xff]
    %v6106 = vadd.f32 %v6090, %v5800
    %v6107 = vadd.f32 %v6091, %v5802
    %v6108 = vadd.f32 %v6092, %v5889
    %v6109 = vadd.f32 %v6093, %v5891
    %v6110 = vadd.f32 %v6094, %v5806
    %v6111 = vadd.f32 %v6095, %v5808
    %v6112 = vadd.f32 %v6096, %v5895
    %v6113 = vadd.f32 %v6097, %v5897
    %v6114 = vadd.f32 %v6098, %v5812
    %v6115 = vadd.f32 %v6099, %v5814
    %v6116 = vadd.f32 %v6100, %v5901
    %v6117 = vadd.f32 %v6101, %v5903
    %v6118 = vadd.f32 %v6102, %v5818
    %v6119 = vadd.f32 %v6103, %v5820
    %v6120 = vadd.f32 %v6104, %v5907
    %v6121 = vadd.f32 %v6105, %v5909
    %v6122 = vxor.u32 %v6106, 2147483648
    %v6123 = vxor.u32 %v6110, 2147483648
    %v6124 = vxor.u32 %v6114, 2147483648
    %v6125 = vxor.u32 %v6118, 2147483648
    %v6126 = vmul.f32 %v6122, 1.442695
    %v6127 = vpow.pop %v6126
    %v6128 = vmul.f32 %v6123, 1.442695
    %v6129 = vpow.pop %v6128
    %v6130 = vmul.f32 %v6124, 1.442695
    %v6131 = vpow.pop %v6130
    %v6132 = vmul.f32 %v6125, 1.442695
    %v6133 = vpow.pop %v6132
    %v6134 = vadd.f32 %v6127, 1.0
    %v6135 = vadd.f32 %v6129, 1.0
    %v6136 = vadd.f32 %v6131, 1.0
    %v6137 = vadd.f32 %v6133, 1.0
    %v6138 = vrcp.pop %v6134
    %v6139 = vmul.f32 1.0, %v6138
    %v6140 = vrcp.pop %v6135
    %v6141 = vmul.f32 1.0, %v6140
    %v6142 = vrcp.pop %v6136
    %v6143 = vmul.f32 1.0, %v6142
    %v6144 = vrcp.pop %v6137
    %v6145 = vmul.f32 1.0, %v6144
    %v6146 = vxor.u32 %v6107, 2147483648
    %v6147 = vxor.u32 %v6111, 2147483648
    %v6148 = vxor.u32 %v6115, 2147483648
    %v6149 = vxor.u32 %v6119, 2147483648
    %v6150 = vmul.f32 %v6146, 1.442695
    %v6151 = vpow.pop %v6150
    %v6152 = vmul.f32 %v6147, 1.442695
    %v6153 = vpow.pop %v6152
    %v6154 = vmul.f32 %v6148, 1.442695
    %v6155 = vpow.pop %v6154
    %v6156 = vmul.f32 %v6149, 1.442695
    %v6157 = vpow.pop %v6156
    %v6158 = vadd.f32 %v6151, 1.0
    %v6159 = vadd.f32 %v6153, 1.0
    %v6160 = vadd.f32 %v6155, 1.0
    %v6161 = vadd.f32 %v6157, 1.0
    %v6162 = vrcp.pop %v6158
    %v6163 = vmul.f32 1.0, %v6162
    %v6164 = vrcp.pop %v6159
    %v6165 = vmul.f32 1.0, %v6164
    %v6166 = vrcp.pop %v6160
    %v6167 = vmul.f32 1.0, %v6166
    %v6168 = vrcp.pop %v6161
    %v6169 = vmul.f32 1.0, %v6168
    %v6170 = vtanh.pop %v6108
    %v6171 = vtanh.pop %v6112
    %v6172 = vtanh.pop %v6116
    %v6173 = vtanh.pop %v6120
    %v6174 = vxor.u32 %v6109, 2147483648
    %v6175 = vxor.u32 %v6113, 2147483648
    %v6176 = vxor.u32 %v6117, 2147483648
    %v6177 = vxor.u32 %v6121, 2147483648
    %v6178 = vmul.f32 %v6174, 1.442695
    %v6179 = vpow.pop %v6178
    %v6180 = vmul.f32 %v6175, 1.442695
    %v6181 = vpow.pop %v6180
    %v6182 = vmul.f32 %v6176, 1.442695
    %v6183 = vpow.pop %v6182
    %v6184 = vmul.f32 %v6177, 1.442695
    %v6185 = vpow.pop %v6184
    %v6186 = vadd.f32 %v6179, 1.0
    %v6187 = vadd.f32 %v6181, 1.0
    %v6188 = vadd.f32 %v6183, 1.0
    %v6189 = vadd.f32 %v6185, 1.0
    %v6190 = vrcp.pop %v6186
    %v6191 = vmul.f32 1.0, %v6190
    %v6192 = vrcp.pop %v6187
    %v6193 = vmul.f32 1.0, %v6192
    %v6194 = vrcp.pop %v6188
    %v6195 = vmul.f32 1.0, %v6194
    %v6196 = vrcp.pop %v6189
    %v6197 = vmul.f32 1.0, %v6196
    %v6198 = vmul.f32 %v6163, %v5431
    %v6199 = vmul.f32 %v6165, %v5432
    %v6200 = vmul.f32 %v6167, %v5433
    %v6201 = vmul.f32 %v6169, %v5434
    %v6202 = vmul.f32 %v6139, %v6170
    %v6203 = vmul.f32 %v6141, %v6171
    %v6204 = vmul.f32 %v6143, %v6172
    %v6205 = vmul.f32 %v6145, %v6173
    %v6206 = vadd.f32 %v6198, %v6202
    %v6207 = vadd.f32 %v6199, %v6203
    %v6208 = vadd.f32 %v6200, %v6204
    %v6209 = vadd.f32 %v6201, %v6205
    %v6210 = vtanh.pop %v6206
    %v6211 = vtanh.pop %v6207
    %v6212 = vtanh.pop %v6208
    %v6213 = vtanh.pop %v6209
    %v6214 = vmul.f32 %v6191, %v6210
    %v6215 = vmul.f32 %v6193, %v6211
    %v6216 = vmul.f32 %v6195, %v6212
    %v6217 = vmul.f32 %v6197, %v6213
    %6218 = vmatprep.subr.mxu0 %v160
    %6219 = vmatpush1.msra.mxu0 %v159
    %6220 = vmatprep.subr.mxu0 %v164
    %6221 = vmatpush1.msra.mxu0 %v163
    %6222 = vmatprep.subr.mxu0 %v168
    %6223 = vmatpush1.msra.mxu0 %v167
    %6224 = vmatprep.subr.mxu0 %v172
    %6225 = vmatpush1.msra.mxu0 %v171
    %6226 = vmatprep.subr.mxu0 %v176
    %6227 = vmatpush1.msra.mxu0 %v175
    %6228 = vmatprep.subr.mxu0 %v180
    %6229 = vmatpush1.msra.mxu0 %v179
    %6230 = vmatprep.subr.mxu0 %v184
    %6231 = vmatpush1.msra.mxu0 %v183
    %6232 = vmatprep.subr.mxu0 %v188
    %6233 = vmatpush1.msra.mxu0 %v187
    %6234 = vmatprep.subr.mxu0 %v192
    %6235 = vmatpush1.msra.mxu0 %v191
    %6236 = vmatprep.subr.mxu0 %v196
    %6237 = vmatpush1.msra.mxu0 %v195
    %6238 = vmatprep.subr.mxu0 %v200
    %6239 = vmatpush1.msra.mxu0 %v199
    %6240 = vmatprep.subr.mxu0 %v204
    %6241 = vmatpush1.msra.mxu0 %v203
    %6242 = vmatprep.subr.mxu0 %v208
    %6243 = vmatpush1.msra.mxu0 %v207
    %6244 = vmatprep.subr.mxu0 %v212
    %6245 = vmatpush1.msra.mxu0 %v211
    %6246 = vmatprep.subr.mxu0 %v216
    %6247 = vmatpush1.msra.mxu0 %v215
    %6248 = vmatprep.subr.mxu0 %v220
    %6249 = vmatpush1.msra.mxu0 %v219
    %6250 = vmatprep.subr.mxu0 0.0
    %6251 = vmatpush1.msra.mxu0 0.0
    %6252 = vmatprep.subr.mxu0 0.0
    %6253 = vmatpush1.msra.mxu0 0.0
    %6254 = vmatprep.subr.mxu0 0.0
    %6255 = vmatpush1.msra.mxu0 0.0
    %6256 = vmatprep.subr.mxu0 0.0
    %6257 = vmatpush1.msra.mxu0 0.0
    %6258 = vmatprep.subr.mxu0 0.0
    %6259 = vmatpush1.msra.mxu0 0.0
    %6260 = vmatprep.subr.mxu0 0.0
    %6261 = vmatpush1.msra.mxu0 0.0
    %6262 = vmatprep.subr.mxu0 0.0
    %6263 = vmatpush1.msra.mxu0 0.0
    %6264 = vmatprep.subr.mxu0 0.0
    %6265 = vmatpush1.msra.mxu0 0.0
    %6266 = vmatprep.subr.mxu0 0.0
    %6267 = vmatpush1.msra.mxu0 0.0
    %6268 = vmatprep.subr.mxu0 0.0
    %6269 = vmatpush1.msra.mxu0 0.0
    %6270 = vmatprep.subr.mxu0 0.0
    %6271 = vmatpush1.msra.mxu0 0.0
    %6272 = vmatprep.subr.mxu0 0.0
    %6273 = vmatpush1.msra.mxu0 0.0
    %6274 = vmatprep.subr.mxu0 0.0
    %6275 = vmatpush1.msra.mxu0 0.0
    %6276 = vmatprep.subr.mxu0 0.0
    %6277 = vmatpush1.msra.mxu0 0.0
    %6278 = vmatprep.subr.mxu0 0.0
    %6279 = vmatpush1.msra.mxu0 0.0
    %6280 = vmatprep.subr.mxu0 0.0
    %6281 = vmatpush1.msra.mxu0 0.0
    %6282 = vmatprep.mubr.f32.mxu0 0.0
    %6283 = vmatmul.mubr.f32.gmra.mrb[0].mxu0 %v6214
    %v6284 = vpop.f32.mrb[0].mxu0
    %v6285 = vadd.f32 %v5978, %v6284
    %v6286 = vpop.f32.mrb[0].mxu0
    %v6287 = vadd.f32 %v5980, %v6286
    %6288 = vmatprep.mubr.f32.mxu0 0.0
    %6289 = vmatmul.mubr.f32.gmra.mrb[0].mxu0 %v6215
    %v6290 = vpop.f32.mrb[0].mxu0
    %v6291 = vadd.f32 %v5984, %v6290
    %v6292 = vpop.f32.mrb[0].mxu0
    %v6293 = vadd.f32 %v5986, %v6292
    %6294 = vmatprep.mubr.f32.mxu0 0.0
    %6295 = vmatmul.mubr.f32.gmra.mrb[0].mxu0 %v6216
    %v6296 = vpop.f32.mrb[0].mxu0
    %v6297 = vadd.f32 %v5990, %v6296
    %v6298 = vpop.f32.mrb[0].mxu0
    %v6299 = vadd.f32 %v5992, %v6298
    %6300 = vmatprep.mubr.f32.mxu0 0.0
    %6301 = vmatmul.mubr.f32.gmra.mrb[0].mxu0 %v6217
    %v6302 = vpop.f32.mrb[0].mxu0
    %v6303 = vadd.f32 %v5996, %v6302
    %v6304 = vpop.f32.mrb[0].mxu0
    %v6305 = vadd.f32 %v5998, %v6304
    %6306 = vdwg.mxu0
    %6307 = vmatprep.subr.mxu0 %v162
    %6308 = vmatpush1.msra.mxu0 %v161
    %6309 = vmatprep.subr.mxu0 %v166
    %6310 = vmatpush1.msra.mxu0 %v165
    %6311 = vmatprep.subr.mxu0 %v170
    %6312 = vmatpush1.msra.mxu0 %v169
    %6313 = vmatprep.subr.mxu0 %v174
    %6314 = vmatpush1.msra.mxu0 %v173
    %6315 = vmatprep.subr.mxu0 %v178
    %6316 = vmatpush1.msra.mxu0 %v177
    %6317 = vmatprep.subr.mxu0 %v182
    %6318 = vmatpush1.msra.mxu0 %v181
    %6319 = vmatprep.subr.mxu0 %v186
    %6320 = vmatpush1.msra.mxu0 %v185
    %6321 = vmatprep.subr.mxu0 %v190
    %6322 = vmatpush1.msra.mxu0 %v189
    %6323 = vmatprep.subr.mxu0 %v194
    %6324 = vmatpush1.msra.mxu0 %v193
    %6325 = vmatprep.subr.mxu0 %v198
    %6326 = vmatpush1.msra.mxu0 %v197
    %6327 = vmatprep.subr.mxu0 %v202
    %6328 = vmatpush1.msra.mxu0 %v201
    %6329 = vmatprep.subr.mxu0 %v206
    %6330 = vmatpush1.msra.mxu0 %v205
    %6331 = vmatprep.subr.mxu0 %v210
    %6332 = vmatpush1.msra.mxu0 %v209
    %6333 = vmatprep.subr.mxu0 %v214
    %6334 = vmatpush1.msra.mxu0 %v213
    %6335 = vmatprep.subr.mxu0 %v218
    %6336 = vmatpush1.msra.mxu0 %v217
    %6337 = vmatprep.subr.mxu0 %v222
    %6338 = vmatpush1.msra.mxu0 %v221
    %6339 = vmatprep.subr.mxu0 0.0
    %6340 = vmatpush1.msra.mxu0 0.0
    %6341 = vmatprep.subr.mxu0 0.0
    %6342 = vmatpush1.msra.mxu0 0.0
    %6343 = vmatprep.subr.mxu0 0.0
    %6344 = vmatpush1.msra.mxu0 0.0
    %6345 = vmatprep.subr.mxu0 0.0
    %6346 = vmatpush1.msra.mxu0 0.0
    %6347 = vmatprep.subr.mxu0 0.0
    %6348 = vmatpush1.msra.mxu0 0.0
    %6349 = vmatprep.subr.mxu0 0.0
    %6350 = vmatpush1.msra.mxu0 0.0
    %6351 = vmatprep.subr.mxu0 0.0
    %6352 = vmatpush1.msra.mxu0 0.0
    %6353 = vmatprep.subr.mxu0 0.0
    %6354 = vmatpush1.msra.mxu0 0.0
    %6355 = vmatprep.subr.mxu0 0.0
    %6356 = vmatpush1.msra.mxu0 0.0
    %6357 = vmatprep.subr.mxu0 0.0
    %6358 = vmatpush1.msra.mxu0 0.0
    %6359 = vmatprep.subr.mxu0 0.0
    %6360 = vmatpush1.msra.mxu0 0.0
    %6361 = vmatprep.subr.mxu0 0.0
    %6362 = vmatpush1.msra.mxu0 0.0
    %6363 = vmatprep.subr.mxu0 0.0
    %6364 = vmatpush1.msra.mxu0 0.0
    %6365 = vmatprep.subr.mxu0 0.0
    %6366 = vmatpush1.msra.mxu0 0.0
    %6367 = vmatprep.subr.mxu0 0.0
    %6368 = vmatpush1.msra.mxu0 0.0
    %6369 = vmatprep.subr.mxu0 0.0
    %6370 = vmatpush1.msra.mxu0 0.0
    %6371 = vmatprep.mubr.f32.mxu0 0.0
    %6372 = vmatmul.mubr.f32.gmra.mrb[0].mxu0 %v6214
    %v6373 = vpop.f32.mrb[0].mxu0
    %v6374 = vadd.f32 %v6067, %v6373
    %v6375 = vpop.f32.mrb[0].mxu0
    %v6376 = vadd.f32 %v6069, %v6375
    %6377 = vmatprep.mubr.f32.mxu0 0.0
    %6378 = vmatmul.mubr.f32.gmra.mrb[0].mxu0 %v6215
    %v6379 = vpop.f32.mrb[0].mxu0
    %v6380 = vadd.f32 %v6073, %v6379
    %v6381 = vpop.f32.mrb[0].mxu0
    %v6382 = vadd.f32 %v6075, %v6381
    %6383 = vmatprep.mubr.f32.mxu0 0.0
    %6384 = vmatmul.mubr.f32.gmra.mrb[0].mxu0 %v6216
    %v6385 = vpop.f32.mrb[0].mxu0
    %v6386 = vadd.f32 %v6079, %v6385
    %v6387 = vpop.f32.mrb[0].mxu0
    %v6388 = vadd.f32 %v6081, %v6387
    %6389 = vmatprep.mubr.f32.mxu0 0.0
    %6390 = vmatmul.mubr.f32.gmra.mrb[0].mxu0 %v6217
    %v6391 = vpop.f32.mrb[0].mxu0
    %v6392 = vadd.f32 %v6085, %v6391
    %v6393 = vpop.f32.mrb[0].mxu0
    %v6394 = vadd.f32 %v6087, %v6393
    %6395 = vdwg.mxu0
    %v6396 = vadd.f32 %v6285, %v292
    %v6397 = vadd.f32 %v6287, %v296
    %v6398 = vadd.f32 %v6374, %v300
    %v6399 = vadd.f32 %v6376, %v304
    %v6400 = vadd.f32 %v6291, %v292
    %v6401 = vadd.f32 %v6293, %v296
    %v6402 = vadd.f32 %v6380, %v300
    %v6403 = vadd.f32 %v6382, %v304
    %v6404 = vadd.f32 %v6297, %v292
    %v6405 = vadd.f32 %v6299, %v296
    %v6406 = vadd.f32 %v6386, %v300
    %v6407 = vadd.f32 %v6388, %v304
    %v6408 = vadd.f32 %v6303, %v292
    %v6409 = vadd.f32 %v6305, %v296
    %v6410 = vadd.f32 %v6392, %v300
    %v6411 = vadd.f32 %v6394, %v304
    %v6412 = vxor.u32 %v6396, 2147483648
    %v6413 = vxor.u32 %v6400, 2147483648
    %v6414 = vxor.u32 %v6404, 2147483648
    %v6415 = vxor.u32 %v6408, 2147483648
    %v6416 = vmul.f32 %v6412, 1.442695
    %v6417 = vpow.pop %v6416
    %v6418 = vmul.f32 %v6413, 1.442695
    %v6419 = vpow.pop %v6418
    %v6420 = vmul.f32 %v6414, 1.442695
    %v6421 = vpow.pop %v6420
    %v6422 = vmul.f32 %v6415, 1.442695
    %v6423 = vpow.pop %v6422
    %v6424 = vadd.f32 %v6417, 1.0
    %v6425 = vadd.f32 %v6419, 1.0
    %v6426 = vadd.f32 %v6421, 1.0
    %v6427 = vadd.f32 %v6423, 1.0
    %v6428 = vrcp.pop %v6424
    %v6429 = vmul.f32 1.0, %v6428
    %v6430 = vrcp.pop %v6425
    %v6431 = vmul.f32 1.0, %v6430
    %v6432 = vrcp.pop %v6426
    %v6433 = vmul.f32 1.0, %v6432
    %v6434 = vrcp.pop %v6427
    %v6435 = vmul.f32 1.0, %v6434
    %v6436 = vxor.u32 %v6397, 2147483648
    %v6437 = vxor.u32 %v6401, 2147483648
    %v6438 = vxor.u32 %v6405, 2147483648
    %v6439 = vxor.u32 %v6409, 2147483648
    %v6440 = vmul.f32 %v6436, 1.442695
    %v6441 = vpow.pop %v6440
    %v6442 = vmul.f32 %v6437, 1.442695
    %v6443 = vpow.pop %v6442
    %v6444 = vmul.f32 %v6438, 1.442695
    %v6445 = vpow.pop %v6444
    %v6446 = vmul.f32 %v6439, 1.442695
    %v6447 = vpow.pop %v6446
    %v6448 = vadd.f32 %v6441, 1.0
    %v6449 = vadd.f32 %v6443, 1.0
    %v6450 = vadd.f32 %v6445, 1.0
    %v6451 = vadd.f32 %v6447, 1.0
    %v6452 = vrcp.pop %v6448
    %v6453 = vmul.f32 1.0, %v6452
    %v6454 = vrcp.pop %v6449
    %v6455 = vmul.f32 1.0, %v6454
    %v6456 = vrcp.pop %v6450
    %v6457 = vmul.f32 1.0, %v6456
    %v6458 = vrcp.pop %v6451
    %v6459 = vmul.f32 1.0, %v6458
    %v6460 = vtanh.pop %v6398
    %v6461 = vtanh.pop %v6402
    %v6462 = vtanh.pop %v6406
    %v6463 = vtanh.pop %v6410
    %v6464 = vxor.u32 %v6399, 2147483648
    %v6465 = vxor.u32 %v6403, 2147483648
    %v6466 = vxor.u32 %v6407, 2147483648
    %v6467 = vxor.u32 %v6411, 2147483648
    %v6468 = vmul.f32 %v6464, 1.442695
    %v6469 = vpow.pop %v6468
    %v6470 = vmul.f32 %v6465, 1.442695
    %v6471 = vpow.pop %v6470
    %v6472 = vmul.f32 %v6466, 1.442695
    %v6473 = vpow.pop %v6472
    %v6474 = vmul.f32 %v6467, 1.442695
    %v6475 = vpow.pop %v6474
    %v6476 = vadd.f32 %v6469, 1.0
    %v6477 = vadd.f32 %v6471, 1.0
    %v6478 = vadd.f32 %v6473, 1.0
    %v6479 = vadd.f32 %v6475, 1.0
    %v6480 = vrcp.pop %v6476
    %v6481 = vmul.f32 1.0, %v6480
    %v6482 = vrcp.pop %v6477
    %v6483 = vmul.f32 1.0, %v6482
    %v6484 = vrcp.pop %v6478
    %v6485 = vmul.f32 1.0, %v6484
    %v6486 = vrcp.pop %v6479
    %v6487 = vmul.f32 1.0, %v6486
    %v6488 = vmul.f32 %v6453, %v5721
    %v6489 = vmul.f32 %v6455, %v5722
    %v6490 = vmul.f32 %v6457, %v5723
    %v6491 = vmul.f32 %v6459, %v5724
    %v6492 = vmul.f32 %v6429, %v6460
    %v6493 = vmul.f32 %v6431, %v6461
    %v6494 = vmul.f32 %v6433, %v6462
    %v6495 = vmul.f32 %v6435, %v6463
    %v6496 = vadd.f32 %v6488, %v6492
    %v6497 = vadd.f32 %v6489, %v6493
    %v6498 = vadd.f32 %v6490, %v6494
    %v6499 = vadd.f32 %v6491, %v6495
    %v6500 = vtanh.pop %v6496
    %v6501 = vtanh.pop %v6497
    %v6502 = vtanh.pop %v6498
    %v6503 = vtanh.pop %v6499
    %v6504 = vmul.f32 %v6481, %v6500
    %v6505 = vmul.f32 %v6483, %v6501
    %v6506 = vmul.f32 %v6485, %v6502
    %v6507 = vmul.f32 %v6487, %v6503
    %v6508 = vld [vmem:[#allocation10] sm:$0xff]
    %v6509 = vld [vmem:[#allocation10 + $0x8] sm:$0xff]
    %v6510 = vld [vmem:[#allocation10 + $0x10] sm:$0xff]
    %v6511 = vld [vmem:[#allocation10 + $0x18] sm:$0xff]
    %v6512 = vld [vmem:[#allocation10 + $0x20] sm:$0xff]
    %v6513 = vld [vmem:[#allocation10 + $0x28] sm:$0xff]
    %v6514 = vld [vmem:[#allocation10 + $0x30] sm:$0xff]
    %v6515 = vld [vmem:[#allocation10 + $0x38] sm:$0xff]
    %v6516 = vld [vmem:[#allocation10 + $0x40] sm:$0xff]
    %v6517 = vld [vmem:[#allocation10 + $0x48] sm:$0xff]
    %v6518 = vld [vmem:[#allocation10 + $0x50] sm:$0xff]
    %v6519 = vld [vmem:[#allocation10 + $0x58] sm:$0xff]
    %v6520 = vld [vmem:[#allocation10 + $0x60] sm:$0xff]
    %v6521 = vld [vmem:[#allocation10 + $0x68] sm:$0xff]
    %v6522 = vld [vmem:[#allocation10 + $0x70] sm:$0xff]
    %v6523 = vld [vmem:[#allocation10 + $0x78] sm:$0xff]
    %v6524 = vld [vmem:[%s6] sm:$0x1]
    %v6526 = vlaneseq
    %v6527 = vshrl.u32 %v6526, 7
    %v6528 = vsub.s32 0, %v6527
    %v6529 = vrot.slane %v6524, %v6528
    %6531 = vmatprep.subr.mxu0 0.0
    %6532 = vmatpush1.msra.mxu0 %v6508
    %6533 = vmatprep.subr.mxu0 0.0
    %6534 = vmatpush1.msra.mxu0 %v6509
    %6535 = vmatprep.subr.mxu0 0.0
    %6536 = vmatpush1.msra.mxu0 %v6510
    %6537 = vmatprep.subr.mxu0 0.0
    %6538 = vmatpush1.msra.mxu0 %v6511
    %6539 = vmatprep.subr.mxu0 0.0
    %6540 = vmatpush1.msra.mxu0 %v6512
    %6541 = vmatprep.subr.mxu0 0.0
    %6542 = vmatpush1.msra.mxu0 %v6513
    %6543 = vmatprep.subr.mxu0 0.0
    %6544 = vmatpush1.msra.mxu0 %v6514
    %6545 = vmatprep.subr.mxu0 0.0
    %6546 = vmatpush1.msra.mxu0 %v6515
    %6547 = vmatprep.subr.mxu0 0.0
    %6548 = vmatpush1.msra.mxu0 %v6516
    %6549 = vmatprep.subr.mxu0 0.0
    %6550 = vmatpush1.msra.mxu0 %v6517
    %6551 = vmatprep.subr.mxu0 0.0
    %6552 = vmatpush1.msra.mxu0 %v6518
    %6553 = vmatprep.subr.mxu0 0.0
    %6554 = vmatpush1.msra.mxu0 %v6519
    %6555 = vmatprep.subr.mxu0 0.0
    %6556 = vmatpush1.msra.mxu0 %v6520
    %6557 = vmatprep.subr.mxu0 0.0
    %6558 = vmatpush1.msra.mxu0 %v6521
    %6559 = vmatprep.subr.mxu0 0.0
    %6560 = vmatpush1.msra.mxu0 %v6522
    %6561 = vmatprep.subr.mxu0 0.0
    %6562 = vmatpush1.msra.mxu0 %v6523
    %6563 = vmatprep.subr.mxu0 0.0
    %6564 = vmatpush1.msra.mxu0 0.0
    %6565 = vmatprep.subr.mxu0 0.0
    %6566 = vmatpush1.msra.mxu0 0.0
    %6567 = vmatprep.subr.mxu0 0.0
    %6568 = vmatpush1.msra.mxu0 0.0
    %6569 = vmatprep.subr.mxu0 0.0
    %6570 = vmatpush1.msra.mxu0 0.0
    %6571 = vmatprep.subr.mxu0 0.0
    %6572 = vmatpush1.msra.mxu0 0.0
    %6573 = vmatprep.subr.mxu0 0.0
    %6574 = vmatpush1.msra.mxu0 0.0
    %6575 = vmatprep.subr.mxu0 0.0
    %6576 = vmatpush1.msra.mxu0 0.0
    %6577 = vmatprep.subr.mxu0 0.0
    %6578 = vmatpush1.msra.mxu0 0.0
    %6579 = vmatprep.subr.mxu0 0.0
    %6580 = vmatpush1.msra.mxu0 0.0
    %6581 = vmatprep.subr.mxu0 0.0
    %6582 = vmatpush1.msra.mxu0 0.0
    %6583 = vmatprep.subr.mxu0 0.0
    %6584 = vmatpush1.msra.mxu0 0.0
    %6585 = vmatprep.subr.mxu0 0.0
    %6586 = vmatpush1.msra.mxu0 0.0
    %6587 = vmatprep.subr.mxu0 0.0
    %6588 = vmatpush1.msra.mxu0 0.0
    %6589 = vmatprep.subr.mxu0 0.0
    %6590 = vmatpush1.msra.mxu0 0.0
    %6591 = vmatprep.subr.mxu0 0.0
    %6592 = vmatpush1.msra.mxu0 0.0
    %6593 = vmatprep.subr.mxu0 0.0
    %6594 = vmatpush1.msra.mxu0 0.0
    %6595 = vmatprep.mubr.f32.mxu0 0.0
    %6596 = vmatmul.mubr.f32.gmra.mrb[0].mxu0 %v6504
    %v6597 = vpop.f32.mrb[0].mxu0
    %v6598 = vadd.f32 %v6529, %v6597
    %v6599 = vpop.f32.mrb[0].mxu0
    %6600 = vmatprep.mubr.f32.mxu0 0.0
    %6601 = vmatmul.mubr.f32.gmra.mrb[0].mxu0 %v6505
    %v6602 = vpop.f32.mrb[0].mxu0
    %v6603 = vadd.f32 %v6529, %v6602
    %v6604 = vpop.f32.mrb[0].mxu0
    %6605 = vmatprep.mubr.f32.mxu0 0.0
    %6606 = vmatmul.mubr.f32.gmra.mrb[0].mxu0 %v6506
    %v6607 = vpop.f32.mrb[0].mxu0
    %v6608 = vadd.f32 %v6529, %v6607
    %v6609 = vpop.f32.mrb[0].mxu0
    %6610 = vmatprep.mubr.f32.mxu0 0.0
    %6611 = vmatmul.mubr.f32.gmra.mrb[0].mxu0 %v6507
    %v6612 = vpop.f32.mrb[0].mxu0
    %v6613 = vadd.f32 %v6529, %v6612
    %v6614 = vpop.f32.mrb[0].mxu0
    %6615 = vdwg.mxu0
    %v6616 = vxor.u32 %v6598, 2147483648
    %v6617 = vxor.u32 %v6603, 2147483648
    %v6618 = vxor.u32 %v6608, 2147483648
    %v6619 = vxor.u32 %v6613, 2147483648
    %v6620 = vmul.f32 %v6616, 1.442695
    %v6621 = vpow.pop %v6620
    %v6622 = vmul.f32 %v6617, 1.442695
    %v6623 = vpow.pop %v6622
    %v6624 = vmul.f32 %v6618, 1.442695
    %v6625 = vpow.pop %v6624
    %v6626 = vmul.f32 %v6619, 1.442695
    %v6627 = vpow.pop %v6626
    %v6628 = vadd.f32 %v6621, 1.0
    %v6629 = vadd.f32 %v6623, 1.0
    %v6630 = vadd.f32 %v6625, 1.0
    %v6631 = vadd.f32 %v6627, 1.0
    %v6632 = vrcp.pop %v6628
    %v6633 = vmul.f32 1.0, %v6632
    %v6634 = vrcp.pop %v6629
    %v6635 = vmul.f32 1.0, %v6634
    %v6636 = vrcp.pop %v6630
    %v6637 = vmul.f32 1.0, %v6636
    %v6638 = vrcp.pop %v6631
    %v6639 = vmul.f32 1.0, %v6638
    %6640 = vst [vmem:[#allocation11] sm:$0xff] %v6633
    %6641 = vst [vmem:[#allocation11 + $0x8] sm:$0xff] %v6635
    %6642 = vst [vmem:[#allocation11 + $0x10] sm:$0xff] %v6637
    %6643 = vst [vmem:[#allocation11 + $0x18] sm:$0xff] %v6639
    // Predicated region
    $region50: #{tpu_custom_call.1} parent=1 // pred_check
      _
    $region51: #{tpu_custom_call.1} parent=1 // pred_check_branch
      %6645 = sbr.rel (0) target = $region53
    $region52: #{tpu_custom_call.1} parent=1 // pred_region
      %s6647 = ssub.s32 512, 512
      %6648 = vsyncadd [#allocation4], %s6647
      %s6649 = sshll.u32 [#allocation11], 4
      %s6650 = int_to_ptr.vmem [resolvable:$true] %s6649
      %6655 = dma.vmem_to_hbm [thread:$0]  %s6650, 512, %s7, [#allocation4], 128, 128, 8
    $region53: #{tpu_custom_call.1} parent=1 // pred_fallthru
      _
    // Predicated region
    $region54: #{tpu_custom_call.1} parent=1 // pred_check
      _
    $region55: #{tpu_custom_call.1} parent=1 // pred_check_branch
      %6657 = sbr.rel (0) target = $region57
    $region56: #{tpu_custom_call.1} parent=1 // pred_region
      %6658 = dma.done [#allocation4], 512
    $region57: #{tpu_custom_call.1} parent=1 // pred_fallthru
      _
    %6659 = vsyncpa [#allocation3], 1
    %6660 = vsyncpa [#allocation6], 1
    %6661 = vsyncpa [#allocation9], 1
    %6662 = vsyncpa [#allocation4], 1

</llo_original>
